<compile_context>
chip_gen: v6e
topology: v6e:2x2x1
jax: 0.10.0
libtpu: 0.0.40
codegen_flags: <defaults>
</compile_context>

<pallas_src>
import functools

import jax
import jax.numpy as jnp
from jax.experimental import pallas as pl
from jax.experimental.pallas import tpu as pltpu


def _round_up(v: int, m: int) -> int:
    return ((v + m - 1) // m) * m


def _interp_matrix(out_size: int, in_size: int) -> jnp.ndarray:
    """(out_size, in_size) bilinear matrix, PyTorch align_corners=False."""
    scale = in_size / out_size
    o = jnp.arange(out_size, dtype=jnp.float32)
    src = (o + 0.5) * scale - 0.5
    src = jnp.maximum(src, 0.0)                      # PyTorch clamps negative coords
    i0f = jnp.floor(src)
    frac = src - i0f
    i0 = jnp.minimum(i0f.astype(jnp.int32), in_size - 1)
    i1 = jnp.minimum(i0 + 1, in_size - 1)
    eye = jnp.eye(in_size, dtype=jnp.float32)
    return eye[i0] * (1.0 - frac)[:, None] + eye[i1] * frac[:, None]


def _task_output_kernel(x_ref, w_ref, b_ref, bt_ref, o_ref, *, H, W, KH, Cout):
    """Fused 3x3 conv (+bias) + bilinear resize for one batch element.

    x_ref : ((H+KH-1)*W, KW*Cin)  bf16  row-flattened padded input, KW shifts
                                        concatenated along the channel axis
    w_ref : (KH, KW*Cin, Cp)      bf16  conv weights, dy-major, Cout padded
    b_ref : (1, Cp)               f32   bias (padded)
    bt_ref: (H*W, Ho*Wo)          bf16  kron(A_h, A_w)^T  (bilinear resize)
    o_ref : (Cout, Ho*Wo)         f32   output, NCHW with flattened spatial
    """
    cp = w_ref.shape[-1]

    # 3x3 conv as KH=3 shifted matmuls with the KW taps folded into K=KW*Cin.
    # Each load starts at dy*W (a multiple of the sublane tile) so it is fully
    # aligned; f32 accumulation on the MXU.
    acc = jnp.zeros((H * W, cp), jnp.float32)
    for dy in range(KH):
        patch = x_ref[pl.ds(dy * W, H * W), :]            # (H*W, KW*Cin) bf16
        acc += jnp.dot(patch, w_ref[dy],
                       preferred_element_type=jnp.float32)
    acc += b_ref[...]                                     # (1, Cp) broadcast

    # Epilogue: bf16 aligned transpose (half the XLU traffic of f32), slice to
    # the Cout real channels, then ONE bf16 matmul applies the whole bilinear
    # resize and lands the result in NCHW layout with a lane-dense last dim.
    acc_t = acc.astype(jnp.bfloat16).T                    # (Cp, H*W) bf16
    out = jnp.dot(acc_t[:Cout, :], bt_ref[...],
                  preferred_element_type=jnp.float32)     # (Cout, Ho*Wo) f32
    o_ref[...] = out


def task_output_layer(x, weight, bias, *, input_size):
    """Pallas forward of TaskOutputLayer.

    x:      (N, Cin, H, W)      f32  NCHW
    weight: (Cout, Cin, KH, KW) f32  (KH = KW = 3, padding = 1)
    bias:   (Cout,)             f32
    returns (N, Cout, Ho, Wo)   f32, (Ho, Wo) = input_size
    """
    n, cin, h, w = x.shape
    cout, _, kh, kw = weight.shape
    ho, wo = input_size
    cp = _round_up(cout, 128)            # lane-dense channel dim inside the kernel
    hp = h + kh - 1                      # padded height ('same' conv)

    # ---- one-time layout work (XLA) -------------------------------------
    # NCHW -> NHWC, zero-pad, cast to bf16 for the MXU.
    x_nhwc = jnp.transpose(x, (0, 2, 3, 1))
    x_pad = jnp.pad(
        x_nhwc, ((0, 0), (kh // 2, kh // 2), (kw // 2, kw // 2), (0, 0))
    ).astype(jnp.bfloat16)
    # Concatenate the KW horizontal shifts along channels (dx-major) and
    # flatten (Hp, W) -> Hp*W: every in-kernel tap load is then a 2-D,
    # tile-aligned slice and the conv contraction depth is KW*Cin = 768.
    x_fused = jnp.concatenate(
        [x_pad[:, :, dx:dx + w, :] for dx in range(kw)], axis=-1)
    x_fused = x_fused.reshape(n, hp * w, kw * cin)         # (N, Hp*W, KW*Cin)

    # (Cout, Cin, KH, KW) -> (KH, KW*Cin, Cp): dy-major taps, dx-major fused K
    # (matching x_fused), zero-padded output channels.
    w_taps = jnp.transpose(weight, (2, 3, 1, 0)).reshape(kh, kw * cin, cout)
    w_taps = jnp.pad(w_taps, ((0, 0), (0, 0), (0, cp - cout))).astype(jnp.bfloat16)
    b_pad = jnp.pad(bias, (0, cp - cout)).reshape(1, cp).astype(jnp.float32)

    # Bilinear resize as one bf16 matrix: BT[h*W+w, ho*Wo+wo] = A_h[ho,h]*A_w[wo,w].
    a_h = _interp_matrix(ho, h)
    a_w = _interp_matrix(wo, w)
    bt = jnp.einsum("oh,pw->hwop", a_h, a_w).reshape(h * w, ho * wo)
    bt = bt.astype(jnp.bfloat16)

    # ---- fused kernel -----------------------------------------------------
    kernel = functools.partial(_task_output_kernel, H=h, W=w, KH=kh, Cout=cout)
    out_flat = pl.pallas_call(
        kernel,
        out_shape=jax.ShapeDtypeStruct((n, cout, ho * wo), jnp.float32),
        grid_spec=pltpu.PrefetchScalarGridSpec(
            num_scalar_prefetch=0,
            grid=(n,),
            in_specs=[
                pl.BlockSpec((None, hp * w, kw * cin), lambda i: (i, 0, 0)),
                pl.BlockSpec((kh, kw * cin, cp), lambda i: (0, 0, 0)),
                pl.BlockSpec((1, cp), lambda i: (0, 0)),
                pl.BlockSpec((h * w, ho * wo), lambda i: (0, 0)),
            ],
            out_specs=pl.BlockSpec((None, cout, ho * wo), lambda i: (i, 0, 0)),
        ),
        compiler_params=pltpu.CompilerParams(
            dimension_semantics=("parallel",),   # batch across v7x's 2 TCs
            vmem_limit_bytes=32 * 1024 * 1024,
        ),
    )(x_fused, w_taps, b_pad, bt)

    # Free metadata reshape: (N, Cout, Ho*Wo) -> (N, Cout, Ho, Wo), already NCHW.
    return out_flat.reshape(n, cout, ho, wo)


def _reference(x, weight, bias, input_size):
    """Pure-JAX reference (bf16-rounded conv inputs to match kernel precision)."""
    conv = jax.lax.conv_general_dilated(
        x.astype(jnp.bfloat16), weight.astype(jnp.bfloat16),
        window_strides=(1, 1), padding=((1, 1), (1, 1)),
        dimension_numbers=("NCHW", "OIHW", "NCHW"),
        preferred_element_type=jnp.float32)
    conv = conv + bias[None, :, None, None]
    a_h = _interp_matrix(input_size[0], x.shape[2])
    a_w = _interp_matrix(input_size[1], x.shape[3])
    return jnp.einsum("oh,pw,nchw->ncop", a_h, a_w, conv,
                      precision=jax.lax.Precision.HIGHEST)


if __name__ == "__main__":
    key = jax.random.PRNGKey(0)
    k_x, k_w, k_b = jax.random.split(key, 3)

    # Small shapes consistent with the module: Cin=256 fixed by the spec,
    # output_channels=20 (segmentation head), 16x16 features -> 64x64 output.
    N, CIN, H, W = 2, 256, 16, 16
    COUT = 20
    INPUT_SIZE = (64, 64)

    x = jax.random.normal(k_x, (N, CIN, H, W), jnp.float32)
    weight = jax.random.normal(k_w, (COUT, CIN, 3, 3), jnp.float32) * (1.0 / (CIN * 9)) ** 0.5
    bias = jax.random.normal(k_b, (COUT,), jnp.float32) * 0.1

    fwd = jax.jit(functools.partial(task_output_layer, input_size=INPUT_SIZE))
    out = jax.block_until_ready(fwd(x, weight, bias))

    assert out.shape == (N, COUT, INPUT_SIZE[0], INPUT_SIZE[1]), out.shape
    assert out.dtype == jnp.float32
    assert bool(jnp.all(jnp.isfinite(out)))

    ref = _reference(x, weight, bias, INPUT_SIZE)
    max_err = float(jnp.max(jnp.abs(out - ref)))
    assert max_err < 1e-1, f"max abs error vs reference: {max_err}"

    print("KERNEL_OK")
</pallas_src>

<mosaic_0001>
module attributes {stable_mosaic.version = 11 : i64} {
  func.func @_task_output_kernel(%arg0: i32, %arg1: memref<1x288x768xbf16, #tpu.memory_space<vmem>>, %arg2: memref<3x768x128xbf16, #tpu.memory_space<vmem>>, %arg3: memref<1x128xf32, #tpu.memory_space<vmem>>, %arg4: memref<256x4096xbf16, #tpu.memory_space<vmem>>, %arg5: memref<1x20x4096xf32, #tpu.memory_space<vmem>>) attributes {dimension_semantics = [#tpu.dimension_semantics<parallel>], iteration_bounds = array<i64: 2>, scalar_prefetch = 0 : i64, scratch_operands = 0 : i64, tpu.core_type = #tpu.core_type<tc>, window_params = [{transform_indices = @transform_0, window_bounds = array<i64: 1, 288, 768>}, {pipeline_mode = #tpu.pipeline_mode<synchronous>, transform_indices = @transform_1, window_bounds = array<i64: 3, 768, 128>}, {pipeline_mode = #tpu.pipeline_mode<synchronous>, transform_indices = @transform_2, window_bounds = array<i64: 1, 128>}, {pipeline_mode = #tpu.pipeline_mode<synchronous>, transform_indices = @transform_3, window_bounds = array<i64: 256, 4096>}, {transform_indices = @transform_4, window_bounds = array<i64: 1, 20, 4096>}]} {
    %cst = arith.constant 0.000000e+00 : f32
    %0 = vector.broadcast %cst : f32 to vector<256x128xf32>
    %c0 = arith.constant 0 : index
    %c0_0 = arith.constant 0 : index
    %c0_1 = arith.constant 0 : index
    %1 = vector.load %arg1[%c0, %c0_0, %c0_1] : memref<1x288x768xbf16, #tpu.memory_space<vmem>>, vector<1x256x768xbf16>
    %2 = vector.shape_cast %1 : vector<1x256x768xbf16> to vector<256x768xbf16>
    %c0_2 = arith.constant 0 : index
    %c0_3 = arith.constant 0 : index
    %c0_4 = arith.constant 0 : index
    %3 = vector.load %arg2[%c0_2, %c0_3, %c0_4] : memref<3x768x128xbf16, #tpu.memory_space<vmem>>, vector<1x768x128xbf16>
    %4 = vector.shape_cast %3 : vector<1x768x128xbf16> to vector<768x128xbf16>
    %cst_5 = arith.constant dense<0.000000e+00> : vector<256x128xf32>
    %5 = tpu.matmul %2, %4, %cst_5 {dimension_numbers = #tpu.dot_dimension_numbers<[1], [0], [0], [1], [0, 0, 1, 1], [], []>} : vector<256x768xbf16>, vector<768x128xbf16>, vector<256x128xf32> -> vector<256x128xf32>
    %6 = arith.addf %0, %5 : vector<256x128xf32>
    %c0_6 = arith.constant 0 : index
    %c16 = arith.constant 16 : index
    %c0_7 = arith.constant 0 : index
    %7 = vector.load %arg1[%c0_6, %c16, %c0_7] : memref<1x288x768xbf16, #tpu.memory_space<vmem>>, vector<1x256x768xbf16>
    %8 = vector.shape_cast %7 : vector<1x256x768xbf16> to vector<256x768xbf16>
    %c1 = arith.constant 1 : index
    %c0_8 = arith.constant 0 : index
    %c0_9 = arith.constant 0 : index
    %9 = vector.load %arg2[%c1, %c0_8, %c0_9] : memref<3x768x128xbf16, #tpu.memory_space<vmem>>, vector<1x768x128xbf16>
    %10 = vector.shape_cast %9 : vector<1x768x128xbf16> to vector<768x128xbf16>
    %cst_10 = arith.constant dense<0.000000e+00> : vector<256x128xf32>
    %11 = tpu.matmul %8, %10, %cst_10 {dimension_numbers = #tpu.dot_dimension_numbers<[1], [0], [0], [1], [0, 0, 1, 1], [], []>} : vector<256x768xbf16>, vector<768x128xbf16>, vector<256x128xf32> -> vector<256x128xf32>
    %12 = arith.addf %6, %11 : vector<256x128xf32>
    %c0_11 = arith.constant 0 : index
    %c32 = arith.constant 32 : index
    %c0_12 = arith.constant 0 : index
    %13 = vector.load %arg1[%c0_11, %c32, %c0_12] : memref<1x288x768xbf16, #tpu.memory_space<vmem>>, vector<1x256x768xbf16>
    %14 = vector.shape_cast %13 : vector<1x256x768xbf16> to vector<256x768xbf16>
    %c2 = arith.constant 2 : index
    %c0_13 = arith.constant 0 : index
    %c0_14 = arith.constant 0 : index
    %15 = vector.load %arg2[%c2, %c0_13, %c0_14] : memref<3x768x128xbf16, #tpu.memory_space<vmem>>, vector<1x768x128xbf16>
    %16 = vector.shape_cast %15 : vector<1x768x128xbf16> to vector<768x128xbf16>
    %cst_15 = arith.constant dense<0.000000e+00> : vector<256x128xf32>
    %17 = tpu.matmul %14, %16, %cst_15 {dimension_numbers = #tpu.dot_dimension_numbers<[1], [0], [0], [1], [0, 0, 1, 1], [], []>} : vector<256x768xbf16>, vector<768x128xbf16>, vector<256x128xf32> -> vector<256x128xf32>
    %18 = arith.addf %12, %17 : vector<256x128xf32>
    %c0_16 = arith.constant 0 : index
    %c0_17 = arith.constant 0 : index
    %19 = vector.load %arg3[%c0_16, %c0_17] : memref<1x128xf32, #tpu.memory_space<vmem>>, vector<1x128xf32>
    %20 = vector.broadcast %19 : vector<1x128xf32> to vector<256x128xf32>
    %21 = arith.addf %18, %20 : vector<256x128xf32>
    %22 = arith.truncf %21 : vector<256x128xf32> to vector<256x128xbf16>
    %23 = tpu.transpose %22, [1, 0] : vector<256x128xbf16> -> vector<128x256xbf16>
    %24 = vector.extract_strided_slice %23 {offsets = [0, 0], sizes = [20, 256], strides = [1, 1]} : vector<128x256xbf16> to vector<20x256xbf16>
    %c0_18 = arith.constant 0 : index
    %c0_19 = arith.constant 0 : index
    %25 = vector.load %arg4[%c0_18, %c0_19] : memref<256x4096xbf16, #tpu.memory_space<vmem>>, vector<256x4096xbf16>
    %cst_20 = arith.constant dense<0.000000e+00> : vector<20x4096xf32>
    %26 = tpu.matmul %24, %25, %cst_20 {dimension_numbers = #tpu.dot_dimension_numbers<[1], [0], [0], [1], [0, 0, 1, 1], [], []>} : vector<20x256xbf16>, vector<256x4096xbf16>, vector<20x4096xf32> -> vector<20x4096xf32>
    %c0_21 = arith.constant 0 : index
    %c0_22 = arith.constant 0 : index
    %c0_23 = arith.constant 0 : index
    %27 = vector.load %arg5[%c0_21, %c0_22, %c0_23] : memref<1x20x4096xf32, #tpu.memory_space<vmem>>, vector<1x20x4096xf32>
    %28 = vector.shape_cast %27 : vector<1x20x4096xf32> to vector<20x4096xf32>
    %29 = vector.shape_cast %26 : vector<20x4096xf32> to vector<1x20x4096xf32>
    tpu.vector_store %arg5[%c0_21, %c0_22, %c0_23], %29 {strides = array<i32>} : memref<1x20x4096xf32, #tpu.memory_space<vmem>>, vector<1x20x4096xf32>,
    return
  }
  func.func @transform_0(%arg0: i32) -> (i32, i32, i32) {
    %c0_i32 = arith.constant 0 : i32
    %c0_i32_0 = arith.constant 0 : i32
    %c0_i32_1 = arith.constant 0 : i32
    return %arg0, %c0_i32, %c0_i32_0 : i32, i32, i32
  }
  func.func @transform_1(%arg0: i32) -> (i32, i32, i32) {
    %c0_i32 = arith.constant 0 : i32
    %c0_i32_0 = arith.constant 0 : i32
    %c0_i32_1 = arith.constant 0 : i32
    %c0_i32_2 = arith.constant 0 : i32
    return %c0_i32, %c0_i32_0, %c0_i32_1 : i32, i32, i32
  }
  func.func @transform_2(%arg0: i32) -> (i32, i32) {
    %c0_i32 = arith.constant 0 : i32
    %c0_i32_0 = arith.constant 0 : i32
    %c0_i32_1 = arith.constant 0 : i32
    return %c0_i32, %c0_i32_0 : i32, i32
  }
  func.func @transform_3(%arg0: i32) -> (i32, i32) {
    %c0_i32 = arith.constant 0 : i32
    %c0_i32_0 = arith.constant 0 : i32
    %c0_i32_1 = arith.constant 0 : i32
    return %c0_i32, %c0_i32_0 : i32, i32
  }
  func.func @transform_4(%arg0: i32) -> (i32, i32, i32) {
    %c0_i32 = arith.constant 0 : i32
    %c0_i32_0 = arith.constant 0 : i32
    %c0_i32_1 = arith.constant 0 : i32
    return %arg0, %c0_i32, %c0_i32_0 : i32, i32, i32
  }
}

</mosaic_0001>

<llo_original>
// kernel: task_output_layer.1
$region0: #{task_output_layer.1}
  #allocation0 [shape = 'u32[]', space=smem, size = 0x4, offset = 0x4, fixed_abs, tag = 'smem constant byte address 0x4 - core index']
  #allocation1 [shape = 'u32[144,128]{1,0:T(1,128)}', space=vmem, size = 0x12000, scoped, tag = 'internal scratch']
  %s0 = inlined_call_operand.vmem [shape: bf16[2,288,768], index: 0, kind: input, shape index: {}]
  %s1 = inlined_call_operand.vmem [shape: bf16[3,768,128], index: 1, kind: input, shape index: {}]
  %s2 = inlined_call_operand.vmem [shape: f32[1,128], index: 2, kind: input, shape index: {}]
  %s3 = inlined_call_operand.vmem [shape: bf16[256,4096], index: 3, kind: input, shape index: {}]
  %s4 = inlined_call_operand.vmem [shape: f32[2,20,4096], index: 4, kind: output, shape index: {}]
  %s5 = sld [smem:[#allocation0]]
  $region49: #{task_output_layer.1} parent=0
    _
  %s7 = ssub.s32 1, %s5
  %s8 = scalar_select 0, %s7, %s5
  loop: start=0, step=1, limit=4
  $region2: #{task_output_layer.1} parent=0 // loop_pre_header
    _
  $region3: #{task_output_layer.1} parent=0 // loop_header
    %s10 = sphi 0, %s14
    %p11 = scmp.ge.s32.totalorder %s10, 4
    %s20 = sphi 0, %s22
    %s23 = sphi 0, %s20
    %s24 = sphi 0, %s23
    %s40 = sphi 0, %s24
    %s44 = sphi 0, %s44
    %s46 = sphi 0, %s44
    %s47 = sphi 0, %s46
    %s61 = sphi 0, %s47
    %s65 = sphi 0, %s65
    %s67 = sphi 0, %s65
    %s68 = sphi 0, %s67
    %s82 = sphi 0, %s68
    %s86 = sphi 0, %s86
    %s88 = sphi 0, %s86
    %s89 = sphi 0, %s88
    %s103 = sphi 0, %s89
    %s109 = sphi 0, %s111
    %s112 = sphi 0, %s109
    %s113 = sphi 0, %s112
    %s129 = sphi 0, %s113
  $region4: #{task_output_layer.1} parent=0 // loop_header_branch
    %13 = sbr.rel (%p11) target = $region8
  $region5: #{task_output_layer.1} parent=0 // loop_body
    %s15 = ssub.s32 %s10, 1
    %s16 = ssub.s32 %s10, 2
    %s17 = sadd.s32 %s10, 1
    %s18 = ssub.s32 %s10, %s17
    %p19 = scmp.eq.s32.totalorder %s18, 0
    %s21 = sadd.s32 %s20, 1
    %s22 = scalar_select %p19, %s20, %s21
    %p25 = pneg %p19
    %p26 = scmp.eq.s32.totalorder %s10, 1
    %p27 = por %p25, %p26
    %p28 = scmp.ne.s32.totalorder %s20, %s23
    %p29 = scmp.eq.s32.totalorder %s10, 0
    %p30 = por %p28, %p29
    %p31 = scmp.ne.s32.totalorder %s20, %s23
    %p32 = scmp.eq.s32.totalorder %s15, 1
    %p33 = por %p31, %p32
    %p34 = scmp.ne.s32.totalorder %s23, %s24
    %p35 = scmp.eq.s32.totalorder %s15, 0
    %p36 = por %p34, %p35
    %p37 = scmp.ne.s32.totalorder %s23, %s24
    %p38 = scmp.eq.s32.totalorder %s16, 1
    %p39 = por %p37, %p38
    %p41 = scmp.ne.s32.totalorder %s24, %s40
    %p42 = scmp.eq.s32.totalorder %s16, 0
    %p43 = por %p41, %p42
    %s45 = sadd.s32 %s44, 1
    %p48 = scmp.eq.s32.totalorder %s10, 1
    %p49 = scmp.ne.s32.totalorder %s44, %s46
    %p50 = scmp.eq.s32.totalorder %s10, 0
    %p51 = por %p49, %p50
    %p52 = scmp.ne.s32.totalorder %s44, %s46
    %p53 = scmp.eq.s32.totalorder %s15, 1
    %p54 = por %p52, %p53
    %p55 = scmp.ne.s32.totalorder %s46, %s47
    %p56 = scmp.eq.s32.totalorder %s15, 0
    %p57 = por %p55, %p56
    %p58 = scmp.ne.s32.totalorder %s46, %s47
    %p59 = scmp.eq.s32.totalorder %s16, 1
    %p60 = por %p58, %p59
    %p62 = scmp.ne.s32.totalorder %s47, %s61
    %p63 = scmp.eq.s32.totalorder %s16, 0
    %p64 = por %p62, %p63
    %s66 = sadd.s32 %s65, 1
    %p69 = scmp.eq.s32.totalorder %s10, 1
    %p70 = scmp.ne.s32.totalorder %s65, %s67
    %p71 = scmp.eq.s32.totalorder %s10, 0
    %p72 = por %p70, %p71
    %p73 = scmp.ne.s32.totalorder %s65, %s67
    %p74 = scmp.eq.s32.totalorder %s15, 1
    %p75 = por %p73, %p74
    %p76 = scmp.ne.s32.totalorder %s67, %s68
    %p77 = scmp.eq.s32.totalorder %s15, 0
    %p78 = por %p76, %p77
    %p79 = scmp.ne.s32.totalorder %s67, %s68
    %p80 = scmp.eq.s32.totalorder %s16, 1
    %p81 = por %p79, %p80
    %p83 = scmp.ne.s32.totalorder %s68, %s82
    %p84 = scmp.eq.s32.totalorder %s16, 0
    %p85 = por %p83, %p84
    %s87 = sadd.s32 %s86, 1
    %p90 = scmp.eq.s32.totalorder %s10, 1
    %p91 = scmp.ne.s32.totalorder %s86, %s88
    %p92 = scmp.eq.s32.totalorder %s10, 0
    %p93 = por %p91, %p92
    %p94 = scmp.ne.s32.totalorder %s86, %s88
    %p95 = scmp.eq.s32.totalorder %s15, 1
    %p96 = por %p94, %p95
    %p97 = scmp.ne.s32.totalorder %s88, %s89
    %p98 = scmp.eq.s32.totalorder %s15, 0
    %p99 = por %p97, %p98
    %p100 = scmp.ne.s32.totalorder %s88, %s89
    %p101 = scmp.eq.s32.totalorder %s16, 1
    %p102 = por %p100, %p101
    %p104 = scmp.ne.s32.totalorder %s89, %s103
    %p105 = scmp.eq.s32.totalorder %s16, 0
    %p106 = por %p104, %p105
    %s107 = ssub.s32 %s10, %s17
    %p108 = scmp.eq.s32.totalorder %s107, 0
    %s110 = sadd.s32 %s109, 1
    %s111 = scalar_select %p108, %s109, %s110
    %p114 = pneg %p108
    %p115 = scmp.eq.s32.totalorder %s10, 1
    %p116 = por %p114, %p115
    %p117 = scmp.ne.s32.totalorder %s109, %s112
    %p118 = scmp.eq.s32.totalorder %s10, 0
    %p119 = por %p117, %p118
    %p120 = scmp.ne.s32.totalorder %s109, %s112
    %p121 = scmp.eq.s32.totalorder %s15, 1
    %p122 = por %p120, %p121
    %p123 = scmp.ne.s32.totalorder %s112, %s113
    %p124 = scmp.eq.s32.totalorder %s15, 0
    %p125 = por %p123, %p124
    %p126 = scmp.ne.s32.totalorder %s112, %s113
    %p127 = scmp.eq.s32.totalorder %s16, 1
    %p128 = por %p126, %p127
    %p130 = scmp.ne.s32.totalorder %s113, %s129
    %p131 = scmp.eq.s32.totalorder %s16, 0
    %p132 = por %p130, %p131
    %p133 = scmp.le.s32.totalorder 1, %s10
    %p134 = scmp.lt.s32.totalorder %s10, 3
    %p135 = pnand %p133, %p134
    %p136 = pneg %p135
    // Predicated region
    $region9: #{task_output_layer.1} parent=5 // pred_check
      _
    $region10: #{task_output_layer.1} parent=5 // pred_check_branch
      %138 = sbr.rel (%p135) target = $region12
    $region11: #{task_output_layer.1} parent=5 // pred_region
      %s139 = ssub.s32 %s10, 1
      // Predicated region
      $region13: #{task_output_layer.1} parent=11 // pred_check
        %p140 = pneg %p57
      $region14: #{task_output_layer.1} parent=11 // pred_check_branch
        %142 = sbr.rel (%p140) target = $region16
      $region15: #{task_output_layer.1} parent=11 // pred_region
        _
      $region16: #{task_output_layer.1} parent=11 // pred_fallthru
        _
      // Predicated region
      $region17: #{task_output_layer.1} parent=11 // pred_check
        %p143 = pneg %p78
      $region18: #{task_output_layer.1} parent=11 // pred_check_branch
        %145 = sbr.rel (%p143) target = $region20
      $region19: #{task_output_layer.1} parent=11 // pred_region
        _
      $region20: #{task_output_layer.1} parent=11 // pred_fallthru
        _
      // Predicated region
      $region21: #{task_output_layer.1} parent=11 // pred_check
        %p146 = pneg %p99
      $region22: #{task_output_layer.1} parent=11 // pred_check_branch
        %148 = sbr.rel (%p146) target = $region24
      $region23: #{task_output_layer.1} parent=11 // pred_region
        _
      $region24: #{task_output_layer.1} parent=11 // pred_fallthru
        _
    $region12: #{task_output_layer.1} parent=5 // pred_fallthru
      _
    %p149 = scmp.lt.s32.totalorder %s10, 2
    // Predicated region
    $region25: #{task_output_layer.1} parent=5 // pred_check
      %p150 = pneg %p149
    $region26: #{task_output_layer.1} parent=5 // pred_check_branch
      %152 = sbr.rel (%p150) target = $region28
    $region27: #{task_output_layer.1} parent=5 // pred_region
      // Predicated region
      $region29: #{task_output_layer.1} parent=27 // pred_check
        %p153 = pneg %p30
      $region30: #{task_output_layer.1} parent=27 // pred_check_branch
        %155 = sbr.rel (%p153) target = $region32
      $region31: #{task_output_layer.1} parent=27 // pred_region
        %p156 = scmp.lt.s32.totalorder %s10, 1
        %s157 = scalar_select %p156, %s10, 1
        %s158 = smul.addr %s157, 216
        %s159 = smul.addr %s158, 4
        %s160 = scalar_lea.vmem %s0, %s159
      $region32: #{task_output_layer.1} parent=27 // pred_fallthru
        _
    $region28: #{task_output_layer.1} parent=5 // pred_fallthru
      _
    %p161 = scmp.le.s32.totalorder 1, %s10
    %p162 = scmp.lt.s32.totalorder %s10, 3
    %p163 = pnand %p161, %p162
    %p164 = pneg %p163
    // Predicated region
    $region33: #{task_output_layer.1} parent=5 // pred_check
      _
    $region34: #{task_output_layer.1} parent=5 // pred_check_branch
      %166 = sbr.rel (%p163) target = $region36
    $region35: #{task_output_layer.1} parent=5 // pred_region
      %s167 = ssub.s32 %s10, 1
      %p168 = scmp.lt.s32.totalorder %s15, 1
      %s169 = scalar_select %p168, %s15, 1
      %s170 = smul.addr %s169, 216
      %s171 = smul.addr %s170, 4
      %s172 = scalar_lea.vmem %s0, %s171
      %p173 = pneg %p36
      %p174 = pneg %p33
      %p175 = pneg %p57
      %p176 = pneg %p54
      %p177 = pneg %p78
      %p178 = pneg %p75
      %p179 = pneg %p99
      %p180 = pneg %p96
      %p181 = pneg %p125
      %p182 = pneg %p122
      %p183 = scmp.lt.s32.totalorder %s15, 1
      %s184 = scalar_select %p183, %s15, 1
      %s185 = smul.addr %s184, 96
      %s186 = smul.addr %s185, 8
      %s187 = scalar_lea.vmem %s4, %s186
      %p188 = scmp.lt.s32.totalorder %s15, 1
      %s189 = scalar_select %p188, %s15, 1
      %s190 = smul.addr %s189, 216
      %s191 = smul.addr %s190, 4
      %s192 = scalar_lea.vmem %s0, %s191
      %p193 = scmp.lt.s32.totalorder %s15, 1
      %s194 = scalar_select %p193, %s15, 1
      %s195 = smul.addr %s194, 96
      %s196 = smul.addr %s195, 8
      %s197 = scalar_lea.vmem %s4, %s196
      %v199 = vld [vmem:[%s192] sm:$0xff]
      %v200 = vld [vmem:[%s192 + $0x8] sm:$0xff]
      %v201 = vld [vmem:[%s192 + $0x10] sm:$0xff]
      %v202 = vld [vmem:[%s192 + $0x18] sm:$0xff]
      %v203 = vld [vmem:[%s192 + $0x20] sm:$0xff]
      %v204 = vld [vmem:[%s192 + $0x28] sm:$0xff]
      %v205 = vld [vmem:[%s192 + $0x30] sm:$0xff]
      %v206 = vld [vmem:[%s192 + $0x38] sm:$0xff]
      %v207 = vld [vmem:[%s192 + $0x40] sm:$0xff]
      %v208 = vld [vmem:[%s192 + $0x48] sm:$0xff]
      %v209 = vld [vmem:[%s192 + $0x50] sm:$0xff]
      %v210 = vld [vmem:[%s192 + $0x58] sm:$0xff]
      %v211 = vld [vmem:[%s192 + $0x60] sm:$0xff]
      %v212 = vld [vmem:[%s192 + $0x68] sm:$0xff]
      %v213 = vld [vmem:[%s192 + $0x70] sm:$0xff]
      %v214 = vld [vmem:[%s192 + $0x78] sm:$0xff]
      %v215 = vld [vmem:[%s192 + $0x80] sm:$0xff]
      %v216 = vld [vmem:[%s192 + $0x88] sm:$0xff]
      %v217 = vld [vmem:[%s192 + $0x90] sm:$0xff]
      %v218 = vld [vmem:[%s192 + $0x98] sm:$0xff]
      %v219 = vld [vmem:[%s192 + $0xa0] sm:$0xff]
      %v220 = vld [vmem:[%s192 + $0xa8] sm:$0xff]
      %v221 = vld [vmem:[%s192 + $0xb0] sm:$0xff]
      %v222 = vld [vmem:[%s192 + $0xb8] sm:$0xff]
      %v223 = vld [vmem:[%s192 + $0xc0] sm:$0xff]
      %v224 = vld [vmem:[%s192 + $0xc8] sm:$0xff]
      %v225 = vld [vmem:[%s192 + $0xd0] sm:$0xff]
      %v226 = vld [vmem:[%s192 + $0xd8] sm:$0xff]
      %v227 = vld [vmem:[%s192 + $0xe0] sm:$0xff]
      %v228 = vld [vmem:[%s192 + $0xe8] sm:$0xff]
      %v229 = vld [vmem:[%s192 + $0xf0] sm:$0xff]
      %v230 = vld [vmem:[%s192 + $0xf8] sm:$0xff]
      %v231 = vld [vmem:[%s192 + $0x100] sm:$0xff]
      %v232 = vld [vmem:[%s192 + $0x108] sm:$0xff]
      %v233 = vld [vmem:[%s192 + $0x110] sm:$0xff]
      %v234 = vld [vmem:[%s192 + $0x118] sm:$0xff]
      %v235 = vld [vmem:[%s192 + $0x120] sm:$0xff]
      %v236 = vld [vmem:[%s192 + $0x128] sm:$0xff]
      %v237 = vld [vmem:[%s192 + $0x130] sm:$0xff]
      %v238 = vld [vmem:[%s192 + $0x138] sm:$0xff]
      %v239 = vld [vmem:[%s192 + $0x140] sm:$0xff]
      %v240 = vld [vmem:[%s192 + $0x148] sm:$0xff]
      %v241 = vld [vmem:[%s192 + $0x150] sm:$0xff]
      %v242 = vld [vmem:[%s192 + $0x158] sm:$0xff]
      %v243 = vld [vmem:[%s192 + $0x160] sm:$0xff]
      %v244 = vld [vmem:[%s192 + $0x168] sm:$0xff]
      %v245 = vld [vmem:[%s192 + $0x170] sm:$0xff]
      %v246 = vld [vmem:[%s192 + $0x178] sm:$0xff]
      %v247 = vld [vmem:[%s192 + $0x180] sm:$0xff]
      %v248 = vld [vmem:[%s192 + $0x188] sm:$0xff]
      %v249 = vld [vmem:[%s192 + $0x190] sm:$0xff]
      %v250 = vld [vmem:[%s192 + $0x198] sm:$0xff]
      %v251 = vld [vmem:[%s192 + $0x1a0] sm:$0xff]
      %v252 = vld [vmem:[%s192 + $0x1a8] sm:$0xff]
      %v253 = vld [vmem:[%s192 + $0x1b0] sm:$0xff]
      %v254 = vld [vmem:[%s192 + $0x1b8] sm:$0xff]
      %v255 = vld [vmem:[%s192 + $0x1c0] sm:$0xff]
      %v256 = vld [vmem:[%s192 + $0x1c8] sm:$0xff]
      %v257 = vld [vmem:[%s192 + $0x1d0] sm:$0xff]
      %v258 = vld [vmem:[%s192 + $0x1d8] sm:$0xff]
      %v259 = vld [vmem:[%s192 + $0x1e0] sm:$0xff]
      %v260 = vld [vmem:[%s192 + $0x1e8] sm:$0xff]
      %v261 = vld [vmem:[%s192 + $0x1f0] sm:$0xff]
      %v262 = vld [vmem:[%s192 + $0x1f8] sm:$0xff]
      %v263 = vld [vmem:[%s192 + $0x200] sm:$0xff]
      %v264 = vld [vmem:[%s192 + $0x208] sm:$0xff]
      %v265 = vld [vmem:[%s192 + $0x210] sm:$0xff]
      %v266 = vld [vmem:[%s192 + $0x218] sm:$0xff]
      %v267 = vld [vmem:[%s192 + $0x220] sm:$0xff]
      %v268 = vld [vmem:[%s192 + $0x228] sm:$0xff]
      %v269 = vld [vmem:[%s192 + $0x230] sm:$0xff]
      %v270 = vld [vmem:[%s192 + $0x238] sm:$0xff]
      %v271 = vld [vmem:[%s192 + $0x240] sm:$0xff]
      %v272 = vld [vmem:[%s192 + $0x248] sm:$0xff]
      %v273 = vld [vmem:[%s192 + $0x250] sm:$0xff]
      %v274 = vld [vmem:[%s192 + $0x258] sm:$0xff]
      %v275 = vld [vmem:[%s192 + $0x260] sm:$0xff]
      %v276 = vld [vmem:[%s192 + $0x268] sm:$0xff]
      %v277 = vld [vmem:[%s192 + $0x270] sm:$0xff]
      %v278 = vld [vmem:[%s192 + $0x278] sm:$0xff]
      %v279 = vld [vmem:[%s192 + $0x280] sm:$0xff]
      %v280 = vld [vmem:[%s192 + $0x288] sm:$0xff]
      %v281 = vld [vmem:[%s192 + $0x290] sm:$0xff]
      %v282 = vld [vmem:[%s192 + $0x298] sm:$0xff]
      %v283 = vld [vmem:[%s192 + $0x2a0] sm:$0xff]
      %v284 = vld [vmem:[%s192 + $0x2a8] sm:$0xff]
      %v285 = vld [vmem:[%s192 + $0x2b0] sm:$0xff]
      %v286 = vld [vmem:[%s192 + $0x2b8] sm:$0xff]
      %v287 = vld [vmem:[%s192 + $0x2c0] sm:$0xff]
      %v288 = vld [vmem:[%s192 + $0x2c8] sm:$0xff]
      %v289 = vld [vmem:[%s192 + $0x2d0] sm:$0xff]
      %v290 = vld [vmem:[%s192 + $0x2d8] sm:$0xff]
      %v291 = vld [vmem:[%s192 + $0x2e0] sm:$0xff]
      %v292 = vld [vmem:[%s192 + $0x2e8] sm:$0xff]
      %v293 = vld [vmem:[%s192 + $0x2f0] sm:$0xff]
      %v294 = vld [vmem:[%s192 + $0x2f8] sm:$0xff]
      %v295 = vld [vmem:[%s1] sm:$0xf]
      %v296 = vld [vmem:[%s1 + $0x4] sm:$0xf]
      %v297 = vld [vmem:[%s1 + $0x8] sm:$0xf]
      %v298 = vld [vmem:[%s1 + $0xc] sm:$0xf]
      %v299 = vld [vmem:[%s1 + $0x10] sm:$0xf]
      %v300 = vld [vmem:[%s1 + $0x14] sm:$0xf]
      %v301 = vld [vmem:[%s1 + $0x18] sm:$0xf]
      %v302 = vld [vmem:[%s1 + $0x1c] sm:$0xf]
      %v303 = vld [vmem:[%s1 + $0x20] sm:$0xf]
      %v304 = vld [vmem:[%s1 + $0x24] sm:$0xf]
      %v305 = vld [vmem:[%s1 + $0x28] sm:$0xf]
      %v306 = vld [vmem:[%s1 + $0x2c] sm:$0xf]
      %v307 = vld [vmem:[%s1 + $0x30] sm:$0xf]
      %v308 = vld [vmem:[%s1 + $0x34] sm:$0xf]
      %v309 = vld [vmem:[%s1 + $0x38] sm:$0xf]
      %v310 = vld [vmem:[%s1 + $0x3c] sm:$0xf]
      %v311 = vld [vmem:[%s1 + $0x40] sm:$0xf]
      %v312 = vld [vmem:[%s1 + $0x44] sm:$0xf]
      %v313 = vld [vmem:[%s1 + $0x48] sm:$0xf]
      %v314 = vld [vmem:[%s1 + $0x4c] sm:$0xf]
      %v315 = vld [vmem:[%s1 + $0x50] sm:$0xf]
      %v316 = vld [vmem:[%s1 + $0x54] sm:$0xf]
      %v317 = vld [vmem:[%s1 + $0x58] sm:$0xf]
      %v318 = vld [vmem:[%s1 + $0x5c] sm:$0xf]
      %v319 = vld [vmem:[%s1 + $0x60] sm:$0xf]
      %v320 = vld [vmem:[%s1 + $0x64] sm:$0xf]
      %v321 = vld [vmem:[%s1 + $0x68] sm:$0xf]
      %v322 = vld [vmem:[%s1 + $0x6c] sm:$0xf]
      %v323 = vld [vmem:[%s1 + $0x70] sm:$0xf]
      %v324 = vld [vmem:[%s1 + $0x74] sm:$0xf]
      %v325 = vld [vmem:[%s1 + $0x78] sm:$0xf]
      %v326 = vld [vmem:[%s1 + $0x7c] sm:$0xf]
      %v327 = vld [vmem:[%s1 + $0x80] sm:$0xf]
      %v328 = vld [vmem:[%s1 + $0x84] sm:$0xf]
      %v329 = vld [vmem:[%s1 + $0x88] sm:$0xf]
      %v330 = vld [vmem:[%s1 + $0x8c] sm:$0xf]
      %v331 = vld [vmem:[%s1 + $0x90] sm:$0xf]
      %v332 = vld [vmem:[%s1 + $0x94] sm:$0xf]
      %v333 = vld [vmem:[%s1 + $0x98] sm:$0xf]
      %v334 = vld [vmem:[%s1 + $0x9c] sm:$0xf]
      %v335 = vld [vmem:[%s1 + $0xa0] sm:$0xf]
      %v336 = vld [vmem:[%s1 + $0xa4] sm:$0xf]
      %v337 = vld [vmem:[%s1 + $0xa8] sm:$0xf]
      %v338 = vld [vmem:[%s1 + $0xac] sm:$0xf]
      %v339 = vld [vmem:[%s1 + $0xb0] sm:$0xf]
      %v340 = vld [vmem:[%s1 + $0xb4] sm:$0xf]
      %v341 = vld [vmem:[%s1 + $0xb8] sm:$0xf]
      %v342 = vld [vmem:[%s1 + $0xbc] sm:$0xf]
      %v343 = vld [vmem:[%s1 + $0xc0] sm:$0xf]
      %v344 = vld [vmem:[%s1 + $0xc4] sm:$0xf]
      %v345 = vld [vmem:[%s1 + $0xc8] sm:$0xf]
      %v346 = vld [vmem:[%s1 + $0xcc] sm:$0xf]
      %v347 = vld [vmem:[%s1 + $0xd0] sm:$0xf]
      %v348 = vld [vmem:[%s1 + $0xd4] sm:$0xf]
      %v349 = vld [vmem:[%s1 + $0xd8] sm:$0xf]
      %v350 = vld [vmem:[%s1 + $0xdc] sm:$0xf]
      %v351 = vld [vmem:[%s1 + $0xe0] sm:$0xf]
      %v352 = vld [vmem:[%s1 + $0xe4] sm:$0xf]
      %v353 = vld [vmem:[%s1 + $0xe8] sm:$0xf]
      %v354 = vld [vmem:[%s1 + $0xec] sm:$0xf]
      %v355 = vld [vmem:[%s1 + $0xf0] sm:$0xf]
      %v356 = vld [vmem:[%s1 + $0xf4] sm:$0xf]
      %v357 = vld [vmem:[%s1 + $0xf8] sm:$0xf]
      %v358 = vld [vmem:[%s1 + $0xfc] sm:$0xf]
      %v359 = vld [vmem:[%s1 + $0x100] sm:$0xf]
      %v360 = vld [vmem:[%s1 + $0x104] sm:$0xf]
      %v361 = vld [vmem:[%s1 + $0x108] sm:$0xf]
      %v362 = vld [vmem:[%s1 + $0x10c] sm:$0xf]
      %v363 = vld [vmem:[%s1 + $0x110] sm:$0xf]
      %v364 = vld [vmem:[%s1 + $0x114] sm:$0xf]
      %v365 = vld [vmem:[%s1 + $0x118] sm:$0xf]
      %v366 = vld [vmem:[%s1 + $0x11c] sm:$0xf]
      %v367 = vld [vmem:[%s1 + $0x120] sm:$0xf]
      %v368 = vld [vmem:[%s1 + $0x124] sm:$0xf]
      %v369 = vld [vmem:[%s1 + $0x128] sm:$0xf]
      %v370 = vld [vmem:[%s1 + $0x12c] sm:$0xf]
      %v371 = vld [vmem:[%s1 + $0x130] sm:$0xf]
      %v372 = vld [vmem:[%s1 + $0x134] sm:$0xf]
      %v373 = vld [vmem:[%s1 + $0x138] sm:$0xf]
      %v374 = vld [vmem:[%s1 + $0x13c] sm:$0xf]
      %v375 = vld [vmem:[%s1 + $0x140] sm:$0xf]
      %v376 = vld [vmem:[%s1 + $0x144] sm:$0xf]
      %v377 = vld [vmem:[%s1 + $0x148] sm:$0xf]
      %v378 = vld [vmem:[%s1 + $0x14c] sm:$0xf]
      %v379 = vld [vmem:[%s1 + $0x150] sm:$0xf]
      %v380 = vld [vmem:[%s1 + $0x154] sm:$0xf]
      %v381 = vld [vmem:[%s1 + $0x158] sm:$0xf]
      %v382 = vld [vmem:[%s1 + $0x15c] sm:$0xf]
      %v383 = vld [vmem:[%s1 + $0x160] sm:$0xf]
      %v384 = vld [vmem:[%s1 + $0x164] sm:$0xf]
      %v385 = vld [vmem:[%s1 + $0x168] sm:$0xf]
      %v386 = vld [vmem:[%s1 + $0x16c] sm:$0xf]
      %v387 = vld [vmem:[%s1 + $0x170] sm:$0xf]
      %v388 = vld [vmem:[%s1 + $0x174] sm:$0xf]
      %v389 = vld [vmem:[%s1 + $0x178] sm:$0xf]
      %v390 = vld [vmem:[%s1 + $0x17c] sm:$0xf]
      %v391 = vld [vmem:[%s192 + $0x300] sm:$0xff]
      %v392 = vld [vmem:[%s192 + $0x308] sm:$0xff]
      %v393 = vld [vmem:[%s192 + $0x310] sm:$0xff]
      %v394 = vld [vmem:[%s192 + $0x318] sm:$0xff]
      %v395 = vld [vmem:[%s192 + $0x320] sm:$0xff]
      %v396 = vld [vmem:[%s192 + $0x328] sm:$0xff]
      %s397 = scalar_lea.vmem %s1, 384
      %v398 = vld [vmem:[%s397] sm:$0xf]
      %v399 = vld [vmem:[%s397 + $0x4] sm:$0xf]
      %v400 = vld [vmem:[%s397 + $0x8] sm:$0xf]
      %v401 = vld [vmem:[%s397 + $0xc] sm:$0xf]
      %v402 = vld [vmem:[%s397 + $0x10] sm:$0xf]
      %v403 = vld [vmem:[%s397 + $0x14] sm:$0xf]
      %v404 = vld [vmem:[%s397 + $0x18] sm:$0xf]
      %v405 = vld [vmem:[%s397 + $0x1c] sm:$0xf]
      %v406 = vld [vmem:[%s397 + $0x20] sm:$0xf]
      %v407 = vld [vmem:[%s397 + $0x24] sm:$0xf]
      %v408 = vld [vmem:[%s397 + $0x28] sm:$0xf]
      %v409 = vld [vmem:[%s397 + $0x2c] sm:$0xf]
      %v410 = vld [vmem:[%s397 + $0x30] sm:$0xf]
      %v411 = vld [vmem:[%s397 + $0x34] sm:$0xf]
      %v412 = vld [vmem:[%s397 + $0x38] sm:$0xf]
      %v413 = vld [vmem:[%s397 + $0x3c] sm:$0xf]
      %v414 = vld [vmem:[%s397 + $0x40] sm:$0xf]
      %v415 = vld [vmem:[%s397 + $0x44] sm:$0xf]
      %v416 = vld [vmem:[%s397 + $0x48] sm:$0xf]
      %v417 = vld [vmem:[%s397 + $0x4c] sm:$0xf]
      %v418 = vld [vmem:[%s397 + $0x50] sm:$0xf]
      %v419 = vld [vmem:[%s397 + $0x54] sm:$0xf]
      %v420 = vld [vmem:[%s397 + $0x58] sm:$0xf]
      %v421 = vld [vmem:[%s397 + $0x5c] sm:$0xf]
      %v422 = vld [vmem:[%s397 + $0x60] sm:$0xf]
      %v423 = vld [vmem:[%s397 + $0x64] sm:$0xf]
      %v424 = vld [vmem:[%s397 + $0x68] sm:$0xf]
      %v425 = vld [vmem:[%s397 + $0x6c] sm:$0xf]
      %v426 = vld [vmem:[%s397 + $0x70] sm:$0xf]
      %v427 = vld [vmem:[%s397 + $0x74] sm:$0xf]
      %v428 = vld [vmem:[%s397 + $0x78] sm:$0xf]
      %v429 = vld [vmem:[%s397 + $0x7c] sm:$0xf]
      %v430 = vld [vmem:[%s397 + $0x80] sm:$0xf]
      %v431 = vld [vmem:[%s397 + $0x84] sm:$0xf]
      %v432 = vld [vmem:[%s397 + $0x88] sm:$0xf]
      %v433 = vld [vmem:[%s397 + $0x8c] sm:$0xf]
      %v434 = vld [vmem:[%s397 + $0x90] sm:$0xf]
      %v435 = vld [vmem:[%s397 + $0x94] sm:$0xf]
      %v436 = vld [vmem:[%s397 + $0x98] sm:$0xf]
      %v437 = vld [vmem:[%s397 + $0x9c] sm:$0xf]
      %v438 = vld [vmem:[%s397 + $0xa0] sm:$0xf]
      %v439 = vld [vmem:[%s397 + $0xa4] sm:$0xf]
      %v440 = vld [vmem:[%s397 + $0xa8] sm:$0xf]
      %v441 = vld [vmem:[%s397 + $0xac] sm:$0xf]
      %v442 = vld [vmem:[%s397 + $0xb0] sm:$0xf]
      %v443 = vld [vmem:[%s397 + $0xb4] sm:$0xf]
      %v444 = vld [vmem:[%s397 + $0xb8] sm:$0xf]
      %v445 = vld [vmem:[%s397 + $0xbc] sm:$0xf]
      %v446 = vld [vmem:[%s397 + $0xc0] sm:$0xf]
      %v447 = vld [vmem:[%s397 + $0xc4] sm:$0xf]
      %v448 = vld [vmem:[%s397 + $0xc8] sm:$0xf]
      %v449 = vld [vmem:[%s397 + $0xcc] sm:$0xf]
      %v450 = vld [vmem:[%s397 + $0xd0] sm:$0xf]
      %v451 = vld [vmem:[%s397 + $0xd4] sm:$0xf]
      %v452 = vld [vmem:[%s397 + $0xd8] sm:$0xf]
      %v453 = vld [vmem:[%s397 + $0xdc] sm:$0xf]
      %v454 = vld [vmem:[%s397 + $0xe0] sm:$0xf]
      %v455 = vld [vmem:[%s397 + $0xe4] sm:$0xf]
      %v456 = vld [vmem:[%s397 + $0xe8] sm:$0xf]
      %v457 = vld [vmem:[%s397 + $0xec] sm:$0xf]
      %v458 = vld [vmem:[%s397 + $0xf0] sm:$0xf]
      %v459 = vld [vmem:[%s397 + $0xf4] sm:$0xf]
      %v460 = vld [vmem:[%s397 + $0xf8] sm:$0xf]
      %v461 = vld [vmem:[%s397 + $0xfc] sm:$0xf]
      %v462 = vld [vmem:[%s397 + $0x100] sm:$0xf]
      %v463 = vld [vmem:[%s397 + $0x104] sm:$0xf]
      %v464 = vld [vmem:[%s397 + $0x108] sm:$0xf]
      %v465 = vld [vmem:[%s397 + $0x10c] sm:$0xf]
      %v466 = vld [vmem:[%s397 + $0x110] sm:$0xf]
      %v467 = vld [vmem:[%s397 + $0x114] sm:$0xf]
      %v468 = vld [vmem:[%s397 + $0x118] sm:$0xf]
      %v469 = vld [vmem:[%s397 + $0x11c] sm:$0xf]
      %v470 = vld [vmem:[%s397 + $0x120] sm:$0xf]
      %v471 = vld [vmem:[%s397 + $0x124] sm:$0xf]
      %v472 = vld [vmem:[%s397 + $0x128] sm:$0xf]
      %v473 = vld [vmem:[%s397 + $0x12c] sm:$0xf]
      %v474 = vld [vmem:[%s397 + $0x130] sm:$0xf]
      %v475 = vld [vmem:[%s397 + $0x134] sm:$0xf]
      %v476 = vld [vmem:[%s397 + $0x138] sm:$0xf]
      %v477 = vld [vmem:[%s397 + $0x13c] sm:$0xf]
      %v478 = vld [vmem:[%s397 + $0x140] sm:$0xf]
      %v479 = vld [vmem:[%s397 + $0x144] sm:$0xf]
      %v480 = vld [vmem:[%s397 + $0x148] sm:$0xf]
      %v481 = vld [vmem:[%s397 + $0x14c] sm:$0xf]
      %v482 = vld [vmem:[%s397 + $0x150] sm:$0xf]
      %v483 = vld [vmem:[%s397 + $0x154] sm:$0xf]
      %v484 = vld [vmem:[%s397 + $0x158] sm:$0xf]
      %v485 = vld [vmem:[%s397 + $0x15c] sm:$0xf]
      %v486 = vld [vmem:[%s397 + $0x160] sm:$0xf]
      %v487 = vld [vmem:[%s397 + $0x164] sm:$0xf]
      %v488 = vld [vmem:[%s397 + $0x168] sm:$0xf]
      %v489 = vld [vmem:[%s397 + $0x16c] sm:$0xf]
      %v490 = vld [vmem:[%s397 + $0x170] sm:$0xf]
      %v491 = vld [vmem:[%s397 + $0x174] sm:$0xf]
      %v492 = vld [vmem:[%s397 + $0x178] sm:$0xf]
      %v493 = vld [vmem:[%s397 + $0x17c] sm:$0xf]
      %v590 = vunpack.c.l.b16 %v205
      %v591 = vunpack.c.h.b16 %v205
      %v592 = vunpack.c.l.b16 %v206
      %v593 = vunpack.c.h.b16 %v206
      %v594 = vunpack.c.l.b16 %v207
      %v595 = vunpack.c.h.b16 %v207
      %v596 = vunpack.c.l.b16 %v208
      %v597 = vunpack.c.h.b16 %v208
      %v598 = vunpack.c.l.b16 %v209
      %v599 = vunpack.c.h.b16 %v209
      %v600 = vunpack.c.l.b16 %v210
      %v601 = vunpack.c.h.b16 %v210
      %v602 = vunpack.c.l.b16 %v211
      %v603 = vunpack.c.h.b16 %v211
      %v604 = vunpack.c.l.b16 %v212
      %v605 = vunpack.c.h.b16 %v212
      %v606 = vunpack.c.l.b16 %v213
      %v607 = vunpack.c.h.b16 %v213
      %v608 = vunpack.c.l.b16 %v214
      %v609 = vunpack.c.h.b16 %v214
      %v610 = vunpack.c.l.b16 %v215
      %v611 = vunpack.c.h.b16 %v215
      %v612 = vunpack.c.l.b16 %v216
      %v613 = vunpack.c.h.b16 %v216
      %v614 = vunpack.c.l.b16 %v217
      %v615 = vunpack.c.h.b16 %v217
      %v616 = vunpack.c.l.b16 %v218
      %v617 = vunpack.c.h.b16 %v218
      %v618 = vunpack.c.l.b16 %v219
      %v619 = vunpack.c.h.b16 %v219
      %v620 = vunpack.c.l.b16 %v220
      %v621 = vunpack.c.h.b16 %v220
      %v622 = vunpack.c.l.b16 %v221
      %v623 = vunpack.c.h.b16 %v221
      %v624 = vunpack.c.l.b16 %v222
      %v625 = vunpack.c.h.b16 %v222
      %v626 = vunpack.c.l.b16 %v223
      %v627 = vunpack.c.h.b16 %v223
      %v628 = vunpack.c.l.b16 %v224
      %v629 = vunpack.c.h.b16 %v224
      %v630 = vunpack.c.l.b16 %v225
      %v631 = vunpack.c.h.b16 %v225
      %v632 = vunpack.c.l.b16 %v226
      %v633 = vunpack.c.h.b16 %v226
      %v634 = vunpack.c.l.b16 %v227
      %v635 = vunpack.c.h.b16 %v227
      %v636 = vunpack.c.l.b16 %v228
      %v637 = vunpack.c.h.b16 %v228
      %v638 = vunpack.c.l.b16 %v229
      %v639 = vunpack.c.h.b16 %v229
      %v640 = vunpack.c.l.b16 %v230
      %v641 = vunpack.c.h.b16 %v230
      %v642 = vunpack.c.l.b16 %v231
      %v643 = vunpack.c.h.b16 %v231
      %v644 = vunpack.c.l.b16 %v232
      %v645 = vunpack.c.h.b16 %v232
      %v646 = vunpack.c.l.b16 %v233
      %v647 = vunpack.c.h.b16 %v233
      %v648 = vunpack.c.l.b16 %v234
      %v649 = vunpack.c.h.b16 %v234
      %v650 = vunpack.c.l.b16 %v235
      %v651 = vunpack.c.h.b16 %v235
      %v652 = vunpack.c.l.b16 %v236
      %v653 = vunpack.c.h.b16 %v236
      %v654 = vunpack.c.l.b16 %v237
      %v655 = vunpack.c.h.b16 %v237
      %v656 = vunpack.c.l.b16 %v238
      %v657 = vunpack.c.h.b16 %v238
      %v658 = vunpack.c.l.b16 %v239
      %v659 = vunpack.c.h.b16 %v239
      %v660 = vunpack.c.l.b16 %v240
      %v661 = vunpack.c.h.b16 %v240
      %v662 = vunpack.c.l.b16 %v241
      %v663 = vunpack.c.h.b16 %v241
      %v664 = vunpack.c.l.b16 %v242
      %v665 = vunpack.c.h.b16 %v242
      %v666 = vunpack.c.l.b16 %v243
      %v667 = vunpack.c.h.b16 %v243
      %v668 = vunpack.c.l.b16 %v244
      %v669 = vunpack.c.h.b16 %v244
      %v670 = vunpack.c.l.b16 %v245
      %v671 = vunpack.c.h.b16 %v245
      %v672 = vunpack.c.l.b16 %v246
      %v673 = vunpack.c.h.b16 %v246
      %v674 = vunpack.c.l.b16 %v247
      %v675 = vunpack.c.h.b16 %v247
      %v676 = vunpack.c.l.b16 %v248
      %v677 = vunpack.c.h.b16 %v248
      %v678 = vunpack.c.l.b16 %v249
      %v679 = vunpack.c.h.b16 %v249
      %v680 = vunpack.c.l.b16 %v250
      %v681 = vunpack.c.h.b16 %v250
      %v682 = vunpack.c.l.b16 %v251
      %v683 = vunpack.c.h.b16 %v251
      %v684 = vunpack.c.l.b16 %v252
      %v685 = vunpack.c.h.b16 %v252
      %v686 = vunpack.c.l.b16 %v253
      %v687 = vunpack.c.h.b16 %v253
      %v688 = vunpack.c.l.b16 %v254
      %v689 = vunpack.c.h.b16 %v254
      %v690 = vunpack.c.l.b16 %v255
      %v691 = vunpack.c.h.b16 %v255
      %v692 = vunpack.c.l.b16 %v256
      %v693 = vunpack.c.h.b16 %v256
      %v694 = vunpack.c.l.b16 %v257
      %v695 = vunpack.c.h.b16 %v257
      %v696 = vunpack.c.l.b16 %v258
      %v697 = vunpack.c.h.b16 %v258
      %v698 = vunpack.c.l.b16 %v259
      %v699 = vunpack.c.h.b16 %v259
      %v700 = vunpack.c.l.b16 %v260
      %v701 = vunpack.c.h.b16 %v260
      %v702 = vunpack.c.l.b16 %v261
      %v703 = vunpack.c.h.b16 %v261
      %v704 = vunpack.c.l.b16 %v262
      %v705 = vunpack.c.h.b16 %v262
      %v706 = vunpack.c.l.b16 %v263
      %v707 = vunpack.c.h.b16 %v263
      %v708 = vunpack.c.l.b16 %v264
      %v709 = vunpack.c.h.b16 %v264
      %v710 = vunpack.c.l.b16 %v265
      %v711 = vunpack.c.h.b16 %v265
      %v712 = vunpack.c.l.b16 %v266
      %v713 = vunpack.c.h.b16 %v266
      %v714 = vunpack.c.l.b16 %v267
      %v715 = vunpack.c.h.b16 %v267
      %v716 = vunpack.c.l.b16 %v268
      %v717 = vunpack.c.h.b16 %v268
      %v718 = vunpack.c.l.b16 %v269
      %v719 = vunpack.c.h.b16 %v269
      %v720 = vunpack.c.l.b16 %v270
      %v721 = vunpack.c.h.b16 %v270
      %v722 = vunpack.c.l.b16 %v271
      %v723 = vunpack.c.h.b16 %v271
      %v724 = vunpack.c.l.b16 %v272
      %v725 = vunpack.c.h.b16 %v272
      %v726 = vunpack.c.l.b16 %v273
      %v727 = vunpack.c.h.b16 %v273
      %v728 = vunpack.c.l.b16 %v274
      %v729 = vunpack.c.h.b16 %v274
      %v730 = vunpack.c.l.b16 %v275
      %v731 = vunpack.c.h.b16 %v275
      %v732 = vunpack.c.l.b16 %v276
      %v733 = vunpack.c.h.b16 %v276
      %v734 = vunpack.c.l.b16 %v277
      %v735 = vunpack.c.h.b16 %v277
      %v736 = vunpack.c.l.b16 %v278
      %v737 = vunpack.c.h.b16 %v278
      %v738 = vunpack.c.l.b16 %v279
      %v739 = vunpack.c.h.b16 %v279
      %v740 = vunpack.c.l.b16 %v280
      %v741 = vunpack.c.h.b16 %v280
      %v742 = vunpack.c.l.b16 %v281
      %v743 = vunpack.c.h.b16 %v281
      %v744 = vunpack.c.l.b16 %v282
      %v745 = vunpack.c.h.b16 %v282
      %v746 = vunpack.c.l.b16 %v283
      %v747 = vunpack.c.h.b16 %v283
      %v748 = vunpack.c.l.b16 %v284
      %v749 = vunpack.c.h.b16 %v284
      %v750 = vunpack.c.l.b16 %v285
      %v751 = vunpack.c.h.b16 %v285
      %v752 = vunpack.c.l.b16 %v286
      %v753 = vunpack.c.h.b16 %v286
      %v754 = vunpack.c.l.b16 %v287
      %v755 = vunpack.c.h.b16 %v287
      %v756 = vunpack.c.l.b16 %v288
      %v757 = vunpack.c.h.b16 %v288
      %v758 = vunpack.c.l.b16 %v289
      %v759 = vunpack.c.h.b16 %v289
      %v760 = vunpack.c.l.b16 %v290
      %v761 = vunpack.c.h.b16 %v290
      %v762 = vunpack.c.l.b16 %v291
      %v763 = vunpack.c.h.b16 %v291
      %v764 = vunpack.c.l.b16 %v292
      %v765 = vunpack.c.h.b16 %v292
      %v766 = vunpack.c.l.b16 %v293
      %v767 = vunpack.c.h.b16 %v293
      %v768 = vunpack.c.l.b16 %v294
      %v769 = vunpack.c.h.b16 %v294
      %v770 = vunpack.c.l.b16 %v391
      %v771 = vunpack.c.h.b16 %v391
      %v772 = vunpack.c.l.b16 %v392
      %v773 = vunpack.c.h.b16 %v392
      %v774 = vunpack.c.l.b16 %v393
      %v775 = vunpack.c.h.b16 %v393
      %v776 = vunpack.c.l.b16 %v394
      %v777 = vunpack.c.h.b16 %v394
      %v778 = vunpack.c.l.b16 %v395
      %v779 = vunpack.c.h.b16 %v395
      %v780 = vunpack.c.l.b16 %v396
      %v781 = vunpack.c.h.b16 %v396
      %v782 = vpack.c.b16 %v596, %v590
      %v783 = vpack.c.b16 %v597, %v591
      %v784 = vpack.c.b16 %v598, %v592
      %v785 = vpack.c.b16 %v599, %v593
      %v786 = vpack.c.b16 %v600, %v594
      %v787 = vpack.c.b16 %v601, %v595
      %v788 = vpack.c.b16 %v608, %v602
      %v789 = vpack.c.b16 %v609, %v603
      %v790 = vpack.c.b16 %v610, %v604
      %v791 = vpack.c.b16 %v611, %v605
      %v792 = vpack.c.b16 %v612, %v606
      %v793 = vpack.c.b16 %v613, %v607
      %v794 = vpack.c.b16 %v620, %v614
      %v795 = vpack.c.b16 %v621, %v615
      %v796 = vpack.c.b16 %v622, %v616
      %v797 = vpack.c.b16 %v623, %v617
      %v798 = vpack.c.b16 %v624, %v618
      %v799 = vpack.c.b16 %v625, %v619
      %v800 = vpack.c.b16 %v632, %v626
      %v801 = vpack.c.b16 %v633, %v627
      %v802 = vpack.c.b16 %v634, %v628
      %v803 = vpack.c.b16 %v635, %v629
      %v804 = vpack.c.b16 %v636, %v630
      %v805 = vpack.c.b16 %v637, %v631
      %v806 = vpack.c.b16 %v644, %v638
      %v807 = vpack.c.b16 %v645, %v639
      %v808 = vpack.c.b16 %v646, %v640
      %v809 = vpack.c.b16 %v647, %v641
      %v810 = vpack.c.b16 %v648, %v642
      %v811 = vpack.c.b16 %v649, %v643
      %v812 = vpack.c.b16 %v656, %v650
      %v813 = vpack.c.b16 %v657, %v651
      %v814 = vpack.c.b16 %v658, %v652
      %v815 = vpack.c.b16 %v659, %v653
      %v816 = vpack.c.b16 %v660, %v654
      %v817 = vpack.c.b16 %v661, %v655
      %v818 = vpack.c.b16 %v668, %v662
      %v819 = vpack.c.b16 %v669, %v663
      %v820 = vpack.c.b16 %v670, %v664
      %v821 = vpack.c.b16 %v671, %v665
      %v822 = vpack.c.b16 %v672, %v666
      %v823 = vpack.c.b16 %v673, %v667
      %v824 = vpack.c.b16 %v680, %v674
      %v825 = vpack.c.b16 %v681, %v675
      %v826 = vpack.c.b16 %v682, %v676
      %v827 = vpack.c.b16 %v683, %v677
      %v828 = vpack.c.b16 %v684, %v678
      %v829 = vpack.c.b16 %v685, %v679
      %v830 = vpack.c.b16 %v692, %v686
      %v831 = vpack.c.b16 %v693, %v687
      %v832 = vpack.c.b16 %v694, %v688
      %v833 = vpack.c.b16 %v695, %v689
      %v834 = vpack.c.b16 %v696, %v690
      %v835 = vpack.c.b16 %v697, %v691
      %v836 = vpack.c.b16 %v704, %v698
      %v837 = vpack.c.b16 %v705, %v699
      %v838 = vpack.c.b16 %v706, %v700
      %v839 = vpack.c.b16 %v707, %v701
      %v840 = vpack.c.b16 %v708, %v702
      %v841 = vpack.c.b16 %v709, %v703
      %v842 = vpack.c.b16 %v716, %v710
      %v843 = vpack.c.b16 %v717, %v711
      %v844 = vpack.c.b16 %v718, %v712
      %v845 = vpack.c.b16 %v719, %v713
      %v846 = vpack.c.b16 %v720, %v714
      %v847 = vpack.c.b16 %v721, %v715
      %v848 = vpack.c.b16 %v728, %v722
      %v849 = vpack.c.b16 %v729, %v723
      %v850 = vpack.c.b16 %v730, %v724
      %v851 = vpack.c.b16 %v731, %v725
      %v852 = vpack.c.b16 %v732, %v726
      %v853 = vpack.c.b16 %v733, %v727
      %v854 = vpack.c.b16 %v740, %v734
      %v855 = vpack.c.b16 %v741, %v735
      %v856 = vpack.c.b16 %v742, %v736
      %v857 = vpack.c.b16 %v743, %v737
      %v858 = vpack.c.b16 %v744, %v738
      %v859 = vpack.c.b16 %v745, %v739
      %v860 = vpack.c.b16 %v752, %v746
      %v861 = vpack.c.b16 %v753, %v747
      %v862 = vpack.c.b16 %v754, %v748
      %v863 = vpack.c.b16 %v755, %v749
      %v864 = vpack.c.b16 %v756, %v750
      %v865 = vpack.c.b16 %v757, %v751
      %v866 = vpack.c.b16 %v764, %v758
      %v867 = vpack.c.b16 %v765, %v759
      %v868 = vpack.c.b16 %v766, %v760
      %v869 = vpack.c.b16 %v767, %v761
      %v870 = vpack.c.b16 %v768, %v762
      %v871 = vpack.c.b16 %v769, %v763
      %v872 = vpack.c.b16 %v776, %v770
      %v873 = vpack.c.b16 %v777, %v771
      %v874 = vpack.c.b16 %v778, %v772
      %v875 = vpack.c.b16 %v779, %v773
      %v876 = vpack.c.b16 %v780, %v774
      %v877 = vpack.c.b16 %v781, %v775
      %v1070 = vunpack.c.l.b16 %v398
      %v1071 = vunpack.c.l.b16 %v399
      %v1072 = vunpack.c.l.b16 %v400
      %v1073 = vunpack.c.l.b16 %v401
      %v1074 = vunpack.c.l.b16 %v402
      %v1075 = vunpack.c.l.b16 %v403
      %v1076 = vunpack.c.l.b16 %v404
      %v1077 = vunpack.c.l.b16 %v405
      %v1078 = vunpack.c.l.b16 %v406
      %v1079 = vunpack.c.l.b16 %v407
      %v1080 = vunpack.c.l.b16 %v408
      %v1081 = vunpack.c.l.b16 %v409
      %v1082 = vunpack.c.l.b16 %v410
      %v1083 = vunpack.c.l.b16 %v411
      %v1084 = vunpack.c.l.b16 %v412
      %v1085 = vunpack.c.l.b16 %v413
      %v1086 = vunpack.c.l.b16 %v414
      %v1087 = vunpack.c.l.b16 %v415
      %v1088 = vunpack.c.l.b16 %v416
      %v1089 = vunpack.c.l.b16 %v417
      %v1090 = vunpack.c.l.b16 %v418
      %v1091 = vunpack.c.l.b16 %v419
      %v1092 = vunpack.c.l.b16 %v420
      %v1093 = vunpack.c.l.b16 %v421
      %v1094 = vunpack.c.l.b16 %v422
      %v1095 = vunpack.c.l.b16 %v423
      %v1096 = vunpack.c.l.b16 %v424
      %v1097 = vunpack.c.l.b16 %v425
      %v1098 = vunpack.c.l.b16 %v426
      %v1099 = vunpack.c.l.b16 %v427
      %v1100 = vunpack.c.l.b16 %v428
      %v1101 = vunpack.c.l.b16 %v429
      %v1102 = vunpack.c.l.b16 %v430
      %v1103 = vunpack.c.l.b16 %v431
      %v1104 = vunpack.c.l.b16 %v432
      %v1105 = vunpack.c.l.b16 %v433
      %v1106 = vunpack.c.l.b16 %v434
      %v1107 = vunpack.c.l.b16 %v435
      %v1108 = vunpack.c.l.b16 %v436
      %v1109 = vunpack.c.l.b16 %v437
      %v1110 = vunpack.c.l.b16 %v438
      %v1111 = vunpack.c.l.b16 %v439
      %v1112 = vunpack.c.l.b16 %v440
      %v1113 = vunpack.c.l.b16 %v441
      %v1114 = vunpack.c.l.b16 %v442
      %v1115 = vunpack.c.l.b16 %v443
      %v1116 = vunpack.c.l.b16 %v444
      %v1117 = vunpack.c.l.b16 %v445
      %v1118 = vunpack.c.l.b16 %v446
      %v1119 = vunpack.c.l.b16 %v447
      %v1120 = vunpack.c.l.b16 %v448
      %v1121 = vunpack.c.l.b16 %v449
      %v1122 = vunpack.c.l.b16 %v450
      %v1123 = vunpack.c.l.b16 %v451
      %v1124 = vunpack.c.l.b16 %v452
      %v1125 = vunpack.c.l.b16 %v453
      %v1126 = vunpack.c.l.b16 %v454
      %v1127 = vunpack.c.l.b16 %v455
      %v1128 = vunpack.c.l.b16 %v456
      %v1129 = vunpack.c.l.b16 %v457
      %v1130 = vunpack.c.l.b16 %v458
      %v1131 = vunpack.c.l.b16 %v459
      %v1132 = vunpack.c.l.b16 %v460
      %v1133 = vunpack.c.l.b16 %v461
      %v1134 = vunpack.c.l.b16 %v462
      %v1135 = vunpack.c.l.b16 %v463
      %v1136 = vunpack.c.l.b16 %v464
      %v1137 = vunpack.c.l.b16 %v465
      %v1138 = vunpack.c.l.b16 %v466
      %v1139 = vunpack.c.l.b16 %v467
      %v1140 = vunpack.c.l.b16 %v468
      %v1141 = vunpack.c.l.b16 %v469
      %v1142 = vunpack.c.l.b16 %v470
      %v1143 = vunpack.c.l.b16 %v471
      %v1144 = vunpack.c.l.b16 %v472
      %v1145 = vunpack.c.l.b16 %v473
      %v1146 = vunpack.c.l.b16 %v474
      %v1147 = vunpack.c.l.b16 %v475
      %v1148 = vunpack.c.l.b16 %v476
      %v1149 = vunpack.c.l.b16 %v477
      %v1150 = vunpack.c.l.b16 %v478
      %v1151 = vunpack.c.l.b16 %v479
      %v1152 = vunpack.c.l.b16 %v480
      %v1153 = vunpack.c.l.b16 %v481
      %v1154 = vunpack.c.l.b16 %v482
      %v1155 = vunpack.c.l.b16 %v483
      %v1156 = vunpack.c.l.b16 %v484
      %v1157 = vunpack.c.l.b16 %v485
      %v1158 = vunpack.c.l.b16 %v486
      %v1159 = vunpack.c.l.b16 %v487
      %v1160 = vunpack.c.l.b16 %v488
      %v1161 = vunpack.c.l.b16 %v489
      %v1162 = vunpack.c.l.b16 %v490
      %v1163 = vunpack.c.l.b16 %v491
      %v1164 = vunpack.c.l.b16 %v492
      %v1165 = vunpack.c.l.b16 %v493
      %v1166 = vpack.c.b16 %v1071, %v1070
      %v1167 = vpack.c.b16 %v1073, %v1072
      %v1168 = vpack.c.b16 %v1075, %v1074
      %v1169 = vpack.c.b16 %v1077, %v1076
      %v1170 = vpack.c.b16 %v1079, %v1078
      %v1171 = vpack.c.b16 %v1081, %v1080
      %v1172 = vpack.c.b16 %v1083, %v1082
      %v1173 = vpack.c.b16 %v1085, %v1084
      %v1174 = vpack.c.b16 %v1087, %v1086
      %v1175 = vpack.c.b16 %v1089, %v1088
      %v1176 = vpack.c.b16 %v1091, %v1090
      %v1177 = vpack.c.b16 %v1093, %v1092
      %v1178 = vpack.c.b16 %v1095, %v1094
      %v1179 = vpack.c.b16 %v1097, %v1096
      %v1180 = vpack.c.b16 %v1099, %v1098
      %v1181 = vpack.c.b16 %v1101, %v1100
      %v1182 = vpack.c.b16 %v1103, %v1102
      %v1183 = vpack.c.b16 %v1105, %v1104
      %v1184 = vpack.c.b16 %v1107, %v1106
      %v1185 = vpack.c.b16 %v1109, %v1108
      %v1186 = vpack.c.b16 %v1111, %v1110
      %v1187 = vpack.c.b16 %v1113, %v1112
      %v1188 = vpack.c.b16 %v1115, %v1114
      %v1189 = vpack.c.b16 %v1117, %v1116
      %v1190 = vpack.c.b16 %v1119, %v1118
      %v1191 = vpack.c.b16 %v1121, %v1120
      %v1192 = vpack.c.b16 %v1123, %v1122
      %v1193 = vpack.c.b16 %v1125, %v1124
      %v1194 = vpack.c.b16 %v1127, %v1126
      %v1195 = vpack.c.b16 %v1129, %v1128
      %v1196 = vpack.c.b16 %v1131, %v1130
      %v1197 = vpack.c.b16 %v1133, %v1132
      %v1198 = vpack.c.b16 %v1135, %v1134
      %v1199 = vpack.c.b16 %v1137, %v1136
      %v1200 = vpack.c.b16 %v1139, %v1138
      %v1201 = vpack.c.b16 %v1141, %v1140
      %v1202 = vpack.c.b16 %v1143, %v1142
      %v1203 = vpack.c.b16 %v1145, %v1144
      %v1204 = vpack.c.b16 %v1147, %v1146
      %v1205 = vpack.c.b16 %v1149, %v1148
      %v1206 = vpack.c.b16 %v1151, %v1150
      %v1207 = vpack.c.b16 %v1153, %v1152
      %v1208 = vpack.c.b16 %v1155, %v1154
      %v1209 = vpack.c.b16 %v1157, %v1156
      %v1210 = vpack.c.b16 %v1159, %v1158
      %v1211 = vpack.c.b16 %v1161, %v1160
      %v1212 = vpack.c.b16 %v1163, %v1162
      %v1213 = vpack.c.b16 %v1165, %v1164
      %1262 = vmatprep.subr.bf16.mxu0 0
      %1263 = vmatpush1.bf16.msra.mxu0 %v1173
      %1264 = vmatprep.subr.bf16.mxu0 0
      %1265 = vmatpush1.bf16.msra.mxu0 %v1172
      %1266 = vmatprep.subr.bf16.mxu0 0
      %1267 = vmatpush1.bf16.msra.mxu0 %v1171
      %1268 = vmatprep.subr.bf16.mxu0 0
      %1269 = vmatpush1.bf16.msra.mxu0 %v1170
      %1270 = vmatprep.subr.bf16.mxu0 0
      %1271 = vmatpush1.bf16.msra.mxu0 %v1169
      %1272 = vmatprep.subr.bf16.mxu0 0
      %1273 = vmatpush1.bf16.msra.mxu0 %v1168
      %1274 = vmatprep.subr.bf16.mxu0 0
      %1275 = vmatpush1.bf16.msra.mxu0 %v1167
      %1276 = vmatprep.subr.bf16.mxu0 0
      %1277 = vmatpush1.bf16.msra.mxu0 %v1166
      %1278 = vmatprep.subr.bf16.mxu0 0
      %1279 = vmatpush2.bf16.msra.mxu0 %v1181
      %1280 = vmatprep.subr.bf16.mxu0 0
      %1281 = vmatpush2.bf16.msra.mxu0 %v1180
      %1282 = vmatprep.subr.bf16.mxu0 0
      %1283 = vmatpush2.bf16.msra.mxu0 %v1179
      %1284 = vmatprep.subr.bf16.mxu0 0
      %1285 = vmatpush2.bf16.msra.mxu0 %v1178
      %1286 = vmatprep.subr.bf16.mxu0 0
      %1287 = vmatpush2.bf16.msra.mxu0 %v1177
      %1288 = vmatprep.subr.bf16.mxu0 0
      %1289 = vmatpush2.bf16.msra.mxu0 %v1176
      %1290 = vmatprep.subr.bf16.mxu0 0
      %1291 = vmatpush2.bf16.msra.mxu0 %v1175
      %1292 = vmatprep.subr.bf16.mxu0 0
      %1293 = vmatpush2.bf16.msra.mxu0 %v1174
      %1294 = vmatprep.mubr.bf16.mxu0 %v783
      %1295 = vmatmul.mubr.bf16.gmra.mxu0 %v782
      %v1296 = vpop.f32.mrf.mxu0
      %v1297 = vadd.f32 0.0, %v1296
      %v1298 = vpop.f32.mrf.mxu0
      %v1299 = vpop.f32.mrf.mxu0
      %v1300 = vadd.f32 0.0, %v1299
      %v1301 = vpop.f32.mrf.mxu0
      %1302 = vmatprep.mubr.bf16.mxu0 %v789
      %1303 = vmatmul.mubr.bf16.gmra.mxu0 %v788
      %v1304 = vpop.f32.mrf.mxu0
      %v1305 = vadd.f32 0.0, %v1304
      %v1306 = vpop.f32.mrf.mxu0
      %v1307 = vpop.f32.mrf.mxu0
      %v1308 = vadd.f32 0.0, %v1307
      %v1309 = vpop.f32.mrf.mxu0
      %1310 = vmatprep.mubr.bf16.mxu0 %v795
      %1311 = vmatmul.mubr.bf16.gmra.mxu0 %v794
      %v1312 = vpop.f32.mrf.mxu0
      %v1313 = vadd.f32 0.0, %v1312
      %v1314 = vpop.f32.mrf.mxu0
      %v1315 = vpop.f32.mrf.mxu0
      %v1316 = vadd.f32 0.0, %v1315
      %v1317 = vpop.f32.mrf.mxu0
      %1318 = vmatprep.mubr.bf16.mxu0 %v801
      %1319 = vmatmul.mubr.bf16.gmra.mxu0 %v800
      %v1320 = vpop.f32.mrf.mxu0
      %v1321 = vadd.f32 0.0, %v1320
      %v1322 = vpop.f32.mrf.mxu0
      %v1323 = vpop.f32.mrf.mxu0
      %v1324 = vadd.f32 0.0, %v1323
      %v1325 = vpop.f32.mrf.mxu0
      %1326 = vmatprep.mubr.bf16.mxu0 %v807
      %1327 = vmatmul.mubr.bf16.gmra.mxu0 %v806
      %v1328 = vpop.f32.mrf.mxu0
      %v1329 = vadd.f32 0.0, %v1328
      %v1330 = vpop.f32.mrf.mxu0
      %v1331 = vpop.f32.mrf.mxu0
      %v1332 = vadd.f32 0.0, %v1331
      %v1333 = vpop.f32.mrf.mxu0
      %1334 = vmatprep.mubr.bf16.mxu0 %v813
      %1335 = vmatmul.mubr.bf16.gmra.mxu0 %v812
      %v1336 = vpop.f32.mrf.mxu0
      %v1337 = vadd.f32 0.0, %v1336
      %v1338 = vpop.f32.mrf.mxu0
      %v1339 = vpop.f32.mrf.mxu0
      %v1340 = vadd.f32 0.0, %v1339
      %v1341 = vpop.f32.mrf.mxu0
      %1342 = vmatprep.mubr.bf16.mxu0 %v819
      %1343 = vmatmul.mubr.bf16.gmra.mxu0 %v818
      %v1344 = vpop.f32.mrf.mxu0
      %v1345 = vadd.f32 0.0, %v1344
      %v1346 = vpop.f32.mrf.mxu0
      %v1347 = vpop.f32.mrf.mxu0
      %v1348 = vadd.f32 0.0, %v1347
      %v1349 = vpop.f32.mrf.mxu0
      %1350 = vmatprep.mubr.bf16.mxu0 %v825
      %1351 = vmatmul.mubr.bf16.gmra.mxu0 %v824
      %v1352 = vpop.f32.mrf.mxu0
      %v1353 = vadd.f32 0.0, %v1352
      %v1354 = vpop.f32.mrf.mxu0
      %v1355 = vpop.f32.mrf.mxu0
      %v1356 = vadd.f32 0.0, %v1355
      %v1357 = vpop.f32.mrf.mxu0
      %1358 = vmatprep.mubr.bf16.mxu0 %v831
      %1359 = vmatmul.mubr.bf16.gmra.mxu0 %v830
      %v1360 = vpop.f32.mrf.mxu0
      %v1361 = vadd.f32 0.0, %v1360
      %v1362 = vpop.f32.mrf.mxu0
      %v1363 = vpop.f32.mrf.mxu0
      %v1364 = vadd.f32 0.0, %v1363
      %v1365 = vpop.f32.mrf.mxu0
      %1366 = vmatprep.mubr.bf16.mxu0 %v837
      %1367 = vmatmul.mubr.bf16.gmra.mxu0 %v836
      %v1368 = vpop.f32.mrf.mxu0
      %v1369 = vadd.f32 0.0, %v1368
      %v1370 = vpop.f32.mrf.mxu0
      %v1371 = vpop.f32.mrf.mxu0
      %v1372 = vadd.f32 0.0, %v1371
      %v1373 = vpop.f32.mrf.mxu0
      %1374 = vmatprep.mubr.bf16.mxu0 %v843
      %1375 = vmatmul.mubr.bf16.gmra.mxu0 %v842
      %v1376 = vpop.f32.mrf.mxu0
      %v1377 = vadd.f32 0.0, %v1376
      %v1378 = vpop.f32.mrf.mxu0
      %v1379 = vpop.f32.mrf.mxu0
      %v1380 = vadd.f32 0.0, %v1379
      %v1381 = vpop.f32.mrf.mxu0
      %1382 = vmatprep.mubr.bf16.mxu0 %v849
      %1383 = vmatmul.mubr.bf16.gmra.mxu0 %v848
      %v1384 = vpop.f32.mrf.mxu0
      %v1385 = vadd.f32 0.0, %v1384
      %v1386 = vpop.f32.mrf.mxu0
      %v1387 = vpop.f32.mrf.mxu0
      %v1388 = vadd.f32 0.0, %v1387
      %v1389 = vpop.f32.mrf.mxu0
      %1390 = vmatprep.mubr.bf16.mxu0 %v855
      %1391 = vmatmul.mubr.bf16.gmra.mxu0 %v854
      %v1392 = vpop.f32.mrf.mxu0
      %v1393 = vadd.f32 0.0, %v1392
      %v1394 = vpop.f32.mrf.mxu0
      %v1395 = vpop.f32.mrf.mxu0
      %v1396 = vadd.f32 0.0, %v1395
      %v1397 = vpop.f32.mrf.mxu0
      %1398 = vmatprep.mubr.bf16.mxu0 %v861
      %1399 = vmatmul.mubr.bf16.gmra.mxu0 %v860
      %v1400 = vpop.f32.mrf.mxu0
      %v1401 = vadd.f32 0.0, %v1400
      %v1402 = vpop.f32.mrf.mxu0
      %v1403 = vpop.f32.mrf.mxu0
      %v1404 = vadd.f32 0.0, %v1403
      %v1405 = vpop.f32.mrf.mxu0
      %1406 = vmatprep.mubr.bf16.mxu0 %v867
      %1407 = vmatmul.mubr.bf16.gmra.mxu0 %v866
      %v1408 = vpop.f32.mrf.mxu0
      %v1409 = vadd.f32 0.0, %v1408
      %v1410 = vpop.f32.mrf.mxu0
      %v1411 = vpop.f32.mrf.mxu0
      %v1412 = vadd.f32 0.0, %v1411
      %v1413 = vpop.f32.mrf.mxu0
      %1414 = vmatprep.mubr.bf16.mxu0 %v873
      %1415 = vmatmul.mubr.bf16.gmra.mxu0 %v872
      %v1416 = vpop.f32.mrf.mxu0
      %v1417 = vadd.f32 0.0, %v1416
      %v1418 = vpop.f32.mrf.mxu0
      %v1419 = vpop.f32.mrf.mxu0
      %v1420 = vadd.f32 0.0, %v1419
      %v1421 = vpop.f32.mrf.mxu0
      %1422 = vdwg.mxu0
      %1423 = vmatprep.subr.bf16.mxu0 0
      %1424 = vmatpush1.bf16.msra.mxu0 %v1189
      %1425 = vmatprep.subr.bf16.mxu0 0
      %1426 = vmatpush1.bf16.msra.mxu0 %v1188
      %1427 = vmatprep.subr.bf16.mxu0 0
      %1428 = vmatpush1.bf16.msra.mxu0 %v1187
      %1429 = vmatprep.subr.bf16.mxu0 0
      %1430 = vmatpush1.bf16.msra.mxu0 %v1186
      %1431 = vmatprep.subr.bf16.mxu0 0
      %1432 = vmatpush1.bf16.msra.mxu0 %v1185
      %1433 = vmatprep.subr.bf16.mxu0 0
      %1434 = vmatpush1.bf16.msra.mxu0 %v1184
      %1435 = vmatprep.subr.bf16.mxu0 0
      %1436 = vmatpush1.bf16.msra.mxu0 %v1183
      %1437 = vmatprep.subr.bf16.mxu0 0
      %1438 = vmatpush1.bf16.msra.mxu0 %v1182
      %1439 = vmatprep.subr.bf16.mxu0 0
      %1440 = vmatpush2.bf16.msra.mxu0 %v1197
      %1441 = vmatprep.subr.bf16.mxu0 0
      %1442 = vmatpush2.bf16.msra.mxu0 %v1196
      %1443 = vmatprep.subr.bf16.mxu0 0
      %1444 = vmatpush2.bf16.msra.mxu0 %v1195
      %1445 = vmatprep.subr.bf16.mxu0 0
      %1446 = vmatpush2.bf16.msra.mxu0 %v1194
      %1447 = vmatprep.subr.bf16.mxu0 0
      %1448 = vmatpush2.bf16.msra.mxu0 %v1193
      %1449 = vmatprep.subr.bf16.mxu0 0
      %1450 = vmatpush2.bf16.msra.mxu0 %v1192
      %1451 = vmatprep.subr.bf16.mxu0 0
      %1452 = vmatpush2.bf16.msra.mxu0 %v1191
      %1453 = vmatprep.subr.bf16.mxu0 0
      %1454 = vmatpush2.bf16.msra.mxu0 %v1190
      %1455 = vmatprep.mubr.bf16.mxu0 %v785
      %1456 = vmatmul.mubr.bf16.gmra.mxu0 %v784
      %v1457 = vpop.f32.mrf.mxu0
      %v1458 = vadd.f32 %v1297, %v1457
      %v1459 = vpop.f32.mrf.mxu0
      %v1460 = vpop.f32.mrf.mxu0
      %v1461 = vadd.f32 %v1300, %v1460
      %v1462 = vpop.f32.mrf.mxu0
      %1463 = vmatprep.mubr.bf16.mxu0 %v791
      %1464 = vmatmul.mubr.bf16.gmra.mxu0 %v790
      %v1465 = vpop.f32.mrf.mxu0
      %v1466 = vadd.f32 %v1305, %v1465
      %v1467 = vpop.f32.mrf.mxu0
      %v1468 = vpop.f32.mrf.mxu0
      %v1469 = vadd.f32 %v1308, %v1468
      %v1470 = vpop.f32.mrf.mxu0
      %1471 = vmatprep.mubr.bf16.mxu0 %v797
      %1472 = vmatmul.mubr.bf16.gmra.mxu0 %v796
      %v1473 = vpop.f32.mrf.mxu0
      %v1474 = vadd.f32 %v1313, %v1473
      %v1475 = vpop.f32.mrf.mxu0
      %v1476 = vpop.f32.mrf.mxu0
      %v1477 = vadd.f32 %v1316, %v1476
      %v1478 = vpop.f32.mrf.mxu0
      %1479 = vmatprep.mubr.bf16.mxu0 %v803
      %1480 = vmatmul.mubr.bf16.gmra.mxu0 %v802
      %v1481 = vpop.f32.mrf.mxu0
      %v1482 = vadd.f32 %v1321, %v1481
      %v1483 = vpop.f32.mrf.mxu0
      %v1484 = vpop.f32.mrf.mxu0
      %v1485 = vadd.f32 %v1324, %v1484
      %v1486 = vpop.f32.mrf.mxu0
      %1487 = vmatprep.mubr.bf16.mxu0 %v809
      %1488 = vmatmul.mubr.bf16.gmra.mxu0 %v808
      %v1489 = vpop.f32.mrf.mxu0
      %v1490 = vadd.f32 %v1329, %v1489
      %v1491 = vpop.f32.mrf.mxu0
      %v1492 = vpop.f32.mrf.mxu0
      %v1493 = vadd.f32 %v1332, %v1492
      %v1494 = vpop.f32.mrf.mxu0
      %1495 = vmatprep.mubr.bf16.mxu0 %v815
      %1496 = vmatmul.mubr.bf16.gmra.mxu0 %v814
      %v1497 = vpop.f32.mrf.mxu0
      %v1498 = vadd.f32 %v1337, %v1497
      %v1499 = vpop.f32.mrf.mxu0
      %v1500 = vpop.f32.mrf.mxu0
      %v1501 = vadd.f32 %v1340, %v1500
      %v1502 = vpop.f32.mrf.mxu0
      %1503 = vmatprep.mubr.bf16.mxu0 %v821
      %1504 = vmatmul.mubr.bf16.gmra.mxu0 %v820
      %v1505 = vpop.f32.mrf.mxu0
      %v1506 = vadd.f32 %v1345, %v1505
      %v1507 = vpop.f32.mrf.mxu0
      %v1508 = vpop.f32.mrf.mxu0
      %v1509 = vadd.f32 %v1348, %v1508
      %v1510 = vpop.f32.mrf.mxu0
      %1511 = vmatprep.mubr.bf16.mxu0 %v827
      %1512 = vmatmul.mubr.bf16.gmra.mxu0 %v826
      %v1513 = vpop.f32.mrf.mxu0
      %v1514 = vadd.f32 %v1353, %v1513
      %v1515 = vpop.f32.mrf.mxu0
      %v1516 = vpop.f32.mrf.mxu0
      %v1517 = vadd.f32 %v1356, %v1516
      %v1518 = vpop.f32.mrf.mxu0
      %1519 = vmatprep.mubr.bf16.mxu0 %v833
      %1520 = vmatmul.mubr.bf16.gmra.mxu0 %v832
      %v1521 = vpop.f32.mrf.mxu0
      %v1522 = vadd.f32 %v1361, %v1521
      %v1523 = vpop.f32.mrf.mxu0
      %v1524 = vpop.f32.mrf.mxu0
      %v1525 = vadd.f32 %v1364, %v1524
      %v1526 = vpop.f32.mrf.mxu0
      %1527 = vmatprep.mubr.bf16.mxu0 %v839
      %1528 = vmatmul.mubr.bf16.gmra.mxu0 %v838
      %v1529 = vpop.f32.mrf.mxu0
      %v1530 = vadd.f32 %v1369, %v1529
      %v1531 = vpop.f32.mrf.mxu0
      %v1532 = vpop.f32.mrf.mxu0
      %v1533 = vadd.f32 %v1372, %v1532
      %v1534 = vpop.f32.mrf.mxu0
      %1535 = vmatprep.mubr.bf16.mxu0 %v845
      %1536 = vmatmul.mubr.bf16.gmra.mxu0 %v844
      %v1537 = vpop.f32.mrf.mxu0
      %v1538 = vadd.f32 %v1377, %v1537
      %v1539 = vpop.f32.mrf.mxu0
      %v1540 = vpop.f32.mrf.mxu0
      %v1541 = vadd.f32 %v1380, %v1540
      %v1542 = vpop.f32.mrf.mxu0
      %1543 = vmatprep.mubr.bf16.mxu0 %v851
      %1544 = vmatmul.mubr.bf16.gmra.mxu0 %v850
      %v1545 = vpop.f32.mrf.mxu0
      %v1546 = vadd.f32 %v1385, %v1545
      %v1547 = vpop.f32.mrf.mxu0
      %v1548 = vpop.f32.mrf.mxu0
      %v1549 = vadd.f32 %v1388, %v1548
      %v1550 = vpop.f32.mrf.mxu0
      %1551 = vmatprep.mubr.bf16.mxu0 %v857
      %1552 = vmatmul.mubr.bf16.gmra.mxu0 %v856
      %v1553 = vpop.f32.mrf.mxu0
      %v1554 = vadd.f32 %v1393, %v1553
      %v1555 = vpop.f32.mrf.mxu0
      %v1556 = vpop.f32.mrf.mxu0
      %v1557 = vadd.f32 %v1396, %v1556
      %v1558 = vpop.f32.mrf.mxu0
      %1559 = vmatprep.mubr.bf16.mxu0 %v863
      %1560 = vmatmul.mubr.bf16.gmra.mxu0 %v862
      %v1561 = vpop.f32.mrf.mxu0
      %v1562 = vadd.f32 %v1401, %v1561
      %v1563 = vpop.f32.mrf.mxu0
      %v1564 = vpop.f32.mrf.mxu0
      %v1565 = vadd.f32 %v1404, %v1564
      %v1566 = vpop.f32.mrf.mxu0
      %1567 = vmatprep.mubr.bf16.mxu0 %v869
      %1568 = vmatmul.mubr.bf16.gmra.mxu0 %v868
      %v1569 = vpop.f32.mrf.mxu0
      %v1570 = vadd.f32 %v1409, %v1569
      %v1571 = vpop.f32.mrf.mxu0
      %v1572 = vpop.f32.mrf.mxu0
      %v1573 = vadd.f32 %v1412, %v1572
      %v1574 = vpop.f32.mrf.mxu0
      %1575 = vmatprep.mubr.bf16.mxu0 %v875
      %1576 = vmatmul.mubr.bf16.gmra.mxu0 %v874
      %v1577 = vpop.f32.mrf.mxu0
      %v1578 = vadd.f32 %v1417, %v1577
      %v1579 = vpop.f32.mrf.mxu0
      %v1580 = vpop.f32.mrf.mxu0
      %v1581 = vadd.f32 %v1420, %v1580
      %v1582 = vpop.f32.mrf.mxu0
      %1583 = vdwg.mxu0
      %1584 = vmatprep.subr.bf16.mxu0 0
      %1585 = vmatpush1.bf16.msra.mxu0 %v1205
      %1586 = vmatprep.subr.bf16.mxu0 0
      %1587 = vmatpush1.bf16.msra.mxu0 %v1204
      %1588 = vmatprep.subr.bf16.mxu0 0
      %1589 = vmatpush1.bf16.msra.mxu0 %v1203
      %1590 = vmatprep.subr.bf16.mxu0 0
      %1591 = vmatpush1.bf16.msra.mxu0 %v1202
      %1592 = vmatprep.subr.bf16.mxu0 0
      %1593 = vmatpush1.bf16.msra.mxu0 %v1201
      %1594 = vmatprep.subr.bf16.mxu0 0
      %1595 = vmatpush1.bf16.msra.mxu0 %v1200
      %1596 = vmatprep.subr.bf16.mxu0 0
      %1597 = vmatpush1.bf16.msra.mxu0 %v1199
      %1598 = vmatprep.subr.bf16.mxu0 0
      %1599 = vmatpush1.bf16.msra.mxu0 %v1198
      %1600 = vmatprep.subr.bf16.mxu0 0
      %1601 = vmatpush2.bf16.msra.mxu0 %v1213
      %1602 = vmatprep.subr.bf16.mxu0 0
      %1603 = vmatpush2.bf16.msra.mxu0 %v1212
      %1604 = vmatprep.subr.bf16.mxu0 0
      %1605 = vmatpush2.bf16.msra.mxu0 %v1211
      %1606 = vmatprep.subr.bf16.mxu0 0
      %1607 = vmatpush2.bf16.msra.mxu0 %v1210
      %1608 = vmatprep.subr.bf16.mxu0 0
      %1609 = vmatpush2.bf16.msra.mxu0 %v1209
      %1610 = vmatprep.subr.bf16.mxu0 0
      %1611 = vmatpush2.bf16.msra.mxu0 %v1208
      %1612 = vmatprep.subr.bf16.mxu0 0
      %1613 = vmatpush2.bf16.msra.mxu0 %v1207
      %1614 = vmatprep.subr.bf16.mxu0 0
      %1615 = vmatpush2.bf16.msra.mxu0 %v1206
      %1616 = vmatprep.mubr.bf16.mxu0 %v787
      %1617 = vmatmul.mubr.bf16.gmra.mxu0 %v786
      %v1618 = vpop.f32.mrf.mxu0
      %v1619 = vadd.f32 %v1458, %v1618
      %v1620 = vpop.f32.mrf.mxu0
      %v1621 = vpop.f32.mrf.mxu0
      %v1622 = vadd.f32 %v1461, %v1621
      %v1623 = vpop.f32.mrf.mxu0
      %1624 = vmatprep.mubr.bf16.mxu0 %v793
      %1625 = vmatmul.mubr.bf16.gmra.mxu0 %v792
      %v1626 = vpop.f32.mrf.mxu0
      %v1627 = vadd.f32 %v1466, %v1626
      %v1628 = vpop.f32.mrf.mxu0
      %v1629 = vpop.f32.mrf.mxu0
      %v1630 = vadd.f32 %v1469, %v1629
      %v1631 = vpop.f32.mrf.mxu0
      %1632 = vmatprep.mubr.bf16.mxu0 %v799
      %1633 = vmatmul.mubr.bf16.gmra.mxu0 %v798
      %v1634 = vpop.f32.mrf.mxu0
      %v1635 = vadd.f32 %v1474, %v1634
      %v1636 = vpop.f32.mrf.mxu0
      %v1637 = vpop.f32.mrf.mxu0
      %v1638 = vadd.f32 %v1477, %v1637
      %v1639 = vpop.f32.mrf.mxu0
      %1640 = vmatprep.mubr.bf16.mxu0 %v805
      %1641 = vmatmul.mubr.bf16.gmra.mxu0 %v804
      %v1642 = vpop.f32.mrf.mxu0
      %v1643 = vadd.f32 %v1482, %v1642
      %v1644 = vpop.f32.mrf.mxu0
      %v1645 = vpop.f32.mrf.mxu0
      %v1646 = vadd.f32 %v1485, %v1645
      %v1647 = vpop.f32.mrf.mxu0
      %1648 = vmatprep.mubr.bf16.mxu0 %v811
      %1649 = vmatmul.mubr.bf16.gmra.mxu0 %v810
      %v1650 = vpop.f32.mrf.mxu0
      %v1651 = vadd.f32 %v1490, %v1650
      %v1652 = vpop.f32.mrf.mxu0
      %v1653 = vpop.f32.mrf.mxu0
      %v1654 = vadd.f32 %v1493, %v1653
      %v1655 = vpop.f32.mrf.mxu0
      %1656 = vmatprep.mubr.bf16.mxu0 %v817
      %1657 = vmatmul.mubr.bf16.gmra.mxu0 %v816
      %v1658 = vpop.f32.mrf.mxu0
      %v1659 = vadd.f32 %v1498, %v1658
      %v1660 = vpop.f32.mrf.mxu0
      %v1661 = vpop.f32.mrf.mxu0
      %v1662 = vadd.f32 %v1501, %v1661
      %v1663 = vpop.f32.mrf.mxu0
      %1664 = vmatprep.mubr.bf16.mxu0 %v823
      %1665 = vmatmul.mubr.bf16.gmra.mxu0 %v822
      %v1666 = vpop.f32.mrf.mxu0
      %v1667 = vadd.f32 %v1506, %v1666
      %v1668 = vpop.f32.mrf.mxu0
      %v1669 = vpop.f32.mrf.mxu0
      %v1670 = vadd.f32 %v1509, %v1669
      %v1671 = vpop.f32.mrf.mxu0
      %1672 = vmatprep.mubr.bf16.mxu0 %v829
      %1673 = vmatmul.mubr.bf16.gmra.mxu0 %v828
      %v1674 = vpop.f32.mrf.mxu0
      %v1675 = vadd.f32 %v1514, %v1674
      %v1676 = vpop.f32.mrf.mxu0
      %v1677 = vpop.f32.mrf.mxu0
      %v1678 = vadd.f32 %v1517, %v1677
      %v1679 = vpop.f32.mrf.mxu0
      %1680 = vmatprep.mubr.bf16.mxu0 %v835
      %1681 = vmatmul.mubr.bf16.gmra.mxu0 %v834
      %v1682 = vpop.f32.mrf.mxu0
      %v1683 = vadd.f32 %v1522, %v1682
      %v1684 = vpop.f32.mrf.mxu0
      %v1685 = vpop.f32.mrf.mxu0
      %v1686 = vadd.f32 %v1525, %v1685
      %v1687 = vpop.f32.mrf.mxu0
      %1688 = vmatprep.mubr.bf16.mxu0 %v841
      %1689 = vmatmul.mubr.bf16.gmra.mxu0 %v840
      %v1690 = vpop.f32.mrf.mxu0
      %v1691 = vadd.f32 %v1530, %v1690
      %v1692 = vpop.f32.mrf.mxu0
      %v1693 = vpop.f32.mrf.mxu0
      %v1694 = vadd.f32 %v1533, %v1693
      %v1695 = vpop.f32.mrf.mxu0
      %1696 = vmatprep.mubr.bf16.mxu0 %v847
      %1697 = vmatmul.mubr.bf16.gmra.mxu0 %v846
      %v1698 = vpop.f32.mrf.mxu0
      %v1699 = vadd.f32 %v1538, %v1698
      %v1700 = vpop.f32.mrf.mxu0
      %v1701 = vpop.f32.mrf.mxu0
      %v1702 = vadd.f32 %v1541, %v1701
      %v1703 = vpop.f32.mrf.mxu0
      %1704 = vmatprep.mubr.bf16.mxu0 %v853
      %1705 = vmatmul.mubr.bf16.gmra.mxu0 %v852
      %v1706 = vpop.f32.mrf.mxu0
      %v1707 = vadd.f32 %v1546, %v1706
      %v1708 = vpop.f32.mrf.mxu0
      %v1709 = vpop.f32.mrf.mxu0
      %v1710 = vadd.f32 %v1549, %v1709
      %v1711 = vpop.f32.mrf.mxu0
      %1712 = vmatprep.mubr.bf16.mxu0 %v859
      %1713 = vmatmul.mubr.bf16.gmra.mxu0 %v858
      %v1714 = vpop.f32.mrf.mxu0
      %v1715 = vadd.f32 %v1554, %v1714
      %v1716 = vpop.f32.mrf.mxu0
      %v1717 = vpop.f32.mrf.mxu0
      %v1718 = vadd.f32 %v1557, %v1717
      %v1719 = vpop.f32.mrf.mxu0
      %1720 = vmatprep.mubr.bf16.mxu0 %v865
      %1721 = vmatmul.mubr.bf16.gmra.mxu0 %v864
      %v1722 = vpop.f32.mrf.mxu0
      %v1723 = vadd.f32 %v1562, %v1722
      %v1724 = vpop.f32.mrf.mxu0
      %v1725 = vpop.f32.mrf.mxu0
      %v1726 = vadd.f32 %v1565, %v1725
      %v1727 = vpop.f32.mrf.mxu0
      %1728 = vmatprep.mubr.bf16.mxu0 %v871
      %1729 = vmatmul.mubr.bf16.gmra.mxu0 %v870
      %v1730 = vpop.f32.mrf.mxu0
      %v1731 = vadd.f32 %v1570, %v1730
      %v1732 = vpop.f32.mrf.mxu0
      %v1733 = vpop.f32.mrf.mxu0
      %v1734 = vadd.f32 %v1573, %v1733
      %v1735 = vpop.f32.mrf.mxu0
      %1736 = vmatprep.mubr.bf16.mxu0 %v877
      %1737 = vmatmul.mubr.bf16.gmra.mxu0 %v876
      %v1738 = vpop.f32.mrf.mxu0
      %v1739 = vadd.f32 %v1578, %v1738
      %v1740 = vpop.f32.mrf.mxu0
      %v1741 = vpop.f32.mrf.mxu0
      %v1742 = vadd.f32 %v1581, %v1741
      %v1743 = vpop.f32.mrf.mxu0
      %1744 = vdwg.mxu0
      %v1751 = vunpack.c.l.b16 %v199
      %v1752 = vunpack.c.h.b16 %v199
      %v1753 = vunpack.c.l.b16 %v200
      %v1754 = vunpack.c.h.b16 %v200
      %v1755 = vunpack.c.l.b16 %v201
      %v1756 = vunpack.c.h.b16 %v201
      %v1757 = vunpack.c.l.b16 %v202
      %v1758 = vunpack.c.h.b16 %v202
      %v1759 = vunpack.c.l.b16 %v203
      %v1760 = vunpack.c.h.b16 %v203
      %v1761 = vunpack.c.l.b16 %v204
      %v1762 = vunpack.c.h.b16 %v204
      %v1763 = vpack.c.b16 %v1757, %v1751
      %v1764 = vpack.c.b16 %v1758, %v1752
      %v1765 = vpack.c.b16 %v1759, %v1753
      %v1766 = vpack.c.b16 %v1760, %v1754
      %v1767 = vpack.c.b16 %v1761, %v1755
      %v1768 = vpack.c.b16 %v1762, %v1756
      %v1871 = vunpack.c.l.b16 %v295
      %v1872 = vunpack.c.l.b16 %v296
      %v1873 = vunpack.c.l.b16 %v297
      %v1874 = vunpack.c.l.b16 %v298
      %v1875 = vunpack.c.l.b16 %v299
      %v1876 = vunpack.c.l.b16 %v300
      %v1877 = vunpack.c.l.b16 %v301
      %v1878 = vunpack.c.l.b16 %v302
      %v1879 = vunpack.c.l.b16 %v303
      %v1880 = vunpack.c.l.b16 %v304
      %v1881 = vunpack.c.l.b16 %v305
      %v1882 = vunpack.c.l.b16 %v306
      %v1883 = vunpack.c.l.b16 %v307
      %v1884 = vunpack.c.l.b16 %v308
      %v1885 = vunpack.c.l.b16 %v309
      %v1886 = vunpack.c.l.b16 %v310
      %v1887 = vunpack.c.l.b16 %v311
      %v1888 = vunpack.c.l.b16 %v312
      %v1889 = vunpack.c.l.b16 %v313
      %v1890 = vunpack.c.l.b16 %v314
      %v1891 = vunpack.c.l.b16 %v315
      %v1892 = vunpack.c.l.b16 %v316
      %v1893 = vunpack.c.l.b16 %v317
      %v1894 = vunpack.c.l.b16 %v318
      %v1895 = vunpack.c.l.b16 %v319
      %v1896 = vunpack.c.l.b16 %v320
      %v1897 = vunpack.c.l.b16 %v321
      %v1898 = vunpack.c.l.b16 %v322
      %v1899 = vunpack.c.l.b16 %v323
      %v1900 = vunpack.c.l.b16 %v324
      %v1901 = vunpack.c.l.b16 %v325
      %v1902 = vunpack.c.l.b16 %v326
      %v1903 = vunpack.c.l.b16 %v327
      %v1904 = vunpack.c.l.b16 %v328
      %v1905 = vunpack.c.l.b16 %v329
      %v1906 = vunpack.c.l.b16 %v330
      %v1907 = vunpack.c.l.b16 %v331
      %v1908 = vunpack.c.l.b16 %v332
      %v1909 = vunpack.c.l.b16 %v333
      %v1910 = vunpack.c.l.b16 %v334
      %v1911 = vunpack.c.l.b16 %v335
      %v1912 = vunpack.c.l.b16 %v336
      %v1913 = vunpack.c.l.b16 %v337
      %v1914 = vunpack.c.l.b16 %v338
      %v1915 = vunpack.c.l.b16 %v339
      %v1916 = vunpack.c.l.b16 %v340
      %v1917 = vunpack.c.l.b16 %v341
      %v1918 = vunpack.c.l.b16 %v342
      %v1919 = vunpack.c.l.b16 %v343
      %v1920 = vunpack.c.l.b16 %v344
      %v1921 = vunpack.c.l.b16 %v345
      %v1922 = vunpack.c.l.b16 %v346
      %v1923 = vunpack.c.l.b16 %v347
      %v1924 = vunpack.c.l.b16 %v348
      %v1925 = vunpack.c.l.b16 %v349
      %v1926 = vunpack.c.l.b16 %v350
      %v1927 = vunpack.c.l.b16 %v351
      %v1928 = vunpack.c.l.b16 %v352
      %v1929 = vunpack.c.l.b16 %v353
      %v1930 = vunpack.c.l.b16 %v354
      %v1931 = vunpack.c.l.b16 %v355
      %v1932 = vunpack.c.l.b16 %v356
      %v1933 = vunpack.c.l.b16 %v357
      %v1934 = vunpack.c.l.b16 %v358
      %v1935 = vunpack.c.l.b16 %v359
      %v1936 = vunpack.c.l.b16 %v360
      %v1937 = vunpack.c.l.b16 %v361
      %v1938 = vunpack.c.l.b16 %v362
      %v1939 = vunpack.c.l.b16 %v363
      %v1940 = vunpack.c.l.b16 %v364
      %v1941 = vunpack.c.l.b16 %v365
      %v1942 = vunpack.c.l.b16 %v366
      %v1943 = vunpack.c.l.b16 %v367
      %v1944 = vunpack.c.l.b16 %v368
      %v1945 = vunpack.c.l.b16 %v369
      %v1946 = vunpack.c.l.b16 %v370
      %v1947 = vunpack.c.l.b16 %v371
      %v1948 = vunpack.c.l.b16 %v372
      %v1949 = vunpack.c.l.b16 %v373
      %v1950 = vunpack.c.l.b16 %v374
      %v1951 = vunpack.c.l.b16 %v375
      %v1952 = vunpack.c.l.b16 %v376
      %v1953 = vunpack.c.l.b16 %v377
      %v1954 = vunpack.c.l.b16 %v378
      %v1955 = vunpack.c.l.b16 %v379
      %v1956 = vunpack.c.l.b16 %v380
      %v1957 = vunpack.c.l.b16 %v381
      %v1958 = vunpack.c.l.b16 %v382
      %v1959 = vunpack.c.l.b16 %v383
      %v1960 = vunpack.c.l.b16 %v384
      %v1961 = vunpack.c.l.b16 %v385
      %v1962 = vunpack.c.l.b16 %v386
      %v1963 = vunpack.c.l.b16 %v387
      %v1964 = vunpack.c.l.b16 %v388
      %v1965 = vunpack.c.l.b16 %v389
      %v1966 = vunpack.c.l.b16 %v390
      %v1967 = vpack.c.b16 %v1872, %v1871
      %v1968 = vpack.c.b16 %v1874, %v1873
      %v1969 = vpack.c.b16 %v1876, %v1875
      %v1970 = vpack.c.b16 %v1878, %v1877
      %v1971 = vpack.c.b16 %v1880, %v1879
      %v1972 = vpack.c.b16 %v1882, %v1881
      %v1973 = vpack.c.b16 %v1884, %v1883
      %v1974 = vpack.c.b16 %v1886, %v1885
      %v1975 = vpack.c.b16 %v1888, %v1887
      %v1976 = vpack.c.b16 %v1890, %v1889
      %v1977 = vpack.c.b16 %v1892, %v1891
      %v1978 = vpack.c.b16 %v1894, %v1893
      %v1979 = vpack.c.b16 %v1896, %v1895
      %v1980 = vpack.c.b16 %v1898, %v1897
      %v1981 = vpack.c.b16 %v1900, %v1899
      %v1982 = vpack.c.b16 %v1902, %v1901
      %v1983 = vpack.c.b16 %v1904, %v1903
      %v1984 = vpack.c.b16 %v1906, %v1905
      %v1985 = vpack.c.b16 %v1908, %v1907
      %v1986 = vpack.c.b16 %v1910, %v1909
      %v1987 = vpack.c.b16 %v1912, %v1911
      %v1988 = vpack.c.b16 %v1914, %v1913
      %v1989 = vpack.c.b16 %v1916, %v1915
      %v1990 = vpack.c.b16 %v1918, %v1917
      %v1991 = vpack.c.b16 %v1920, %v1919
      %v1992 = vpack.c.b16 %v1922, %v1921
      %v1993 = vpack.c.b16 %v1924, %v1923
      %v1994 = vpack.c.b16 %v1926, %v1925
      %v1995 = vpack.c.b16 %v1928, %v1927
      %v1996 = vpack.c.b16 %v1930, %v1929
      %v1997 = vpack.c.b16 %v1932, %v1931
      %v1998 = vpack.c.b16 %v1934, %v1933
      %v1999 = vpack.c.b16 %v1936, %v1935
      %v2000 = vpack.c.b16 %v1938, %v1937
      %v2001 = vpack.c.b16 %v1940, %v1939
      %v2002 = vpack.c.b16 %v1942, %v1941
      %v2003 = vpack.c.b16 %v1944, %v1943
      %v2004 = vpack.c.b16 %v1946, %v1945
      %v2005 = vpack.c.b16 %v1948, %v1947
      %v2006 = vpack.c.b16 %v1950, %v1949
      %v2007 = vpack.c.b16 %v1952, %v1951
      %v2008 = vpack.c.b16 %v1954, %v1953
      %v2009 = vpack.c.b16 %v1956, %v1955
      %v2010 = vpack.c.b16 %v1958, %v1957
      %v2011 = vpack.c.b16 %v1960, %v1959
      %v2012 = vpack.c.b16 %v1962, %v1961
      %v2013 = vpack.c.b16 %v1964, %v1963
      %v2014 = vpack.c.b16 %v1966, %v1965
      %2063 = vmatprep.subr.bf16.mxu0 0
      %2064 = vmatpush1.bf16.msra.mxu0 %v1974
      %2065 = vmatprep.subr.bf16.mxu0 0
      %2066 = vmatpush1.bf16.msra.mxu0 %v1973
      %2067 = vmatprep.subr.bf16.mxu0 0
      %2068 = vmatpush1.bf16.msra.mxu0 %v1972
      %2069 = vmatprep.subr.bf16.mxu0 0
      %2070 = vmatpush1.bf16.msra.mxu0 %v1971
      %2071 = vmatprep.subr.bf16.mxu0 0
      %2072 = vmatpush1.bf16.msra.mxu0 %v1970
      %2073 = vmatprep.subr.bf16.mxu0 0
      %2074 = vmatpush1.bf16.msra.mxu0 %v1969
      %2075 = vmatprep.subr.bf16.mxu0 0
      %2076 = vmatpush1.bf16.msra.mxu0 %v1968
      %2077 = vmatprep.subr.bf16.mxu0 0
      %2078 = vmatpush1.bf16.msra.mxu0 %v1967
      %2079 = vmatprep.subr.bf16.mxu0 0
      %2080 = vmatpush2.bf16.msra.mxu0 %v1982
      %2081 = vmatprep.subr.bf16.mxu0 0
      %2082 = vmatpush2.bf16.msra.mxu0 %v1981
      %2083 = vmatprep.subr.bf16.mxu0 0
      %2084 = vmatpush2.bf16.msra.mxu0 %v1980
      %2085 = vmatprep.subr.bf16.mxu0 0
      %2086 = vmatpush2.bf16.msra.mxu0 %v1979
      %2087 = vmatprep.subr.bf16.mxu0 0
      %2088 = vmatpush2.bf16.msra.mxu0 %v1978
      %2089 = vmatprep.subr.bf16.mxu0 0
      %2090 = vmatpush2.bf16.msra.mxu0 %v1977
      %2091 = vmatprep.subr.bf16.mxu0 0
      %2092 = vmatpush2.bf16.msra.mxu0 %v1976
      %2093 = vmatprep.subr.bf16.mxu0 0
      %2094 = vmatpush2.bf16.msra.mxu0 %v1975
      %2095 = vmatprep.mubr.bf16.mxu0 %v1764
      %2096 = vmatmul.mubr.bf16.gmra.mxu0 %v1763
      %v2097 = vpop.f32.mrf.mxu0
      %v2098 = vadd.f32 %v1619, %v2097
      %v2099 = vpop.f32.mrf.mxu0
      %v2100 = vpop.f32.mrf.mxu0
      %v2101 = vadd.f32 %v1622, %v2100
      %v2102 = vpop.f32.mrf.mxu0
      %2103 = vmatprep.mubr.bf16.mxu0 %v783
      %2104 = vmatmul.mubr.bf16.gmra.mxu0 %v782
      %v2105 = vpop.f32.mrf.mxu0
      %v2106 = vadd.f32 %v1627, %v2105
      %v2107 = vpop.f32.mrf.mxu0
      %v2108 = vpop.f32.mrf.mxu0
      %v2109 = vadd.f32 %v1630, %v2108
      %v2110 = vpop.f32.mrf.mxu0
      %2111 = vmatprep.mubr.bf16.mxu0 %v789
      %2112 = vmatmul.mubr.bf16.gmra.mxu0 %v788
      %v2113 = vpop.f32.mrf.mxu0
      %v2114 = vadd.f32 %v1635, %v2113
      %v2115 = vpop.f32.mrf.mxu0
      %v2116 = vpop.f32.mrf.mxu0
      %v2117 = vadd.f32 %v1638, %v2116
      %v2118 = vpop.f32.mrf.mxu0
      %2119 = vmatprep.mubr.bf16.mxu0 %v795
      %2120 = vmatmul.mubr.bf16.gmra.mxu0 %v794
      %v2121 = vpop.f32.mrf.mxu0
      %v2122 = vadd.f32 %v1643, %v2121
      %v2123 = vpop.f32.mrf.mxu0
      %v2124 = vpop.f32.mrf.mxu0
      %v2125 = vadd.f32 %v1646, %v2124
      %v2126 = vpop.f32.mrf.mxu0
      %2127 = vmatprep.mubr.bf16.mxu0 %v801
      %2128 = vmatmul.mubr.bf16.gmra.mxu0 %v800
      %v2129 = vpop.f32.mrf.mxu0
      %v2130 = vadd.f32 %v1651, %v2129
      %v2131 = vpop.f32.mrf.mxu0
      %v2132 = vpop.f32.mrf.mxu0
      %v2133 = vadd.f32 %v1654, %v2132
      %v2134 = vpop.f32.mrf.mxu0
      %2135 = vmatprep.mubr.bf16.mxu0 %v807
      %2136 = vmatmul.mubr.bf16.gmra.mxu0 %v806
      %v2137 = vpop.f32.mrf.mxu0
      %v2138 = vadd.f32 %v1659, %v2137
      %v2139 = vpop.f32.mrf.mxu0
      %v2140 = vpop.f32.mrf.mxu0
      %v2141 = vadd.f32 %v1662, %v2140
      %v2142 = vpop.f32.mrf.mxu0
      %2143 = vmatprep.mubr.bf16.mxu0 %v813
      %2144 = vmatmul.mubr.bf16.gmra.mxu0 %v812
      %v2145 = vpop.f32.mrf.mxu0
      %v2146 = vadd.f32 %v1667, %v2145
      %v2147 = vpop.f32.mrf.mxu0
      %v2148 = vpop.f32.mrf.mxu0
      %v2149 = vadd.f32 %v1670, %v2148
      %v2150 = vpop.f32.mrf.mxu0
      %2151 = vmatprep.mubr.bf16.mxu0 %v819
      %2152 = vmatmul.mubr.bf16.gmra.mxu0 %v818
      %v2153 = vpop.f32.mrf.mxu0
      %v2154 = vadd.f32 %v1675, %v2153
      %v2155 = vpop.f32.mrf.mxu0
      %v2156 = vpop.f32.mrf.mxu0
      %v2157 = vadd.f32 %v1678, %v2156
      %v2158 = vpop.f32.mrf.mxu0
      %2159 = vmatprep.mubr.bf16.mxu0 %v825
      %2160 = vmatmul.mubr.bf16.gmra.mxu0 %v824
      %v2161 = vpop.f32.mrf.mxu0
      %v2162 = vadd.f32 %v1683, %v2161
      %v2163 = vpop.f32.mrf.mxu0
      %v2164 = vpop.f32.mrf.mxu0
      %v2165 = vadd.f32 %v1686, %v2164
      %v2166 = vpop.f32.mrf.mxu0
      %2167 = vmatprep.mubr.bf16.mxu0 %v831
      %2168 = vmatmul.mubr.bf16.gmra.mxu0 %v830
      %v2169 = vpop.f32.mrf.mxu0
      %v2170 = vadd.f32 %v1691, %v2169
      %v2171 = vpop.f32.mrf.mxu0
      %v2172 = vpop.f32.mrf.mxu0
      %v2173 = vadd.f32 %v1694, %v2172
      %v2174 = vpop.f32.mrf.mxu0
      %2175 = vmatprep.mubr.bf16.mxu0 %v837
      %2176 = vmatmul.mubr.bf16.gmra.mxu0 %v836
      %v2177 = vpop.f32.mrf.mxu0
      %v2178 = vadd.f32 %v1699, %v2177
      %v2179 = vpop.f32.mrf.mxu0
      %v2180 = vpop.f32.mrf.mxu0
      %v2181 = vadd.f32 %v1702, %v2180
      %v2182 = vpop.f32.mrf.mxu0
      %2183 = vmatprep.mubr.bf16.mxu0 %v843
      %2184 = vmatmul.mubr.bf16.gmra.mxu0 %v842
      %v2185 = vpop.f32.mrf.mxu0
      %v2186 = vadd.f32 %v1707, %v2185
      %v2187 = vpop.f32.mrf.mxu0
      %v2188 = vpop.f32.mrf.mxu0
      %v2189 = vadd.f32 %v1710, %v2188
      %v2190 = vpop.f32.mrf.mxu0
      %2191 = vmatprep.mubr.bf16.mxu0 %v849
      %2192 = vmatmul.mubr.bf16.gmra.mxu0 %v848
      %v2193 = vpop.f32.mrf.mxu0
      %v2194 = vadd.f32 %v1715, %v2193
      %v2195 = vpop.f32.mrf.mxu0
      %v2196 = vpop.f32.mrf.mxu0
      %v2197 = vadd.f32 %v1718, %v2196
      %v2198 = vpop.f32.mrf.mxu0
      %2199 = vmatprep.mubr.bf16.mxu0 %v855
      %2200 = vmatmul.mubr.bf16.gmra.mxu0 %v854
      %v2201 = vpop.f32.mrf.mxu0
      %v2202 = vadd.f32 %v1723, %v2201
      %v2203 = vpop.f32.mrf.mxu0
      %v2204 = vpop.f32.mrf.mxu0
      %v2205 = vadd.f32 %v1726, %v2204
      %v2206 = vpop.f32.mrf.mxu0
      %2207 = vmatprep.mubr.bf16.mxu0 %v861
      %2208 = vmatmul.mubr.bf16.gmra.mxu0 %v860
      %v2209 = vpop.f32.mrf.mxu0
      %v2210 = vadd.f32 %v1731, %v2209
      %v2211 = vpop.f32.mrf.mxu0
      %v2212 = vpop.f32.mrf.mxu0
      %v2213 = vadd.f32 %v1734, %v2212
      %v2214 = vpop.f32.mrf.mxu0
      %2215 = vmatprep.mubr.bf16.mxu0 %v867
      %2216 = vmatmul.mubr.bf16.gmra.mxu0 %v866
      %v2217 = vpop.f32.mrf.mxu0
      %v2218 = vadd.f32 %v1739, %v2217
      %v2219 = vpop.f32.mrf.mxu0
      %v2220 = vpop.f32.mrf.mxu0
      %v2221 = vadd.f32 %v1742, %v2220
      %v2222 = vpop.f32.mrf.mxu0
      %2223 = vdwg.mxu0
      %2224 = vmatprep.subr.bf16.mxu0 0
      %2225 = vmatpush1.bf16.msra.mxu0 %v1990
      %2226 = vmatprep.subr.bf16.mxu0 0
      %2227 = vmatpush1.bf16.msra.mxu0 %v1989
      %2228 = vmatprep.subr.bf16.mxu0 0
      %2229 = vmatpush1.bf16.msra.mxu0 %v1988
      %2230 = vmatprep.subr.bf16.mxu0 0
      %2231 = vmatpush1.bf16.msra.mxu0 %v1987
      %2232 = vmatprep.subr.bf16.mxu0 0
      %2233 = vmatpush1.bf16.msra.mxu0 %v1986
      %2234 = vmatprep.subr.bf16.mxu0 0
      %2235 = vmatpush1.bf16.msra.mxu0 %v1985
      %2236 = vmatprep.subr.bf16.mxu0 0
      %2237 = vmatpush1.bf16.msra.mxu0 %v1984
      %2238 = vmatprep.subr.bf16.mxu0 0
      %2239 = vmatpush1.bf16.msra.mxu0 %v1983
      %2240 = vmatprep.subr.bf16.mxu0 0
      %2241 = vmatpush2.bf16.msra.mxu0 %v1998
      %2242 = vmatprep.subr.bf16.mxu0 0
      %2243 = vmatpush2.bf16.msra.mxu0 %v1997
      %2244 = vmatprep.subr.bf16.mxu0 0
      %2245 = vmatpush2.bf16.msra.mxu0 %v1996
      %2246 = vmatprep.subr.bf16.mxu0 0
      %2247 = vmatpush2.bf16.msra.mxu0 %v1995
      %2248 = vmatprep.subr.bf16.mxu0 0
      %2249 = vmatpush2.bf16.msra.mxu0 %v1994
      %2250 = vmatprep.subr.bf16.mxu0 0
      %2251 = vmatpush2.bf16.msra.mxu0 %v1993
      %2252 = vmatprep.subr.bf16.mxu0 0
      %2253 = vmatpush2.bf16.msra.mxu0 %v1992
      %2254 = vmatprep.subr.bf16.mxu0 0
      %2255 = vmatpush2.bf16.msra.mxu0 %v1991
      %2256 = vmatprep.mubr.bf16.mxu0 %v1766
      %2257 = vmatmul.mubr.bf16.gmra.mxu0 %v1765
      %v2258 = vpop.f32.mrf.mxu0
      %v2259 = vadd.f32 %v2098, %v2258
      %v2260 = vpop.f32.mrf.mxu0
      %v2261 = vpop.f32.mrf.mxu0
      %v2262 = vadd.f32 %v2101, %v2261
      %v2263 = vpop.f32.mrf.mxu0
      %2264 = vmatprep.mubr.bf16.mxu0 %v785
      %2265 = vmatmul.mubr.bf16.gmra.mxu0 %v784
      %v2266 = vpop.f32.mrf.mxu0
      %v2267 = vadd.f32 %v2106, %v2266
      %v2268 = vpop.f32.mrf.mxu0
      %v2269 = vpop.f32.mrf.mxu0
      %v2270 = vadd.f32 %v2109, %v2269
      %v2271 = vpop.f32.mrf.mxu0
      %2272 = vmatprep.mubr.bf16.mxu0 %v791
      %2273 = vmatmul.mubr.bf16.gmra.mxu0 %v790
      %v2274 = vpop.f32.mrf.mxu0
      %v2275 = vadd.f32 %v2114, %v2274
      %v2276 = vpop.f32.mrf.mxu0
      %v2277 = vpop.f32.mrf.mxu0
      %v2278 = vadd.f32 %v2117, %v2277
      %v2279 = vpop.f32.mrf.mxu0
      %2280 = vmatprep.mubr.bf16.mxu0 %v797
      %2281 = vmatmul.mubr.bf16.gmra.mxu0 %v796
      %v2282 = vpop.f32.mrf.mxu0
      %v2283 = vadd.f32 %v2122, %v2282
      %v2284 = vpop.f32.mrf.mxu0
      %v2285 = vpop.f32.mrf.mxu0
      %v2286 = vadd.f32 %v2125, %v2285
      %v2287 = vpop.f32.mrf.mxu0
      %2288 = vmatprep.mubr.bf16.mxu0 %v803
      %2289 = vmatmul.mubr.bf16.gmra.mxu0 %v802
      %v2290 = vpop.f32.mrf.mxu0
      %v2291 = vadd.f32 %v2130, %v2290
      %v2292 = vpop.f32.mrf.mxu0
      %v2293 = vpop.f32.mrf.mxu0
      %v2294 = vadd.f32 %v2133, %v2293
      %v2295 = vpop.f32.mrf.mxu0
      %2296 = vmatprep.mubr.bf16.mxu0 %v809
      %2297 = vmatmul.mubr.bf16.gmra.mxu0 %v808
      %v2298 = vpop.f32.mrf.mxu0
      %v2299 = vadd.f32 %v2138, %v2298
      %v2300 = vpop.f32.mrf.mxu0
      %v2301 = vpop.f32.mrf.mxu0
      %v2302 = vadd.f32 %v2141, %v2301
      %v2303 = vpop.f32.mrf.mxu0
      %2304 = vmatprep.mubr.bf16.mxu0 %v815
      %2305 = vmatmul.mubr.bf16.gmra.mxu0 %v814
      %v2306 = vpop.f32.mrf.mxu0
      %v2307 = vadd.f32 %v2146, %v2306
      %v2308 = vpop.f32.mrf.mxu0
      %v2309 = vpop.f32.mrf.mxu0
      %v2310 = vadd.f32 %v2149, %v2309
      %v2311 = vpop.f32.mrf.mxu0
      %2312 = vmatprep.mubr.bf16.mxu0 %v821
      %2313 = vmatmul.mubr.bf16.gmra.mxu0 %v820
      %v2314 = vpop.f32.mrf.mxu0
      %v2315 = vadd.f32 %v2154, %v2314
      %v2316 = vpop.f32.mrf.mxu0
      %v2317 = vpop.f32.mrf.mxu0
      %v2318 = vadd.f32 %v2157, %v2317
      %v2319 = vpop.f32.mrf.mxu0
      %2320 = vmatprep.mubr.bf16.mxu0 %v827
      %2321 = vmatmul.mubr.bf16.gmra.mxu0 %v826
      %v2322 = vpop.f32.mrf.mxu0
      %v2323 = vadd.f32 %v2162, %v2322
      %v2324 = vpop.f32.mrf.mxu0
      %v2325 = vpop.f32.mrf.mxu0
      %v2326 = vadd.f32 %v2165, %v2325
      %v2327 = vpop.f32.mrf.mxu0
      %2328 = vmatprep.mubr.bf16.mxu0 %v833
      %2329 = vmatmul.mubr.bf16.gmra.mxu0 %v832
      %v2330 = vpop.f32.mrf.mxu0
      %v2331 = vadd.f32 %v2170, %v2330
      %v2332 = vpop.f32.mrf.mxu0
      %v2333 = vpop.f32.mrf.mxu0
      %v2334 = vadd.f32 %v2173, %v2333
      %v2335 = vpop.f32.mrf.mxu0
      %2336 = vmatprep.mubr.bf16.mxu0 %v839
      %2337 = vmatmul.mubr.bf16.gmra.mxu0 %v838
      %v2338 = vpop.f32.mrf.mxu0
      %v2339 = vadd.f32 %v2178, %v2338
      %v2340 = vpop.f32.mrf.mxu0
      %v2341 = vpop.f32.mrf.mxu0
      %v2342 = vadd.f32 %v2181, %v2341
      %v2343 = vpop.f32.mrf.mxu0
      %2344 = vmatprep.mubr.bf16.mxu0 %v845
      %2345 = vmatmul.mubr.bf16.gmra.mxu0 %v844
      %v2346 = vpop.f32.mrf.mxu0
      %v2347 = vadd.f32 %v2186, %v2346
      %v2348 = vpop.f32.mrf.mxu0
      %v2349 = vpop.f32.mrf.mxu0
      %v2350 = vadd.f32 %v2189, %v2349
      %v2351 = vpop.f32.mrf.mxu0
      %2352 = vmatprep.mubr.bf16.mxu0 %v851
      %2353 = vmatmul.mubr.bf16.gmra.mxu0 %v850
      %v2354 = vpop.f32.mrf.mxu0
      %v2355 = vadd.f32 %v2194, %v2354
      %v2356 = vpop.f32.mrf.mxu0
      %v2357 = vpop.f32.mrf.mxu0
      %v2358 = vadd.f32 %v2197, %v2357
      %v2359 = vpop.f32.mrf.mxu0
      %2360 = vmatprep.mubr.bf16.mxu0 %v857
      %2361 = vmatmul.mubr.bf16.gmra.mxu0 %v856
      %v2362 = vpop.f32.mrf.mxu0
      %v2363 = vadd.f32 %v2202, %v2362
      %v2364 = vpop.f32.mrf.mxu0
      %v2365 = vpop.f32.mrf.mxu0
      %v2366 = vadd.f32 %v2205, %v2365
      %v2367 = vpop.f32.mrf.mxu0
      %2368 = vmatprep.mubr.bf16.mxu0 %v863
      %2369 = vmatmul.mubr.bf16.gmra.mxu0 %v862
      %v2370 = vpop.f32.mrf.mxu0
      %v2371 = vadd.f32 %v2210, %v2370
      %v2372 = vpop.f32.mrf.mxu0
      %v2373 = vpop.f32.mrf.mxu0
      %v2374 = vadd.f32 %v2213, %v2373
      %v2375 = vpop.f32.mrf.mxu0
      %2376 = vmatprep.mubr.bf16.mxu0 %v869
      %2377 = vmatmul.mubr.bf16.gmra.mxu0 %v868
      %v2378 = vpop.f32.mrf.mxu0
      %v2379 = vadd.f32 %v2218, %v2378
      %v2380 = vpop.f32.mrf.mxu0
      %v2381 = vpop.f32.mrf.mxu0
      %v2382 = vadd.f32 %v2221, %v2381
      %v2383 = vpop.f32.mrf.mxu0
      %2384 = vdwg.mxu0
      %2385 = vmatprep.subr.bf16.mxu0 0
      %2386 = vmatpush1.bf16.msra.mxu0 %v2006
      %2387 = vmatprep.subr.bf16.mxu0 0
      %2388 = vmatpush1.bf16.msra.mxu0 %v2005
      %2389 = vmatprep.subr.bf16.mxu0 0
      %2390 = vmatpush1.bf16.msra.mxu0 %v2004
      %2391 = vmatprep.subr.bf16.mxu0 0
      %2392 = vmatpush1.bf16.msra.mxu0 %v2003
      %2393 = vmatprep.subr.bf16.mxu0 0
      %2394 = vmatpush1.bf16.msra.mxu0 %v2002
      %2395 = vmatprep.subr.bf16.mxu0 0
      %2396 = vmatpush1.bf16.msra.mxu0 %v2001
      %2397 = vmatprep.subr.bf16.mxu0 0
      %2398 = vmatpush1.bf16.msra.mxu0 %v2000
      %2399 = vmatprep.subr.bf16.mxu0 0
      %2400 = vmatpush1.bf16.msra.mxu0 %v1999
      %2401 = vmatprep.subr.bf16.mxu0 0
      %2402 = vmatpush2.bf16.msra.mxu0 %v2014
      %2403 = vmatprep.subr.bf16.mxu0 0
      %2404 = vmatpush2.bf16.msra.mxu0 %v2013
      %2405 = vmatprep.subr.bf16.mxu0 0
      %2406 = vmatpush2.bf16.msra.mxu0 %v2012
      %2407 = vmatprep.subr.bf16.mxu0 0
      %2408 = vmatpush2.bf16.msra.mxu0 %v2011
      %2409 = vmatprep.subr.bf16.mxu0 0
      %2410 = vmatpush2.bf16.msra.mxu0 %v2010
      %2411 = vmatprep.subr.bf16.mxu0 0
      %2412 = vmatpush2.bf16.msra.mxu0 %v2009
      %2413 = vmatprep.subr.bf16.mxu0 0
      %2414 = vmatpush2.bf16.msra.mxu0 %v2008
      %2415 = vmatprep.subr.bf16.mxu0 0
      %2416 = vmatpush2.bf16.msra.mxu0 %v2007
      %2417 = vmatprep.mubr.bf16.mxu0 %v1768
      %2418 = vmatmul.mubr.bf16.gmra.mxu0 %v1767
      %v2419 = vpop.f32.mrf.mxu0
      %v2420 = vadd.f32 %v2259, %v2419
      %v2421 = vpop.f32.mrf.mxu0
      %v2422 = vpop.f32.mrf.mxu0
      %v2423 = vadd.f32 %v2262, %v2422
      %v2424 = vpop.f32.mrf.mxu0
      %2425 = vmatprep.mubr.bf16.mxu0 %v787
      %2426 = vmatmul.mubr.bf16.gmra.mxu0 %v786
      %v2427 = vpop.f32.mrf.mxu0
      %v2428 = vadd.f32 %v2267, %v2427
      %v2429 = vpop.f32.mrf.mxu0
      %v2430 = vpop.f32.mrf.mxu0
      %v2431 = vadd.f32 %v2270, %v2430
      %v2432 = vpop.f32.mrf.mxu0
      %2433 = vmatprep.mubr.bf16.mxu0 %v793
      %2434 = vmatmul.mubr.bf16.gmra.mxu0 %v792
      %v2435 = vpop.f32.mrf.mxu0
      %v2436 = vadd.f32 %v2275, %v2435
      %v2437 = vpop.f32.mrf.mxu0
      %v2438 = vpop.f32.mrf.mxu0
      %v2439 = vadd.f32 %v2278, %v2438
      %v2440 = vpop.f32.mrf.mxu0
      %2441 = vmatprep.mubr.bf16.mxu0 %v799
      %2442 = vmatmul.mubr.bf16.gmra.mxu0 %v798
      %v2443 = vpop.f32.mrf.mxu0
      %v2444 = vadd.f32 %v2283, %v2443
      %v2445 = vpop.f32.mrf.mxu0
      %v2446 = vpop.f32.mrf.mxu0
      %v2447 = vadd.f32 %v2286, %v2446
      %v2448 = vpop.f32.mrf.mxu0
      %2449 = vmatprep.mubr.bf16.mxu0 %v805
      %2450 = vmatmul.mubr.bf16.gmra.mxu0 %v804
      %v2451 = vpop.f32.mrf.mxu0
      %v2452 = vadd.f32 %v2291, %v2451
      %v2453 = vpop.f32.mrf.mxu0
      %v2454 = vpop.f32.mrf.mxu0
      %v2455 = vadd.f32 %v2294, %v2454
      %v2456 = vpop.f32.mrf.mxu0
      %2457 = vmatprep.mubr.bf16.mxu0 %v811
      %2458 = vmatmul.mubr.bf16.gmra.mxu0 %v810
      %v2459 = vpop.f32.mrf.mxu0
      %v2460 = vadd.f32 %v2299, %v2459
      %v2461 = vpop.f32.mrf.mxu0
      %v2462 = vpop.f32.mrf.mxu0
      %v2463 = vadd.f32 %v2302, %v2462
      %v2464 = vpop.f32.mrf.mxu0
      %2465 = vmatprep.mubr.bf16.mxu0 %v817
      %2466 = vmatmul.mubr.bf16.gmra.mxu0 %v816
      %v2467 = vpop.f32.mrf.mxu0
      %v2468 = vadd.f32 %v2307, %v2467
      %v2469 = vpop.f32.mrf.mxu0
      %v2470 = vpop.f32.mrf.mxu0
      %v2471 = vadd.f32 %v2310, %v2470
      %v2472 = vpop.f32.mrf.mxu0
      %2473 = vmatprep.mubr.bf16.mxu0 %v823
      %2474 = vmatmul.mubr.bf16.gmra.mxu0 %v822
      %v2475 = vpop.f32.mrf.mxu0
      %v2476 = vadd.f32 %v2315, %v2475
      %v2477 = vpop.f32.mrf.mxu0
      %v2478 = vpop.f32.mrf.mxu0
      %v2479 = vadd.f32 %v2318, %v2478
      %v2480 = vpop.f32.mrf.mxu0
      %2481 = vmatprep.mubr.bf16.mxu0 %v829
      %2482 = vmatmul.mubr.bf16.gmra.mxu0 %v828
      %v2483 = vpop.f32.mrf.mxu0
      %v2484 = vadd.f32 %v2323, %v2483
      %v2485 = vpop.f32.mrf.mxu0
      %v2486 = vpop.f32.mrf.mxu0
      %v2487 = vadd.f32 %v2326, %v2486
      %v2488 = vpop.f32.mrf.mxu0
      %2489 = vmatprep.mubr.bf16.mxu0 %v835
      %2490 = vmatmul.mubr.bf16.gmra.mxu0 %v834
      %v2491 = vpop.f32.mrf.mxu0
      %v2492 = vadd.f32 %v2331, %v2491
      %v2493 = vpop.f32.mrf.mxu0
      %v2494 = vpop.f32.mrf.mxu0
      %v2495 = vadd.f32 %v2334, %v2494
      %v2496 = vpop.f32.mrf.mxu0
      %2497 = vmatprep.mubr.bf16.mxu0 %v841
      %2498 = vmatmul.mubr.bf16.gmra.mxu0 %v840
      %v2499 = vpop.f32.mrf.mxu0
      %v2500 = vadd.f32 %v2339, %v2499
      %v2501 = vpop.f32.mrf.mxu0
      %v2502 = vpop.f32.mrf.mxu0
      %v2503 = vadd.f32 %v2342, %v2502
      %v2504 = vpop.f32.mrf.mxu0
      %2505 = vmatprep.mubr.bf16.mxu0 %v847
      %2506 = vmatmul.mubr.bf16.gmra.mxu0 %v846
      %v2507 = vpop.f32.mrf.mxu0
      %v2508 = vadd.f32 %v2347, %v2507
      %v2509 = vpop.f32.mrf.mxu0
      %v2510 = vpop.f32.mrf.mxu0
      %v2511 = vadd.f32 %v2350, %v2510
      %v2512 = vpop.f32.mrf.mxu0
      %2513 = vmatprep.mubr.bf16.mxu0 %v853
      %2514 = vmatmul.mubr.bf16.gmra.mxu0 %v852
      %v2515 = vpop.f32.mrf.mxu0
      %v2516 = vadd.f32 %v2355, %v2515
      %v2517 = vpop.f32.mrf.mxu0
      %v2518 = vpop.f32.mrf.mxu0
      %v2519 = vadd.f32 %v2358, %v2518
      %v2520 = vpop.f32.mrf.mxu0
      %2521 = vmatprep.mubr.bf16.mxu0 %v859
      %2522 = vmatmul.mubr.bf16.gmra.mxu0 %v858
      %v2523 = vpop.f32.mrf.mxu0
      %v2524 = vadd.f32 %v2363, %v2523
      %v2525 = vpop.f32.mrf.mxu0
      %v2526 = vpop.f32.mrf.mxu0
      %v2527 = vadd.f32 %v2366, %v2526
      %v2528 = vpop.f32.mrf.mxu0
      %2529 = vmatprep.mubr.bf16.mxu0 %v865
      %2530 = vmatmul.mubr.bf16.gmra.mxu0 %v864
      %v2531 = vpop.f32.mrf.mxu0
      %v2532 = vadd.f32 %v2371, %v2531
      %v2533 = vpop.f32.mrf.mxu0
      %v2534 = vpop.f32.mrf.mxu0
      %v2535 = vadd.f32 %v2374, %v2534
      %v2536 = vpop.f32.mrf.mxu0
      %2537 = vmatprep.mubr.bf16.mxu0 %v871
      %2538 = vmatmul.mubr.bf16.gmra.mxu0 %v870
      %v2539 = vpop.f32.mrf.mxu0
      %v2540 = vadd.f32 %v2379, %v2539
      %v2541 = vpop.f32.mrf.mxu0
      %v2542 = vpop.f32.mrf.mxu0
      %v2543 = vadd.f32 %v2382, %v2542
      %v2544 = vpop.f32.mrf.mxu0
      %2545 = vdwg.mxu0
      %v2546 = vld [vmem:[%s192 + $0x60] sm:$0xff]
      %v2547 = vld [vmem:[%s192 + $0x68] sm:$0xff]
      %v2548 = vld [vmem:[%s192 + $0x70] sm:$0xff]
      %v2549 = vld [vmem:[%s192 + $0x78] sm:$0xff]
      %v2550 = vld [vmem:[%s192 + $0x80] sm:$0xff]
      %v2551 = vld [vmem:[%s192 + $0x88] sm:$0xff]
      %v2552 = vld [vmem:[%s192 + $0x90] sm:$0xff]
      %v2553 = vld [vmem:[%s192 + $0x98] sm:$0xff]
      %v2554 = vld [vmem:[%s192 + $0xa0] sm:$0xff]
      %v2555 = vld [vmem:[%s192 + $0xa8] sm:$0xff]
      %v2556 = vld [vmem:[%s192 + $0xb0] sm:$0xff]
      %v2557 = vld [vmem:[%s192 + $0xb8] sm:$0xff]
      %v2558 = vld [vmem:[%s192 + $0xc0] sm:$0xff]
      %v2559 = vld [vmem:[%s192 + $0xc8] sm:$0xff]
      %v2560 = vld [vmem:[%s192 + $0xd0] sm:$0xff]
      %v2561 = vld [vmem:[%s192 + $0xd8] sm:$0xff]
      %v2562 = vld [vmem:[%s192 + $0xe0] sm:$0xff]
      %v2563 = vld [vmem:[%s192 + $0xe8] sm:$0xff]
      %v2564 = vld [vmem:[%s192 + $0xf0] sm:$0xff]
      %v2565 = vld [vmem:[%s192 + $0xf8] sm:$0xff]
      %v2566 = vld [vmem:[%s192 + $0x100] sm:$0xff]
      %v2567 = vld [vmem:[%s192 + $0x108] sm:$0xff]
      %v2568 = vld [vmem:[%s192 + $0x110] sm:$0xff]
      %v2569 = vld [vmem:[%s192 + $0x118] sm:$0xff]
      %v2570 = vld [vmem:[%s192 + $0x120] sm:$0xff]
      %v2571 = vld [vmem:[%s192 + $0x128] sm:$0xff]
      %v2572 = vld [vmem:[%s192 + $0x130] sm:$0xff]
      %v2573 = vld [vmem:[%s192 + $0x138] sm:$0xff]
      %v2574 = vld [vmem:[%s192 + $0x140] sm:$0xff]
      %v2575 = vld [vmem:[%s192 + $0x148] sm:$0xff]
      %v2576 = vld [vmem:[%s192 + $0x150] sm:$0xff]
      %v2577 = vld [vmem:[%s192 + $0x158] sm:$0xff]
      %v2578 = vld [vmem:[%s192 + $0x160] sm:$0xff]
      %v2579 = vld [vmem:[%s192 + $0x168] sm:$0xff]
      %v2580 = vld [vmem:[%s192 + $0x170] sm:$0xff]
      %v2581 = vld [vmem:[%s192 + $0x178] sm:$0xff]
      %v2582 = vld [vmem:[%s192 + $0x180] sm:$0xff]
      %v2583 = vld [vmem:[%s192 + $0x188] sm:$0xff]
      %v2584 = vld [vmem:[%s192 + $0x190] sm:$0xff]
      %v2585 = vld [vmem:[%s192 + $0x198] sm:$0xff]
      %v2586 = vld [vmem:[%s192 + $0x1a0] sm:$0xff]
      %v2587 = vld [vmem:[%s192 + $0x1a8] sm:$0xff]
      %v2588 = vld [vmem:[%s192 + $0x1b0] sm:$0xff]
      %v2589 = vld [vmem:[%s192 + $0x1b8] sm:$0xff]
      %v2590 = vld [vmem:[%s192 + $0x1c0] sm:$0xff]
      %v2591 = vld [vmem:[%s192 + $0x1c8] sm:$0xff]
      %v2592 = vld [vmem:[%s192 + $0x1d0] sm:$0xff]
      %v2593 = vld [vmem:[%s192 + $0x1d8] sm:$0xff]
      %v2594 = vld [vmem:[%s192 + $0x1e0] sm:$0xff]
      %v2595 = vld [vmem:[%s192 + $0x1e8] sm:$0xff]
      %v2596 = vld [vmem:[%s192 + $0x1f0] sm:$0xff]
      %v2597 = vld [vmem:[%s192 + $0x1f8] sm:$0xff]
      %v2598 = vld [vmem:[%s192 + $0x200] sm:$0xff]
      %v2599 = vld [vmem:[%s192 + $0x208] sm:$0xff]
      %v2600 = vld [vmem:[%s192 + $0x210] sm:$0xff]
      %v2601 = vld [vmem:[%s192 + $0x218] sm:$0xff]
      %v2602 = vld [vmem:[%s192 + $0x220] sm:$0xff]
      %v2603 = vld [vmem:[%s192 + $0x228] sm:$0xff]
      %v2604 = vld [vmem:[%s192 + $0x230] sm:$0xff]
      %v2605 = vld [vmem:[%s192 + $0x238] sm:$0xff]
      %v2606 = vld [vmem:[%s192 + $0x240] sm:$0xff]
      %v2607 = vld [vmem:[%s192 + $0x248] sm:$0xff]
      %v2608 = vld [vmem:[%s192 + $0x250] sm:$0xff]
      %v2609 = vld [vmem:[%s192 + $0x258] sm:$0xff]
      %v2610 = vld [vmem:[%s192 + $0x260] sm:$0xff]
      %v2611 = vld [vmem:[%s192 + $0x268] sm:$0xff]
      %v2612 = vld [vmem:[%s192 + $0x270] sm:$0xff]
      %v2613 = vld [vmem:[%s192 + $0x278] sm:$0xff]
      %v2614 = vld [vmem:[%s192 + $0x280] sm:$0xff]
      %v2615 = vld [vmem:[%s192 + $0x288] sm:$0xff]
      %v2616 = vld [vmem:[%s192 + $0x290] sm:$0xff]
      %v2617 = vld [vmem:[%s192 + $0x298] sm:$0xff]
      %v2618 = vld [vmem:[%s192 + $0x2a0] sm:$0xff]
      %v2619 = vld [vmem:[%s192 + $0x2a8] sm:$0xff]
      %v2620 = vld [vmem:[%s192 + $0x2b0] sm:$0xff]
      %v2621 = vld [vmem:[%s192 + $0x2b8] sm:$0xff]
      %v2622 = vld [vmem:[%s192 + $0x2c0] sm:$0xff]
      %v2623 = vld [vmem:[%s192 + $0x2c8] sm:$0xff]
      %v2624 = vld [vmem:[%s192 + $0x2d0] sm:$0xff]
      %v2625 = vld [vmem:[%s192 + $0x2d8] sm:$0xff]
      %v2626 = vld [vmem:[%s192 + $0x2e0] sm:$0xff]
      %v2627 = vld [vmem:[%s192 + $0x2e8] sm:$0xff]
      %v2628 = vld [vmem:[%s192 + $0x2f0] sm:$0xff]
      %v2629 = vld [vmem:[%s192 + $0x2f8] sm:$0xff]
      %v2630 = vld [vmem:[%s192 + $0x300] sm:$0xff]
      %v2631 = vld [vmem:[%s192 + $0x308] sm:$0xff]
      %v2632 = vld [vmem:[%s192 + $0x310] sm:$0xff]
      %v2633 = vld [vmem:[%s192 + $0x318] sm:$0xff]
      %v2634 = vld [vmem:[%s192 + $0x320] sm:$0xff]
      %v2635 = vld [vmem:[%s192 + $0x328] sm:$0xff]
      %v2636 = vld [vmem:[%s192 + $0x330] sm:$0xff]
      %v2637 = vld [vmem:[%s192 + $0x338] sm:$0xff]
      %v2638 = vld [vmem:[%s192 + $0x340] sm:$0xff]
      %v2639 = vld [vmem:[%s192 + $0x348] sm:$0xff]
      %v2640 = vld [vmem:[%s192 + $0x350] sm:$0xff]
      %v2641 = vld [vmem:[%s192 + $0x358] sm:$0xff]
      %s2642 = scalar_lea.vmem %s1, 768
      %v2643 = vld [vmem:[%s2642] sm:$0xf]
      %v2644 = vld [vmem:[%s2642 + $0x4] sm:$0xf]
      %v2645 = vld [vmem:[%s2642 + $0x8] sm:$0xf]
      %v2646 = vld [vmem:[%s2642 + $0xc] sm:$0xf]
      %v2647 = vld [vmem:[%s2642 + $0x10] sm:$0xf]
      %v2648 = vld [vmem:[%s2642 + $0x14] sm:$0xf]
      %v2649 = vld [vmem:[%s2642 + $0x18] sm:$0xf]
      %v2650 = vld [vmem:[%s2642 + $0x1c] sm:$0xf]
      %v2651 = vld [vmem:[%s2642 + $0x20] sm:$0xf]
      %v2652 = vld [vmem:[%s2642 + $0x24] sm:$0xf]
      %v2653 = vld [vmem:[%s2642 + $0x28] sm:$0xf]
      %v2654 = vld [vmem:[%s2642 + $0x2c] sm:$0xf]
      %v2655 = vld [vmem:[%s2642 + $0x30] sm:$0xf]
      %v2656 = vld [vmem:[%s2642 + $0x34] sm:$0xf]
      %v2657 = vld [vmem:[%s2642 + $0x38] sm:$0xf]
      %v2658 = vld [vmem:[%s2642 + $0x3c] sm:$0xf]
      %v2659 = vld [vmem:[%s2642 + $0x40] sm:$0xf]
      %v2660 = vld [vmem:[%s2642 + $0x44] sm:$0xf]
      %v2661 = vld [vmem:[%s2642 + $0x48] sm:$0xf]
      %v2662 = vld [vmem:[%s2642 + $0x4c] sm:$0xf]
      %v2663 = vld [vmem:[%s2642 + $0x50] sm:$0xf]
      %v2664 = vld [vmem:[%s2642 + $0x54] sm:$0xf]
      %v2665 = vld [vmem:[%s2642 + $0x58] sm:$0xf]
      %v2666 = vld [vmem:[%s2642 + $0x5c] sm:$0xf]
      %v2667 = vld [vmem:[%s2642 + $0x60] sm:$0xf]
      %v2668 = vld [vmem:[%s2642 + $0x64] sm:$0xf]
      %v2669 = vld [vmem:[%s2642 + $0x68] sm:$0xf]
      %v2670 = vld [vmem:[%s2642 + $0x6c] sm:$0xf]
      %v2671 = vld [vmem:[%s2642 + $0x70] sm:$0xf]
      %v2672 = vld [vmem:[%s2642 + $0x74] sm:$0xf]
      %v2673 = vld [vmem:[%s2642 + $0x78] sm:$0xf]
      %v2674 = vld [vmem:[%s2642 + $0x7c] sm:$0xf]
      %v2675 = vld [vmem:[%s2642 + $0x80] sm:$0xf]
      %v2676 = vld [vmem:[%s2642 + $0x84] sm:$0xf]
      %v2677 = vld [vmem:[%s2642 + $0x88] sm:$0xf]
      %v2678 = vld [vmem:[%s2642 + $0x8c] sm:$0xf]
      %v2679 = vld [vmem:[%s2642 + $0x90] sm:$0xf]
      %v2680 = vld [vmem:[%s2642 + $0x94] sm:$0xf]
      %v2681 = vld [vmem:[%s2642 + $0x98] sm:$0xf]
      %v2682 = vld [vmem:[%s2642 + $0x9c] sm:$0xf]
      %v2683 = vld [vmem:[%s2642 + $0xa0] sm:$0xf]
      %v2684 = vld [vmem:[%s2642 + $0xa4] sm:$0xf]
      %v2685 = vld [vmem:[%s2642 + $0xa8] sm:$0xf]
      %v2686 = vld [vmem:[%s2642 + $0xac] sm:$0xf]
      %v2687 = vld [vmem:[%s2642 + $0xb0] sm:$0xf]
      %v2688 = vld [vmem:[%s2642 + $0xb4] sm:$0xf]
      %v2689 = vld [vmem:[%s2642 + $0xb8] sm:$0xf]
      %v2690 = vld [vmem:[%s2642 + $0xbc] sm:$0xf]
      %v2691 = vld [vmem:[%s2642 + $0xc0] sm:$0xf]
      %v2692 = vld [vmem:[%s2642 + $0xc4] sm:$0xf]
      %v2693 = vld [vmem:[%s2642 + $0xc8] sm:$0xf]
      %v2694 = vld [vmem:[%s2642 + $0xcc] sm:$0xf]
      %v2695 = vld [vmem:[%s2642 + $0xd0] sm:$0xf]
      %v2696 = vld [vmem:[%s2642 + $0xd4] sm:$0xf]
      %v2697 = vld [vmem:[%s2642 + $0xd8] sm:$0xf]
      %v2698 = vld [vmem:[%s2642 + $0xdc] sm:$0xf]
      %v2699 = vld [vmem:[%s2642 + $0xe0] sm:$0xf]
      %v2700 = vld [vmem:[%s2642 + $0xe4] sm:$0xf]
      %v2701 = vld [vmem:[%s2642 + $0xe8] sm:$0xf]
      %v2702 = vld [vmem:[%s2642 + $0xec] sm:$0xf]
      %v2703 = vld [vmem:[%s2642 + $0xf0] sm:$0xf]
      %v2704 = vld [vmem:[%s2642 + $0xf4] sm:$0xf]
      %v2705 = vld [vmem:[%s2642 + $0xf8] sm:$0xf]
      %v2706 = vld [vmem:[%s2642 + $0xfc] sm:$0xf]
      %v2707 = vld [vmem:[%s2642 + $0x100] sm:$0xf]
      %v2708 = vld [vmem:[%s2642 + $0x104] sm:$0xf]
      %v2709 = vld [vmem:[%s2642 + $0x108] sm:$0xf]
      %v2710 = vld [vmem:[%s2642 + $0x10c] sm:$0xf]
      %v2711 = vld [vmem:[%s2642 + $0x110] sm:$0xf]
      %v2712 = vld [vmem:[%s2642 + $0x114] sm:$0xf]
      %v2713 = vld [vmem:[%s2642 + $0x118] sm:$0xf]
      %v2714 = vld [vmem:[%s2642 + $0x11c] sm:$0xf]
      %v2715 = vld [vmem:[%s2642 + $0x120] sm:$0xf]
      %v2716 = vld [vmem:[%s2642 + $0x124] sm:$0xf]
      %v2717 = vld [vmem:[%s2642 + $0x128] sm:$0xf]
      %v2718 = vld [vmem:[%s2642 + $0x12c] sm:$0xf]
      %v2719 = vld [vmem:[%s2642 + $0x130] sm:$0xf]
      %v2720 = vld [vmem:[%s2642 + $0x134] sm:$0xf]
      %v2721 = vld [vmem:[%s2642 + $0x138] sm:$0xf]
      %v2722 = vld [vmem:[%s2642 + $0x13c] sm:$0xf]
      %v2723 = vld [vmem:[%s2642 + $0x140] sm:$0xf]
      %v2724 = vld [vmem:[%s2642 + $0x144] sm:$0xf]
      %v2725 = vld [vmem:[%s2642 + $0x148] sm:$0xf]
      %v2726 = vld [vmem:[%s2642 + $0x14c] sm:$0xf]
      %v2727 = vld [vmem:[%s2642 + $0x150] sm:$0xf]
      %v2728 = vld [vmem:[%s2642 + $0x154] sm:$0xf]
      %v2729 = vld [vmem:[%s2642 + $0x158] sm:$0xf]
      %v2730 = vld [vmem:[%s2642 + $0x15c] sm:$0xf]
      %v2731 = vld [vmem:[%s2642 + $0x160] sm:$0xf]
      %v2732 = vld [vmem:[%s2642 + $0x164] sm:$0xf]
      %v2733 = vld [vmem:[%s2642 + $0x168] sm:$0xf]
      %v2734 = vld [vmem:[%s2642 + $0x16c] sm:$0xf]
      %v2735 = vld [vmem:[%s2642 + $0x170] sm:$0xf]
      %v2736 = vld [vmem:[%s2642 + $0x174] sm:$0xf]
      %v2737 = vld [vmem:[%s2642 + $0x178] sm:$0xf]
      %v2738 = vld [vmem:[%s2642 + $0x17c] sm:$0xf]
      %v2835 = vunpack.c.l.b16 %v2546
      %v2836 = vunpack.c.h.b16 %v2546
      %v2837 = vunpack.c.l.b16 %v2547
      %v2838 = vunpack.c.h.b16 %v2547
      %v2839 = vunpack.c.l.b16 %v2548
      %v2840 = vunpack.c.h.b16 %v2548
      %v2841 = vunpack.c.l.b16 %v2549
      %v2842 = vunpack.c.h.b16 %v2549
      %v2843 = vunpack.c.l.b16 %v2550
      %v2844 = vunpack.c.h.b16 %v2550
      %v2845 = vunpack.c.l.b16 %v2551
      %v2846 = vunpack.c.h.b16 %v2551
      %v2847 = vunpack.c.l.b16 %v2552
      %v2848 = vunpack.c.h.b16 %v2552
      %v2849 = vunpack.c.l.b16 %v2553
      %v2850 = vunpack.c.h.b16 %v2553
      %v2851 = vunpack.c.l.b16 %v2554
      %v2852 = vunpack.c.h.b16 %v2554
      %v2853 = vunpack.c.l.b16 %v2555
      %v2854 = vunpack.c.h.b16 %v2555
      %v2855 = vunpack.c.l.b16 %v2556
      %v2856 = vunpack.c.h.b16 %v2556
      %v2857 = vunpack.c.l.b16 %v2557
      %v2858 = vunpack.c.h.b16 %v2557
      %v2859 = vunpack.c.l.b16 %v2558
      %v2860 = vunpack.c.h.b16 %v2558
      %v2861 = vunpack.c.l.b16 %v2559
      %v2862 = vunpack.c.h.b16 %v2559
      %v2863 = vunpack.c.l.b16 %v2560
      %v2864 = vunpack.c.h.b16 %v2560
      %v2865 = vunpack.c.l.b16 %v2561
      %v2866 = vunpack.c.h.b16 %v2561
      %v2867 = vunpack.c.l.b16 %v2562
      %v2868 = vunpack.c.h.b16 %v2562
      %v2869 = vunpack.c.l.b16 %v2563
      %v2870 = vunpack.c.h.b16 %v2563
      %v2871 = vunpack.c.l.b16 %v2564
      %v2872 = vunpack.c.h.b16 %v2564
      %v2873 = vunpack.c.l.b16 %v2565
      %v2874 = vunpack.c.h.b16 %v2565
      %v2875 = vunpack.c.l.b16 %v2566
      %v2876 = vunpack.c.h.b16 %v2566
      %v2877 = vunpack.c.l.b16 %v2567
      %v2878 = vunpack.c.h.b16 %v2567
      %v2879 = vunpack.c.l.b16 %v2568
      %v2880 = vunpack.c.h.b16 %v2568
      %v2881 = vunpack.c.l.b16 %v2569
      %v2882 = vunpack.c.h.b16 %v2569
      %v2883 = vunpack.c.l.b16 %v2570
      %v2884 = vunpack.c.h.b16 %v2570
      %v2885 = vunpack.c.l.b16 %v2571
      %v2886 = vunpack.c.h.b16 %v2571
      %v2887 = vunpack.c.l.b16 %v2572
      %v2888 = vunpack.c.h.b16 %v2572
      %v2889 = vunpack.c.l.b16 %v2573
      %v2890 = vunpack.c.h.b16 %v2573
      %v2891 = vunpack.c.l.b16 %v2574
      %v2892 = vunpack.c.h.b16 %v2574
      %v2893 = vunpack.c.l.b16 %v2575
      %v2894 = vunpack.c.h.b16 %v2575
      %v2895 = vunpack.c.l.b16 %v2576
      %v2896 = vunpack.c.h.b16 %v2576
      %v2897 = vunpack.c.l.b16 %v2577
      %v2898 = vunpack.c.h.b16 %v2577
      %v2899 = vunpack.c.l.b16 %v2578
      %v2900 = vunpack.c.h.b16 %v2578
      %v2901 = vunpack.c.l.b16 %v2579
      %v2902 = vunpack.c.h.b16 %v2579
      %v2903 = vunpack.c.l.b16 %v2580
      %v2904 = vunpack.c.h.b16 %v2580
      %v2905 = vunpack.c.l.b16 %v2581
      %v2906 = vunpack.c.h.b16 %v2581
      %v2907 = vunpack.c.l.b16 %v2582
      %v2908 = vunpack.c.h.b16 %v2582
      %v2909 = vunpack.c.l.b16 %v2583
      %v2910 = vunpack.c.h.b16 %v2583
      %v2911 = vunpack.c.l.b16 %v2584
      %v2912 = vunpack.c.h.b16 %v2584
      %v2913 = vunpack.c.l.b16 %v2585
      %v2914 = vunpack.c.h.b16 %v2585
      %v2915 = vunpack.c.l.b16 %v2586
      %v2916 = vunpack.c.h.b16 %v2586
      %v2917 = vunpack.c.l.b16 %v2587
      %v2918 = vunpack.c.h.b16 %v2587
      %v2919 = vunpack.c.l.b16 %v2588
      %v2920 = vunpack.c.h.b16 %v2588
      %v2921 = vunpack.c.l.b16 %v2589
      %v2922 = vunpack.c.h.b16 %v2589
      %v2923 = vunpack.c.l.b16 %v2590
      %v2924 = vunpack.c.h.b16 %v2590
      %v2925 = vunpack.c.l.b16 %v2591
      %v2926 = vunpack.c.h.b16 %v2591
      %v2927 = vunpack.c.l.b16 %v2592
      %v2928 = vunpack.c.h.b16 %v2592
      %v2929 = vunpack.c.l.b16 %v2593
      %v2930 = vunpack.c.h.b16 %v2593
      %v2931 = vunpack.c.l.b16 %v2594
      %v2932 = vunpack.c.h.b16 %v2594
      %v2933 = vunpack.c.l.b16 %v2595
      %v2934 = vunpack.c.h.b16 %v2595
      %v2935 = vunpack.c.l.b16 %v2596
      %v2936 = vunpack.c.h.b16 %v2596
      %v2937 = vunpack.c.l.b16 %v2597
      %v2938 = vunpack.c.h.b16 %v2597
      %v2939 = vunpack.c.l.b16 %v2598
      %v2940 = vunpack.c.h.b16 %v2598
      %v2941 = vunpack.c.l.b16 %v2599
      %v2942 = vunpack.c.h.b16 %v2599
      %v2943 = vunpack.c.l.b16 %v2600
      %v2944 = vunpack.c.h.b16 %v2600
      %v2945 = vunpack.c.l.b16 %v2601
      %v2946 = vunpack.c.h.b16 %v2601
      %v2947 = vunpack.c.l.b16 %v2602
      %v2948 = vunpack.c.h.b16 %v2602
      %v2949 = vunpack.c.l.b16 %v2603
      %v2950 = vunpack.c.h.b16 %v2603
      %v2951 = vunpack.c.l.b16 %v2604
      %v2952 = vunpack.c.h.b16 %v2604
      %v2953 = vunpack.c.l.b16 %v2605
      %v2954 = vunpack.c.h.b16 %v2605
      %v2955 = vunpack.c.l.b16 %v2606
      %v2956 = vunpack.c.h.b16 %v2606
      %v2957 = vunpack.c.l.b16 %v2607
      %v2958 = vunpack.c.h.b16 %v2607
      %v2959 = vunpack.c.l.b16 %v2608
      %v2960 = vunpack.c.h.b16 %v2608
      %v2961 = vunpack.c.l.b16 %v2609
      %v2962 = vunpack.c.h.b16 %v2609
      %v2963 = vunpack.c.l.b16 %v2610
      %v2964 = vunpack.c.h.b16 %v2610
      %v2965 = vunpack.c.l.b16 %v2611
      %v2966 = vunpack.c.h.b16 %v2611
      %v2967 = vunpack.c.l.b16 %v2612
      %v2968 = vunpack.c.h.b16 %v2612
      %v2969 = vunpack.c.l.b16 %v2613
      %v2970 = vunpack.c.h.b16 %v2613
      %v2971 = vunpack.c.l.b16 %v2614
      %v2972 = vunpack.c.h.b16 %v2614
      %v2973 = vunpack.c.l.b16 %v2615
      %v2974 = vunpack.c.h.b16 %v2615
      %v2975 = vunpack.c.l.b16 %v2616
      %v2976 = vunpack.c.h.b16 %v2616
      %v2977 = vunpack.c.l.b16 %v2617
      %v2978 = vunpack.c.h.b16 %v2617
      %v2979 = vunpack.c.l.b16 %v2618
      %v2980 = vunpack.c.h.b16 %v2618
      %v2981 = vunpack.c.l.b16 %v2619
      %v2982 = vunpack.c.h.b16 %v2619
      %v2983 = vunpack.c.l.b16 %v2620
      %v2984 = vunpack.c.h.b16 %v2620
      %v2985 = vunpack.c.l.b16 %v2621
      %v2986 = vunpack.c.h.b16 %v2621
      %v2987 = vunpack.c.l.b16 %v2622
      %v2988 = vunpack.c.h.b16 %v2622
      %v2989 = vunpack.c.l.b16 %v2623
      %v2990 = vunpack.c.h.b16 %v2623
      %v2991 = vunpack.c.l.b16 %v2624
      %v2992 = vunpack.c.h.b16 %v2624
      %v2993 = vunpack.c.l.b16 %v2625
      %v2994 = vunpack.c.h.b16 %v2625
      %v2995 = vunpack.c.l.b16 %v2626
      %v2996 = vunpack.c.h.b16 %v2626
      %v2997 = vunpack.c.l.b16 %v2627
      %v2998 = vunpack.c.h.b16 %v2627
      %v2999 = vunpack.c.l.b16 %v2628
      %v3000 = vunpack.c.h.b16 %v2628
      %v3001 = vunpack.c.l.b16 %v2629
      %v3002 = vunpack.c.h.b16 %v2629
      %v3003 = vunpack.c.l.b16 %v2630
      %v3004 = vunpack.c.h.b16 %v2630
      %v3005 = vunpack.c.l.b16 %v2631
      %v3006 = vunpack.c.h.b16 %v2631
      %v3007 = vunpack.c.l.b16 %v2632
      %v3008 = vunpack.c.h.b16 %v2632
      %v3009 = vunpack.c.l.b16 %v2633
      %v3010 = vunpack.c.h.b16 %v2633
      %v3011 = vunpack.c.l.b16 %v2634
      %v3012 = vunpack.c.h.b16 %v2634
      %v3013 = vunpack.c.l.b16 %v2635
      %v3014 = vunpack.c.h.b16 %v2635
      %v3015 = vunpack.c.l.b16 %v2636
      %v3016 = vunpack.c.h.b16 %v2636
      %v3017 = vunpack.c.l.b16 %v2637
      %v3018 = vunpack.c.h.b16 %v2637
      %v3019 = vunpack.c.l.b16 %v2638
      %v3020 = vunpack.c.h.b16 %v2638
      %v3021 = vunpack.c.l.b16 %v2639
      %v3022 = vunpack.c.h.b16 %v2639
      %v3023 = vunpack.c.l.b16 %v2640
      %v3024 = vunpack.c.h.b16 %v2640
      %v3025 = vunpack.c.l.b16 %v2641
      %v3026 = vunpack.c.h.b16 %v2641
      %v3027 = vpack.c.b16 %v2841, %v2835
      %v3028 = vpack.c.b16 %v2842, %v2836
      %v3029 = vpack.c.b16 %v2843, %v2837
      %v3030 = vpack.c.b16 %v2844, %v2838
      %v3031 = vpack.c.b16 %v2845, %v2839
      %v3032 = vpack.c.b16 %v2846, %v2840
      %v3033 = vpack.c.b16 %v2853, %v2847
      %v3034 = vpack.c.b16 %v2854, %v2848
      %v3035 = vpack.c.b16 %v2855, %v2849
      %v3036 = vpack.c.b16 %v2856, %v2850
      %v3037 = vpack.c.b16 %v2857, %v2851
      %v3038 = vpack.c.b16 %v2858, %v2852
      %v3039 = vpack.c.b16 %v2865, %v2859
      %v3040 = vpack.c.b16 %v2866, %v2860
      %v3041 = vpack.c.b16 %v2867, %v2861
      %v3042 = vpack.c.b16 %v2868, %v2862
      %v3043 = vpack.c.b16 %v2869, %v2863
      %v3044 = vpack.c.b16 %v2870, %v2864
      %v3045 = vpack.c.b16 %v2877, %v2871
      %v3046 = vpack.c.b16 %v2878, %v2872
      %v3047 = vpack.c.b16 %v2879, %v2873
      %v3048 = vpack.c.b16 %v2880, %v2874
      %v3049 = vpack.c.b16 %v2881, %v2875
      %v3050 = vpack.c.b16 %v2882, %v2876
      %v3051 = vpack.c.b16 %v2889, %v2883
      %v3052 = vpack.c.b16 %v2890, %v2884
      %v3053 = vpack.c.b16 %v2891, %v2885
      %v3054 = vpack.c.b16 %v2892, %v2886
      %v3055 = vpack.c.b16 %v2893, %v2887
      %v3056 = vpack.c.b16 %v2894, %v2888
      %v3057 = vpack.c.b16 %v2901, %v2895
      %v3058 = vpack.c.b16 %v2902, %v2896
      %v3059 = vpack.c.b16 %v2903, %v2897
      %v3060 = vpack.c.b16 %v2904, %v2898
      %v3061 = vpack.c.b16 %v2905, %v2899
      %v3062 = vpack.c.b16 %v2906, %v2900
      %v3063 = vpack.c.b16 %v2913, %v2907
      %v3064 = vpack.c.b16 %v2914, %v2908
      %v3065 = vpack.c.b16 %v2915, %v2909
      %v3066 = vpack.c.b16 %v2916, %v2910
      %v3067 = vpack.c.b16 %v2917, %v2911
      %v3068 = vpack.c.b16 %v2918, %v2912
      %v3069 = vpack.c.b16 %v2925, %v2919
      %v3070 = vpack.c.b16 %v2926, %v2920
      %v3071 = vpack.c.b16 %v2927, %v2921
      %v3072 = vpack.c.b16 %v2928, %v2922
      %v3073 = vpack.c.b16 %v2929, %v2923
      %v3074 = vpack.c.b16 %v2930, %v2924
      %v3075 = vpack.c.b16 %v2937, %v2931
      %v3076 = vpack.c.b16 %v2938, %v2932
      %v3077 = vpack.c.b16 %v2939, %v2933
      %v3078 = vpack.c.b16 %v2940, %v2934
      %v3079 = vpack.c.b16 %v2941, %v2935
      %v3080 = vpack.c.b16 %v2942, %v2936
      %v3081 = vpack.c.b16 %v2949, %v2943
      %v3082 = vpack.c.b16 %v2950, %v2944
      %v3083 = vpack.c.b16 %v2951, %v2945
      %v3084 = vpack.c.b16 %v2952, %v2946
      %v3085 = vpack.c.b16 %v2953, %v2947
      %v3086 = vpack.c.b16 %v2954, %v2948
      %v3087 = vpack.c.b16 %v2961, %v2955
      %v3088 = vpack.c.b16 %v2962, %v2956
      %v3089 = vpack.c.b16 %v2963, %v2957
      %v3090 = vpack.c.b16 %v2964, %v2958
      %v3091 = vpack.c.b16 %v2965, %v2959
      %v3092 = vpack.c.b16 %v2966, %v2960
      %v3093 = vpack.c.b16 %v2973, %v2967
      %v3094 = vpack.c.b16 %v2974, %v2968
      %v3095 = vpack.c.b16 %v2975, %v2969
      %v3096 = vpack.c.b16 %v2976, %v2970
      %v3097 = vpack.c.b16 %v2977, %v2971
      %v3098 = vpack.c.b16 %v2978, %v2972
      %v3099 = vpack.c.b16 %v2985, %v2979
      %v3100 = vpack.c.b16 %v2986, %v2980
      %v3101 = vpack.c.b16 %v2987, %v2981
      %v3102 = vpack.c.b16 %v2988, %v2982
      %v3103 = vpack.c.b16 %v2989, %v2983
      %v3104 = vpack.c.b16 %v2990, %v2984
      %v3105 = vpack.c.b16 %v2997, %v2991
      %v3106 = vpack.c.b16 %v2998, %v2992
      %v3107 = vpack.c.b16 %v2999, %v2993
      %v3108 = vpack.c.b16 %v3000, %v2994
      %v3109 = vpack.c.b16 %v3001, %v2995
      %v3110 = vpack.c.b16 %v3002, %v2996
      %v3111 = vpack.c.b16 %v3009, %v3003
      %v3112 = vpack.c.b16 %v3010, %v3004
      %v3113 = vpack.c.b16 %v3011, %v3005
      %v3114 = vpack.c.b16 %v3012, %v3006
      %v3115 = vpack.c.b16 %v3013, %v3007
      %v3116 = vpack.c.b16 %v3014, %v3008
      %v3117 = vpack.c.b16 %v3021, %v3015
      %v3118 = vpack.c.b16 %v3022, %v3016
      %v3119 = vpack.c.b16 %v3023, %v3017
      %v3120 = vpack.c.b16 %v3024, %v3018
      %v3121 = vpack.c.b16 %v3025, %v3019
      %v3122 = vpack.c.b16 %v3026, %v3020
      %v3315 = vunpack.c.l.b16 %v2643
      %v3316 = vunpack.c.l.b16 %v2644
      %v3317 = vunpack.c.l.b16 %v2645
      %v3318 = vunpack.c.l.b16 %v2646
      %v3319 = vunpack.c.l.b16 %v2647
      %v3320 = vunpack.c.l.b16 %v2648
      %v3321 = vunpack.c.l.b16 %v2649
      %v3322 = vunpack.c.l.b16 %v2650
      %v3323 = vunpack.c.l.b16 %v2651
      %v3324 = vunpack.c.l.b16 %v2652
      %v3325 = vunpack.c.l.b16 %v2653
      %v3326 = vunpack.c.l.b16 %v2654
      %v3327 = vunpack.c.l.b16 %v2655
      %v3328 = vunpack.c.l.b16 %v2656
      %v3329 = vunpack.c.l.b16 %v2657
      %v3330 = vunpack.c.l.b16 %v2658
      %v3331 = vunpack.c.l.b16 %v2659
      %v3332 = vunpack.c.l.b16 %v2660
      %v3333 = vunpack.c.l.b16 %v2661
      %v3334 = vunpack.c.l.b16 %v2662
      %v3335 = vunpack.c.l.b16 %v2663
      %v3336 = vunpack.c.l.b16 %v2664
      %v3337 = vunpack.c.l.b16 %v2665
      %v3338 = vunpack.c.l.b16 %v2666
      %v3339 = vunpack.c.l.b16 %v2667
      %v3340 = vunpack.c.l.b16 %v2668
      %v3341 = vunpack.c.l.b16 %v2669
      %v3342 = vunpack.c.l.b16 %v2670
      %v3343 = vunpack.c.l.b16 %v2671
      %v3344 = vunpack.c.l.b16 %v2672
      %v3345 = vunpack.c.l.b16 %v2673
      %v3346 = vunpack.c.l.b16 %v2674
      %v3347 = vunpack.c.l.b16 %v2675
      %v3348 = vunpack.c.l.b16 %v2676
      %v3349 = vunpack.c.l.b16 %v2677
      %v3350 = vunpack.c.l.b16 %v2678
      %v3351 = vunpack.c.l.b16 %v2679
      %v3352 = vunpack.c.l.b16 %v2680
      %v3353 = vunpack.c.l.b16 %v2681
      %v3354 = vunpack.c.l.b16 %v2682
      %v3355 = vunpack.c.l.b16 %v2683
      %v3356 = vunpack.c.l.b16 %v2684
      %v3357 = vunpack.c.l.b16 %v2685
      %v3358 = vunpack.c.l.b16 %v2686
      %v3359 = vunpack.c.l.b16 %v2687
      %v3360 = vunpack.c.l.b16 %v2688
      %v3361 = vunpack.c.l.b16 %v2689
      %v3362 = vunpack.c.l.b16 %v2690
      %v3363 = vunpack.c.l.b16 %v2691
      %v3364 = vunpack.c.l.b16 %v2692
      %v3365 = vunpack.c.l.b16 %v2693
      %v3366 = vunpack.c.l.b16 %v2694
      %v3367 = vunpack.c.l.b16 %v2695
      %v3368 = vunpack.c.l.b16 %v2696
      %v3369 = vunpack.c.l.b16 %v2697
      %v3370 = vunpack.c.l.b16 %v2698
      %v3371 = vunpack.c.l.b16 %v2699
      %v3372 = vunpack.c.l.b16 %v2700
      %v3373 = vunpack.c.l.b16 %v2701
      %v3374 = vunpack.c.l.b16 %v2702
      %v3375 = vunpack.c.l.b16 %v2703
      %v3376 = vunpack.c.l.b16 %v2704
      %v3377 = vunpack.c.l.b16 %v2705
      %v3378 = vunpack.c.l.b16 %v2706
      %v3379 = vunpack.c.l.b16 %v2707
      %v3380 = vunpack.c.l.b16 %v2708
      %v3381 = vunpack.c.l.b16 %v2709
      %v3382 = vunpack.c.l.b16 %v2710
      %v3383 = vunpack.c.l.b16 %v2711
      %v3384 = vunpack.c.l.b16 %v2712
      %v3385 = vunpack.c.l.b16 %v2713
      %v3386 = vunpack.c.l.b16 %v2714
      %v3387 = vunpack.c.l.b16 %v2715
      %v3388 = vunpack.c.l.b16 %v2716
      %v3389 = vunpack.c.l.b16 %v2717
      %v3390 = vunpack.c.l.b16 %v2718
      %v3391 = vunpack.c.l.b16 %v2719
      %v3392 = vunpack.c.l.b16 %v2720
      %v3393 = vunpack.c.l.b16 %v2721
      %v3394 = vunpack.c.l.b16 %v2722
      %v3395 = vunpack.c.l.b16 %v2723
      %v3396 = vunpack.c.l.b16 %v2724
      %v3397 = vunpack.c.l.b16 %v2725
      %v3398 = vunpack.c.l.b16 %v2726
      %v3399 = vunpack.c.l.b16 %v2727
      %v3400 = vunpack.c.l.b16 %v2728
      %v3401 = vunpack.c.l.b16 %v2729
      %v3402 = vunpack.c.l.b16 %v2730
      %v3403 = vunpack.c.l.b16 %v2731
      %v3404 = vunpack.c.l.b16 %v2732
      %v3405 = vunpack.c.l.b16 %v2733
      %v3406 = vunpack.c.l.b16 %v2734
      %v3407 = vunpack.c.l.b16 %v2735
      %v3408 = vunpack.c.l.b16 %v2736
      %v3409 = vunpack.c.l.b16 %v2737
      %v3410 = vunpack.c.l.b16 %v2738
      %v3411 = vpack.c.b16 %v3316, %v3315
      %v3412 = vpack.c.b16 %v3318, %v3317
      %v3413 = vpack.c.b16 %v3320, %v3319
      %v3414 = vpack.c.b16 %v3322, %v3321
      %v3415 = vpack.c.b16 %v3324, %v3323
      %v3416 = vpack.c.b16 %v3326, %v3325
      %v3417 = vpack.c.b16 %v3328, %v3327
      %v3418 = vpack.c.b16 %v3330, %v3329
      %v3419 = vpack.c.b16 %v3332, %v3331
      %v3420 = vpack.c.b16 %v3334, %v3333
      %v3421 = vpack.c.b16 %v3336, %v3335
      %v3422 = vpack.c.b16 %v3338, %v3337
      %v3423 = vpack.c.b16 %v3340, %v3339
      %v3424 = vpack.c.b16 %v3342, %v3341
      %v3425 = vpack.c.b16 %v3344, %v3343
      %v3426 = vpack.c.b16 %v3346, %v3345
      %v3427 = vpack.c.b16 %v3348, %v3347
      %v3428 = vpack.c.b16 %v3350, %v3349
      %v3429 = vpack.c.b16 %v3352, %v3351
      %v3430 = vpack.c.b16 %v3354, %v3353
      %v3431 = vpack.c.b16 %v3356, %v3355
      %v3432 = vpack.c.b16 %v3358, %v3357
      %v3433 = vpack.c.b16 %v3360, %v3359
      %v3434 = vpack.c.b16 %v3362, %v3361
      %v3435 = vpack.c.b16 %v3364, %v3363
      %v3436 = vpack.c.b16 %v3366, %v3365
      %v3437 = vpack.c.b16 %v3368, %v3367
      %v3438 = vpack.c.b16 %v3370, %v3369
      %v3439 = vpack.c.b16 %v3372, %v3371
      %v3440 = vpack.c.b16 %v3374, %v3373
      %v3441 = vpack.c.b16 %v3376, %v3375
      %v3442 = vpack.c.b16 %v3378, %v3377
      %v3443 = vpack.c.b16 %v3380, %v3379
      %v3444 = vpack.c.b16 %v3382, %v3381
      %v3445 = vpack.c.b16 %v3384, %v3383
      %v3446 = vpack.c.b16 %v3386, %v3385
      %v3447 = vpack.c.b16 %v3388, %v3387
      %v3448 = vpack.c.b16 %v3390, %v3389
      %v3449 = vpack.c.b16 %v3392, %v3391
      %v3450 = vpack.c.b16 %v3394, %v3393
      %v3451 = vpack.c.b16 %v3396, %v3395
      %v3452 = vpack.c.b16 %v3398, %v3397
      %v3453 = vpack.c.b16 %v3400, %v3399
      %v3454 = vpack.c.b16 %v3402, %v3401
      %v3455 = vpack.c.b16 %v3404, %v3403
      %v3456 = vpack.c.b16 %v3406, %v3405
      %v3457 = vpack.c.b16 %v3408, %v3407
      %v3458 = vpack.c.b16 %v3410, %v3409
      %3507 = vmatprep.subr.bf16.mxu0 0
      %3508 = vmatpush1.bf16.msra.mxu0 %v3418
      %3509 = vmatprep.subr.bf16.mxu0 0
      %3510 = vmatpush1.bf16.msra.mxu0 %v3417
      %3511 = vmatprep.subr.bf16.mxu0 0
      %3512 = vmatpush1.bf16.msra.mxu0 %v3416
      %3513 = vmatprep.subr.bf16.mxu0 0
      %3514 = vmatpush1.bf16.msra.mxu0 %v3415
      %3515 = vmatprep.subr.bf16.mxu0 0
      %3516 = vmatpush1.bf16.msra.mxu0 %v3414
      %3517 = vmatprep.subr.bf16.mxu0 0
      %3518 = vmatpush1.bf16.msra.mxu0 %v3413
      %3519 = vmatprep.subr.bf16.mxu0 0
      %3520 = vmatpush1.bf16.msra.mxu0 %v3412
      %3521 = vmatprep.subr.bf16.mxu0 0
      %3522 = vmatpush1.bf16.msra.mxu0 %v3411
      %3523 = vmatprep.subr.bf16.mxu0 0
      %3524 = vmatpush2.bf16.msra.mxu0 %v3426
      %3525 = vmatprep.subr.bf16.mxu0 0
      %3526 = vmatpush2.bf16.msra.mxu0 %v3425
      %3527 = vmatprep.subr.bf16.mxu0 0
      %3528 = vmatpush2.bf16.msra.mxu0 %v3424
      %3529 = vmatprep.subr.bf16.mxu0 0
      %3530 = vmatpush2.bf16.msra.mxu0 %v3423
      %3531 = vmatprep.subr.bf16.mxu0 0
      %3532 = vmatpush2.bf16.msra.mxu0 %v3422
      %3533 = vmatprep.subr.bf16.mxu0 0
      %3534 = vmatpush2.bf16.msra.mxu0 %v3421
      %3535 = vmatprep.subr.bf16.mxu0 0
      %3536 = vmatpush2.bf16.msra.mxu0 %v3420
      %3537 = vmatprep.subr.bf16.mxu0 0
      %3538 = vmatpush2.bf16.msra.mxu0 %v3419
      %3539 = vmatprep.mubr.bf16.mxu0 %v3028
      %3540 = vmatmul.mubr.bf16.gmra.mxu0 %v3027
      %v3541 = vpop.f32.mrf.mxu0
      %v3542 = vadd.f32 0.0, %v3541
      %v3543 = vpop.f32.mrf.mxu0
      %v3544 = vpop.f32.mrf.mxu0
      %v3545 = vadd.f32 0.0, %v3544
      %v3546 = vpop.f32.mrf.mxu0
      %3547 = vmatprep.mubr.bf16.mxu0 %v3034
      %3548 = vmatmul.mubr.bf16.gmra.mxu0 %v3033
      %v3549 = vpop.f32.mrf.mxu0
      %v3550 = vadd.f32 0.0, %v3549
      %v3551 = vpop.f32.mrf.mxu0
      %v3552 = vpop.f32.mrf.mxu0
      %v3553 = vadd.f32 0.0, %v3552
      %v3554 = vpop.f32.mrf.mxu0
      %3555 = vmatprep.mubr.bf16.mxu0 %v3040
      %3556 = vmatmul.mubr.bf16.gmra.mxu0 %v3039
      %v3557 = vpop.f32.mrf.mxu0
      %v3558 = vadd.f32 0.0, %v3557
      %v3559 = vpop.f32.mrf.mxu0
      %v3560 = vpop.f32.mrf.mxu0
      %v3561 = vadd.f32 0.0, %v3560
      %v3562 = vpop.f32.mrf.mxu0
      %3563 = vmatprep.mubr.bf16.mxu0 %v3046
      %3564 = vmatmul.mubr.bf16.gmra.mxu0 %v3045
      %v3565 = vpop.f32.mrf.mxu0
      %v3566 = vadd.f32 0.0, %v3565
      %v3567 = vpop.f32.mrf.mxu0
      %v3568 = vpop.f32.mrf.mxu0
      %v3569 = vadd.f32 0.0, %v3568
      %v3570 = vpop.f32.mrf.mxu0
      %3571 = vmatprep.mubr.bf16.mxu0 %v3052
      %3572 = vmatmul.mubr.bf16.gmra.mxu0 %v3051
      %v3573 = vpop.f32.mrf.mxu0
      %v3574 = vadd.f32 0.0, %v3573
      %v3575 = vpop.f32.mrf.mxu0
      %v3576 = vpop.f32.mrf.mxu0
      %v3577 = vadd.f32 0.0, %v3576
      %v3578 = vpop.f32.mrf.mxu0
      %3579 = vmatprep.mubr.bf16.mxu0 %v3058
      %3580 = vmatmul.mubr.bf16.gmra.mxu0 %v3057
      %v3581 = vpop.f32.mrf.mxu0
      %v3582 = vadd.f32 0.0, %v3581
      %v3583 = vpop.f32.mrf.mxu0
      %v3584 = vpop.f32.mrf.mxu0
      %v3585 = vadd.f32 0.0, %v3584
      %v3586 = vpop.f32.mrf.mxu0
      %3587 = vmatprep.mubr.bf16.mxu0 %v3064
      %3588 = vmatmul.mubr.bf16.gmra.mxu0 %v3063
      %v3589 = vpop.f32.mrf.mxu0
      %v3590 = vadd.f32 0.0, %v3589
      %v3591 = vpop.f32.mrf.mxu0
      %v3592 = vpop.f32.mrf.mxu0
      %v3593 = vadd.f32 0.0, %v3592
      %v3594 = vpop.f32.mrf.mxu0
      %3595 = vmatprep.mubr.bf16.mxu0 %v3070
      %3596 = vmatmul.mubr.bf16.gmra.mxu0 %v3069
      %v3597 = vpop.f32.mrf.mxu0
      %v3598 = vadd.f32 0.0, %v3597
      %v3599 = vpop.f32.mrf.mxu0
      %v3600 = vpop.f32.mrf.mxu0
      %v3601 = vadd.f32 0.0, %v3600
      %v3602 = vpop.f32.mrf.mxu0
      %3603 = vmatprep.mubr.bf16.mxu0 %v3076
      %3604 = vmatmul.mubr.bf16.gmra.mxu0 %v3075
      %v3605 = vpop.f32.mrf.mxu0
      %v3606 = vadd.f32 0.0, %v3605
      %v3607 = vpop.f32.mrf.mxu0
      %v3608 = vpop.f32.mrf.mxu0
      %v3609 = vadd.f32 0.0, %v3608
      %v3610 = vpop.f32.mrf.mxu0
      %3611 = vmatprep.mubr.bf16.mxu0 %v3082
      %3612 = vmatmul.mubr.bf16.gmra.mxu0 %v3081
      %v3613 = vpop.f32.mrf.mxu0
      %v3614 = vadd.f32 0.0, %v3613
      %v3615 = vpop.f32.mrf.mxu0
      %v3616 = vpop.f32.mrf.mxu0
      %v3617 = vadd.f32 0.0, %v3616
      %v3618 = vpop.f32.mrf.mxu0
      %3619 = vmatprep.mubr.bf16.mxu0 %v3088
      %3620 = vmatmul.mubr.bf16.gmra.mxu0 %v3087
      %v3621 = vpop.f32.mrf.mxu0
      %v3622 = vadd.f32 0.0, %v3621
      %v3623 = vpop.f32.mrf.mxu0
      %v3624 = vpop.f32.mrf.mxu0
      %v3625 = vadd.f32 0.0, %v3624
      %v3626 = vpop.f32.mrf.mxu0
      %3627 = vmatprep.mubr.bf16.mxu0 %v3094
      %3628 = vmatmul.mubr.bf16.gmra.mxu0 %v3093
      %v3629 = vpop.f32.mrf.mxu0
      %v3630 = vadd.f32 0.0, %v3629
      %v3631 = vpop.f32.mrf.mxu0
      %v3632 = vpop.f32.mrf.mxu0
      %v3633 = vadd.f32 0.0, %v3632
      %v3634 = vpop.f32.mrf.mxu0
      %3635 = vmatprep.mubr.bf16.mxu0 %v3100
      %3636 = vmatmul.mubr.bf16.gmra.mxu0 %v3099
      %v3637 = vpop.f32.mrf.mxu0
      %v3638 = vadd.f32 0.0, %v3637
      %v3639 = vpop.f32.mrf.mxu0
      %v3640 = vpop.f32.mrf.mxu0
      %v3641 = vadd.f32 0.0, %v3640
      %v3642 = vpop.f32.mrf.mxu0
      %3643 = vmatprep.mubr.bf16.mxu0 %v3106
      %3644 = vmatmul.mubr.bf16.gmra.mxu0 %v3105
      %v3645 = vpop.f32.mrf.mxu0
      %v3646 = vadd.f32 0.0, %v3645
      %v3647 = vpop.f32.mrf.mxu0
      %v3648 = vpop.f32.mrf.mxu0
      %v3649 = vadd.f32 0.0, %v3648
      %v3650 = vpop.f32.mrf.mxu0
      %3651 = vmatprep.mubr.bf16.mxu0 %v3112
      %3652 = vmatmul.mubr.bf16.gmra.mxu0 %v3111
      %v3653 = vpop.f32.mrf.mxu0
      %v3654 = vadd.f32 0.0, %v3653
      %v3655 = vpop.f32.mrf.mxu0
      %v3656 = vpop.f32.mrf.mxu0
      %v3657 = vadd.f32 0.0, %v3656
      %v3658 = vpop.f32.mrf.mxu0
      %3659 = vmatprep.mubr.bf16.mxu0 %v3118
      %3660 = vmatmul.mubr.bf16.gmra.mxu0 %v3117
      %v3661 = vpop.f32.mrf.mxu0
      %v3662 = vadd.f32 0.0, %v3661
      %v3663 = vpop.f32.mrf.mxu0
      %v3664 = vpop.f32.mrf.mxu0
      %v3665 = vadd.f32 0.0, %v3664
      %v3666 = vpop.f32.mrf.mxu0
      %3667 = vdwg.mxu0
      %3668 = vmatprep.subr.bf16.mxu0 0
      %3669 = vmatpush1.bf16.msra.mxu0 %v3434
      %3670 = vmatprep.subr.bf16.mxu0 0
      %3671 = vmatpush1.bf16.msra.mxu0 %v3433
      %3672 = vmatprep.subr.bf16.mxu0 0
      %3673 = vmatpush1.bf16.msra.mxu0 %v3432
      %3674 = vmatprep.subr.bf16.mxu0 0
      %3675 = vmatpush1.bf16.msra.mxu0 %v3431
      %3676 = vmatprep.subr.bf16.mxu0 0
      %3677 = vmatpush1.bf16.msra.mxu0 %v3430
      %3678 = vmatprep.subr.bf16.mxu0 0
      %3679 = vmatpush1.bf16.msra.mxu0 %v3429
      %3680 = vmatprep.subr.bf16.mxu0 0
      %3681 = vmatpush1.bf16.msra.mxu0 %v3428
      %3682 = vmatprep.subr.bf16.mxu0 0
      %3683 = vmatpush1.bf16.msra.mxu0 %v3427
      %3684 = vmatprep.subr.bf16.mxu0 0
      %3685 = vmatpush2.bf16.msra.mxu0 %v3442
      %3686 = vmatprep.subr.bf16.mxu0 0
      %3687 = vmatpush2.bf16.msra.mxu0 %v3441
      %3688 = vmatprep.subr.bf16.mxu0 0
      %3689 = vmatpush2.bf16.msra.mxu0 %v3440
      %3690 = vmatprep.subr.bf16.mxu0 0
      %3691 = vmatpush2.bf16.msra.mxu0 %v3439
      %3692 = vmatprep.subr.bf16.mxu0 0
      %3693 = vmatpush2.bf16.msra.mxu0 %v3438
      %3694 = vmatprep.subr.bf16.mxu0 0
      %3695 = vmatpush2.bf16.msra.mxu0 %v3437
      %3696 = vmatprep.subr.bf16.mxu0 0
      %3697 = vmatpush2.bf16.msra.mxu0 %v3436
      %3698 = vmatprep.subr.bf16.mxu0 0
      %3699 = vmatpush2.bf16.msra.mxu0 %v3435
      %3700 = vmatprep.mubr.bf16.mxu0 %v3030
      %3701 = vmatmul.mubr.bf16.gmra.mxu0 %v3029
      %v3702 = vpop.f32.mrf.mxu0
      %v3703 = vadd.f32 %v3542, %v3702
      %v3704 = vpop.f32.mrf.mxu0
      %v3705 = vpop.f32.mrf.mxu0
      %v3706 = vadd.f32 %v3545, %v3705
      %v3707 = vpop.f32.mrf.mxu0
      %3708 = vmatprep.mubr.bf16.mxu0 %v3036
      %3709 = vmatmul.mubr.bf16.gmra.mxu0 %v3035
      %v3710 = vpop.f32.mrf.mxu0
      %v3711 = vadd.f32 %v3550, %v3710
      %v3712 = vpop.f32.mrf.mxu0
      %v3713 = vpop.f32.mrf.mxu0
      %v3714 = vadd.f32 %v3553, %v3713
      %v3715 = vpop.f32.mrf.mxu0
      %3716 = vmatprep.mubr.bf16.mxu0 %v3042
      %3717 = vmatmul.mubr.bf16.gmra.mxu0 %v3041
      %v3718 = vpop.f32.mrf.mxu0
      %v3719 = vadd.f32 %v3558, %v3718
      %v3720 = vpop.f32.mrf.mxu0
      %v3721 = vpop.f32.mrf.mxu0
      %v3722 = vadd.f32 %v3561, %v3721
      %v3723 = vpop.f32.mrf.mxu0
      %3724 = vmatprep.mubr.bf16.mxu0 %v3048
      %3725 = vmatmul.mubr.bf16.gmra.mxu0 %v3047
      %v3726 = vpop.f32.mrf.mxu0
      %v3727 = vadd.f32 %v3566, %v3726
      %v3728 = vpop.f32.mrf.mxu0
      %v3729 = vpop.f32.mrf.mxu0
      %v3730 = vadd.f32 %v3569, %v3729
      %v3731 = vpop.f32.mrf.mxu0
      %3732 = vmatprep.mubr.bf16.mxu0 %v3054
      %3733 = vmatmul.mubr.bf16.gmra.mxu0 %v3053
      %v3734 = vpop.f32.mrf.mxu0
      %v3735 = vadd.f32 %v3574, %v3734
      %v3736 = vpop.f32.mrf.mxu0
      %v3737 = vpop.f32.mrf.mxu0
      %v3738 = vadd.f32 %v3577, %v3737
      %v3739 = vpop.f32.mrf.mxu0
      %3740 = vmatprep.mubr.bf16.mxu0 %v3060
      %3741 = vmatmul.mubr.bf16.gmra.mxu0 %v3059
      %v3742 = vpop.f32.mrf.mxu0
      %v3743 = vadd.f32 %v3582, %v3742
      %v3744 = vpop.f32.mrf.mxu0
      %v3745 = vpop.f32.mrf.mxu0
      %v3746 = vadd.f32 %v3585, %v3745
      %v3747 = vpop.f32.mrf.mxu0
      %3748 = vmatprep.mubr.bf16.mxu0 %v3066
      %3749 = vmatmul.mubr.bf16.gmra.mxu0 %v3065
      %v3750 = vpop.f32.mrf.mxu0
      %v3751 = vadd.f32 %v3590, %v3750
      %v3752 = vpop.f32.mrf.mxu0
      %v3753 = vpop.f32.mrf.mxu0
      %v3754 = vadd.f32 %v3593, %v3753
      %v3755 = vpop.f32.mrf.mxu0
      %3756 = vmatprep.mubr.bf16.mxu0 %v3072
      %3757 = vmatmul.mubr.bf16.gmra.mxu0 %v3071
      %v3758 = vpop.f32.mrf.mxu0
      %v3759 = vadd.f32 %v3598, %v3758
      %v3760 = vpop.f32.mrf.mxu0
      %v3761 = vpop.f32.mrf.mxu0
      %v3762 = vadd.f32 %v3601, %v3761
      %v3763 = vpop.f32.mrf.mxu0
      %3764 = vmatprep.mubr.bf16.mxu0 %v3078
      %3765 = vmatmul.mubr.bf16.gmra.mxu0 %v3077
      %v3766 = vpop.f32.mrf.mxu0
      %v3767 = vadd.f32 %v3606, %v3766
      %v3768 = vpop.f32.mrf.mxu0
      %v3769 = vpop.f32.mrf.mxu0
      %v3770 = vadd.f32 %v3609, %v3769
      %v3771 = vpop.f32.mrf.mxu0
      %3772 = vmatprep.mubr.bf16.mxu0 %v3084
      %3773 = vmatmul.mubr.bf16.gmra.mxu0 %v3083
      %v3774 = vpop.f32.mrf.mxu0
      %v3775 = vadd.f32 %v3614, %v3774
      %v3776 = vpop.f32.mrf.mxu0
      %v3777 = vpop.f32.mrf.mxu0
      %v3778 = vadd.f32 %v3617, %v3777
      %v3779 = vpop.f32.mrf.mxu0
      %3780 = vmatprep.mubr.bf16.mxu0 %v3090
      %3781 = vmatmul.mubr.bf16.gmra.mxu0 %v3089
      %v3782 = vpop.f32.mrf.mxu0
      %v3783 = vadd.f32 %v3622, %v3782
      %v3784 = vpop.f32.mrf.mxu0
      %v3785 = vpop.f32.mrf.mxu0
      %v3786 = vadd.f32 %v3625, %v3785
      %v3787 = vpop.f32.mrf.mxu0
      %3788 = vmatprep.mubr.bf16.mxu0 %v3096
      %3789 = vmatmul.mubr.bf16.gmra.mxu0 %v3095
      %v3790 = vpop.f32.mrf.mxu0
      %v3791 = vadd.f32 %v3630, %v3790
      %v3792 = vpop.f32.mrf.mxu0
      %v3793 = vpop.f32.mrf.mxu0
      %v3794 = vadd.f32 %v3633, %v3793
      %v3795 = vpop.f32.mrf.mxu0
      %3796 = vmatprep.mubr.bf16.mxu0 %v3102
      %3797 = vmatmul.mubr.bf16.gmra.mxu0 %v3101
      %v3798 = vpop.f32.mrf.mxu0
      %v3799 = vadd.f32 %v3638, %v3798
      %v3800 = vpop.f32.mrf.mxu0
      %v3801 = vpop.f32.mrf.mxu0
      %v3802 = vadd.f32 %v3641, %v3801
      %v3803 = vpop.f32.mrf.mxu0
      %3804 = vmatprep.mubr.bf16.mxu0 %v3108
      %3805 = vmatmul.mubr.bf16.gmra.mxu0 %v3107
      %v3806 = vpop.f32.mrf.mxu0
      %v3807 = vadd.f32 %v3646, %v3806
      %v3808 = vpop.f32.mrf.mxu0
      %v3809 = vpop.f32.mrf.mxu0
      %v3810 = vadd.f32 %v3649, %v3809
      %v3811 = vpop.f32.mrf.mxu0
      %3812 = vmatprep.mubr.bf16.mxu0 %v3114
      %3813 = vmatmul.mubr.bf16.gmra.mxu0 %v3113
      %v3814 = vpop.f32.mrf.mxu0
      %v3815 = vadd.f32 %v3654, %v3814
      %v3816 = vpop.f32.mrf.mxu0
      %v3817 = vpop.f32.mrf.mxu0
      %v3818 = vadd.f32 %v3657, %v3817
      %v3819 = vpop.f32.mrf.mxu0
      %3820 = vmatprep.mubr.bf16.mxu0 %v3120
      %3821 = vmatmul.mubr.bf16.gmra.mxu0 %v3119
      %v3822 = vpop.f32.mrf.mxu0
      %v3823 = vadd.f32 %v3662, %v3822
      %v3824 = vpop.f32.mrf.mxu0
      %v3825 = vpop.f32.mrf.mxu0
      %v3826 = vadd.f32 %v3665, %v3825
      %v3827 = vpop.f32.mrf.mxu0
      %3828 = vdwg.mxu0
      %3829 = vmatprep.subr.bf16.mxu0 0
      %3830 = vmatpush1.bf16.msra.mxu0 %v3450
      %3831 = vmatprep.subr.bf16.mxu0 0
      %3832 = vmatpush1.bf16.msra.mxu0 %v3449
      %3833 = vmatprep.subr.bf16.mxu0 0
      %3834 = vmatpush1.bf16.msra.mxu0 %v3448
      %3835 = vmatprep.subr.bf16.mxu0 0
      %3836 = vmatpush1.bf16.msra.mxu0 %v3447
      %3837 = vmatprep.subr.bf16.mxu0 0
      %3838 = vmatpush1.bf16.msra.mxu0 %v3446
      %3839 = vmatprep.subr.bf16.mxu0 0
      %3840 = vmatpush1.bf16.msra.mxu0 %v3445
      %3841 = vmatprep.subr.bf16.mxu0 0
      %3842 = vmatpush1.bf16.msra.mxu0 %v3444
      %3843 = vmatprep.subr.bf16.mxu0 0
      %3844 = vmatpush1.bf16.msra.mxu0 %v3443
      %3845 = vmatprep.subr.bf16.mxu0 0
      %3846 = vmatpush2.bf16.msra.mxu0 %v3458
      %3847 = vmatprep.subr.bf16.mxu0 0
      %3848 = vmatpush2.bf16.msra.mxu0 %v3457
      %3849 = vmatprep.subr.bf16.mxu0 0
      %3850 = vmatpush2.bf16.msra.mxu0 %v3456
      %3851 = vmatprep.subr.bf16.mxu0 0
      %3852 = vmatpush2.bf16.msra.mxu0 %v3455
      %3853 = vmatprep.subr.bf16.mxu0 0
      %3854 = vmatpush2.bf16.msra.mxu0 %v3454
      %3855 = vmatprep.subr.bf16.mxu0 0
      %3856 = vmatpush2.bf16.msra.mxu0 %v3453
      %3857 = vmatprep.subr.bf16.mxu0 0
      %3858 = vmatpush2.bf16.msra.mxu0 %v3452
      %3859 = vmatprep.subr.bf16.mxu0 0
      %3860 = vmatpush2.bf16.msra.mxu0 %v3451
      %3861 = vmatprep.mubr.bf16.mxu0 %v3032
      %3862 = vmatmul.mubr.bf16.gmra.mxu0 %v3031
      %v3863 = vpop.f32.mrf.mxu0
      %v3864 = vadd.f32 %v3703, %v3863
      %v3865 = vpop.f32.mrf.mxu0
      %v3866 = vpop.f32.mrf.mxu0
      %v3867 = vadd.f32 %v3706, %v3866
      %v3868 = vpop.f32.mrf.mxu0
      %3869 = vmatprep.mubr.bf16.mxu0 %v3038
      %3870 = vmatmul.mubr.bf16.gmra.mxu0 %v3037
      %v3871 = vpop.f32.mrf.mxu0
      %v3872 = vadd.f32 %v3711, %v3871
      %v3873 = vpop.f32.mrf.mxu0
      %v3874 = vpop.f32.mrf.mxu0
      %v3875 = vadd.f32 %v3714, %v3874
      %v3876 = vpop.f32.mrf.mxu0
      %3877 = vmatprep.mubr.bf16.mxu0 %v3044
      %3878 = vmatmul.mubr.bf16.gmra.mxu0 %v3043
      %v3879 = vpop.f32.mrf.mxu0
      %v3880 = vadd.f32 %v3719, %v3879
      %v3881 = vpop.f32.mrf.mxu0
      %v3882 = vpop.f32.mrf.mxu0
      %v3883 = vadd.f32 %v3722, %v3882
      %v3884 = vpop.f32.mrf.mxu0
      %3885 = vmatprep.mubr.bf16.mxu0 %v3050
      %3886 = vmatmul.mubr.bf16.gmra.mxu0 %v3049
      %v3887 = vpop.f32.mrf.mxu0
      %v3888 = vadd.f32 %v3727, %v3887
      %v3889 = vpop.f32.mrf.mxu0
      %v3890 = vpop.f32.mrf.mxu0
      %v3891 = vadd.f32 %v3730, %v3890
      %v3892 = vpop.f32.mrf.mxu0
      %3893 = vmatprep.mubr.bf16.mxu0 %v3056
      %3894 = vmatmul.mubr.bf16.gmra.mxu0 %v3055
      %v3895 = vpop.f32.mrf.mxu0
      %v3896 = vadd.f32 %v3735, %v3895
      %v3897 = vpop.f32.mrf.mxu0
      %v3898 = vpop.f32.mrf.mxu0
      %v3899 = vadd.f32 %v3738, %v3898
      %v3900 = vpop.f32.mrf.mxu0
      %3901 = vmatprep.mubr.bf16.mxu0 %v3062
      %3902 = vmatmul.mubr.bf16.gmra.mxu0 %v3061
      %v3903 = vpop.f32.mrf.mxu0
      %v3904 = vadd.f32 %v3743, %v3903
      %v3905 = vpop.f32.mrf.mxu0
      %v3906 = vpop.f32.mrf.mxu0
      %v3907 = vadd.f32 %v3746, %v3906
      %v3908 = vpop.f32.mrf.mxu0
      %3909 = vmatprep.mubr.bf16.mxu0 %v3068
      %3910 = vmatmul.mubr.bf16.gmra.mxu0 %v3067
      %v3911 = vpop.f32.mrf.mxu0
      %v3912 = vadd.f32 %v3751, %v3911
      %v3913 = vpop.f32.mrf.mxu0
      %v3914 = vpop.f32.mrf.mxu0
      %v3915 = vadd.f32 %v3754, %v3914
      %v3916 = vpop.f32.mrf.mxu0
      %3917 = vmatprep.mubr.bf16.mxu0 %v3074
      %3918 = vmatmul.mubr.bf16.gmra.mxu0 %v3073
      %v3919 = vpop.f32.mrf.mxu0
      %v3920 = vadd.f32 %v3759, %v3919
      %v3921 = vpop.f32.mrf.mxu0
      %v3922 = vpop.f32.mrf.mxu0
      %v3923 = vadd.f32 %v3762, %v3922
      %v3924 = vpop.f32.mrf.mxu0
      %3925 = vmatprep.mubr.bf16.mxu0 %v3080
      %3926 = vmatmul.mubr.bf16.gmra.mxu0 %v3079
      %v3927 = vpop.f32.mrf.mxu0
      %v3928 = vadd.f32 %v3767, %v3927
      %v3929 = vpop.f32.mrf.mxu0
      %v3930 = vpop.f32.mrf.mxu0
      %v3931 = vadd.f32 %v3770, %v3930
      %v3932 = vpop.f32.mrf.mxu0
      %3933 = vmatprep.mubr.bf16.mxu0 %v3086
      %3934 = vmatmul.mubr.bf16.gmra.mxu0 %v3085
      %v3935 = vpop.f32.mrf.mxu0
      %v3936 = vadd.f32 %v3775, %v3935
      %v3937 = vpop.f32.mrf.mxu0
      %v3938 = vpop.f32.mrf.mxu0
      %v3939 = vadd.f32 %v3778, %v3938
      %v3940 = vpop.f32.mrf.mxu0
      %3941 = vmatprep.mubr.bf16.mxu0 %v3092
      %3942 = vmatmul.mubr.bf16.gmra.mxu0 %v3091
      %v3943 = vpop.f32.mrf.mxu0
      %v3944 = vadd.f32 %v3783, %v3943
      %v3945 = vpop.f32.mrf.mxu0
      %v3946 = vpop.f32.mrf.mxu0
      %v3947 = vadd.f32 %v3786, %v3946
      %v3948 = vpop.f32.mrf.mxu0
      %3949 = vmatprep.mubr.bf16.mxu0 %v3098
      %3950 = vmatmul.mubr.bf16.gmra.mxu0 %v3097
      %v3951 = vpop.f32.mrf.mxu0
      %v3952 = vadd.f32 %v3791, %v3951
      %v3953 = vpop.f32.mrf.mxu0
      %v3954 = vpop.f32.mrf.mxu0
      %v3955 = vadd.f32 %v3794, %v3954
      %v3956 = vpop.f32.mrf.mxu0
      %3957 = vmatprep.mubr.bf16.mxu0 %v3104
      %3958 = vmatmul.mubr.bf16.gmra.mxu0 %v3103
      %v3959 = vpop.f32.mrf.mxu0
      %v3960 = vadd.f32 %v3799, %v3959
      %v3961 = vpop.f32.mrf.mxu0
      %v3962 = vpop.f32.mrf.mxu0
      %v3963 = vadd.f32 %v3802, %v3962
      %v3964 = vpop.f32.mrf.mxu0
      %3965 = vmatprep.mubr.bf16.mxu0 %v3110
      %3966 = vmatmul.mubr.bf16.gmra.mxu0 %v3109
      %v3967 = vpop.f32.mrf.mxu0
      %v3968 = vadd.f32 %v3807, %v3967
      %v3969 = vpop.f32.mrf.mxu0
      %v3970 = vpop.f32.mrf.mxu0
      %v3971 = vadd.f32 %v3810, %v3970
      %v3972 = vpop.f32.mrf.mxu0
      %3973 = vmatprep.mubr.bf16.mxu0 %v3116
      %3974 = vmatmul.mubr.bf16.gmra.mxu0 %v3115
      %v3975 = vpop.f32.mrf.mxu0
      %v3976 = vadd.f32 %v3815, %v3975
      %v3977 = vpop.f32.mrf.mxu0
      %v3978 = vpop.f32.mrf.mxu0
      %v3979 = vadd.f32 %v3818, %v3978
      %v3980 = vpop.f32.mrf.mxu0
      %3981 = vmatprep.mubr.bf16.mxu0 %v3122
      %3982 = vmatmul.mubr.bf16.gmra.mxu0 %v3121
      %v3983 = vpop.f32.mrf.mxu0
      %v3984 = vadd.f32 %v3823, %v3983
      %v3985 = vpop.f32.mrf.mxu0
      %v3986 = vpop.f32.mrf.mxu0
      %v3987 = vadd.f32 %v3826, %v3986
      %v3988 = vpop.f32.mrf.mxu0
      %3989 = vdwg.mxu0
      %v3990 = vadd.f32 %v2420, %v3864
      %v3991 = vadd.f32 %v2423, %v3867
      %v3992 = vadd.f32 %v2428, %v3872
      %v3993 = vadd.f32 %v2431, %v3875
      %v3994 = vadd.f32 %v2436, %v3880
      %v3995 = vadd.f32 %v2439, %v3883
      %v3996 = vadd.f32 %v2444, %v3888
      %v3997 = vadd.f32 %v2447, %v3891
      %v3998 = vadd.f32 %v2452, %v3896
      %v3999 = vadd.f32 %v2455, %v3899
      %v4000 = vadd.f32 %v2460, %v3904
      %v4001 = vadd.f32 %v2463, %v3907
      %v4002 = vadd.f32 %v2468, %v3912
      %v4003 = vadd.f32 %v2471, %v3915
      %v4004 = vadd.f32 %v2476, %v3920
      %v4005 = vadd.f32 %v2479, %v3923
      %v4006 = vadd.f32 %v2484, %v3928
      %v4007 = vadd.f32 %v2487, %v3931
      %v4008 = vadd.f32 %v2492, %v3936
      %v4009 = vadd.f32 %v2495, %v3939
      %v4010 = vadd.f32 %v2500, %v3944
      %v4011 = vadd.f32 %v2503, %v3947
      %v4012 = vadd.f32 %v2508, %v3952
      %v4013 = vadd.f32 %v2511, %v3955
      %v4014 = vadd.f32 %v2516, %v3960
      %v4015 = vadd.f32 %v2519, %v3963
      %v4016 = vadd.f32 %v2524, %v3968
      %v4017 = vadd.f32 %v2527, %v3971
      %v4018 = vadd.f32 %v2532, %v3976
      %v4019 = vadd.f32 %v2535, %v3979
      %v4020 = vadd.f32 %v2540, %v3984
      %v4021 = vadd.f32 %v2543, %v3987
      %v4022 = vld [vmem:[%s2] sm:$0x1]
      %v4024 = vlaneseq
      %v4025 = vshrl.u32 %v4024, 7
      %v4026 = vsub.s32 0, %v4025
      %v4027 = vrot.slane %v4022, %v4026
      %v4029 = vadd.f32 %v3990, %v4027
      %v4030 = vadd.f32 %v3991, %v4027
      %v4031 = vadd.f32 %v3992, %v4027
      %v4032 = vadd.f32 %v3993, %v4027
      %v4033 = vadd.f32 %v3994, %v4027
      %v4034 = vadd.f32 %v3995, %v4027
      %v4035 = vadd.f32 %v3996, %v4027
      %v4036 = vadd.f32 %v3997, %v4027
      %v4037 = vadd.f32 %v3998, %v4027
      %v4038 = vadd.f32 %v3999, %v4027
      %v4039 = vadd.f32 %v4000, %v4027
      %v4040 = vadd.f32 %v4001, %v4027
      %v4041 = vadd.f32 %v4002, %v4027
      %v4042 = vadd.f32 %v4003, %v4027
      %v4043 = vadd.f32 %v4004, %v4027
      %v4044 = vadd.f32 %v4005, %v4027
      %v4045 = vadd.f32 %v4006, %v4027
      %v4046 = vadd.f32 %v4007, %v4027
      %v4047 = vadd.f32 %v4008, %v4027
      %v4048 = vadd.f32 %v4009, %v4027
      %v4049 = vadd.f32 %v4010, %v4027
      %v4050 = vadd.f32 %v4011, %v4027
      %v4051 = vadd.f32 %v4012, %v4027
      %v4052 = vadd.f32 %v4013, %v4027
      %v4053 = vadd.f32 %v4014, %v4027
      %v4054 = vadd.f32 %v4015, %v4027
      %v4055 = vadd.f32 %v4016, %v4027
      %v4056 = vadd.f32 %v4017, %v4027
      %v4057 = vadd.f32 %v4018, %v4027
      %v4058 = vadd.f32 %v4019, %v4027
      %v4059 = vadd.f32 %v4020, %v4027
      %v4060 = vadd.f32 %v4021, %v4027
      %v4061 = vpack.c.bf16 %v4030, %v4029
      %v4062 = vpack.c.bf16 %v4032, %v4031
      %v4063 = vpack.c.bf16 %v4034, %v4033
      %v4064 = vpack.c.bf16 %v4036, %v4035
      %v4065 = vpack.c.bf16 %v4038, %v4037
      %v4066 = vpack.c.bf16 %v4040, %v4039
      %v4067 = vpack.c.bf16 %v4042, %v4041
      %v4068 = vpack.c.bf16 %v4044, %v4043
      %v4069 = vpack.c.bf16 %v4046, %v4045
      %v4070 = vpack.c.bf16 %v4048, %v4047
      %v4071 = vpack.c.bf16 %v4050, %v4049
      %v4072 = vpack.c.bf16 %v4052, %v4051
      %v4073 = vpack.c.bf16 %v4054, %v4053
      %v4074 = vpack.c.bf16 %v4056, %v4055
      %v4075 = vpack.c.bf16 %v4058, %v4057
      %v4076 = vpack.c.bf16 %v4060, %v4059
      %4077 = vxpose.xlu0.c.b16.start [1/8] %v4061, 128
      %4078 = vxpose.xlu0.c.b16.cont [2/8] %v4062, 128
      %4079 = vxpose.xlu0.c.b16.cont [3/8] %v4063, 128
      %4080 = vxpose.xlu0.c.b16.cont [4/8] %v4064, 128
      %4081 = vxpose.xlu0.c.b16.cont [5/8] %v4065, 128
      %4082 = vxpose.xlu0.c.b16.cont [6/8] %v4066, 128
      %4083 = vxpose.xlu0.c.b16.cont [7/8] %v4067, 128
      %4084 = vxpose.xlu0.c.b16.end [8/8] %v4068, 128
      %v4085 = vpop.trf.xlu0
      %v4086 = vpop.trf.xlu0
      %v4087 = vpop.trf.xlu0
      %v4088 = vpop.trf.xlu0
      %v4089 = vpop.trf.xlu0
      %v4090 = vpop.trf.xlu0
      %v4091 = vpop.trf.xlu0
      %v4092 = vpop.trf.xlu0
      %4093 = vxpose.xlu0.c.b16.start [1/8] %v4069, 128
      %4094 = vxpose.xlu0.c.b16.cont [2/8] %v4070, 128
      %4095 = vxpose.xlu0.c.b16.cont [3/8] %v4071, 128
      %4096 = vxpose.xlu0.c.b16.cont [4/8] %v4072, 128
      %4097 = vxpose.xlu0.c.b16.cont [5/8] %v4073, 128
      %4098 = vxpose.xlu0.c.b16.cont [6/8] %v4074, 128
      %4099 = vxpose.xlu0.c.b16.cont [7/8] %v4075, 128
      %4100 = vxpose.xlu0.c.b16.end [8/8] %v4076, 128
      %v4101 = vpop.trf.xlu0
      %v4102 = vpop.trf.xlu0
      %v4103 = vpop.trf.xlu0
      %v4104 = vpop.trf.xlu0
      %v4105 = vpop.trf.xlu0
      %v4106 = vpop.trf.xlu0
      %v4107 = vpop.trf.xlu0
      %v4108 = vpop.trf.xlu0
      %v4109 = vld [vmem:[%s3] sm:$0xff]
      %v4110 = vld [vmem:[%s3 + $0x8] sm:$0xff]
      %v4111 = vld [vmem:[%s3 + $0x10] sm:$0xff]
      %v4112 = vld [vmem:[%s3 + $0x18] sm:$0xff]
      %v4113 = vld [vmem:[%s3 + $0x20] sm:$0xff]
      %v4114 = vld [vmem:[%s3 + $0x28] sm:$0xff]
      %v4115 = vld [vmem:[%s3 + $0x30] sm:$0xff]
      %v4116 = vld [vmem:[%s3 + $0x38] sm:$0xff]
      %v4117 = vld [vmem:[%s3 + $0x40] sm:$0xff]
      %v4118 = vld [vmem:[%s3 + $0x48] sm:$0xff]
      %v4119 = vld [vmem:[%s3 + $0x50] sm:$0xff]
      %v4120 = vld [vmem:[%s3 + $0x58] sm:$0xff]
      %v4121 = vld [vmem:[%s3 + $0x60] sm:$0xff]
      %v4122 = vld [vmem:[%s3 + $0x68] sm:$0xff]
      %v4123 = vld [vmem:[%s3 + $0x70] sm:$0xff]
      %v4124 = vld [vmem:[%s3 + $0x78] sm:$0xff]
      %v4125 = vld [vmem:[%s3 + $0x80] sm:$0xff]
      %v4126 = vld [vmem:[%s3 + $0x88] sm:$0xff]
      %v4127 = vld [vmem:[%s3 + $0x90] sm:$0xff]
      %v4128 = vld [vmem:[%s3 + $0x98] sm:$0xff]
      %v4129 = vld [vmem:[%s3 + $0xa0] sm:$0xff]
      %v4130 = vld [vmem:[%s3 + $0xa8] sm:$0xff]
      %v4131 = vld [vmem:[%s3 + $0xb0] sm:$0xff]
      %v4132 = vld [vmem:[%s3 + $0xb8] sm:$0xff]
      %v4133 = vld [vmem:[%s3 + $0xc0] sm:$0xff]
      %v4134 = vld [vmem:[%s3 + $0xc8] sm:$0xff]
      %v4135 = vld [vmem:[%s3 + $0xd0] sm:$0xff]
      %v4136 = vld [vmem:[%s3 + $0xd8] sm:$0xff]
      %v4137 = vld [vmem:[%s3 + $0xe0] sm:$0xff]
      %v4138 = vld [vmem:[%s3 + $0xe8] sm:$0xff]
      %v4139 = vld [vmem:[%s3 + $0xf0] sm:$0xff]
      %v4140 = vld [vmem:[%s3 + $0xf8] sm:$0xff]
      %v4141 = vld [vmem:[%s3 + $0x100] sm:$0xff]
      %v4142 = vld [vmem:[%s3 + $0x108] sm:$0xff]
      %v4143 = vld [vmem:[%s3 + $0x110] sm:$0xff]
      %v4144 = vld [vmem:[%s3 + $0x118] sm:$0xff]
      %v4145 = vld [vmem:[%s3 + $0x120] sm:$0xff]
      %v4146 = vld [vmem:[%s3 + $0x128] sm:$0xff]
      %v4147 = vld [vmem:[%s3 + $0x130] sm:$0xff]
      %v4148 = vld [vmem:[%s3 + $0x138] sm:$0xff]
      %v4149 = vld [vmem:[%s3 + $0x140] sm:$0xff]
      %v4150 = vld [vmem:[%s3 + $0x148] sm:$0xff]
      %v4151 = vld [vmem:[%s3 + $0x150] sm:$0xff]
      %v4152 = vld [vmem:[%s3 + $0x158] sm:$0xff]
      %v4153 = vld [vmem:[%s3 + $0x160] sm:$0xff]
      %v4154 = vld [vmem:[%s3 + $0x168] sm:$0xff]
      %v4155 = vld [vmem:[%s3 + $0x170] sm:$0xff]
      %v4156 = vld [vmem:[%s3 + $0x178] sm:$0xff]
      %v4157 = vld [vmem:[%s3 + $0x180] sm:$0xff]
      %v4158 = vld [vmem:[%s3 + $0x188] sm:$0xff]
      %v4159 = vld [vmem:[%s3 + $0x190] sm:$0xff]
      %v4160 = vld [vmem:[%s3 + $0x198] sm:$0xff]
      %v4161 = vld [vmem:[%s3 + $0x1a0] sm:$0xff]
      %v4162 = vld [vmem:[%s3 + $0x1a8] sm:$0xff]
      %v4163 = vld [vmem:[%s3 + $0x1b0] sm:$0xff]
      %v4164 = vld [vmem:[%s3 + $0x1b8] sm:$0xff]
      %v4165 = vld [vmem:[%s3 + $0x1c0] sm:$0xff]
      %v4166 = vld [vmem:[%s3 + $0x1c8] sm:$0xff]
      %v4167 = vld [vmem:[%s3 + $0x1d0] sm:$0xff]
      %v4168 = vld [vmem:[%s3 + $0x1d8] sm:$0xff]
      %v4169 = vld [vmem:[%s3 + $0x1e0] sm:$0xff]
      %v4170 = vld [vmem:[%s3 + $0x1e8] sm:$0xff]
      %v4171 = vld [vmem:[%s3 + $0x1f0] sm:$0xff]
      %v4172 = vld [vmem:[%s3 + $0x1f8] sm:$0xff]
      %v4173 = vld [vmem:[%s3 + $0x200] sm:$0xff]
      %v4174 = vld [vmem:[%s3 + $0x208] sm:$0xff]
      %v4175 = vld [vmem:[%s3 + $0x210] sm:$0xff]
      %v4176 = vld [vmem:[%s3 + $0x218] sm:$0xff]
      %v4177 = vld [vmem:[%s3 + $0x220] sm:$0xff]
      %v4178 = vld [vmem:[%s3 + $0x228] sm:$0xff]
      %v4179 = vld [vmem:[%s3 + $0x230] sm:$0xff]
      %v4180 = vld [vmem:[%s3 + $0x238] sm:$0xff]
      %v4181 = vld [vmem:[%s3 + $0x240] sm:$0xff]
      %v4182 = vld [vmem:[%s3 + $0x248] sm:$0xff]
      %v4183 = vld [vmem:[%s3 + $0x250] sm:$0xff]
      %v4184 = vld [vmem:[%s3 + $0x258] sm:$0xff]
      %v4185 = vld [vmem:[%s3 + $0x260] sm:$0xff]
      %v4186 = vld [vmem:[%s3 + $0x268] sm:$0xff]
      %v4187 = vld [vmem:[%s3 + $0x270] sm:$0xff]
      %v4188 = vld [vmem:[%s3 + $0x278] sm:$0xff]
      %v4189 = vld [vmem:[%s3 + $0x280] sm:$0xff]
      %v4190 = vld [vmem:[%s3 + $0x288] sm:$0xff]
      %v4191 = vld [vmem:[%s3 + $0x290] sm:$0xff]
      %v4192 = vld [vmem:[%s3 + $0x298] sm:$0xff]
      %v4193 = vld [vmem:[%s3 + $0x2a0] sm:$0xff]
      %v4194 = vld [vmem:[%s3 + $0x2a8] sm:$0xff]
      %v4195 = vld [vmem:[%s3 + $0x2b0] sm:$0xff]
      %v4196 = vld [vmem:[%s3 + $0x2b8] sm:$0xff]
      %v4197 = vld [vmem:[%s3 + $0x2c0] sm:$0xff]
      %v4198 = vld [vmem:[%s3 + $0x2c8] sm:$0xff]
      %v4199 = vld [vmem:[%s3 + $0x2d0] sm:$0xff]
      %v4200 = vld [vmem:[%s3 + $0x2d8] sm:$0xff]
      %v4201 = vld [vmem:[%s3 + $0x2e0] sm:$0xff]
      %v4202 = vld [vmem:[%s3 + $0x2e8] sm:$0xff]
      %v4203 = vld [vmem:[%s3 + $0x2f0] sm:$0xff]
      %v4204 = vld [vmem:[%s3 + $0x2f8] sm:$0xff]
      %v4205 = vld [vmem:[%s3 + $0x300] sm:$0xff]
      %v4206 = vld [vmem:[%s3 + $0x308] sm:$0xff]
      %v4207 = vld [vmem:[%s3 + $0x310] sm:$0xff]
      %v4208 = vld [vmem:[%s3 + $0x318] sm:$0xff]
      %v4209 = vld [vmem:[%s3 + $0x320] sm:$0xff]
      %v4210 = vld [vmem:[%s3 + $0x328] sm:$0xff]
      %v4211 = vld [vmem:[%s3 + $0x330] sm:$0xff]
      %v4212 = vld [vmem:[%s3 + $0x338] sm:$0xff]
      %v4213 = vld [vmem:[%s3 + $0x340] sm:$0xff]
      %v4214 = vld [vmem:[%s3 + $0x348] sm:$0xff]
      %v4215 = vld [vmem:[%s3 + $0x350] sm:$0xff]
      %v4216 = vld [vmem:[%s3 + $0x358] sm:$0xff]
      %v4217 = vld [vmem:[%s3 + $0x360] sm:$0xff]
      %v4218 = vld [vmem:[%s3 + $0x368] sm:$0xff]
      %v4219 = vld [vmem:[%s3 + $0x370] sm:$0xff]
      %v4220 = vld [vmem:[%s3 + $0x378] sm:$0xff]
      %v4221 = vld [vmem:[%s3 + $0x380] sm:$0xff]
      %v4222 = vld [vmem:[%s3 + $0x388] sm:$0xff]
      %v4223 = vld [vmem:[%s3 + $0x390] sm:$0xff]
      %v4224 = vld [vmem:[%s3 + $0x398] sm:$0xff]
      %v4225 = vld [vmem:[%s3 + $0x3a0] sm:$0xff]
      %v4226 = vld [vmem:[%s3 + $0x3a8] sm:$0xff]
      %v4227 = vld [vmem:[%s3 + $0x3b0] sm:$0xff]
      %v4228 = vld [vmem:[%s3 + $0x3b8] sm:$0xff]
      %v4229 = vld [vmem:[%s3 + $0x3c0] sm:$0xff]
      %v4230 = vld [vmem:[%s3 + $0x3c8] sm:$0xff]
      %v4231 = vld [vmem:[%s3 + $0x3d0] sm:$0xff]
      %v4232 = vld [vmem:[%s3 + $0x3d8] sm:$0xff]
      %v4233 = vld [vmem:[%s3 + $0x3e0] sm:$0xff]
      %v4234 = vld [vmem:[%s3 + $0x3e8] sm:$0xff]
      %v4235 = vld [vmem:[%s3 + $0x3f0] sm:$0xff]
      %v4236 = vld [vmem:[%s3 + $0x3f8] sm:$0xff]
      %v4237 = vld [vmem:[%s3 + $0x400] sm:$0xff]
      %v4238 = vld [vmem:[%s3 + $0x408] sm:$0xff]
      %v4239 = vld [vmem:[%s3 + $0x410] sm:$0xff]
      %v4240 = vld [vmem:[%s3 + $0x418] sm:$0xff]
      %v4241 = vld [vmem:[%s3 + $0x420] sm:$0xff]
      %v4242 = vld [vmem:[%s3 + $0x428] sm:$0xff]
      %v4243 = vld [vmem:[%s3 + $0x430] sm:$0xff]
      %v4244 = vld [vmem:[%s3 + $0x438] sm:$0xff]
      %v4245 = vld [vmem:[%s3 + $0x440] sm:$0xff]
      %v4246 = vld [vmem:[%s3 + $0x448] sm:$0xff]
      %v4247 = vld [vmem:[%s3 + $0x450] sm:$0xff]
      %v4248 = vld [vmem:[%s3 + $0x458] sm:$0xff]
      %v4249 = vld [vmem:[%s3 + $0x460] sm:$0xff]
      %v4250 = vld [vmem:[%s3 + $0x468] sm:$0xff]
      %v4251 = vld [vmem:[%s3 + $0x470] sm:$0xff]
      %v4252 = vld [vmem:[%s3 + $0x478] sm:$0xff]
      %v4253 = vld [vmem:[%s3 + $0x480] sm:$0xff]
      %v4254 = vld [vmem:[%s3 + $0x488] sm:$0xff]
      %v4255 = vld [vmem:[%s3 + $0x490] sm:$0xff]
      %v4256 = vld [vmem:[%s3 + $0x498] sm:$0xff]
      %v4257 = vld [vmem:[%s3 + $0x4a0] sm:$0xff]
      %v4258 = vld [vmem:[%s3 + $0x4a8] sm:$0xff]
      %v4259 = vld [vmem:[%s3 + $0x4b0] sm:$0xff]
      %v4260 = vld [vmem:[%s3 + $0x4b8] sm:$0xff]
      %v4261 = vld [vmem:[%s3 + $0x4c0] sm:$0xff]
      %v4262 = vld [vmem:[%s3 + $0x4c8] sm:$0xff]
      %v4263 = vld [vmem:[%s3 + $0x4d0] sm:$0xff]
      %v4264 = vld [vmem:[%s3 + $0x4d8] sm:$0xff]
      %v4265 = vld [vmem:[%s3 + $0x4e0] sm:$0xff]
      %v4266 = vld [vmem:[%s3 + $0x4e8] sm:$0xff]
      %v4267 = vld [vmem:[%s3 + $0x4f0] sm:$0xff]
      %v4268 = vld [vmem:[%s3 + $0x4f8] sm:$0xff]
      %v4269 = vld [vmem:[%s3 + $0x500] sm:$0xff]
      %v4270 = vld [vmem:[%s3 + $0x508] sm:$0xff]
      %v4271 = vld [vmem:[%s3 + $0x510] sm:$0xff]
      %v4272 = vld [vmem:[%s3 + $0x518] sm:$0xff]
      %v4273 = vld [vmem:[%s3 + $0x520] sm:$0xff]
      %v4274 = vld [vmem:[%s3 + $0x528] sm:$0xff]
      %v4275 = vld [vmem:[%s3 + $0x530] sm:$0xff]
      %v4276 = vld [vmem:[%s3 + $0x538] sm:$0xff]
      %v4277 = vld [vmem:[%s3 + $0x540] sm:$0xff]
      %v4278 = vld [vmem:[%s3 + $0x548] sm:$0xff]
      %v4279 = vld [vmem:[%s3 + $0x550] sm:$0xff]
      %v4280 = vld [vmem:[%s3 + $0x558] sm:$0xff]
      %v4281 = vld [vmem:[%s3 + $0x560] sm:$0xff]
      %v4282 = vld [vmem:[%s3 + $0x568] sm:$0xff]
      %v4283 = vld [vmem:[%s3 + $0x570] sm:$0xff]
      %v4284 = vld [vmem:[%s3 + $0x578] sm:$0xff]
      %v4285 = vld [vmem:[%s3 + $0x580] sm:$0xff]
      %v4286 = vld [vmem:[%s3 + $0x588] sm:$0xff]
      %v4287 = vld [vmem:[%s3 + $0x590] sm:$0xff]
      %v4288 = vld [vmem:[%s3 + $0x598] sm:$0xff]
      %v4289 = vld [vmem:[%s3 + $0x5a0] sm:$0xff]
      %v4290 = vld [vmem:[%s3 + $0x5a8] sm:$0xff]
      %v4291 = vld [vmem:[%s3 + $0x5b0] sm:$0xff]
      %v4292 = vld [vmem:[%s3 + $0x5b8] sm:$0xff]
      %v4293 = vld [vmem:[%s3 + $0x5c0] sm:$0xff]
      %v4294 = vld [vmem:[%s3 + $0x5c8] sm:$0xff]
      %v4295 = vld [vmem:[%s3 + $0x5d0] sm:$0xff]
      %v4296 = vld [vmem:[%s3 + $0x5d8] sm:$0xff]
      %v4297 = vld [vmem:[%s3 + $0x5e0] sm:$0xff]
      %v4298 = vld [vmem:[%s3 + $0x5e8] sm:$0xff]
      %v4299 = vld [vmem:[%s3 + $0x5f0] sm:$0xff]
      %v4300 = vld [vmem:[%s3 + $0x5f8] sm:$0xff]
      %v4301 = vld [vmem:[%s3 + $0x600] sm:$0xff]
      %v4302 = vld [vmem:[%s3 + $0x608] sm:$0xff]
      %v4303 = vld [vmem:[%s3 + $0x610] sm:$0xff]
      %v4304 = vld [vmem:[%s3 + $0x618] sm:$0xff]
      %v4305 = vld [vmem:[%s3 + $0x620] sm:$0xff]
      %v4306 = vld [vmem:[%s3 + $0x628] sm:$0xff]
      %v4307 = vld [vmem:[%s3 + $0x630] sm:$0xff]
      %v4308 = vld [vmem:[%s3 + $0x638] sm:$0xff]
      %v4309 = vld [vmem:[%s3 + $0x640] sm:$0xff]
      %v4310 = vld [vmem:[%s3 + $0x648] sm:$0xff]
      %v4311 = vld [vmem:[%s3 + $0x650] sm:$0xff]
      %v4312 = vld [vmem:[%s3 + $0x658] sm:$0xff]
      %v4313 = vld [vmem:[%s3 + $0x660] sm:$0xff]
      %v4314 = vld [vmem:[%s3 + $0x668] sm:$0xff]
      %v4315 = vld [vmem:[%s3 + $0x670] sm:$0xff]
      %v4316 = vld [vmem:[%s3 + $0x678] sm:$0xff]
      %v4317 = vld [vmem:[%s3 + $0x680] sm:$0xff]
      %v4318 = vld [vmem:[%s3 + $0x688] sm:$0xff]
      %v4319 = vld [vmem:[%s3 + $0x690] sm:$0xff]
      %v4320 = vld [vmem:[%s3 + $0x698] sm:$0xff]
      %v4321 = vld [vmem:[%s3 + $0x6a0] sm:$0xff]
      %v4322 = vld [vmem:[%s3 + $0x6a8] sm:$0xff]
      %v4323 = vld [vmem:[%s3 + $0x6b0] sm:$0xff]
      %v4324 = vld [vmem:[%s3 + $0x6b8] sm:$0xff]
      %v4325 = vld [vmem:[%s3 + $0x6c0] sm:$0xff]
      %v4326 = vld [vmem:[%s3 + $0x6c8] sm:$0xff]
      %v4327 = vld [vmem:[%s3 + $0x6d0] sm:$0xff]
      %v4328 = vld [vmem:[%s3 + $0x6d8] sm:$0xff]
      %v4329 = vld [vmem:[%s3 + $0x6e0] sm:$0xff]
      %v4330 = vld [vmem:[%s3 + $0x6e8] sm:$0xff]
      %v4331 = vld [vmem:[%s3 + $0x6f0] sm:$0xff]
      %v4332 = vld [vmem:[%s3 + $0x6f8] sm:$0xff]
      %v4333 = vld [vmem:[%s3 + $0x700] sm:$0xff]
      %v4334 = vld [vmem:[%s3 + $0x708] sm:$0xff]
      %v4335 = vld [vmem:[%s3 + $0x710] sm:$0xff]
      %v4336 = vld [vmem:[%s3 + $0x718] sm:$0xff]
      %v4337 = vld [vmem:[%s3 + $0x720] sm:$0xff]
      %v4338 = vld [vmem:[%s3 + $0x728] sm:$0xff]
      %v4339 = vld [vmem:[%s3 + $0x730] sm:$0xff]
      %v4340 = vld [vmem:[%s3 + $0x738] sm:$0xff]
      %v4341 = vld [vmem:[%s3 + $0x740] sm:$0xff]
      %v4342 = vld [vmem:[%s3 + $0x748] sm:$0xff]
      %v4343 = vld [vmem:[%s3 + $0x750] sm:$0xff]
      %v4344 = vld [vmem:[%s3 + $0x758] sm:$0xff]
      %v4345 = vld [vmem:[%s3 + $0x760] sm:$0xff]
      %v4346 = vld [vmem:[%s3 + $0x768] sm:$0xff]
      %v4347 = vld [vmem:[%s3 + $0x770] sm:$0xff]
      %v4348 = vld [vmem:[%s3 + $0x778] sm:$0xff]
      %v4349 = vld [vmem:[%s3 + $0x780] sm:$0xff]
      %v4350 = vld [vmem:[%s3 + $0x788] sm:$0xff]
      %v4351 = vld [vmem:[%s3 + $0x790] sm:$0xff]
      %v4352 = vld [vmem:[%s3 + $0x798] sm:$0xff]
      %v4353 = vld [vmem:[%s3 + $0x7a0] sm:$0xff]
      %v4354 = vld [vmem:[%s3 + $0x7a8] sm:$0xff]
      %v4355 = vld [vmem:[%s3 + $0x7b0] sm:$0xff]
      %v4356 = vld [vmem:[%s3 + $0x7b8] sm:$0xff]
      %v4357 = vld [vmem:[%s3 + $0x7c0] sm:$0xff]
      %v4358 = vld [vmem:[%s3 + $0x7c8] sm:$0xff]
      %v4359 = vld [vmem:[%s3 + $0x7d0] sm:$0xff]
      %v4360 = vld [vmem:[%s3 + $0x7d8] sm:$0xff]
      %v4361 = vld [vmem:[%s3 + $0x7e0] sm:$0xff]
      %v4362 = vld [vmem:[%s3 + $0x7e8] sm:$0xff]
      %v4363 = vld [vmem:[%s3 + $0x7f0] sm:$0xff]
      %v4364 = vld [vmem:[%s3 + $0x7f8] sm:$0xff]
      %v4365 = vld [vmem:[%s3 + $0x800] sm:$0xff]
      %v4366 = vld [vmem:[%s3 + $0x808] sm:$0xff]
      %v4367 = vld [vmem:[%s3 + $0x810] sm:$0xff]
      %v4368 = vld [vmem:[%s3 + $0x818] sm:$0xff]
      %v4369 = vld [vmem:[%s3 + $0x820] sm:$0xff]
      %v4370 = vld [vmem:[%s3 + $0x828] sm:$0xff]
      %v4371 = vld [vmem:[%s3 + $0x830] sm:$0xff]
      %v4372 = vld [vmem:[%s3 + $0x838] sm:$0xff]
      %v4373 = vld [vmem:[%s3 + $0x840] sm:$0xff]
      %v4374 = vld [vmem:[%s3 + $0x848] sm:$0xff]
      %v4375 = vld [vmem:[%s3 + $0x850] sm:$0xff]
      %v4376 = vld [vmem:[%s3 + $0x858] sm:$0xff]
      %v4377 = vld [vmem:[%s3 + $0x860] sm:$0xff]
      %v4378 = vld [vmem:[%s3 + $0x868] sm:$0xff]
      %v4379 = vld [vmem:[%s3 + $0x870] sm:$0xff]
      %v4380 = vld [vmem:[%s3 + $0x878] sm:$0xff]
      %v4381 = vld [vmem:[%s3 + $0x880] sm:$0xff]
      %v4382 = vld [vmem:[%s3 + $0x888] sm:$0xff]
      %v4383 = vld [vmem:[%s3 + $0x890] sm:$0xff]
      %v4384 = vld [vmem:[%s3 + $0x898] sm:$0xff]
      %v4385 = vld [vmem:[%s3 + $0x8a0] sm:$0xff]
      %v4386 = vld [vmem:[%s3 + $0x8a8] sm:$0xff]
      %v4387 = vld [vmem:[%s3 + $0x8b0] sm:$0xff]
      %v4388 = vld [vmem:[%s3 + $0x8b8] sm:$0xff]
      %v4389 = vld [vmem:[%s3 + $0x8c0] sm:$0xff]
      %v4390 = vld [vmem:[%s3 + $0x8c8] sm:$0xff]
      %v4391 = vld [vmem:[%s3 + $0x8d0] sm:$0xff]
      %v4392 = vld [vmem:[%s3 + $0x8d8] sm:$0xff]
      %v4393 = vld [vmem:[%s3 + $0x8e0] sm:$0xff]
      %v4394 = vld [vmem:[%s3 + $0x8e8] sm:$0xff]
      %v4395 = vld [vmem:[%s3 + $0x8f0] sm:$0xff]
      %v4396 = vld [vmem:[%s3 + $0x8f8] sm:$0xff]
      %v4397 = vld [vmem:[%s3 + $0x900] sm:$0xff]
      %v4398 = vld [vmem:[%s3 + $0x908] sm:$0xff]
      %v4399 = vld [vmem:[%s3 + $0x910] sm:$0xff]
      %v4400 = vld [vmem:[%s3 + $0x918] sm:$0xff]
      %v4401 = vld [vmem:[%s3 + $0x920] sm:$0xff]
      %v4402 = vld [vmem:[%s3 + $0x928] sm:$0xff]
      %v4403 = vld [vmem:[%s3 + $0x930] sm:$0xff]
      %v4404 = vld [vmem:[%s3 + $0x938] sm:$0xff]
      %v4405 = vld [vmem:[%s3 + $0x940] sm:$0xff]
      %v4406 = vld [vmem:[%s3 + $0x948] sm:$0xff]
      %v4407 = vld [vmem:[%s3 + $0x950] sm:$0xff]
      %v4408 = vld [vmem:[%s3 + $0x958] sm:$0xff]
      %v4409 = vld [vmem:[%s3 + $0x960] sm:$0xff]
      %v4410 = vld [vmem:[%s3 + $0x968] sm:$0xff]
      %v4411 = vld [vmem:[%s3 + $0x970] sm:$0xff]
      %v4412 = vld [vmem:[%s3 + $0x978] sm:$0xff]
      %v4413 = vld [vmem:[%s3 + $0x980] sm:$0xff]
      %v4414 = vld [vmem:[%s3 + $0x988] sm:$0xff]
      %v4415 = vld [vmem:[%s3 + $0x990] sm:$0xff]
      %v4416 = vld [vmem:[%s3 + $0x998] sm:$0xff]
      %v4417 = vld [vmem:[%s3 + $0x9a0] sm:$0xff]
      %v4418 = vld [vmem:[%s3 + $0x9a8] sm:$0xff]
      %v4419 = vld [vmem:[%s3 + $0x9b0] sm:$0xff]
      %v4420 = vld [vmem:[%s3 + $0x9b8] sm:$0xff]
      %v4421 = vld [vmem:[%s3 + $0x9c0] sm:$0xff]
      %v4422 = vld [vmem:[%s3 + $0x9c8] sm:$0xff]
      %v4423 = vld [vmem:[%s3 + $0x9d0] sm:$0xff]
      %v4424 = vld [vmem:[%s3 + $0x9d8] sm:$0xff]
      %v4425 = vld [vmem:[%s3 + $0x9e0] sm:$0xff]
      %v4426 = vld [vmem:[%s3 + $0x9e8] sm:$0xff]
      %v4427 = vld [vmem:[%s3 + $0x9f0] sm:$0xff]
      %v4428 = vld [vmem:[%s3 + $0x9f8] sm:$0xff]
      %v4429 = vld [vmem:[%s3 + $0xa00] sm:$0xff]
      %v4430 = vld [vmem:[%s3 + $0xa08] sm:$0xff]
      %v4431 = vld [vmem:[%s3 + $0xa10] sm:$0xff]
      %v4432 = vld [vmem:[%s3 + $0xa18] sm:$0xff]
      %v4433 = vld [vmem:[%s3 + $0xa20] sm:$0xff]
      %v4434 = vld [vmem:[%s3 + $0xa28] sm:$0xff]
      %v4435 = vld [vmem:[%s3 + $0xa30] sm:$0xff]
      %v4436 = vld [vmem:[%s3 + $0xa38] sm:$0xff]
      %v4437 = vld [vmem:[%s3 + $0xa40] sm:$0xff]
      %v4438 = vld [vmem:[%s3 + $0xa48] sm:$0xff]
      %v4439 = vld [vmem:[%s3 + $0xa50] sm:$0xff]
      %v4440 = vld [vmem:[%s3 + $0xa58] sm:$0xff]
      %v4441 = vld [vmem:[%s3 + $0xa60] sm:$0xff]
      %v4442 = vld [vmem:[%s3 + $0xa68] sm:$0xff]
      %v4443 = vld [vmem:[%s3 + $0xa70] sm:$0xff]
      %v4444 = vld [vmem:[%s3 + $0xa78] sm:$0xff]
      %v4445 = vld [vmem:[%s3 + $0xa80] sm:$0xff]
      %v4446 = vld [vmem:[%s3 + $0xa88] sm:$0xff]
      %v4447 = vld [vmem:[%s3 + $0xa90] sm:$0xff]
      %v4448 = vld [vmem:[%s3 + $0xa98] sm:$0xff]
      %v4449 = vld [vmem:[%s3 + $0xaa0] sm:$0xff]
      %v4450 = vld [vmem:[%s3 + $0xaa8] sm:$0xff]
      %v4451 = vld [vmem:[%s3 + $0xab0] sm:$0xff]
      %v4452 = vld [vmem:[%s3 + $0xab8] sm:$0xff]
      %v4453 = vld [vmem:[%s3 + $0xac0] sm:$0xff]
      %v4454 = vld [vmem:[%s3 + $0xac8] sm:$0xff]
      %v4455 = vld [vmem:[%s3 + $0xad0] sm:$0xff]
      %v4456 = vld [vmem:[%s3 + $0xad8] sm:$0xff]
      %v4457 = vld [vmem:[%s3 + $0xae0] sm:$0xff]
      %v4458 = vld [vmem:[%s3 + $0xae8] sm:$0xff]
      %v4459 = vld [vmem:[%s3 + $0xaf0] sm:$0xff]
      %v4460 = vld [vmem:[%s3 + $0xaf8] sm:$0xff]
      %v4461 = vld [vmem:[%s3 + $0xb00] sm:$0xff]
      %v4462 = vld [vmem:[%s3 + $0xb08] sm:$0xff]
      %v4463 = vld [vmem:[%s3 + $0xb10] sm:$0xff]
      %v4464 = vld [vmem:[%s3 + $0xb18] sm:$0xff]
      %v4465 = vld [vmem:[%s3 + $0xb20] sm:$0xff]
      %v4466 = vld [vmem:[%s3 + $0xb28] sm:$0xff]
      %v4467 = vld [vmem:[%s3 + $0xb30] sm:$0xff]
      %v4468 = vld [vmem:[%s3 + $0xb38] sm:$0xff]
      %v4469 = vld [vmem:[%s3 + $0xb40] sm:$0xff]
      %v4470 = vld [vmem:[%s3 + $0xb48] sm:$0xff]
      %v4471 = vld [vmem:[%s3 + $0xb50] sm:$0xff]
      %v4472 = vld [vmem:[%s3 + $0xb58] sm:$0xff]
      %v4473 = vld [vmem:[%s3 + $0xb60] sm:$0xff]
      %v4474 = vld [vmem:[%s3 + $0xb68] sm:$0xff]
      %v4475 = vld [vmem:[%s3 + $0xb70] sm:$0xff]
      %v4476 = vld [vmem:[%s3 + $0xb78] sm:$0xff]
      %v4477 = vld [vmem:[%s3 + $0xb80] sm:$0xff]
      %v4478 = vld [vmem:[%s3 + $0xb88] sm:$0xff]
      %v4479 = vld [vmem:[%s3 + $0xb90] sm:$0xff]
      %v4480 = vld [vmem:[%s3 + $0xb98] sm:$0xff]
      %v4481 = vld [vmem:[%s3 + $0xba0] sm:$0xff]
      %v4482 = vld [vmem:[%s3 + $0xba8] sm:$0xff]
      %v4483 = vld [vmem:[%s3 + $0xbb0] sm:$0xff]
      %v4484 = vld [vmem:[%s3 + $0xbb8] sm:$0xff]
      %v4485 = vld [vmem:[%s3 + $0xbc0] sm:$0xff]
      %v4486 = vld [vmem:[%s3 + $0xbc8] sm:$0xff]
      %v4487 = vld [vmem:[%s3 + $0xbd0] sm:$0xff]
      %v4488 = vld [vmem:[%s3 + $0xbd8] sm:$0xff]
      %v4489 = vld [vmem:[%s3 + $0xbe0] sm:$0xff]
      %v4490 = vld [vmem:[%s3 + $0xbe8] sm:$0xff]
      %v4491 = vld [vmem:[%s3 + $0xbf0] sm:$0xff]
      %v4492 = vld [vmem:[%s3 + $0xbf8] sm:$0xff]
      %v4493 = vld [vmem:[%s3 + $0xc00] sm:$0xff]
      %v4494 = vld [vmem:[%s3 + $0xc08] sm:$0xff]
      %v4495 = vld [vmem:[%s3 + $0xc10] sm:$0xff]
      %v4496 = vld [vmem:[%s3 + $0xc18] sm:$0xff]
      %v4497 = vld [vmem:[%s3 + $0xc20] sm:$0xff]
      %v4498 = vld [vmem:[%s3 + $0xc28] sm:$0xff]
      %v4499 = vld [vmem:[%s3 + $0xc30] sm:$0xff]
      %v4500 = vld [vmem:[%s3 + $0xc38] sm:$0xff]
      %v4501 = vld [vmem:[%s3 + $0xc40] sm:$0xff]
      %v4502 = vld [vmem:[%s3 + $0xc48] sm:$0xff]
      %v4503 = vld [vmem:[%s3 + $0xc50] sm:$0xff]
      %v4504 = vld [vmem:[%s3 + $0xc58] sm:$0xff]
      %v4505 = vld [vmem:[%s3 + $0xc60] sm:$0xff]
      %v4506 = vld [vmem:[%s3 + $0xc68] sm:$0xff]
      %v4507 = vld [vmem:[%s3 + $0xc70] sm:$0xff]
      %v4508 = vld [vmem:[%s3 + $0xc78] sm:$0xff]
      %v4509 = vld [vmem:[%s3 + $0xc80] sm:$0xff]
      %v4510 = vld [vmem:[%s3 + $0xc88] sm:$0xff]
      %v4511 = vld [vmem:[%s3 + $0xc90] sm:$0xff]
      %v4512 = vld [vmem:[%s3 + $0xc98] sm:$0xff]
      %v4513 = vld [vmem:[%s3 + $0xca0] sm:$0xff]
      %v4514 = vld [vmem:[%s3 + $0xca8] sm:$0xff]
      %v4515 = vld [vmem:[%s3 + $0xcb0] sm:$0xff]
      %v4516 = vld [vmem:[%s3 + $0xcb8] sm:$0xff]
      %v4517 = vld [vmem:[%s3 + $0xcc0] sm:$0xff]
      %v4518 = vld [vmem:[%s3 + $0xcc8] sm:$0xff]
      %v4519 = vld [vmem:[%s3 + $0xcd0] sm:$0xff]
      %v4520 = vld [vmem:[%s3 + $0xcd8] sm:$0xff]
      %v4521 = vld [vmem:[%s3 + $0xce0] sm:$0xff]
      %v4522 = vld [vmem:[%s3 + $0xce8] sm:$0xff]
      %v4523 = vld [vmem:[%s3 + $0xcf0] sm:$0xff]
      %v4524 = vld [vmem:[%s3 + $0xcf8] sm:$0xff]
      %v4525 = vld [vmem:[%s3 + $0xd00] sm:$0xff]
      %v4526 = vld [vmem:[%s3 + $0xd08] sm:$0xff]
      %v4527 = vld [vmem:[%s3 + $0xd10] sm:$0xff]
      %v4528 = vld [vmem:[%s3 + $0xd18] sm:$0xff]
      %v4529 = vld [vmem:[%s3 + $0xd20] sm:$0xff]
      %v4530 = vld [vmem:[%s3 + $0xd28] sm:$0xff]
      %v4531 = vld [vmem:[%s3 + $0xd30] sm:$0xff]
      %v4532 = vld [vmem:[%s3 + $0xd38] sm:$0xff]
      %v4533 = vld [vmem:[%s3 + $0xd40] sm:$0xff]
      %v4534 = vld [vmem:[%s3 + $0xd48] sm:$0xff]
      %v4535 = vld [vmem:[%s3 + $0xd50] sm:$0xff]
      %v4536 = vld [vmem:[%s3 + $0xd58] sm:$0xff]
      %v4537 = vld [vmem:[%s3 + $0xd60] sm:$0xff]
      %v4538 = vld [vmem:[%s3 + $0xd68] sm:$0xff]
      %v4539 = vld [vmem:[%s3 + $0xd70] sm:$0xff]
      %v4540 = vld [vmem:[%s3 + $0xd78] sm:$0xff]
      %v4541 = vld [vmem:[%s3 + $0xd80] sm:$0xff]
      %v4542 = vld [vmem:[%s3 + $0xd88] sm:$0xff]
      %v4543 = vld [vmem:[%s3 + $0xd90] sm:$0xff]
      %v4544 = vld [vmem:[%s3 + $0xd98] sm:$0xff]
      %v4545 = vld [vmem:[%s3 + $0xda0] sm:$0xff]
      %v4546 = vld [vmem:[%s3 + $0xda8] sm:$0xff]
      %v4547 = vld [vmem:[%s3 + $0xdb0] sm:$0xff]
      %v4548 = vld [vmem:[%s3 + $0xdb8] sm:$0xff]
      %v4549 = vld [vmem:[%s3 + $0xdc0] sm:$0xff]
      %v4550 = vld [vmem:[%s3 + $0xdc8] sm:$0xff]
      %v4551 = vld [vmem:[%s3 + $0xdd0] sm:$0xff]
      %v4552 = vld [vmem:[%s3 + $0xdd8] sm:$0xff]
      %v4553 = vld [vmem:[%s3 + $0xde0] sm:$0xff]
      %v4554 = vld [vmem:[%s3 + $0xde8] sm:$0xff]
      %v4555 = vld [vmem:[%s3 + $0xdf0] sm:$0xff]
      %v4556 = vld [vmem:[%s3 + $0xdf8] sm:$0xff]
      %v4557 = vld [vmem:[%s3 + $0xe00] sm:$0xff]
      %v4558 = vld [vmem:[%s3 + $0xe08] sm:$0xff]
      %v4559 = vld [vmem:[%s3 + $0xe10] sm:$0xff]
      %v4560 = vld [vmem:[%s3 + $0xe18] sm:$0xff]
      %v4561 = vld [vmem:[%s3 + $0xe20] sm:$0xff]
      %v4562 = vld [vmem:[%s3 + $0xe28] sm:$0xff]
      %v4563 = vld [vmem:[%s3 + $0xe30] sm:$0xff]
      %v4564 = vld [vmem:[%s3 + $0xe38] sm:$0xff]
      %v4565 = vld [vmem:[%s3 + $0xe40] sm:$0xff]
      %v4566 = vld [vmem:[%s3 + $0xe48] sm:$0xff]
      %v4567 = vld [vmem:[%s3 + $0xe50] sm:$0xff]
      %v4568 = vld [vmem:[%s3 + $0xe58] sm:$0xff]
      %v4569 = vld [vmem:[%s3 + $0xe60] sm:$0xff]
      %v4570 = vld [vmem:[%s3 + $0xe68] sm:$0xff]
      %v4571 = vld [vmem:[%s3 + $0xe70] sm:$0xff]
      %v4572 = vld [vmem:[%s3 + $0xe78] sm:$0xff]
      %v4573 = vld [vmem:[%s3 + $0xe80] sm:$0xff]
      %v4574 = vld [vmem:[%s3 + $0xe88] sm:$0xff]
      %v4575 = vld [vmem:[%s3 + $0xe90] sm:$0xff]
      %v4576 = vld [vmem:[%s3 + $0xe98] sm:$0xff]
      %v4577 = vld [vmem:[%s3 + $0xea0] sm:$0xff]
      %v4578 = vld [vmem:[%s3 + $0xea8] sm:$0xff]
      %v4579 = vld [vmem:[%s3 + $0xeb0] sm:$0xff]
      %v4580 = vld [vmem:[%s3 + $0xeb8] sm:$0xff]
      %v4581 = vld [vmem:[%s3 + $0xec0] sm:$0xff]
      %v4582 = vld [vmem:[%s3 + $0xec8] sm:$0xff]
      %v4583 = vld [vmem:[%s3 + $0xed0] sm:$0xff]
      %v4584 = vld [vmem:[%s3 + $0xed8] sm:$0xff]
      %v4585 = vld [vmem:[%s3 + $0xee0] sm:$0xff]
      %v4586 = vld [vmem:[%s3 + $0xee8] sm:$0xff]
      %v4587 = vld [vmem:[%s3 + $0xef0] sm:$0xff]
      %v4588 = vld [vmem:[%s3 + $0xef8] sm:$0xff]
      %v4589 = vld [vmem:[%s3 + $0xf00] sm:$0xff]
      %v4590 = vld [vmem:[%s3 + $0xf08] sm:$0xff]
      %v4591 = vld [vmem:[%s3 + $0xf10] sm:$0xff]
      %v4592 = vld [vmem:[%s3 + $0xf18] sm:$0xff]
      %v4593 = vld [vmem:[%s3 + $0xf20] sm:$0xff]
      %v4594 = vld [vmem:[%s3 + $0xf28] sm:$0xff]
      %v4595 = vld [vmem:[%s3 + $0xf30] sm:$0xff]
      %v4596 = vld [vmem:[%s3 + $0xf38] sm:$0xff]
      %v4597 = vld [vmem:[%s3 + $0xf40] sm:$0xff]
      %v4598 = vld [vmem:[%s3 + $0xf48] sm:$0xff]
      %v4599 = vld [vmem:[%s3 + $0xf50] sm:$0xff]
      %v4600 = vld [vmem:[%s3 + $0xf58] sm:$0xff]
      %v4601 = vld [vmem:[%s3 + $0xf60] sm:$0xff]
      %v4602 = vld [vmem:[%s3 + $0xf68] sm:$0xff]
      %v4603 = vld [vmem:[%s3 + $0xf70] sm:$0xff]
      %v4604 = vld [vmem:[%s3 + $0xf78] sm:$0xff]
      %v4605 = vld [vmem:[%s3 + $0xf80] sm:$0xff]
      %v4606 = vld [vmem:[%s3 + $0xf88] sm:$0xff]
      %v4607 = vld [vmem:[%s3 + $0xf90] sm:$0xff]
      %v4608 = vld [vmem:[%s3 + $0xf98] sm:$0xff]
      %v4609 = vld [vmem:[%s3 + $0xfa0] sm:$0xff]
      %v4610 = vld [vmem:[%s3 + $0xfa8] sm:$0xff]
      %v4611 = vld [vmem:[%s3 + $0xfb0] sm:$0xff]
      %v4612 = vld [vmem:[%s3 + $0xfb8] sm:$0xff]
      %v4613 = vld [vmem:[%s3 + $0xfc0] sm:$0xff]
      %v4614 = vld [vmem:[%s3 + $0xfc8] sm:$0xff]
      %v4615 = vld [vmem:[%s3 + $0xfd0] sm:$0xff]
      %v4616 = vld [vmem:[%s3 + $0xfd8] sm:$0xff]
      %v4617 = vld [vmem:[%s3 + $0xfe0] sm:$0xff]
      %v4618 = vld [vmem:[%s3 + $0xfe8] sm:$0xff]
      %v4619 = vld [vmem:[%s3 + $0xff0] sm:$0xff]
      %v4620 = vld [vmem:[%s3 + $0xff8] sm:$0xff]
      %v5133 = vunpack.c.l.b16 %v4109
      %v5134 = vunpack.c.h.b16 %v4109
      %v5135 = vunpack.c.l.b16 %v4110
      %v5136 = vunpack.c.h.b16 %v4110
      %v5137 = vunpack.c.l.b16 %v4111
      %v5138 = vunpack.c.h.b16 %v4111
      %v5139 = vunpack.c.l.b16 %v4112
      %v5140 = vunpack.c.h.b16 %v4112
      %v5141 = vunpack.c.l.b16 %v4113
      %v5142 = vunpack.c.h.b16 %v4113
      %v5143 = vunpack.c.l.b16 %v4114
      %v5144 = vunpack.c.h.b16 %v4114
      %v5145 = vunpack.c.l.b16 %v4115
      %v5146 = vunpack.c.h.b16 %v4115
      %v5147 = vunpack.c.l.b16 %v4116
      %v5148 = vunpack.c.h.b16 %v4116
      %v5149 = vunpack.c.l.b16 %v4117
      %v5150 = vunpack.c.h.b16 %v4117
      %v5151 = vunpack.c.l.b16 %v4118
      %v5152 = vunpack.c.h.b16 %v4118
      %v5153 = vunpack.c.l.b16 %v4119
      %v5154 = vunpack.c.h.b16 %v4119
      %v5155 = vunpack.c.l.b16 %v4120
      %v5156 = vunpack.c.h.b16 %v4120
      %v5157 = vunpack.c.l.b16 %v4121
      %v5158 = vunpack.c.h.b16 %v4121
      %v5159 = vunpack.c.l.b16 %v4122
      %v5160 = vunpack.c.h.b16 %v4122
      %v5161 = vunpack.c.l.b16 %v4123
      %v5162 = vunpack.c.h.b16 %v4123
      %v5163 = vunpack.c.l.b16 %v4124
      %v5164 = vunpack.c.h.b16 %v4124
      %v5165 = vunpack.c.l.b16 %v4125
      %v5166 = vunpack.c.h.b16 %v4125
      %v5167 = vunpack.c.l.b16 %v4126
      %v5168 = vunpack.c.h.b16 %v4126
      %v5169 = vunpack.c.l.b16 %v4127
      %v5170 = vunpack.c.h.b16 %v4127
      %v5171 = vunpack.c.l.b16 %v4128
      %v5172 = vunpack.c.h.b16 %v4128
      %v5173 = vunpack.c.l.b16 %v4129
      %v5174 = vunpack.c.h.b16 %v4129
      %v5175 = vunpack.c.l.b16 %v4130
      %v5176 = vunpack.c.h.b16 %v4130
      %v5177 = vunpack.c.l.b16 %v4131
      %v5178 = vunpack.c.h.b16 %v4131
      %v5179 = vunpack.c.l.b16 %v4132
      %v5180 = vunpack.c.h.b16 %v4132
      %v5181 = vunpack.c.l.b16 %v4133
      %v5182 = vunpack.c.h.b16 %v4133
      %v5183 = vunpack.c.l.b16 %v4134
      %v5184 = vunpack.c.h.b16 %v4134
      %v5185 = vunpack.c.l.b16 %v4135
      %v5186 = vunpack.c.h.b16 %v4135
      %v5187 = vunpack.c.l.b16 %v4136
      %v5188 = vunpack.c.h.b16 %v4136
      %v5189 = vunpack.c.l.b16 %v4137
      %v5190 = vunpack.c.h.b16 %v4137
      %v5191 = vunpack.c.l.b16 %v4138
      %v5192 = vunpack.c.h.b16 %v4138
      %v5193 = vunpack.c.l.b16 %v4139
      %v5194 = vunpack.c.h.b16 %v4139
      %v5195 = vunpack.c.l.b16 %v4140
      %v5196 = vunpack.c.h.b16 %v4140
      %v5197 = vunpack.c.l.b16 %v4141
      %v5198 = vunpack.c.h.b16 %v4141
      %v5199 = vunpack.c.l.b16 %v4142
      %v5200 = vunpack.c.h.b16 %v4142
      %v5201 = vunpack.c.l.b16 %v4143
      %v5202 = vunpack.c.h.b16 %v4143
      %v5203 = vunpack.c.l.b16 %v4144
      %v5204 = vunpack.c.h.b16 %v4144
      %v5205 = vunpack.c.l.b16 %v4145
      %v5206 = vunpack.c.h.b16 %v4145
      %v5207 = vunpack.c.l.b16 %v4146
      %v5208 = vunpack.c.h.b16 %v4146
      %v5209 = vunpack.c.l.b16 %v4147
      %v5210 = vunpack.c.h.b16 %v4147
      %v5211 = vunpack.c.l.b16 %v4148
      %v5212 = vunpack.c.h.b16 %v4148
      %v5213 = vunpack.c.l.b16 %v4149
      %v5214 = vunpack.c.h.b16 %v4149
      %v5215 = vunpack.c.l.b16 %v4150
      %v5216 = vunpack.c.h.b16 %v4150
      %v5217 = vunpack.c.l.b16 %v4151
      %v5218 = vunpack.c.h.b16 %v4151
      %v5219 = vunpack.c.l.b16 %v4152
      %v5220 = vunpack.c.h.b16 %v4152
      %v5221 = vunpack.c.l.b16 %v4153
      %v5222 = vunpack.c.h.b16 %v4153
      %v5223 = vunpack.c.l.b16 %v4154
      %v5224 = vunpack.c.h.b16 %v4154
      %v5225 = vunpack.c.l.b16 %v4155
      %v5226 = vunpack.c.h.b16 %v4155
      %v5227 = vunpack.c.l.b16 %v4156
      %v5228 = vunpack.c.h.b16 %v4156
      %v5229 = vunpack.c.l.b16 %v4157
      %v5230 = vunpack.c.h.b16 %v4157
      %v5231 = vunpack.c.l.b16 %v4158
      %v5232 = vunpack.c.h.b16 %v4158
      %v5233 = vunpack.c.l.b16 %v4159
      %v5234 = vunpack.c.h.b16 %v4159
      %v5235 = vunpack.c.l.b16 %v4160
      %v5236 = vunpack.c.h.b16 %v4160
      %v5237 = vunpack.c.l.b16 %v4161
      %v5238 = vunpack.c.h.b16 %v4161
      %v5239 = vunpack.c.l.b16 %v4162
      %v5240 = vunpack.c.h.b16 %v4162
      %v5241 = vunpack.c.l.b16 %v4163
      %v5242 = vunpack.c.h.b16 %v4163
      %v5243 = vunpack.c.l.b16 %v4164
      %v5244 = vunpack.c.h.b16 %v4164
      %v5245 = vunpack.c.l.b16 %v4165
      %v5246 = vunpack.c.h.b16 %v4165
      %v5247 = vunpack.c.l.b16 %v4166
      %v5248 = vunpack.c.h.b16 %v4166
      %v5249 = vunpack.c.l.b16 %v4167
      %v5250 = vunpack.c.h.b16 %v4167
      %v5251 = vunpack.c.l.b16 %v4168
      %v5252 = vunpack.c.h.b16 %v4168
      %v5253 = vunpack.c.l.b16 %v4169
      %v5254 = vunpack.c.h.b16 %v4169
      %v5255 = vunpack.c.l.b16 %v4170
      %v5256 = vunpack.c.h.b16 %v4170
      %v5257 = vunpack.c.l.b16 %v4171
      %v5258 = vunpack.c.h.b16 %v4171
      %v5259 = vunpack.c.l.b16 %v4172
      %v5260 = vunpack.c.h.b16 %v4172
      %v5261 = vunpack.c.l.b16 %v4173
      %v5262 = vunpack.c.h.b16 %v4173
      %v5263 = vunpack.c.l.b16 %v4174
      %v5264 = vunpack.c.h.b16 %v4174
      %v5265 = vunpack.c.l.b16 %v4175
      %v5266 = vunpack.c.h.b16 %v4175
      %v5267 = vunpack.c.l.b16 %v4176
      %v5268 = vunpack.c.h.b16 %v4176
      %v5269 = vunpack.c.l.b16 %v4177
      %v5270 = vunpack.c.h.b16 %v4177
      %v5271 = vunpack.c.l.b16 %v4178
      %v5272 = vunpack.c.h.b16 %v4178
      %v5273 = vunpack.c.l.b16 %v4179
      %v5274 = vunpack.c.h.b16 %v4179
      %v5275 = vunpack.c.l.b16 %v4180
      %v5276 = vunpack.c.h.b16 %v4180
      %v5277 = vunpack.c.l.b16 %v4181
      %v5278 = vunpack.c.h.b16 %v4181
      %v5279 = vunpack.c.l.b16 %v4182
      %v5280 = vunpack.c.h.b16 %v4182
      %v5281 = vunpack.c.l.b16 %v4183
      %v5282 = vunpack.c.h.b16 %v4183
      %v5283 = vunpack.c.l.b16 %v4184
      %v5284 = vunpack.c.h.b16 %v4184
      %v5285 = vunpack.c.l.b16 %v4185
      %v5286 = vunpack.c.h.b16 %v4185
      %v5287 = vunpack.c.l.b16 %v4186
      %v5288 = vunpack.c.h.b16 %v4186
      %v5289 = vunpack.c.l.b16 %v4187
      %v5290 = vunpack.c.h.b16 %v4187
      %v5291 = vunpack.c.l.b16 %v4188
      %v5292 = vunpack.c.h.b16 %v4188
      %v5293 = vunpack.c.l.b16 %v4189
      %v5294 = vunpack.c.h.b16 %v4189
      %v5295 = vunpack.c.l.b16 %v4190
      %v5296 = vunpack.c.h.b16 %v4190
      %v5297 = vunpack.c.l.b16 %v4191
      %v5298 = vunpack.c.h.b16 %v4191
      %v5299 = vunpack.c.l.b16 %v4192
      %v5300 = vunpack.c.h.b16 %v4192
      %v5301 = vunpack.c.l.b16 %v4193
      %v5302 = vunpack.c.h.b16 %v4193
      %v5303 = vunpack.c.l.b16 %v4194
      %v5304 = vunpack.c.h.b16 %v4194
      %v5305 = vunpack.c.l.b16 %v4195
      %v5306 = vunpack.c.h.b16 %v4195
      %v5307 = vunpack.c.l.b16 %v4196
      %v5308 = vunpack.c.h.b16 %v4196
      %v5309 = vunpack.c.l.b16 %v4197
      %v5310 = vunpack.c.h.b16 %v4197
      %v5311 = vunpack.c.l.b16 %v4198
      %v5312 = vunpack.c.h.b16 %v4198
      %v5313 = vunpack.c.l.b16 %v4199
      %v5314 = vunpack.c.h.b16 %v4199
      %v5315 = vunpack.c.l.b16 %v4200
      %v5316 = vunpack.c.h.b16 %v4200
      %v5317 = vunpack.c.l.b16 %v4201
      %v5318 = vunpack.c.h.b16 %v4201
      %v5319 = vunpack.c.l.b16 %v4202
      %v5320 = vunpack.c.h.b16 %v4202
      %v5321 = vunpack.c.l.b16 %v4203
      %v5322 = vunpack.c.h.b16 %v4203
      %v5323 = vunpack.c.l.b16 %v4204
      %v5324 = vunpack.c.h.b16 %v4204
      %v5325 = vunpack.c.l.b16 %v4205
      %v5326 = vunpack.c.h.b16 %v4205
      %v5327 = vunpack.c.l.b16 %v4206
      %v5328 = vunpack.c.h.b16 %v4206
      %v5329 = vunpack.c.l.b16 %v4207
      %v5330 = vunpack.c.h.b16 %v4207
      %v5331 = vunpack.c.l.b16 %v4208
      %v5332 = vunpack.c.h.b16 %v4208
      %v5333 = vunpack.c.l.b16 %v4209
      %v5334 = vunpack.c.h.b16 %v4209
      %v5335 = vunpack.c.l.b16 %v4210
      %v5336 = vunpack.c.h.b16 %v4210
      %v5337 = vunpack.c.l.b16 %v4211
      %v5338 = vunpack.c.h.b16 %v4211
      %v5339 = vunpack.c.l.b16 %v4212
      %v5340 = vunpack.c.h.b16 %v4212
      %v5341 = vunpack.c.l.b16 %v4213
      %v5342 = vunpack.c.h.b16 %v4213
      %v5343 = vunpack.c.l.b16 %v4214
      %v5344 = vunpack.c.h.b16 %v4214
      %v5345 = vunpack.c.l.b16 %v4215
      %v5346 = vunpack.c.h.b16 %v4215
      %v5347 = vunpack.c.l.b16 %v4216
      %v5348 = vunpack.c.h.b16 %v4216
      %v5349 = vunpack.c.l.b16 %v4217
      %v5350 = vunpack.c.h.b16 %v4217
      %v5351 = vunpack.c.l.b16 %v4218
      %v5352 = vunpack.c.h.b16 %v4218
      %v5353 = vunpack.c.l.b16 %v4219
      %v5354 = vunpack.c.h.b16 %v4219
      %v5355 = vunpack.c.l.b16 %v4220
      %v5356 = vunpack.c.h.b16 %v4220
      %v5357 = vunpack.c.l.b16 %v4221
      %v5358 = vunpack.c.h.b16 %v4221
      %v5359 = vunpack.c.l.b16 %v4222
      %v5360 = vunpack.c.h.b16 %v4222
      %v5361 = vunpack.c.l.b16 %v4223
      %v5362 = vunpack.c.h.b16 %v4223
      %v5363 = vunpack.c.l.b16 %v4224
      %v5364 = vunpack.c.h.b16 %v4224
      %v5365 = vunpack.c.l.b16 %v4225
      %v5366 = vunpack.c.h.b16 %v4225
      %v5367 = vunpack.c.l.b16 %v4226
      %v5368 = vunpack.c.h.b16 %v4226
      %v5369 = vunpack.c.l.b16 %v4227
      %v5370 = vunpack.c.h.b16 %v4227
      %v5371 = vunpack.c.l.b16 %v4228
      %v5372 = vunpack.c.h.b16 %v4228
      %v5373 = vunpack.c.l.b16 %v4229
      %v5374 = vunpack.c.h.b16 %v4229
      %v5375 = vunpack.c.l.b16 %v4230
      %v5376 = vunpack.c.h.b16 %v4230
      %v5377 = vunpack.c.l.b16 %v4231
      %v5378 = vunpack.c.h.b16 %v4231
      %v5379 = vunpack.c.l.b16 %v4232
      %v5380 = vunpack.c.h.b16 %v4232
      %v5381 = vunpack.c.l.b16 %v4233
      %v5382 = vunpack.c.h.b16 %v4233
      %v5383 = vunpack.c.l.b16 %v4234
      %v5384 = vunpack.c.h.b16 %v4234
      %v5385 = vunpack.c.l.b16 %v4235
      %v5386 = vunpack.c.h.b16 %v4235
      %v5387 = vunpack.c.l.b16 %v4236
      %v5388 = vunpack.c.h.b16 %v4236
      %v5389 = vunpack.c.l.b16 %v4237
      %v5390 = vunpack.c.h.b16 %v4237
      %v5391 = vunpack.c.l.b16 %v4238
      %v5392 = vunpack.c.h.b16 %v4238
      %v5393 = vunpack.c.l.b16 %v4239
      %v5394 = vunpack.c.h.b16 %v4239
      %v5395 = vunpack.c.l.b16 %v4240
      %v5396 = vunpack.c.h.b16 %v4240
      %v5397 = vunpack.c.l.b16 %v4241
      %v5398 = vunpack.c.h.b16 %v4241
      %v5399 = vunpack.c.l.b16 %v4242
      %v5400 = vunpack.c.h.b16 %v4242
      %v5401 = vunpack.c.l.b16 %v4243
      %v5402 = vunpack.c.h.b16 %v4243
      %v5403 = vunpack.c.l.b16 %v4244
      %v5404 = vunpack.c.h.b16 %v4244
      %v5405 = vunpack.c.l.b16 %v4245
      %v5406 = vunpack.c.h.b16 %v4245
      %v5407 = vunpack.c.l.b16 %v4246
      %v5408 = vunpack.c.h.b16 %v4246
      %v5409 = vunpack.c.l.b16 %v4247
      %v5410 = vunpack.c.h.b16 %v4247
      %v5411 = vunpack.c.l.b16 %v4248
      %v5412 = vunpack.c.h.b16 %v4248
      %v5413 = vunpack.c.l.b16 %v4249
      %v5414 = vunpack.c.h.b16 %v4249
      %v5415 = vunpack.c.l.b16 %v4250
      %v5416 = vunpack.c.h.b16 %v4250
      %v5417 = vunpack.c.l.b16 %v4251
      %v5418 = vunpack.c.h.b16 %v4251
      %v5419 = vunpack.c.l.b16 %v4252
      %v5420 = vunpack.c.h.b16 %v4252
      %v5421 = vunpack.c.l.b16 %v4253
      %v5422 = vunpack.c.h.b16 %v4253
      %v5423 = vunpack.c.l.b16 %v4254
      %v5424 = vunpack.c.h.b16 %v4254
      %v5425 = vunpack.c.l.b16 %v4255
      %v5426 = vunpack.c.h.b16 %v4255
      %v5427 = vunpack.c.l.b16 %v4256
      %v5428 = vunpack.c.h.b16 %v4256
      %v5429 = vunpack.c.l.b16 %v4257
      %v5430 = vunpack.c.h.b16 %v4257
      %v5431 = vunpack.c.l.b16 %v4258
      %v5432 = vunpack.c.h.b16 %v4258
      %v5433 = vunpack.c.l.b16 %v4259
      %v5434 = vunpack.c.h.b16 %v4259
      %v5435 = vunpack.c.l.b16 %v4260
      %v5436 = vunpack.c.h.b16 %v4260
      %v5437 = vunpack.c.l.b16 %v4261
      %v5438 = vunpack.c.h.b16 %v4261
      %v5439 = vunpack.c.l.b16 %v4262
      %v5440 = vunpack.c.h.b16 %v4262
      %v5441 = vunpack.c.l.b16 %v4263
      %v5442 = vunpack.c.h.b16 %v4263
      %v5443 = vunpack.c.l.b16 %v4264
      %v5444 = vunpack.c.h.b16 %v4264
      %v5445 = vunpack.c.l.b16 %v4265
      %v5446 = vunpack.c.h.b16 %v4265
      %v5447 = vunpack.c.l.b16 %v4266
      %v5448 = vunpack.c.h.b16 %v4266
      %v5449 = vunpack.c.l.b16 %v4267
      %v5450 = vunpack.c.h.b16 %v4267
      %v5451 = vunpack.c.l.b16 %v4268
      %v5452 = vunpack.c.h.b16 %v4268
      %v5453 = vunpack.c.l.b16 %v4269
      %v5454 = vunpack.c.h.b16 %v4269
      %v5455 = vunpack.c.l.b16 %v4270
      %v5456 = vunpack.c.h.b16 %v4270
      %v5457 = vunpack.c.l.b16 %v4271
      %v5458 = vunpack.c.h.b16 %v4271
      %v5459 = vunpack.c.l.b16 %v4272
      %v5460 = vunpack.c.h.b16 %v4272
      %v5461 = vunpack.c.l.b16 %v4273
      %v5462 = vunpack.c.h.b16 %v4273
      %v5463 = vunpack.c.l.b16 %v4274
      %v5464 = vunpack.c.h.b16 %v4274
      %v5465 = vunpack.c.l.b16 %v4275
      %v5466 = vunpack.c.h.b16 %v4275
      %v5467 = vunpack.c.l.b16 %v4276
      %v5468 = vunpack.c.h.b16 %v4276
      %v5469 = vunpack.c.l.b16 %v4277
      %v5470 = vunpack.c.h.b16 %v4277
      %v5471 = vunpack.c.l.b16 %v4278
      %v5472 = vunpack.c.h.b16 %v4278
      %v5473 = vunpack.c.l.b16 %v4279
      %v5474 = vunpack.c.h.b16 %v4279
      %v5475 = vunpack.c.l.b16 %v4280
      %v5476 = vunpack.c.h.b16 %v4280
      %v5477 = vunpack.c.l.b16 %v4281
      %v5478 = vunpack.c.h.b16 %v4281
      %v5479 = vunpack.c.l.b16 %v4282
      %v5480 = vunpack.c.h.b16 %v4282
      %v5481 = vunpack.c.l.b16 %v4283
      %v5482 = vunpack.c.h.b16 %v4283
      %v5483 = vunpack.c.l.b16 %v4284
      %v5484 = vunpack.c.h.b16 %v4284
      %v5485 = vunpack.c.l.b16 %v4285
      %v5486 = vunpack.c.h.b16 %v4285
      %v5487 = vunpack.c.l.b16 %v4286
      %v5488 = vunpack.c.h.b16 %v4286
      %v5489 = vunpack.c.l.b16 %v4287
      %v5490 = vunpack.c.h.b16 %v4287
      %v5491 = vunpack.c.l.b16 %v4288
      %v5492 = vunpack.c.h.b16 %v4288
      %v5493 = vunpack.c.l.b16 %v4289
      %v5494 = vunpack.c.h.b16 %v4289
      %v5495 = vunpack.c.l.b16 %v4290
      %v5496 = vunpack.c.h.b16 %v4290
      %v5497 = vunpack.c.l.b16 %v4291
      %v5498 = vunpack.c.h.b16 %v4291
      %v5499 = vunpack.c.l.b16 %v4292
      %v5500 = vunpack.c.h.b16 %v4292
      %v5501 = vunpack.c.l.b16 %v4293
      %v5502 = vunpack.c.h.b16 %v4293
      %v5503 = vunpack.c.l.b16 %v4294
      %v5504 = vunpack.c.h.b16 %v4294
      %v5505 = vunpack.c.l.b16 %v4295
      %v5506 = vunpack.c.h.b16 %v4295
      %v5507 = vunpack.c.l.b16 %v4296
      %v5508 = vunpack.c.h.b16 %v4296
      %v5509 = vunpack.c.l.b16 %v4297
      %v5510 = vunpack.c.h.b16 %v4297
      %v5511 = vunpack.c.l.b16 %v4298
      %v5512 = vunpack.c.h.b16 %v4298
      %v5513 = vunpack.c.l.b16 %v4299
      %v5514 = vunpack.c.h.b16 %v4299
      %v5515 = vunpack.c.l.b16 %v4300
      %v5516 = vunpack.c.h.b16 %v4300
      %v5517 = vunpack.c.l.b16 %v4301
      %v5518 = vunpack.c.h.b16 %v4301
      %v5519 = vunpack.c.l.b16 %v4302
      %v5520 = vunpack.c.h.b16 %v4302
      %v5521 = vunpack.c.l.b16 %v4303
      %v5522 = vunpack.c.h.b16 %v4303
      %v5523 = vunpack.c.l.b16 %v4304
      %v5524 = vunpack.c.h.b16 %v4304
      %v5525 = vunpack.c.l.b16 %v4305
      %v5526 = vunpack.c.h.b16 %v4305
      %v5527 = vunpack.c.l.b16 %v4306
      %v5528 = vunpack.c.h.b16 %v4306
      %v5529 = vunpack.c.l.b16 %v4307
      %v5530 = vunpack.c.h.b16 %v4307
      %v5531 = vunpack.c.l.b16 %v4308
      %v5532 = vunpack.c.h.b16 %v4308
      %v5533 = vunpack.c.l.b16 %v4309
      %v5534 = vunpack.c.h.b16 %v4309
      %v5535 = vunpack.c.l.b16 %v4310
      %v5536 = vunpack.c.h.b16 %v4310
      %v5537 = vunpack.c.l.b16 %v4311
      %v5538 = vunpack.c.h.b16 %v4311
      %v5539 = vunpack.c.l.b16 %v4312
      %v5540 = vunpack.c.h.b16 %v4312
      %v5541 = vunpack.c.l.b16 %v4313
      %v5542 = vunpack.c.h.b16 %v4313
      %v5543 = vunpack.c.l.b16 %v4314
      %v5544 = vunpack.c.h.b16 %v4314
      %v5545 = vunpack.c.l.b16 %v4315
      %v5546 = vunpack.c.h.b16 %v4315
      %v5547 = vunpack.c.l.b16 %v4316
      %v5548 = vunpack.c.h.b16 %v4316
      %v5549 = vunpack.c.l.b16 %v4317
      %v5550 = vunpack.c.h.b16 %v4317
      %v5551 = vunpack.c.l.b16 %v4318
      %v5552 = vunpack.c.h.b16 %v4318
      %v5553 = vunpack.c.l.b16 %v4319
      %v5554 = vunpack.c.h.b16 %v4319
      %v5555 = vunpack.c.l.b16 %v4320
      %v5556 = vunpack.c.h.b16 %v4320
      %v5557 = vunpack.c.l.b16 %v4321
      %v5558 = vunpack.c.h.b16 %v4321
      %v5559 = vunpack.c.l.b16 %v4322
      %v5560 = vunpack.c.h.b16 %v4322
      %v5561 = vunpack.c.l.b16 %v4323
      %v5562 = vunpack.c.h.b16 %v4323
      %v5563 = vunpack.c.l.b16 %v4324
      %v5564 = vunpack.c.h.b16 %v4324
      %v5565 = vunpack.c.l.b16 %v4325
      %v5566 = vunpack.c.h.b16 %v4325
      %v5567 = vunpack.c.l.b16 %v4326
      %v5568 = vunpack.c.h.b16 %v4326
      %v5569 = vunpack.c.l.b16 %v4327
      %v5570 = vunpack.c.h.b16 %v4327
      %v5571 = vunpack.c.l.b16 %v4328
      %v5572 = vunpack.c.h.b16 %v4328
      %v5573 = vunpack.c.l.b16 %v4329
      %v5574 = vunpack.c.h.b16 %v4329
      %v5575 = vunpack.c.l.b16 %v4330
      %v5576 = vunpack.c.h.b16 %v4330
      %v5577 = vunpack.c.l.b16 %v4331
      %v5578 = vunpack.c.h.b16 %v4331
      %v5579 = vunpack.c.l.b16 %v4332
      %v5580 = vunpack.c.h.b16 %v4332
      %v5581 = vunpack.c.l.b16 %v4333
      %v5582 = vunpack.c.h.b16 %v4333
      %v5583 = vunpack.c.l.b16 %v4334
      %v5584 = vunpack.c.h.b16 %v4334
      %v5585 = vunpack.c.l.b16 %v4335
      %v5586 = vunpack.c.h.b16 %v4335
      %v5587 = vunpack.c.l.b16 %v4336
      %v5588 = vunpack.c.h.b16 %v4336
      %v5589 = vunpack.c.l.b16 %v4337
      %v5590 = vunpack.c.h.b16 %v4337
      %v5591 = vunpack.c.l.b16 %v4338
      %v5592 = vunpack.c.h.b16 %v4338
      %v5593 = vunpack.c.l.b16 %v4339
      %v5594 = vunpack.c.h.b16 %v4339
      %v5595 = vunpack.c.l.b16 %v4340
      %v5596 = vunpack.c.h.b16 %v4340
      %v5597 = vunpack.c.l.b16 %v4341
      %v5598 = vunpack.c.h.b16 %v4341
      %v5599 = vunpack.c.l.b16 %v4342
      %v5600 = vunpack.c.h.b16 %v4342
      %v5601 = vunpack.c.l.b16 %v4343
      %v5602 = vunpack.c.h.b16 %v4343
      %v5603 = vunpack.c.l.b16 %v4344
      %v5604 = vunpack.c.h.b16 %v4344
      %v5605 = vunpack.c.l.b16 %v4345
      %v5606 = vunpack.c.h.b16 %v4345
      %v5607 = vunpack.c.l.b16 %v4346
      %v5608 = vunpack.c.h.b16 %v4346
      %v5609 = vunpack.c.l.b16 %v4347
      %v5610 = vunpack.c.h.b16 %v4347
      %v5611 = vunpack.c.l.b16 %v4348
      %v5612 = vunpack.c.h.b16 %v4348
      %v5613 = vunpack.c.l.b16 %v4349
      %v5614 = vunpack.c.h.b16 %v4349
      %v5615 = vunpack.c.l.b16 %v4350
      %v5616 = vunpack.c.h.b16 %v4350
      %v5617 = vunpack.c.l.b16 %v4351
      %v5618 = vunpack.c.h.b16 %v4351
      %v5619 = vunpack.c.l.b16 %v4352
      %v5620 = vunpack.c.h.b16 %v4352
      %v5621 = vunpack.c.l.b16 %v4353
      %v5622 = vunpack.c.h.b16 %v4353
      %v5623 = vunpack.c.l.b16 %v4354
      %v5624 = vunpack.c.h.b16 %v4354
      %v5625 = vunpack.c.l.b16 %v4355
      %v5626 = vunpack.c.h.b16 %v4355
      %v5627 = vunpack.c.l.b16 %v4356
      %v5628 = vunpack.c.h.b16 %v4356
      %v5629 = vunpack.c.l.b16 %v4357
      %v5630 = vunpack.c.h.b16 %v4357
      %v5631 = vunpack.c.l.b16 %v4358
      %v5632 = vunpack.c.h.b16 %v4358
      %v5633 = vunpack.c.l.b16 %v4359
      %v5634 = vunpack.c.h.b16 %v4359
      %v5635 = vunpack.c.l.b16 %v4360
      %v5636 = vunpack.c.h.b16 %v4360
      %v5637 = vunpack.c.l.b16 %v4361
      %v5638 = vunpack.c.h.b16 %v4361
      %v5639 = vunpack.c.l.b16 %v4362
      %v5640 = vunpack.c.h.b16 %v4362
      %v5641 = vunpack.c.l.b16 %v4363
      %v5642 = vunpack.c.h.b16 %v4363
      %v5643 = vunpack.c.l.b16 %v4364
      %v5644 = vunpack.c.h.b16 %v4364
      %v5645 = vunpack.c.l.b16 %v4365
      %v5646 = vunpack.c.h.b16 %v4365
      %v5647 = vunpack.c.l.b16 %v4366
      %v5648 = vunpack.c.h.b16 %v4366
      %v5649 = vunpack.c.l.b16 %v4367
      %v5650 = vunpack.c.h.b16 %v4367
      %v5651 = vunpack.c.l.b16 %v4368
      %v5652 = vunpack.c.h.b16 %v4368
      %v5653 = vunpack.c.l.b16 %v4369
      %v5654 = vunpack.c.h.b16 %v4369
      %v5655 = vunpack.c.l.b16 %v4370
      %v5656 = vunpack.c.h.b16 %v4370
      %v5657 = vunpack.c.l.b16 %v4371
      %v5658 = vunpack.c.h.b16 %v4371
      %v5659 = vunpack.c.l.b16 %v4372
      %v5660 = vunpack.c.h.b16 %v4372
      %v5661 = vunpack.c.l.b16 %v4373
      %v5662 = vunpack.c.h.b16 %v4373
      %v5663 = vunpack.c.l.b16 %v4374
      %v5664 = vunpack.c.h.b16 %v4374
      %v5665 = vunpack.c.l.b16 %v4375
      %v5666 = vunpack.c.h.b16 %v4375
      %v5667 = vunpack.c.l.b16 %v4376
      %v5668 = vunpack.c.h.b16 %v4376
      %v5669 = vunpack.c.l.b16 %v4377
      %v5670 = vunpack.c.h.b16 %v4377
      %v5671 = vunpack.c.l.b16 %v4378
      %v5672 = vunpack.c.h.b16 %v4378
      %v5673 = vunpack.c.l.b16 %v4379
      %v5674 = vunpack.c.h.b16 %v4379
      %v5675 = vunpack.c.l.b16 %v4380
      %v5676 = vunpack.c.h.b16 %v4380
      %v5677 = vunpack.c.l.b16 %v4381
      %v5678 = vunpack.c.h.b16 %v4381
      %v5679 = vunpack.c.l.b16 %v4382
      %v5680 = vunpack.c.h.b16 %v4382
      %v5681 = vunpack.c.l.b16 %v4383
      %v5682 = vunpack.c.h.b16 %v4383
      %v5683 = vunpack.c.l.b16 %v4384
      %v5684 = vunpack.c.h.b16 %v4384
      %v5685 = vunpack.c.l.b16 %v4385
      %v5686 = vunpack.c.h.b16 %v4385
      %v5687 = vunpack.c.l.b16 %v4386
      %v5688 = vunpack.c.h.b16 %v4386
      %v5689 = vunpack.c.l.b16 %v4387
      %v5690 = vunpack.c.h.b16 %v4387
      %v5691 = vunpack.c.l.b16 %v4388
      %v5692 = vunpack.c.h.b16 %v4388
      %v5693 = vunpack.c.l.b16 %v4389
      %v5694 = vunpack.c.h.b16 %v4389
      %v5695 = vunpack.c.l.b16 %v4390
      %v5696 = vunpack.c.h.b16 %v4390
      %v5697 = vunpack.c.l.b16 %v4391
      %v5698 = vunpack.c.h.b16 %v4391
      %v5699 = vunpack.c.l.b16 %v4392
      %v5700 = vunpack.c.h.b16 %v4392
      %v5701 = vunpack.c.l.b16 %v4393
      %v5702 = vunpack.c.h.b16 %v4393
      %v5703 = vunpack.c.l.b16 %v4394
      %v5704 = vunpack.c.h.b16 %v4394
      %v5705 = vunpack.c.l.b16 %v4395
      %v5706 = vunpack.c.h.b16 %v4395
      %v5707 = vunpack.c.l.b16 %v4396
      %v5708 = vunpack.c.h.b16 %v4396
      %v5709 = vunpack.c.l.b16 %v4397
      %v5710 = vunpack.c.h.b16 %v4397
      %v5711 = vunpack.c.l.b16 %v4398
      %v5712 = vunpack.c.h.b16 %v4398
      %v5713 = vunpack.c.l.b16 %v4399
      %v5714 = vunpack.c.h.b16 %v4399
      %v5715 = vunpack.c.l.b16 %v4400
      %v5716 = vunpack.c.h.b16 %v4400
      %v5717 = vunpack.c.l.b16 %v4401
      %v5718 = vunpack.c.h.b16 %v4401
      %v5719 = vunpack.c.l.b16 %v4402
      %v5720 = vunpack.c.h.b16 %v4402
      %v5721 = vunpack.c.l.b16 %v4403
      %v5722 = vunpack.c.h.b16 %v4403
      %v5723 = vunpack.c.l.b16 %v4404
      %v5724 = vunpack.c.h.b16 %v4404
      %v5725 = vunpack.c.l.b16 %v4405
      %v5726 = vunpack.c.h.b16 %v4405
      %v5727 = vunpack.c.l.b16 %v4406
      %v5728 = vunpack.c.h.b16 %v4406
      %v5729 = vunpack.c.l.b16 %v4407
      %v5730 = vunpack.c.h.b16 %v4407
      %v5731 = vunpack.c.l.b16 %v4408
      %v5732 = vunpack.c.h.b16 %v4408
      %v5733 = vunpack.c.l.b16 %v4409
      %v5734 = vunpack.c.h.b16 %v4409
      %v5735 = vunpack.c.l.b16 %v4410
      %v5736 = vunpack.c.h.b16 %v4410
      %v5737 = vunpack.c.l.b16 %v4411
      %v5738 = vunpack.c.h.b16 %v4411
      %v5739 = vunpack.c.l.b16 %v4412
      %v5740 = vunpack.c.h.b16 %v4412
      %v5741 = vunpack.c.l.b16 %v4413
      %v5742 = vunpack.c.h.b16 %v4413
      %v5743 = vunpack.c.l.b16 %v4414
      %v5744 = vunpack.c.h.b16 %v4414
      %v5745 = vunpack.c.l.b16 %v4415
      %v5746 = vunpack.c.h.b16 %v4415
      %v5747 = vunpack.c.l.b16 %v4416
      %v5748 = vunpack.c.h.b16 %v4416
      %v5749 = vunpack.c.l.b16 %v4417
      %v5750 = vunpack.c.h.b16 %v4417
      %v5751 = vunpack.c.l.b16 %v4418
      %v5752 = vunpack.c.h.b16 %v4418
      %v5753 = vunpack.c.l.b16 %v4419
      %v5754 = vunpack.c.h.b16 %v4419
      %v5755 = vunpack.c.l.b16 %v4420
      %v5756 = vunpack.c.h.b16 %v4420
      %v5757 = vunpack.c.l.b16 %v4421
      %v5758 = vunpack.c.h.b16 %v4421
      %v5759 = vunpack.c.l.b16 %v4422
      %v5760 = vunpack.c.h.b16 %v4422
      %v5761 = vunpack.c.l.b16 %v4423
      %v5762 = vunpack.c.h.b16 %v4423
      %v5763 = vunpack.c.l.b16 %v4424
      %v5764 = vunpack.c.h.b16 %v4424
      %v5765 = vunpack.c.l.b16 %v4425
      %v5766 = vunpack.c.h.b16 %v4425
      %v5767 = vunpack.c.l.b16 %v4426
      %v5768 = vunpack.c.h.b16 %v4426
      %v5769 = vunpack.c.l.b16 %v4427
      %v5770 = vunpack.c.h.b16 %v4427
      %v5771 = vunpack.c.l.b16 %v4428
      %v5772 = vunpack.c.h.b16 %v4428
      %v5773 = vunpack.c.l.b16 %v4429
      %v5774 = vunpack.c.h.b16 %v4429
      %v5775 = vunpack.c.l.b16 %v4430
      %v5776 = vunpack.c.h.b16 %v4430
      %v5777 = vunpack.c.l.b16 %v4431
      %v5778 = vunpack.c.h.b16 %v4431
      %v5779 = vunpack.c.l.b16 %v4432
      %v5780 = vunpack.c.h.b16 %v4432
      %v5781 = vunpack.c.l.b16 %v4433
      %v5782 = vunpack.c.h.b16 %v4433
      %v5783 = vunpack.c.l.b16 %v4434
      %v5784 = vunpack.c.h.b16 %v4434
      %v5785 = vunpack.c.l.b16 %v4435
      %v5786 = vunpack.c.h.b16 %v4435
      %v5787 = vunpack.c.l.b16 %v4436
      %v5788 = vunpack.c.h.b16 %v4436
      %v5789 = vunpack.c.l.b16 %v4437
      %v5790 = vunpack.c.h.b16 %v4437
      %v5791 = vunpack.c.l.b16 %v4438
      %v5792 = vunpack.c.h.b16 %v4438
      %v5793 = vunpack.c.l.b16 %v4439
      %v5794 = vunpack.c.h.b16 %v4439
      %v5795 = vunpack.c.l.b16 %v4440
      %v5796 = vunpack.c.h.b16 %v4440
      %v5797 = vunpack.c.l.b16 %v4441
      %v5798 = vunpack.c.h.b16 %v4441
      %v5799 = vunpack.c.l.b16 %v4442
      %v5800 = vunpack.c.h.b16 %v4442
      %v5801 = vunpack.c.l.b16 %v4443
      %v5802 = vunpack.c.h.b16 %v4443
      %v5803 = vunpack.c.l.b16 %v4444
      %v5804 = vunpack.c.h.b16 %v4444
      %v5805 = vunpack.c.l.b16 %v4445
      %v5806 = vunpack.c.h.b16 %v4445
      %v5807 = vunpack.c.l.b16 %v4446
      %v5808 = vunpack.c.h.b16 %v4446
      %v5809 = vunpack.c.l.b16 %v4447
      %v5810 = vunpack.c.h.b16 %v4447
      %v5811 = vunpack.c.l.b16 %v4448
      %v5812 = vunpack.c.h.b16 %v4448
      %v5813 = vunpack.c.l.b16 %v4449
      %v5814 = vunpack.c.h.b16 %v4449
      %v5815 = vunpack.c.l.b16 %v4450
      %v5816 = vunpack.c.h.b16 %v4450
      %v5817 = vunpack.c.l.b16 %v4451
      %v5818 = vunpack.c.h.b16 %v4451
      %v5819 = vunpack.c.l.b16 %v4452
      %v5820 = vunpack.c.h.b16 %v4452
      %v5821 = vunpack.c.l.b16 %v4453
      %v5822 = vunpack.c.h.b16 %v4453
      %v5823 = vunpack.c.l.b16 %v4454
      %v5824 = vunpack.c.h.b16 %v4454
      %v5825 = vunpack.c.l.b16 %v4455
      %v5826 = vunpack.c.h.b16 %v4455
      %v5827 = vunpack.c.l.b16 %v4456
      %v5828 = vunpack.c.h.b16 %v4456
      %v5829 = vunpack.c.l.b16 %v4457
      %v5830 = vunpack.c.h.b16 %v4457
      %v5831 = vunpack.c.l.b16 %v4458
      %v5832 = vunpack.c.h.b16 %v4458
      %v5833 = vunpack.c.l.b16 %v4459
      %v5834 = vunpack.c.h.b16 %v4459
      %v5835 = vunpack.c.l.b16 %v4460
      %v5836 = vunpack.c.h.b16 %v4460
      %v5837 = vunpack.c.l.b16 %v4461
      %v5838 = vunpack.c.h.b16 %v4461
      %v5839 = vunpack.c.l.b16 %v4462
      %v5840 = vunpack.c.h.b16 %v4462
      %v5841 = vunpack.c.l.b16 %v4463
      %v5842 = vunpack.c.h.b16 %v4463
      %v5843 = vunpack.c.l.b16 %v4464
      %v5844 = vunpack.c.h.b16 %v4464
      %v5845 = vunpack.c.l.b16 %v4465
      %v5846 = vunpack.c.h.b16 %v4465
      %v5847 = vunpack.c.l.b16 %v4466
      %v5848 = vunpack.c.h.b16 %v4466
      %v5849 = vunpack.c.l.b16 %v4467
      %v5850 = vunpack.c.h.b16 %v4467
      %v5851 = vunpack.c.l.b16 %v4468
      %v5852 = vunpack.c.h.b16 %v4468
      %v5853 = vunpack.c.l.b16 %v4469
      %v5854 = vunpack.c.h.b16 %v4469
      %v5855 = vunpack.c.l.b16 %v4470
      %v5856 = vunpack.c.h.b16 %v4470
      %v5857 = vunpack.c.l.b16 %v4471
      %v5858 = vunpack.c.h.b16 %v4471
      %v5859 = vunpack.c.l.b16 %v4472
      %v5860 = vunpack.c.h.b16 %v4472
      %v5861 = vunpack.c.l.b16 %v4473
      %v5862 = vunpack.c.h.b16 %v4473
      %v5863 = vunpack.c.l.b16 %v4474
      %v5864 = vunpack.c.h.b16 %v4474
      %v5865 = vunpack.c.l.b16 %v4475
      %v5866 = vunpack.c.h.b16 %v4475
      %v5867 = vunpack.c.l.b16 %v4476
      %v5868 = vunpack.c.h.b16 %v4476
      %v5869 = vunpack.c.l.b16 %v4477
      %v5870 = vunpack.c.h.b16 %v4477
      %v5871 = vunpack.c.l.b16 %v4478
      %v5872 = vunpack.c.h.b16 %v4478
      %v5873 = vunpack.c.l.b16 %v4479
      %v5874 = vunpack.c.h.b16 %v4479
      %v5875 = vunpack.c.l.b16 %v4480
      %v5876 = vunpack.c.h.b16 %v4480
      %v5877 = vunpack.c.l.b16 %v4481
      %v5878 = vunpack.c.h.b16 %v4481
      %v5879 = vunpack.c.l.b16 %v4482
      %v5880 = vunpack.c.h.b16 %v4482
      %v5881 = vunpack.c.l.b16 %v4483
      %v5882 = vunpack.c.h.b16 %v4483
      %v5883 = vunpack.c.l.b16 %v4484
      %v5884 = vunpack.c.h.b16 %v4484
      %v5885 = vunpack.c.l.b16 %v4485
      %v5886 = vunpack.c.h.b16 %v4485
      %v5887 = vunpack.c.l.b16 %v4486
      %v5888 = vunpack.c.h.b16 %v4486
      %v5889 = vunpack.c.l.b16 %v4487
      %v5890 = vunpack.c.h.b16 %v4487
      %v5891 = vunpack.c.l.b16 %v4488
      %v5892 = vunpack.c.h.b16 %v4488
      %v5893 = vunpack.c.l.b16 %v4489
      %v5894 = vunpack.c.h.b16 %v4489
      %v5895 = vunpack.c.l.b16 %v4490
      %v5896 = vunpack.c.h.b16 %v4490
      %v5897 = vunpack.c.l.b16 %v4491
      %v5898 = vunpack.c.h.b16 %v4491
      %v5899 = vunpack.c.l.b16 %v4492
      %v5900 = vunpack.c.h.b16 %v4492
      %v5901 = vunpack.c.l.b16 %v4493
      %v5902 = vunpack.c.h.b16 %v4493
      %v5903 = vunpack.c.l.b16 %v4494
      %v5904 = vunpack.c.h.b16 %v4494
      %v5905 = vunpack.c.l.b16 %v4495
      %v5906 = vunpack.c.h.b16 %v4495
      %v5907 = vunpack.c.l.b16 %v4496
      %v5908 = vunpack.c.h.b16 %v4496
      %v5909 = vunpack.c.l.b16 %v4497
      %v5910 = vunpack.c.h.b16 %v4497
      %v5911 = vunpack.c.l.b16 %v4498
      %v5912 = vunpack.c.h.b16 %v4498
      %v5913 = vunpack.c.l.b16 %v4499
      %v5914 = vunpack.c.h.b16 %v4499
      %v5915 = vunpack.c.l.b16 %v4500
      %v5916 = vunpack.c.h.b16 %v4500
      %v5917 = vunpack.c.l.b16 %v4501
      %v5918 = vunpack.c.h.b16 %v4501
      %v5919 = vunpack.c.l.b16 %v4502
      %v5920 = vunpack.c.h.b16 %v4502
      %v5921 = vunpack.c.l.b16 %v4503
      %v5922 = vunpack.c.h.b16 %v4503
      %v5923 = vunpack.c.l.b16 %v4504
      %v5924 = vunpack.c.h.b16 %v4504
      %v5925 = vunpack.c.l.b16 %v4505
      %v5926 = vunpack.c.h.b16 %v4505
      %v5927 = vunpack.c.l.b16 %v4506
      %v5928 = vunpack.c.h.b16 %v4506
      %v5929 = vunpack.c.l.b16 %v4507
      %v5930 = vunpack.c.h.b16 %v4507
      %v5931 = vunpack.c.l.b16 %v4508
      %v5932 = vunpack.c.h.b16 %v4508
      %v5933 = vunpack.c.l.b16 %v4509
      %v5934 = vunpack.c.h.b16 %v4509
      %v5935 = vunpack.c.l.b16 %v4510
      %v5936 = vunpack.c.h.b16 %v4510
      %v5937 = vunpack.c.l.b16 %v4511
      %v5938 = vunpack.c.h.b16 %v4511
      %v5939 = vunpack.c.l.b16 %v4512
      %v5940 = vunpack.c.h.b16 %v4512
      %v5941 = vunpack.c.l.b16 %v4513
      %v5942 = vunpack.c.h.b16 %v4513
      %v5943 = vunpack.c.l.b16 %v4514
      %v5944 = vunpack.c.h.b16 %v4514
      %v5945 = vunpack.c.l.b16 %v4515
      %v5946 = vunpack.c.h.b16 %v4515
      %v5947 = vunpack.c.l.b16 %v4516
      %v5948 = vunpack.c.h.b16 %v4516
      %v5949 = vunpack.c.l.b16 %v4517
      %v5950 = vunpack.c.h.b16 %v4517
      %v5951 = vunpack.c.l.b16 %v4518
      %v5952 = vunpack.c.h.b16 %v4518
      %v5953 = vunpack.c.l.b16 %v4519
      %v5954 = vunpack.c.h.b16 %v4519
      %v5955 = vunpack.c.l.b16 %v4520
      %v5956 = vunpack.c.h.b16 %v4520
      %v5957 = vunpack.c.l.b16 %v4521
      %v5958 = vunpack.c.h.b16 %v4521
      %v5959 = vunpack.c.l.b16 %v4522
      %v5960 = vunpack.c.h.b16 %v4522
      %v5961 = vunpack.c.l.b16 %v4523
      %v5962 = vunpack.c.h.b16 %v4523
      %v5963 = vunpack.c.l.b16 %v4524
      %v5964 = vunpack.c.h.b16 %v4524
      %v5965 = vunpack.c.l.b16 %v4525
      %v5966 = vunpack.c.h.b16 %v4525
      %v5967 = vunpack.c.l.b16 %v4526
      %v5968 = vunpack.c.h.b16 %v4526
      %v5969 = vunpack.c.l.b16 %v4527
      %v5970 = vunpack.c.h.b16 %v4527
      %v5971 = vunpack.c.l.b16 %v4528
      %v5972 = vunpack.c.h.b16 %v4528
      %v5973 = vunpack.c.l.b16 %v4529
      %v5974 = vunpack.c.h.b16 %v4529
      %v5975 = vunpack.c.l.b16 %v4530
      %v5976 = vunpack.c.h.b16 %v4530
      %v5977 = vunpack.c.l.b16 %v4531
      %v5978 = vunpack.c.h.b16 %v4531
      %v5979 = vunpack.c.l.b16 %v4532
      %v5980 = vunpack.c.h.b16 %v4532
      %v5981 = vunpack.c.l.b16 %v4533
      %v5982 = vunpack.c.h.b16 %v4533
      %v5983 = vunpack.c.l.b16 %v4534
      %v5984 = vunpack.c.h.b16 %v4534
      %v5985 = vunpack.c.l.b16 %v4535
      %v5986 = vunpack.c.h.b16 %v4535
      %v5987 = vunpack.c.l.b16 %v4536
      %v5988 = vunpack.c.h.b16 %v4536
      %v5989 = vunpack.c.l.b16 %v4537
      %v5990 = vunpack.c.h.b16 %v4537
      %v5991 = vunpack.c.l.b16 %v4538
      %v5992 = vunpack.c.h.b16 %v4538
      %v5993 = vunpack.c.l.b16 %v4539
      %v5994 = vunpack.c.h.b16 %v4539
      %v5995 = vunpack.c.l.b16 %v4540
      %v5996 = vunpack.c.h.b16 %v4540
      %v5997 = vunpack.c.l.b16 %v4541
      %v5998 = vunpack.c.h.b16 %v4541
      %v5999 = vunpack.c.l.b16 %v4542
      %v6000 = vunpack.c.h.b16 %v4542
      %v6001 = vunpack.c.l.b16 %v4543
      %v6002 = vunpack.c.h.b16 %v4543
      %v6003 = vunpack.c.l.b16 %v4544
      %v6004 = vunpack.c.h.b16 %v4544
      %v6005 = vunpack.c.l.b16 %v4545
      %v6006 = vunpack.c.h.b16 %v4545
      %v6007 = vunpack.c.l.b16 %v4546
      %v6008 = vunpack.c.h.b16 %v4546
      %v6009 = vunpack.c.l.b16 %v4547
      %v6010 = vunpack.c.h.b16 %v4547
      %v6011 = vunpack.c.l.b16 %v4548
      %v6012 = vunpack.c.h.b16 %v4548
      %v6013 = vunpack.c.l.b16 %v4549
      %v6014 = vunpack.c.h.b16 %v4549
      %v6015 = vunpack.c.l.b16 %v4550
      %v6016 = vunpack.c.h.b16 %v4550
      %v6017 = vunpack.c.l.b16 %v4551
      %v6018 = vunpack.c.h.b16 %v4551
      %v6019 = vunpack.c.l.b16 %v4552
      %v6020 = vunpack.c.h.b16 %v4552
      %v6021 = vunpack.c.l.b16 %v4553
      %v6022 = vunpack.c.h.b16 %v4553
      %v6023 = vunpack.c.l.b16 %v4554
      %v6024 = vunpack.c.h.b16 %v4554
      %v6025 = vunpack.c.l.b16 %v4555
      %v6026 = vunpack.c.h.b16 %v4555
      %v6027 = vunpack.c.l.b16 %v4556
      %v6028 = vunpack.c.h.b16 %v4556
      %v6029 = vunpack.c.l.b16 %v4557
      %v6030 = vunpack.c.h.b16 %v4557
      %v6031 = vunpack.c.l.b16 %v4558
      %v6032 = vunpack.c.h.b16 %v4558
      %v6033 = vunpack.c.l.b16 %v4559
      %v6034 = vunpack.c.h.b16 %v4559
      %v6035 = vunpack.c.l.b16 %v4560
      %v6036 = vunpack.c.h.b16 %v4560
      %v6037 = vunpack.c.l.b16 %v4561
      %v6038 = vunpack.c.h.b16 %v4561
      %v6039 = vunpack.c.l.b16 %v4562
      %v6040 = vunpack.c.h.b16 %v4562
      %v6041 = vunpack.c.l.b16 %v4563
      %v6042 = vunpack.c.h.b16 %v4563
      %v6043 = vunpack.c.l.b16 %v4564
      %v6044 = vunpack.c.h.b16 %v4564
      %v6045 = vunpack.c.l.b16 %v4565
      %v6046 = vunpack.c.h.b16 %v4565
      %v6047 = vunpack.c.l.b16 %v4566
      %v6048 = vunpack.c.h.b16 %v4566
      %v6049 = vunpack.c.l.b16 %v4567
      %v6050 = vunpack.c.h.b16 %v4567
      %v6051 = vunpack.c.l.b16 %v4568
      %v6052 = vunpack.c.h.b16 %v4568
      %v6053 = vunpack.c.l.b16 %v4569
      %v6054 = vunpack.c.h.b16 %v4569
      %v6055 = vunpack.c.l.b16 %v4570
      %v6056 = vunpack.c.h.b16 %v4570
      %v6057 = vunpack.c.l.b16 %v4571
      %v6058 = vunpack.c.h.b16 %v4571
      %v6059 = vunpack.c.l.b16 %v4572
      %v6060 = vunpack.c.h.b16 %v4572
      %v6061 = vunpack.c.l.b16 %v4573
      %v6062 = vunpack.c.h.b16 %v4573
      %v6063 = vunpack.c.l.b16 %v4574
      %v6064 = vunpack.c.h.b16 %v4574
      %v6065 = vunpack.c.l.b16 %v4575
      %v6066 = vunpack.c.h.b16 %v4575
      %v6067 = vunpack.c.l.b16 %v4576
      %v6068 = vunpack.c.h.b16 %v4576
      %v6069 = vunpack.c.l.b16 %v4577
      %v6070 = vunpack.c.h.b16 %v4577
      %v6071 = vunpack.c.l.b16 %v4578
      %v6072 = vunpack.c.h.b16 %v4578
      %v6073 = vunpack.c.l.b16 %v4579
      %v6074 = vunpack.c.h.b16 %v4579
      %v6075 = vunpack.c.l.b16 %v4580
      %v6076 = vunpack.c.h.b16 %v4580
      %v6077 = vunpack.c.l.b16 %v4581
      %v6078 = vunpack.c.h.b16 %v4581
      %v6079 = vunpack.c.l.b16 %v4582
      %v6080 = vunpack.c.h.b16 %v4582
      %v6081 = vunpack.c.l.b16 %v4583
      %v6082 = vunpack.c.h.b16 %v4583
      %v6083 = vunpack.c.l.b16 %v4584
      %v6084 = vunpack.c.h.b16 %v4584
      %v6085 = vunpack.c.l.b16 %v4585
      %v6086 = vunpack.c.h.b16 %v4585
      %v6087 = vunpack.c.l.b16 %v4586
      %v6088 = vunpack.c.h.b16 %v4586
      %v6089 = vunpack.c.l.b16 %v4587
      %v6090 = vunpack.c.h.b16 %v4587
      %v6091 = vunpack.c.l.b16 %v4588
      %v6092 = vunpack.c.h.b16 %v4588
      %v6093 = vunpack.c.l.b16 %v4589
      %v6094 = vunpack.c.h.b16 %v4589
      %v6095 = vunpack.c.l.b16 %v4590
      %v6096 = vunpack.c.h.b16 %v4590
      %v6097 = vunpack.c.l.b16 %v4591
      %v6098 = vunpack.c.h.b16 %v4591
      %v6099 = vunpack.c.l.b16 %v4592
      %v6100 = vunpack.c.h.b16 %v4592
      %v6101 = vunpack.c.l.b16 %v4593
      %v6102 = vunpack.c.h.b16 %v4593
      %v6103 = vunpack.c.l.b16 %v4594
      %v6104 = vunpack.c.h.b16 %v4594
      %v6105 = vunpack.c.l.b16 %v4595
      %v6106 = vunpack.c.h.b16 %v4595
      %v6107 = vunpack.c.l.b16 %v4596
      %v6108 = vunpack.c.h.b16 %v4596
      %v6109 = vunpack.c.l.b16 %v4597
      %v6110 = vunpack.c.h.b16 %v4597
      %v6111 = vunpack.c.l.b16 %v4598
      %v6112 = vunpack.c.h.b16 %v4598
      %v6113 = vunpack.c.l.b16 %v4599
      %v6114 = vunpack.c.h.b16 %v4599
      %v6115 = vunpack.c.l.b16 %v4600
      %v6116 = vunpack.c.h.b16 %v4600
      %v6117 = vunpack.c.l.b16 %v4601
      %v6118 = vunpack.c.h.b16 %v4601
      %v6119 = vunpack.c.l.b16 %v4602
      %v6120 = vunpack.c.h.b16 %v4602
      %v6121 = vunpack.c.l.b16 %v4603
      %v6122 = vunpack.c.h.b16 %v4603
      %v6123 = vunpack.c.l.b16 %v4604
      %v6124 = vunpack.c.h.b16 %v4604
      %v6125 = vunpack.c.l.b16 %v4605
      %v6126 = vunpack.c.h.b16 %v4605
      %v6127 = vunpack.c.l.b16 %v4606
      %v6128 = vunpack.c.h.b16 %v4606
      %v6129 = vunpack.c.l.b16 %v4607
      %v6130 = vunpack.c.h.b16 %v4607
      %v6131 = vunpack.c.l.b16 %v4608
      %v6132 = vunpack.c.h.b16 %v4608
      %v6133 = vunpack.c.l.b16 %v4609
      %v6134 = vunpack.c.h.b16 %v4609
      %v6135 = vunpack.c.l.b16 %v4610
      %v6136 = vunpack.c.h.b16 %v4610
      %v6137 = vunpack.c.l.b16 %v4611
      %v6138 = vunpack.c.h.b16 %v4611
      %v6139 = vunpack.c.l.b16 %v4612
      %v6140 = vunpack.c.h.b16 %v4612
      %v6141 = vunpack.c.l.b16 %v4613
      %v6142 = vunpack.c.h.b16 %v4613
      %v6143 = vunpack.c.l.b16 %v4614
      %v6144 = vunpack.c.h.b16 %v4614
      %v6145 = vunpack.c.l.b16 %v4615
      %v6146 = vunpack.c.h.b16 %v4615
      %v6147 = vunpack.c.l.b16 %v4616
      %v6148 = vunpack.c.h.b16 %v4616
      %v6149 = vunpack.c.l.b16 %v4617
      %v6150 = vunpack.c.h.b16 %v4617
      %v6151 = vunpack.c.l.b16 %v4618
      %v6152 = vunpack.c.h.b16 %v4618
      %v6153 = vunpack.c.l.b16 %v4619
      %v6154 = vunpack.c.h.b16 %v4619
      %v6155 = vunpack.c.l.b16 %v4620
      %v6156 = vunpack.c.h.b16 %v4620
      %v6157 = vpack.c.b16 %v5165, %v5133
      %v6158 = vpack.c.b16 %v5166, %v5134
      %v6159 = vpack.c.b16 %v5167, %v5135
      %v6160 = vpack.c.b16 %v5168, %v5136
      %v6161 = vpack.c.b16 %v5169, %v5137
      %v6162 = vpack.c.b16 %v5170, %v5138
      %v6163 = vpack.c.b16 %v5171, %v5139
      %v6164 = vpack.c.b16 %v5172, %v5140
      %v6165 = vpack.c.b16 %v5173, %v5141
      %v6166 = vpack.c.b16 %v5174, %v5142
      %v6167 = vpack.c.b16 %v5175, %v5143
      %v6168 = vpack.c.b16 %v5176, %v5144
      %v6169 = vpack.c.b16 %v5177, %v5145
      %v6170 = vpack.c.b16 %v5178, %v5146
      %v6171 = vpack.c.b16 %v5179, %v5147
      %v6172 = vpack.c.b16 %v5180, %v5148
      %v6173 = vpack.c.b16 %v5181, %v5149
      %v6174 = vpack.c.b16 %v5182, %v5150
      %v6175 = vpack.c.b16 %v5183, %v5151
      %v6176 = vpack.c.b16 %v5184, %v5152
      %v6177 = vpack.c.b16 %v5185, %v5153
      %v6178 = vpack.c.b16 %v5186, %v5154
      %v6179 = vpack.c.b16 %v5187, %v5155
      %v6180 = vpack.c.b16 %v5188, %v5156
      %v6181 = vpack.c.b16 %v5189, %v5157
      %v6182 = vpack.c.b16 %v5190, %v5158
      %v6183 = vpack.c.b16 %v5191, %v5159
      %v6184 = vpack.c.b16 %v5192, %v5160
      %v6185 = vpack.c.b16 %v5193, %v5161
      %v6186 = vpack.c.b16 %v5194, %v5162
      %v6187 = vpack.c.b16 %v5195, %v5163
      %v6188 = vpack.c.b16 %v5196, %v5164
      %v6189 = vpack.c.b16 %v5229, %v5197
      %v6190 = vpack.c.b16 %v5230, %v5198
      %v6191 = vpack.c.b16 %v5231, %v5199
      %v6192 = vpack.c.b16 %v5232, %v5200
      %v6193 = vpack.c.b16 %v5233, %v5201
      %v6194 = vpack.c.b16 %v5234, %v5202
      %v6195 = vpack.c.b16 %v5235, %v5203
      %v6196 = vpack.c.b16 %v5236, %v5204
      %v6197 = vpack.c.b16 %v5237, %v5205
      %v6198 = vpack.c.b16 %v5238, %v5206
      %v6199 = vpack.c.b16 %v5239, %v5207
      %v6200 = vpack.c.b16 %v5240, %v5208
      %v6201 = vpack.c.b16 %v5241, %v5209
      %v6202 = vpack.c.b16 %v5242, %v5210
      %v6203 = vpack.c.b16 %v5243, %v5211
      %v6204 = vpack.c.b16 %v5244, %v5212
      %v6205 = vpack.c.b16 %v5245, %v5213
      %v6206 = vpack.c.b16 %v5246, %v5214
      %v6207 = vpack.c.b16 %v5247, %v5215
      %v6208 = vpack.c.b16 %v5248, %v5216
      %v6209 = vpack.c.b16 %v5249, %v5217
      %v6210 = vpack.c.b16 %v5250, %v5218
      %v6211 = vpack.c.b16 %v5251, %v5219
      %v6212 = vpack.c.b16 %v5252, %v5220
      %v6213 = vpack.c.b16 %v5253, %v5221
      %v6214 = vpack.c.b16 %v5254, %v5222
      %v6215 = vpack.c.b16 %v5255, %v5223
      %v6216 = vpack.c.b16 %v5256, %v5224
      %v6217 = vpack.c.b16 %v5257, %v5225
      %v6218 = vpack.c.b16 %v5258, %v5226
      %v6219 = vpack.c.b16 %v5259, %v5227
      %v6220 = vpack.c.b16 %v5260, %v5228
      %v6221 = vpack.c.b16 %v5293, %v5261
      %v6222 = vpack.c.b16 %v5294, %v5262
      %v6223 = vpack.c.b16 %v5295, %v5263
      %v6224 = vpack.c.b16 %v5296, %v5264
      %v6225 = vpack.c.b16 %v5297, %v5265
      %v6226 = vpack.c.b16 %v5298, %v5266
      %v6227 = vpack.c.b16 %v5299, %v5267
      %v6228 = vpack.c.b16 %v5300, %v5268
      %v6229 = vpack.c.b16 %v5301, %v5269
      %v6230 = vpack.c.b16 %v5302, %v5270
      %v6231 = vpack.c.b16 %v5303, %v5271
      %v6232 = vpack.c.b16 %v5304, %v5272
      %v6233 = vpack.c.b16 %v5305, %v5273
      %v6234 = vpack.c.b16 %v5306, %v5274
      %v6235 = vpack.c.b16 %v5307, %v5275
      %v6236 = vpack.c.b16 %v5308, %v5276
      %v6237 = vpack.c.b16 %v5309, %v5277
      %v6238 = vpack.c.b16 %v5310, %v5278
      %v6239 = vpack.c.b16 %v5311, %v5279
      %v6240 = vpack.c.b16 %v5312, %v5280
      %v6241 = vpack.c.b16 %v5313, %v5281
      %v6242 = vpack.c.b16 %v5314, %v5282
      %v6243 = vpack.c.b16 %v5315, %v5283
      %v6244 = vpack.c.b16 %v5316, %v5284
      %v6245 = vpack.c.b16 %v5317, %v5285
      %v6246 = vpack.c.b16 %v5318, %v5286
      %v6247 = vpack.c.b16 %v5319, %v5287
      %v6248 = vpack.c.b16 %v5320, %v5288
      %v6249 = vpack.c.b16 %v5321, %v5289
      %v6250 = vpack.c.b16 %v5322, %v5290
      %v6251 = vpack.c.b16 %v5323, %v5291
      %v6252 = vpack.c.b16 %v5324, %v5292
      %v6253 = vpack.c.b16 %v5357, %v5325
      %v6254 = vpack.c.b16 %v5358, %v5326
      %v6255 = vpack.c.b16 %v5359, %v5327
      %v6256 = vpack.c.b16 %v5360, %v5328
      %v6257 = vpack.c.b16 %v5361, %v5329
      %v6258 = vpack.c.b16 %v5362, %v5330
      %v6259 = vpack.c.b16 %v5363, %v5331
      %v6260 = vpack.c.b16 %v5364, %v5332
      %v6261 = vpack.c.b16 %v5365, %v5333
      %v6262 = vpack.c.b16 %v5366, %v5334
      %v6263 = vpack.c.b16 %v5367, %v5335
      %v6264 = vpack.c.b16 %v5368, %v5336
      %v6265 = vpack.c.b16 %v5369, %v5337
      %v6266 = vpack.c.b16 %v5370, %v5338
      %v6267 = vpack.c.b16 %v5371, %v5339
      %v6268 = vpack.c.b16 %v5372, %v5340
      %v6269 = vpack.c.b16 %v5373, %v5341
      %v6270 = vpack.c.b16 %v5374, %v5342
      %v6271 = vpack.c.b16 %v5375, %v5343
      %v6272 = vpack.c.b16 %v5376, %v5344
      %v6273 = vpack.c.b16 %v5377, %v5345
      %v6274 = vpack.c.b16 %v5378, %v5346
      %v6275 = vpack.c.b16 %v5379, %v5347
      %v6276 = vpack.c.b16 %v5380, %v5348
      %v6277 = vpack.c.b16 %v5381, %v5349
      %v6278 = vpack.c.b16 %v5382, %v5350
      %v6279 = vpack.c.b16 %v5383, %v5351
      %v6280 = vpack.c.b16 %v5384, %v5352
      %v6281 = vpack.c.b16 %v5385, %v5353
      %v6282 = vpack.c.b16 %v5386, %v5354
      %v6283 = vpack.c.b16 %v5387, %v5355
      %v6284 = vpack.c.b16 %v5388, %v5356
      %v6285 = vpack.c.b16 %v5421, %v5389
      %v6286 = vpack.c.b16 %v5422, %v5390
      %v6287 = vpack.c.b16 %v5423, %v5391
      %v6288 = vpack.c.b16 %v5424, %v5392
      %v6289 = vpack.c.b16 %v5425, %v5393
      %v6290 = vpack.c.b16 %v5426, %v5394
      %v6291 = vpack.c.b16 %v5427, %v5395
      %v6292 = vpack.c.b16 %v5428, %v5396
      %v6293 = vpack.c.b16 %v5429, %v5397
      %v6294 = vpack.c.b16 %v5430, %v5398
      %v6295 = vpack.c.b16 %v5431, %v5399
      %v6296 = vpack.c.b16 %v5432, %v5400
      %v6297 = vpack.c.b16 %v5433, %v5401
      %v6298 = vpack.c.b16 %v5434, %v5402
      %v6299 = vpack.c.b16 %v5435, %v5403
      %v6300 = vpack.c.b16 %v5436, %v5404
      %v6301 = vpack.c.b16 %v5437, %v5405
      %v6302 = vpack.c.b16 %v5438, %v5406
      %v6303 = vpack.c.b16 %v5439, %v5407
      %v6304 = vpack.c.b16 %v5440, %v5408
      %v6305 = vpack.c.b16 %v5441, %v5409
      %v6306 = vpack.c.b16 %v5442, %v5410
      %v6307 = vpack.c.b16 %v5443, %v5411
      %v6308 = vpack.c.b16 %v5444, %v5412
      %v6309 = vpack.c.b16 %v5445, %v5413
      %v6310 = vpack.c.b16 %v5446, %v5414
      %v6311 = vpack.c.b16 %v5447, %v5415
      %v6312 = vpack.c.b16 %v5448, %v5416
      %v6313 = vpack.c.b16 %v5449, %v5417
      %v6314 = vpack.c.b16 %v5450, %v5418
      %v6315 = vpack.c.b16 %v5451, %v5419
      %v6316 = vpack.c.b16 %v5452, %v5420
      %v6317 = vpack.c.b16 %v5485, %v5453
      %v6318 = vpack.c.b16 %v5486, %v5454
      %v6319 = vpack.c.b16 %v5487, %v5455
      %v6320 = vpack.c.b16 %v5488, %v5456
      %v6321 = vpack.c.b16 %v5489, %v5457
      %v6322 = vpack.c.b16 %v5490, %v5458
      %v6323 = vpack.c.b16 %v5491, %v5459
      %v6324 = vpack.c.b16 %v5492, %v5460
      %v6325 = vpack.c.b16 %v5493, %v5461
      %v6326 = vpack.c.b16 %v5494, %v5462
      %v6327 = vpack.c.b16 %v5495, %v5463
      %v6328 = vpack.c.b16 %v5496, %v5464
      %v6329 = vpack.c.b16 %v5497, %v5465
      %v6330 = vpack.c.b16 %v5498, %v5466
      %v6331 = vpack.c.b16 %v5499, %v5467
      %v6332 = vpack.c.b16 %v5500, %v5468
      %v6333 = vpack.c.b16 %v5501, %v5469
      %v6334 = vpack.c.b16 %v5502, %v5470
      %v6335 = vpack.c.b16 %v5503, %v5471
      %v6336 = vpack.c.b16 %v5504, %v5472
      %v6337 = vpack.c.b16 %v5505, %v5473
      %v6338 = vpack.c.b16 %v5506, %v5474
      %v6339 = vpack.c.b16 %v5507, %v5475
      %v6340 = vpack.c.b16 %v5508, %v5476
      %v6341 = vpack.c.b16 %v5509, %v5477
      %v6342 = vpack.c.b16 %v5510, %v5478
      %v6343 = vpack.c.b16 %v5511, %v5479
      %v6344 = vpack.c.b16 %v5512, %v5480
      %v6345 = vpack.c.b16 %v5513, %v5481
      %v6346 = vpack.c.b16 %v5514, %v5482
      %v6347 = vpack.c.b16 %v5515, %v5483
      %v6348 = vpack.c.b16 %v5516, %v5484
      %v6349 = vpack.c.b16 %v5549, %v5517
      %v6350 = vpack.c.b16 %v5550, %v5518
      %v6351 = vpack.c.b16 %v5551, %v5519
      %v6352 = vpack.c.b16 %v5552, %v5520
      %v6353 = vpack.c.b16 %v5553, %v5521
      %v6354 = vpack.c.b16 %v5554, %v5522
      %v6355 = vpack.c.b16 %v5555, %v5523
      %v6356 = vpack.c.b16 %v5556, %v5524
      %v6357 = vpack.c.b16 %v5557, %v5525
      %v6358 = vpack.c.b16 %v5558, %v5526
      %v6359 = vpack.c.b16 %v5559, %v5527
      %v6360 = vpack.c.b16 %v5560, %v5528
      %v6361 = vpack.c.b16 %v5561, %v5529
      %v6362 = vpack.c.b16 %v5562, %v5530
      %v6363 = vpack.c.b16 %v5563, %v5531
      %v6364 = vpack.c.b16 %v5564, %v5532
      %v6365 = vpack.c.b16 %v5565, %v5533
      %v6366 = vpack.c.b16 %v5566, %v5534
      %v6367 = vpack.c.b16 %v5567, %v5535
      %v6368 = vpack.c.b16 %v5568, %v5536
      %v6369 = vpack.c.b16 %v5569, %v5537
      %v6370 = vpack.c.b16 %v5570, %v5538
      %v6371 = vpack.c.b16 %v5571, %v5539
      %v6372 = vpack.c.b16 %v5572, %v5540
      %v6373 = vpack.c.b16 %v5573, %v5541
      %v6374 = vpack.c.b16 %v5574, %v5542
      %v6375 = vpack.c.b16 %v5575, %v5543
      %v6376 = vpack.c.b16 %v5576, %v5544
      %v6377 = vpack.c.b16 %v5577, %v5545
      %v6378 = vpack.c.b16 %v5578, %v5546
      %v6379 = vpack.c.b16 %v5579, %v5547
      %v6380 = vpack.c.b16 %v5580, %v5548
      %v6381 = vpack.c.b16 %v5613, %v5581
      %v6382 = vpack.c.b16 %v5614, %v5582
      %v6383 = vpack.c.b16 %v5615, %v5583
      %v6384 = vpack.c.b16 %v5616, %v5584
      %v6385 = vpack.c.b16 %v5617, %v5585
      %v6386 = vpack.c.b16 %v5618, %v5586
      %v6387 = vpack.c.b16 %v5619, %v5587
      %v6388 = vpack.c.b16 %v5620, %v5588
      %v6389 = vpack.c.b16 %v5621, %v5589
      %v6390 = vpack.c.b16 %v5622, %v5590
      %v6391 = vpack.c.b16 %v5623, %v5591
      %v6392 = vpack.c.b16 %v5624, %v5592
      %v6393 = vpack.c.b16 %v5625, %v5593
      %v6394 = vpack.c.b16 %v5626, %v5594
      %v6395 = vpack.c.b16 %v5627, %v5595
      %v6396 = vpack.c.b16 %v5628, %v5596
      %v6397 = vpack.c.b16 %v5629, %v5597
      %v6398 = vpack.c.b16 %v5630, %v5598
      %v6399 = vpack.c.b16 %v5631, %v5599
      %v6400 = vpack.c.b16 %v5632, %v5600
      %v6401 = vpack.c.b16 %v5633, %v5601
      %v6402 = vpack.c.b16 %v5634, %v5602
      %v6403 = vpack.c.b16 %v5635, %v5603
      %v6404 = vpack.c.b16 %v5636, %v5604
      %v6405 = vpack.c.b16 %v5637, %v5605
      %v6406 = vpack.c.b16 %v5638, %v5606
      %v6407 = vpack.c.b16 %v5639, %v5607
      %v6408 = vpack.c.b16 %v5640, %v5608
      %v6409 = vpack.c.b16 %v5641, %v5609
      %v6410 = vpack.c.b16 %v5642, %v5610
      %v6411 = vpack.c.b16 %v5643, %v5611
      %v6412 = vpack.c.b16 %v5644, %v5612
      %v6413 = vpack.c.b16 %v5677, %v5645
      %v6414 = vpack.c.b16 %v5678, %v5646
      %v6415 = vpack.c.b16 %v5679, %v5647
      %v6416 = vpack.c.b16 %v5680, %v5648
      %v6417 = vpack.c.b16 %v5681, %v5649
      %v6418 = vpack.c.b16 %v5682, %v5650
      %v6419 = vpack.c.b16 %v5683, %v5651
      %v6420 = vpack.c.b16 %v5684, %v5652
      %v6421 = vpack.c.b16 %v5685, %v5653
      %v6422 = vpack.c.b16 %v5686, %v5654
      %v6423 = vpack.c.b16 %v5687, %v5655
      %v6424 = vpack.c.b16 %v5688, %v5656
      %v6425 = vpack.c.b16 %v5689, %v5657
      %v6426 = vpack.c.b16 %v5690, %v5658
      %v6427 = vpack.c.b16 %v5691, %v5659
      %v6428 = vpack.c.b16 %v5692, %v5660
      %v6429 = vpack.c.b16 %v5693, %v5661
      %v6430 = vpack.c.b16 %v5694, %v5662
      %v6431 = vpack.c.b16 %v5695, %v5663
      %v6432 = vpack.c.b16 %v5696, %v5664
      %v6433 = vpack.c.b16 %v5697, %v5665
      %v6434 = vpack.c.b16 %v5698, %v5666
      %v6435 = vpack.c.b16 %v5699, %v5667
      %v6436 = vpack.c.b16 %v5700, %v5668
      %v6437 = vpack.c.b16 %v5701, %v5669
      %v6438 = vpack.c.b16 %v5702, %v5670
      %v6439 = vpack.c.b16 %v5703, %v5671
      %v6440 = vpack.c.b16 %v5704, %v5672
      %v6441 = vpack.c.b16 %v5705, %v5673
      %v6442 = vpack.c.b16 %v5706, %v5674
      %v6443 = vpack.c.b16 %v5707, %v5675
      %v6444 = vpack.c.b16 %v5708, %v5676
      %v6445 = vpack.c.b16 %v5741, %v5709
      %v6446 = vpack.c.b16 %v5742, %v5710
      %v6447 = vpack.c.b16 %v5743, %v5711
      %v6448 = vpack.c.b16 %v5744, %v5712
      %v6449 = vpack.c.b16 %v5745, %v5713
      %v6450 = vpack.c.b16 %v5746, %v5714
      %v6451 = vpack.c.b16 %v5747, %v5715
      %v6452 = vpack.c.b16 %v5748, %v5716
      %v6453 = vpack.c.b16 %v5749, %v5717
      %v6454 = vpack.c.b16 %v5750, %v5718
      %v6455 = vpack.c.b16 %v5751, %v5719
      %v6456 = vpack.c.b16 %v5752, %v5720
      %v6457 = vpack.c.b16 %v5753, %v5721
      %v6458 = vpack.c.b16 %v5754, %v5722
      %v6459 = vpack.c.b16 %v5755, %v5723
      %v6460 = vpack.c.b16 %v5756, %v5724
      %v6461 = vpack.c.b16 %v5757, %v5725
      %v6462 = vpack.c.b16 %v5758, %v5726
      %v6463 = vpack.c.b16 %v5759, %v5727
      %v6464 = vpack.c.b16 %v5760, %v5728
      %v6465 = vpack.c.b16 %v5761, %v5729
      %v6466 = vpack.c.b16 %v5762, %v5730
      %v6467 = vpack.c.b16 %v5763, %v5731
      %v6468 = vpack.c.b16 %v5764, %v5732
      %v6469 = vpack.c.b16 %v5765, %v5733
      %v6470 = vpack.c.b16 %v5766, %v5734
      %v6471 = vpack.c.b16 %v5767, %v5735
      %v6472 = vpack.c.b16 %v5768, %v5736
      %v6473 = vpack.c.b16 %v5769, %v5737
      %v6474 = vpack.c.b16 %v5770, %v5738
      %v6475 = vpack.c.b16 %v5771, %v5739
      %v6476 = vpack.c.b16 %v5772, %v5740
      %v6477 = vpack.c.b16 %v5805, %v5773
      %v6478 = vpack.c.b16 %v5806, %v5774
      %v6479 = vpack.c.b16 %v5807, %v5775
      %v6480 = vpack.c.b16 %v5808, %v5776
      %v6481 = vpack.c.b16 %v5809, %v5777
      %v6482 = vpack.c.b16 %v5810, %v5778
      %v6483 = vpack.c.b16 %v5811, %v5779
      %v6484 = vpack.c.b16 %v5812, %v5780
      %v6485 = vpack.c.b16 %v5813, %v5781
      %v6486 = vpack.c.b16 %v5814, %v5782
      %v6487 = vpack.c.b16 %v5815, %v5783
      %v6488 = vpack.c.b16 %v5816, %v5784
      %v6489 = vpack.c.b16 %v5817, %v5785
      %v6490 = vpack.c.b16 %v5818, %v5786
      %v6491 = vpack.c.b16 %v5819, %v5787
      %v6492 = vpack.c.b16 %v5820, %v5788
      %v6493 = vpack.c.b16 %v5821, %v5789
      %v6494 = vpack.c.b16 %v5822, %v5790
      %v6495 = vpack.c.b16 %v5823, %v5791
      %v6496 = vpack.c.b16 %v5824, %v5792
      %v6497 = vpack.c.b16 %v5825, %v5793
      %v6498 = vpack.c.b16 %v5826, %v5794
      %v6499 = vpack.c.b16 %v5827, %v5795
      %v6500 = vpack.c.b16 %v5828, %v5796
      %v6501 = vpack.c.b16 %v5829, %v5797
      %v6502 = vpack.c.b16 %v5830, %v5798
      %v6503 = vpack.c.b16 %v5831, %v5799
      %v6504 = vpack.c.b16 %v5832, %v5800
      %v6505 = vpack.c.b16 %v5833, %v5801
      %v6506 = vpack.c.b16 %v5834, %v5802
      %v6507 = vpack.c.b16 %v5835, %v5803
      %v6508 = vpack.c.b16 %v5836, %v5804
      %v6509 = vpack.c.b16 %v5869, %v5837
      %v6510 = vpack.c.b16 %v5870, %v5838
      %v6511 = vpack.c.b16 %v5871, %v5839
      %v6512 = vpack.c.b16 %v5872, %v5840
      %v6513 = vpack.c.b16 %v5873, %v5841
      %v6514 = vpack.c.b16 %v5874, %v5842
      %v6515 = vpack.c.b16 %v5875, %v5843
      %v6516 = vpack.c.b16 %v5876, %v5844
      %v6517 = vpack.c.b16 %v5877, %v5845
      %v6518 = vpack.c.b16 %v5878, %v5846
      %v6519 = vpack.c.b16 %v5879, %v5847
      %v6520 = vpack.c.b16 %v5880, %v5848
      %v6521 = vpack.c.b16 %v5881, %v5849
      %v6522 = vpack.c.b16 %v5882, %v5850
      %v6523 = vpack.c.b16 %v5883, %v5851
      %v6524 = vpack.c.b16 %v5884, %v5852
      %v6525 = vpack.c.b16 %v5885, %v5853
      %v6526 = vpack.c.b16 %v5886, %v5854
      %v6527 = vpack.c.b16 %v5887, %v5855
      %v6528 = vpack.c.b16 %v5888, %v5856
      %v6529 = vpack.c.b16 %v5889, %v5857
      %v6530 = vpack.c.b16 %v5890, %v5858
      %v6531 = vpack.c.b16 %v5891, %v5859
      %v6532 = vpack.c.b16 %v5892, %v5860
      %v6533 = vpack.c.b16 %v5893, %v5861
      %v6534 = vpack.c.b16 %v5894, %v5862
      %v6535 = vpack.c.b16 %v5895, %v5863
      %v6536 = vpack.c.b16 %v5896, %v5864
      %v6537 = vpack.c.b16 %v5897, %v5865
      %v6538 = vpack.c.b16 %v5898, %v5866
      %v6539 = vpack.c.b16 %v5899, %v5867
      %v6540 = vpack.c.b16 %v5900, %v5868
      %v6541 = vpack.c.b16 %v5933, %v5901
      %v6542 = vpack.c.b16 %v5934, %v5902
      %v6543 = vpack.c.b16 %v5935, %v5903
      %v6544 = vpack.c.b16 %v5936, %v5904
      %v6545 = vpack.c.b16 %v5937, %v5905
      %v6546 = vpack.c.b16 %v5938, %v5906
      %v6547 = vpack.c.b16 %v5939, %v5907
      %v6548 = vpack.c.b16 %v5940, %v5908
      %v6549 = vpack.c.b16 %v5941, %v5909
      %v6550 = vpack.c.b16 %v5942, %v5910
      %v6551 = vpack.c.b16 %v5943, %v5911
      %v6552 = vpack.c.b16 %v5944, %v5912
      %v6553 = vpack.c.b16 %v5945, %v5913
      %v6554 = vpack.c.b16 %v5946, %v5914
      %v6555 = vpack.c.b16 %v5947, %v5915
      %v6556 = vpack.c.b16 %v5948, %v5916
      %v6557 = vpack.c.b16 %v5949, %v5917
      %v6558 = vpack.c.b16 %v5950, %v5918
      %v6559 = vpack.c.b16 %v5951, %v5919
      %v6560 = vpack.c.b16 %v5952, %v5920
      %v6561 = vpack.c.b16 %v5953, %v5921
      %v6562 = vpack.c.b16 %v5954, %v5922
      %v6563 = vpack.c.b16 %v5955, %v5923
      %v6564 = vpack.c.b16 %v5956, %v5924
      %v6565 = vpack.c.b16 %v5957, %v5925
      %v6566 = vpack.c.b16 %v5958, %v5926
      %v6567 = vpack.c.b16 %v5959, %v5927
      %v6568 = vpack.c.b16 %v5960, %v5928
      %v6569 = vpack.c.b16 %v5961, %v5929
      %v6570 = vpack.c.b16 %v5962, %v5930
      %v6571 = vpack.c.b16 %v5963, %v5931
      %v6572 = vpack.c.b16 %v5964, %v5932
      %v6573 = vpack.c.b16 %v5997, %v5965
      %v6574 = vpack.c.b16 %v5998, %v5966
      %v6575 = vpack.c.b16 %v5999, %v5967
      %v6576 = vpack.c.b16 %v6000, %v5968
      %v6577 = vpack.c.b16 %v6001, %v5969
      %v6578 = vpack.c.b16 %v6002, %v5970
      %v6579 = vpack.c.b16 %v6003, %v5971
      %v6580 = vpack.c.b16 %v6004, %v5972
      %v6581 = vpack.c.b16 %v6005, %v5973
      %v6582 = vpack.c.b16 %v6006, %v5974
      %v6583 = vpack.c.b16 %v6007, %v5975
      %v6584 = vpack.c.b16 %v6008, %v5976
      %v6585 = vpack.c.b16 %v6009, %v5977
      %v6586 = vpack.c.b16 %v6010, %v5978
      %v6587 = vpack.c.b16 %v6011, %v5979
      %v6588 = vpack.c.b16 %v6012, %v5980
      %v6589 = vpack.c.b16 %v6013, %v5981
      %v6590 = vpack.c.b16 %v6014, %v5982
      %v6591 = vpack.c.b16 %v6015, %v5983
      %v6592 = vpack.c.b16 %v6016, %v5984
      %v6593 = vpack.c.b16 %v6017, %v5985
      %v6594 = vpack.c.b16 %v6018, %v5986
      %v6595 = vpack.c.b16 %v6019, %v5987
      %v6596 = vpack.c.b16 %v6020, %v5988
      %v6597 = vpack.c.b16 %v6021, %v5989
      %v6598 = vpack.c.b16 %v6022, %v5990
      %v6599 = vpack.c.b16 %v6023, %v5991
      %v6600 = vpack.c.b16 %v6024, %v5992
      %v6601 = vpack.c.b16 %v6025, %v5993
      %v6602 = vpack.c.b16 %v6026, %v5994
      %v6603 = vpack.c.b16 %v6027, %v5995
      %v6604 = vpack.c.b16 %v6028, %v5996
      %v6605 = vpack.c.b16 %v6061, %v6029
      %v6606 = vpack.c.b16 %v6062, %v6030
      %v6607 = vpack.c.b16 %v6063, %v6031
      %v6608 = vpack.c.b16 %v6064, %v6032
      %v6609 = vpack.c.b16 %v6065, %v6033
      %v6610 = vpack.c.b16 %v6066, %v6034
      %v6611 = vpack.c.b16 %v6067, %v6035
      %v6612 = vpack.c.b16 %v6068, %v6036
      %v6613 = vpack.c.b16 %v6069, %v6037
      %v6614 = vpack.c.b16 %v6070, %v6038
      %v6615 = vpack.c.b16 %v6071, %v6039
      %v6616 = vpack.c.b16 %v6072, %v6040
      %v6617 = vpack.c.b16 %v6073, %v6041
      %v6618 = vpack.c.b16 %v6074, %v6042
      %v6619 = vpack.c.b16 %v6075, %v6043
      %v6620 = vpack.c.b16 %v6076, %v6044
      %v6621 = vpack.c.b16 %v6077, %v6045
      %v6622 = vpack.c.b16 %v6078, %v6046
      %v6623 = vpack.c.b16 %v6079, %v6047
      %v6624 = vpack.c.b16 %v6080, %v6048
      %v6625 = vpack.c.b16 %v6081, %v6049
      %v6626 = vpack.c.b16 %v6082, %v6050
      %v6627 = vpack.c.b16 %v6083, %v6051
      %v6628 = vpack.c.b16 %v6084, %v6052
      %v6629 = vpack.c.b16 %v6085, %v6053
      %v6630 = vpack.c.b16 %v6086, %v6054
      %v6631 = vpack.c.b16 %v6087, %v6055
      %v6632 = vpack.c.b16 %v6088, %v6056
      %v6633 = vpack.c.b16 %v6089, %v6057
      %v6634 = vpack.c.b16 %v6090, %v6058
      %v6635 = vpack.c.b16 %v6091, %v6059
      %v6636 = vpack.c.b16 %v6092, %v6060
      %v6637 = vpack.c.b16 %v6125, %v6093
      %v6638 = vpack.c.b16 %v6126, %v6094
      %v6639 = vpack.c.b16 %v6127, %v6095
      %v6640 = vpack.c.b16 %v6128, %v6096
      %v6641 = vpack.c.b16 %v6129, %v6097
      %v6642 = vpack.c.b16 %v6130, %v6098
      %v6643 = vpack.c.b16 %v6131, %v6099
      %v6644 = vpack.c.b16 %v6132, %v6100
      %v6645 = vpack.c.b16 %v6133, %v6101
      %v6646 = vpack.c.b16 %v6134, %v6102
      %v6647 = vpack.c.b16 %v6135, %v6103
      %v6648 = vpack.c.b16 %v6136, %v6104
      %v6649 = vpack.c.b16 %v6137, %v6105
      %v6650 = vpack.c.b16 %v6138, %v6106
      %v6651 = vpack.c.b16 %v6139, %v6107
      %v6652 = vpack.c.b16 %v6140, %v6108
      %v6653 = vpack.c.b16 %v6141, %v6109
      %v6654 = vpack.c.b16 %v6142, %v6110
      %v6655 = vpack.c.b16 %v6143, %v6111
      %v6656 = vpack.c.b16 %v6144, %v6112
      %v6657 = vpack.c.b16 %v6145, %v6113
      %v6658 = vpack.c.b16 %v6146, %v6114
      %v6659 = vpack.c.b16 %v6147, %v6115
      %v6660 = vpack.c.b16 %v6148, %v6116
      %v6661 = vpack.c.b16 %v6149, %v6117
      %v6662 = vpack.c.b16 %v6150, %v6118
      %v6663 = vpack.c.b16 %v6151, %v6119
      %v6664 = vpack.c.b16 %v6152, %v6120
      %v6665 = vpack.c.b16 %v6153, %v6121
      %v6666 = vpack.c.b16 %v6154, %v6122
      %v6667 = vpack.c.b16 %v6155, %v6123
      %v6668 = vpack.c.b16 %v6156, %v6124
      %7181 = vmatprep.subr.bf16.mxu0 %v6382
      %7182 = vmatpush1.bf16.msra.mxu0 %v6381
      %7183 = vmatprep.subr.bf16.mxu0 %v6350
      %7184 = vmatpush1.bf16.msra.mxu0 %v6349
      %7185 = vmatprep.subr.bf16.mxu0 %v6318
      %7186 = vmatpush1.bf16.msra.mxu0 %v6317
      %7187 = vmatprep.subr.bf16.mxu0 %v6286
      %7188 = vmatpush1.bf16.msra.mxu0 %v6285
      %7189 = vmatprep.subr.bf16.mxu0 %v6254
      %7190 = vmatpush1.bf16.msra.mxu0 %v6253
      %7191 = vmatprep.subr.bf16.mxu0 %v6222
      %7192 = vmatpush1.bf16.msra.mxu0 %v6221
      %7193 = vmatprep.subr.bf16.mxu0 %v6190
      %7194 = vmatpush1.bf16.msra.mxu0 %v6189
      %7195 = vmatprep.subr.bf16.mxu0 %v6158
      %7196 = vmatpush1.bf16.msra.mxu0 %v6157
      %7197 = vmatprep.subr.bf16.mxu0 %v6638
      %7198 = vmatpush2.bf16.msra.mxu0 %v6637
      %7199 = vmatprep.subr.bf16.mxu0 %v6606
      %7200 = vmatpush2.bf16.msra.mxu0 %v6605
      %7201 = vmatprep.subr.bf16.mxu0 %v6574
      %7202 = vmatpush2.bf16.msra.mxu0 %v6573
      %7203 = vmatprep.subr.bf16.mxu0 %v6542
      %7204 = vmatpush2.bf16.msra.mxu0 %v6541
      %7205 = vmatprep.subr.bf16.mxu0 %v6510
      %7206 = vmatpush2.bf16.msra.mxu0 %v6509
      %7207 = vmatprep.subr.bf16.mxu0 %v6478
      %7208 = vmatpush2.bf16.msra.mxu0 %v6477
      %7209 = vmatprep.subr.bf16.mxu0 %v6446
      %7210 = vmatpush2.bf16.msra.mxu0 %v6445
      %7211 = vmatprep.subr.bf16.mxu0 %v6414
      %7212 = vmatpush2.bf16.msra.mxu0 %v6413
      %7213 = vmatprep.mubr.bf16.mxu0 %v4101
      %7214 = vmatmul.mubr.bf16.gmra.mxu0 %v4085
      %v7215 = vpop.f32.mrf.mxu0
      %v7216 = vadd.f32 0.0, %v7215
      %v7217 = vpop.f32.mrf.mxu0
      %v7218 = vadd.f32 0.0, %v7217
      %v7219 = vpop.f32.mrf.mxu0
      %v7220 = vadd.f32 0.0, %v7219
      %v7221 = vpop.f32.mrf.mxu0
      %v7222 = vadd.f32 0.0, %v7221
      %7223 = vmatprep.mubr.bf16.mxu0 %v4102
      %7224 = vmatmul.mubr.bf16.gmra.mxu0 %v4086
      %v7225 = vpop.f32.mrf.mxu0
      %v7226 = vadd.f32 0.0, %v7225
      %v7227 = vpop.f32.mrf.mxu0
      %v7228 = vadd.f32 0.0, %v7227
      %v7229 = vpop.f32.mrf.mxu0
      %v7230 = vpop.f32.mrf.mxu0
      %7231 = vdwg.mxu0
      %7232 = vmatprep.subr.bf16.mxu0 %v6384
      %7233 = vmatpush1.bf16.msra.mxu0 %v6383
      %7234 = vmatprep.subr.bf16.mxu0 %v6352
      %7235 = vmatpush1.bf16.msra.mxu0 %v6351
      %7236 = vmatprep.subr.bf16.mxu0 %v6320
      %7237 = vmatpush1.bf16.msra.mxu0 %v6319
      %7238 = vmatprep.subr.bf16.mxu0 %v6288
      %7239 = vmatpush1.bf16.msra.mxu0 %v6287
      %7240 = vmatprep.subr.bf16.mxu0 %v6256
      %7241 = vmatpush1.bf16.msra.mxu0 %v6255
      %7242 = vmatprep.subr.bf16.mxu0 %v6224
      %7243 = vmatpush1.bf16.msra.mxu0 %v6223
      %7244 = vmatprep.subr.bf16.mxu0 %v6192
      %7245 = vmatpush1.bf16.msra.mxu0 %v6191
      %7246 = vmatprep.subr.bf16.mxu0 %v6160
      %7247 = vmatpush1.bf16.msra.mxu0 %v6159
      %7248 = vmatprep.subr.bf16.mxu0 %v6640
      %7249 = vmatpush2.bf16.msra.mxu0 %v6639
      %7250 = vmatprep.subr.bf16.mxu0 %v6608
      %7251 = vmatpush2.bf16.msra.mxu0 %v6607
      %7252 = vmatprep.subr.bf16.mxu0 %v6576
      %7253 = vmatpush2.bf16.msra.mxu0 %v6575
      %7254 = vmatprep.subr.bf16.mxu0 %v6544
      %7255 = vmatpush2.bf16.msra.mxu0 %v6543
      %7256 = vmatprep.subr.bf16.mxu0 %v6512
      %7257 = vmatpush2.bf16.msra.mxu0 %v6511
      %7258 = vmatprep.subr.bf16.mxu0 %v6480
      %7259 = vmatpush2.bf16.msra.mxu0 %v6479
      %7260 = vmatprep.subr.bf16.mxu0 %v6448
      %7261 = vmatpush2.bf16.msra.mxu0 %v6447
      %7262 = vmatprep.subr.bf16.mxu0 %v6416
      %7263 = vmatpush2.bf16.msra.mxu0 %v6415
      %7264 = vmatprep.mubr.bf16.mxu0 %v4101
      %7265 = vmatmul.mubr.bf16.gmra.mxu0 %v4085
      %v7266 = vpop.f32.mrf.mxu0
      %v7267 = vadd.f32 0.0, %v7266
      %v7268 = vpop.f32.mrf.mxu0
      %v7269 = vadd.f32 0.0, %v7268
      %v7270 = vpop.f32.mrf.mxu0
      %v7271 = vadd.f32 0.0, %v7270
      %v7272 = vpop.f32.mrf.mxu0
      %v7273 = vadd.f32 0.0, %v7272
      %7274 = vmatprep.mubr.bf16.mxu0 %v4102
      %7275 = vmatmul.mubr.bf16.gmra.mxu0 %v4086
      %v7276 = vpop.f32.mrf.mxu0
      %v7277 = vadd.f32 0.0, %v7276
      %v7278 = vpop.f32.mrf.mxu0
      %v7279 = vadd.f32 0.0, %v7278
      %v7280 = vpop.f32.mrf.mxu0
      %v7281 = vpop.f32.mrf.mxu0
      %7282 = vdwg.mxu0
      %7283 = vmatprep.subr.bf16.mxu0 %v6386
      %7284 = vmatpush1.bf16.msra.mxu0 %v6385
      %7285 = vmatprep.subr.bf16.mxu0 %v6354
      %7286 = vmatpush1.bf16.msra.mxu0 %v6353
      %7287 = vmatprep.subr.bf16.mxu0 %v6322
      %7288 = vmatpush1.bf16.msra.mxu0 %v6321
      %7289 = vmatprep.subr.bf16.mxu0 %v6290
      %7290 = vmatpush1.bf16.msra.mxu0 %v6289
      %7291 = vmatprep.subr.bf16.mxu0 %v6258
      %7292 = vmatpush1.bf16.msra.mxu0 %v6257
      %7293 = vmatprep.subr.bf16.mxu0 %v6226
      %7294 = vmatpush1.bf16.msra.mxu0 %v6225
      %7295 = vmatprep.subr.bf16.mxu0 %v6194
      %7296 = vmatpush1.bf16.msra.mxu0 %v6193
      %7297 = vmatprep.subr.bf16.mxu0 %v6162
      %7298 = vmatpush1.bf16.msra.mxu0 %v6161
      %7299 = vmatprep.subr.bf16.mxu0 %v6642
      %7300 = vmatpush2.bf16.msra.mxu0 %v6641
      %7301 = vmatprep.subr.bf16.mxu0 %v6610
      %7302 = vmatpush2.bf16.msra.mxu0 %v6609
      %7303 = vmatprep.subr.bf16.mxu0 %v6578
      %7304 = vmatpush2.bf16.msra.mxu0 %v6577
      %7305 = vmatprep.subr.bf16.mxu0 %v6546
      %7306 = vmatpush2.bf16.msra.mxu0 %v6545
      %7307 = vmatprep.subr.bf16.mxu0 %v6514
      %7308 = vmatpush2.bf16.msra.mxu0 %v6513
      %7309 = vmatprep.subr.bf16.mxu0 %v6482
      %7310 = vmatpush2.bf16.msra.mxu0 %v6481
      %7311 = vmatprep.subr.bf16.mxu0 %v6450
      %7312 = vmatpush2.bf16.msra.mxu0 %v6449
      %7313 = vmatprep.subr.bf16.mxu0 %v6418
      %7314 = vmatpush2.bf16.msra.mxu0 %v6417
      %7315 = vmatprep.mubr.bf16.mxu0 %v4101
      %7316 = vmatmul.mubr.bf16.gmra.mxu0 %v4085
      %v7317 = vpop.f32.mrf.mxu0
      %v7318 = vadd.f32 0.0, %v7317
      %v7319 = vpop.f32.mrf.mxu0
      %v7320 = vadd.f32 0.0, %v7319
      %v7321 = vpop.f32.mrf.mxu0
      %v7322 = vadd.f32 0.0, %v7321
      %v7323 = vpop.f32.mrf.mxu0
      %v7324 = vadd.f32 0.0, %v7323
      %7325 = vmatprep.mubr.bf16.mxu0 %v4102
      %7326 = vmatmul.mubr.bf16.gmra.mxu0 %v4086
      %v7327 = vpop.f32.mrf.mxu0
      %v7328 = vadd.f32 0.0, %v7327
      %v7329 = vpop.f32.mrf.mxu0
      %v7330 = vadd.f32 0.0, %v7329
      %v7331 = vpop.f32.mrf.mxu0
      %v7332 = vpop.f32.mrf.mxu0
      %7333 = vdwg.mxu0
      %7334 = vmatprep.subr.bf16.mxu0 %v6388
      %7335 = vmatpush1.bf16.msra.mxu0 %v6387
      %7336 = vmatprep.subr.bf16.mxu0 %v6356
      %7337 = vmatpush1.bf16.msra.mxu0 %v6355
      %7338 = vmatprep.subr.bf16.mxu0 %v6324
      %7339 = vmatpush1.bf16.msra.mxu0 %v6323
      %7340 = vmatprep.subr.bf16.mxu0 %v6292
      %7341 = vmatpush1.bf16.msra.mxu0 %v6291
      %7342 = vmatprep.subr.bf16.mxu0 %v6260
      %7343 = vmatpush1.bf16.msra.mxu0 %v6259
      %7344 = vmatprep.subr.bf16.mxu0 %v6228
      %7345 = vmatpush1.bf16.msra.mxu0 %v6227
      %7346 = vmatprep.subr.bf16.mxu0 %v6196
      %7347 = vmatpush1.bf16.msra.mxu0 %v6195
      %7348 = vmatprep.subr.bf16.mxu0 %v6164
      %7349 = vmatpush1.bf16.msra.mxu0 %v6163
      %7350 = vmatprep.subr.bf16.mxu0 %v6644
      %7351 = vmatpush2.bf16.msra.mxu0 %v6643
      %7352 = vmatprep.subr.bf16.mxu0 %v6612
      %7353 = vmatpush2.bf16.msra.mxu0 %v6611
      %7354 = vmatprep.subr.bf16.mxu0 %v6580
      %7355 = vmatpush2.bf16.msra.mxu0 %v6579
      %7356 = vmatprep.subr.bf16.mxu0 %v6548
      %7357 = vmatpush2.bf16.msra.mxu0 %v6547
      %7358 = vmatprep.subr.bf16.mxu0 %v6516
      %7359 = vmatpush2.bf16.msra.mxu0 %v6515
      %7360 = vmatprep.subr.bf16.mxu0 %v6484
      %7361 = vmatpush2.bf16.msra.mxu0 %v6483
      %7362 = vmatprep.subr.bf16.mxu0 %v6452
      %7363 = vmatpush2.bf16.msra.mxu0 %v6451
      %7364 = vmatprep.subr.bf16.mxu0 %v6420
      %7365 = vmatpush2.bf16.msra.mxu0 %v6419
      %7366 = vmatprep.mubr.bf16.mxu0 %v4101
      %7367 = vmatmul.mubr.bf16.gmra.mxu0 %v4085
      %v7368 = vpop.f32.mrf.mxu0
      %v7369 = vadd.f32 0.0, %v7368
      %v7370 = vpop.f32.mrf.mxu0
      %v7371 = vadd.f32 0.0, %v7370
      %v7372 = vpop.f32.mrf.mxu0
      %v7373 = vadd.f32 0.0, %v7372
      %v7374 = vpop.f32.mrf.mxu0
      %v7375 = vadd.f32 0.0, %v7374
      %7376 = vmatprep.mubr.bf16.mxu0 %v4102
      %7377 = vmatmul.mubr.bf16.gmra.mxu0 %v4086
      %v7378 = vpop.f32.mrf.mxu0
      %v7379 = vadd.f32 0.0, %v7378
      %v7380 = vpop.f32.mrf.mxu0
      %v7381 = vadd.f32 0.0, %v7380
      %v7382 = vpop.f32.mrf.mxu0
      %v7383 = vpop.f32.mrf.mxu0
      %7384 = vdwg.mxu0
      %7385 = vmatprep.subr.bf16.mxu0 %v6390
      %7386 = vmatpush1.bf16.msra.mxu0 %v6389
      %7387 = vmatprep.subr.bf16.mxu0 %v6358
      %7388 = vmatpush1.bf16.msra.mxu0 %v6357
      %7389 = vmatprep.subr.bf16.mxu0 %v6326
      %7390 = vmatpush1.bf16.msra.mxu0 %v6325
      %7391 = vmatprep.subr.bf16.mxu0 %v6294
      %7392 = vmatpush1.bf16.msra.mxu0 %v6293
      %7393 = vmatprep.subr.bf16.mxu0 %v6262
      %7394 = vmatpush1.bf16.msra.mxu0 %v6261
      %7395 = vmatprep.subr.bf16.mxu0 %v6230
      %7396 = vmatpush1.bf16.msra.mxu0 %v6229
      %7397 = vmatprep.subr.bf16.mxu0 %v6198
      %7398 = vmatpush1.bf16.msra.mxu0 %v6197
      %7399 = vmatprep.subr.bf16.mxu0 %v6166
      %7400 = vmatpush1.bf16.msra.mxu0 %v6165
      %7401 = vmatprep.subr.bf16.mxu0 %v6646
      %7402 = vmatpush2.bf16.msra.mxu0 %v6645
      %7403 = vmatprep.subr.bf16.mxu0 %v6614
      %7404 = vmatpush2.bf16.msra.mxu0 %v6613
      %7405 = vmatprep.subr.bf16.mxu0 %v6582
      %7406 = vmatpush2.bf16.msra.mxu0 %v6581
      %7407 = vmatprep.subr.bf16.mxu0 %v6550
      %7408 = vmatpush2.bf16.msra.mxu0 %v6549
      %7409 = vmatprep.subr.bf16.mxu0 %v6518
      %7410 = vmatpush2.bf16.msra.mxu0 %v6517
      %7411 = vmatprep.subr.bf16.mxu0 %v6486
      %7412 = vmatpush2.bf16.msra.mxu0 %v6485
      %7413 = vmatprep.subr.bf16.mxu0 %v6454
      %7414 = vmatpush2.bf16.msra.mxu0 %v6453
      %7415 = vmatprep.subr.bf16.mxu0 %v6422
      %7416 = vmatpush2.bf16.msra.mxu0 %v6421
      %7417 = vmatprep.mubr.bf16.mxu0 %v4101
      %7418 = vmatmul.mubr.bf16.gmra.mxu0 %v4085
      %v7419 = vpop.f32.mrf.mxu0
      %v7420 = vadd.f32 0.0, %v7419
      %v7421 = vpop.f32.mrf.mxu0
      %v7422 = vadd.f32 0.0, %v7421
      %v7423 = vpop.f32.mrf.mxu0
      %v7424 = vadd.f32 0.0, %v7423
      %v7425 = vpop.f32.mrf.mxu0
      %v7426 = vadd.f32 0.0, %v7425
      %7427 = vmatprep.mubr.bf16.mxu0 %v4102
      %7428 = vmatmul.mubr.bf16.gmra.mxu0 %v4086
      %v7429 = vpop.f32.mrf.mxu0
      %v7430 = vadd.f32 0.0, %v7429
      %v7431 = vpop.f32.mrf.mxu0
      %v7432 = vadd.f32 0.0, %v7431
      %v7433 = vpop.f32.mrf.mxu0
      %v7434 = vpop.f32.mrf.mxu0
      %7435 = vdwg.mxu0
      %7436 = vmatprep.subr.bf16.mxu0 %v6392
      %7437 = vmatpush1.bf16.msra.mxu0 %v6391
      %7438 = vmatprep.subr.bf16.mxu0 %v6360
      %7439 = vmatpush1.bf16.msra.mxu0 %v6359
      %7440 = vmatprep.subr.bf16.mxu0 %v6328
      %7441 = vmatpush1.bf16.msra.mxu0 %v6327
      %7442 = vmatprep.subr.bf16.mxu0 %v6296
      %7443 = vmatpush1.bf16.msra.mxu0 %v6295
      %7444 = vmatprep.subr.bf16.mxu0 %v6264
      %7445 = vmatpush1.bf16.msra.mxu0 %v6263
      %7446 = vmatprep.subr.bf16.mxu0 %v6232
      %7447 = vmatpush1.bf16.msra.mxu0 %v6231
      %7448 = vmatprep.subr.bf16.mxu0 %v6200
      %7449 = vmatpush1.bf16.msra.mxu0 %v6199
      %7450 = vmatprep.subr.bf16.mxu0 %v6168
      %7451 = vmatpush1.bf16.msra.mxu0 %v6167
      %7452 = vmatprep.subr.bf16.mxu0 %v6648
      %7453 = vmatpush2.bf16.msra.mxu0 %v6647
      %7454 = vmatprep.subr.bf16.mxu0 %v6616
      %7455 = vmatpush2.bf16.msra.mxu0 %v6615
      %7456 = vmatprep.subr.bf16.mxu0 %v6584
      %7457 = vmatpush2.bf16.msra.mxu0 %v6583
      %7458 = vmatprep.subr.bf16.mxu0 %v6552
      %7459 = vmatpush2.bf16.msra.mxu0 %v6551
      %7460 = vmatprep.subr.bf16.mxu0 %v6520
      %7461 = vmatpush2.bf16.msra.mxu0 %v6519
      %7462 = vmatprep.subr.bf16.mxu0 %v6488
      %7463 = vmatpush2.bf16.msra.mxu0 %v6487
      %7464 = vmatprep.subr.bf16.mxu0 %v6456
      %7465 = vmatpush2.bf16.msra.mxu0 %v6455
      %7466 = vmatprep.subr.bf16.mxu0 %v6424
      %7467 = vmatpush2.bf16.msra.mxu0 %v6423
      %7468 = vmatprep.mubr.bf16.mxu0 %v4101
      %7469 = vmatmul.mubr.bf16.gmra.mxu0 %v4085
      %v7470 = vpop.f32.mrf.mxu0
      %v7471 = vadd.f32 0.0, %v7470
      %v7472 = vpop.f32.mrf.mxu0
      %v7473 = vadd.f32 0.0, %v7472
      %v7474 = vpop.f32.mrf.mxu0
      %v7475 = vadd.f32 0.0, %v7474
      %v7476 = vpop.f32.mrf.mxu0
      %v7477 = vadd.f32 0.0, %v7476
      %7478 = vmatprep.mubr.bf16.mxu0 %v4102
      %7479 = vmatmul.mubr.bf16.gmra.mxu0 %v4086
      %v7480 = vpop.f32.mrf.mxu0
      %v7481 = vadd.f32 0.0, %v7480
      %v7482 = vpop.f32.mrf.mxu0
      %v7483 = vadd.f32 0.0, %v7482
      %v7484 = vpop.f32.mrf.mxu0
      %v7485 = vpop.f32.mrf.mxu0
      %7486 = vdwg.mxu0
      %7487 = vmatprep.subr.bf16.mxu0 %v6394
      %7488 = vmatpush1.bf16.msra.mxu0 %v6393
      %7489 = vmatprep.subr.bf16.mxu0 %v6362
      %7490 = vmatpush1.bf16.msra.mxu0 %v6361
      %7491 = vmatprep.subr.bf16.mxu0 %v6330
      %7492 = vmatpush1.bf16.msra.mxu0 %v6329
      %7493 = vmatprep.subr.bf16.mxu0 %v6298
      %7494 = vmatpush1.bf16.msra.mxu0 %v6297
      %7495 = vmatprep.subr.bf16.mxu0 %v6266
      %7496 = vmatpush1.bf16.msra.mxu0 %v6265
      %7497 = vmatprep.subr.bf16.mxu0 %v6234
      %7498 = vmatpush1.bf16.msra.mxu0 %v6233
      %7499 = vmatprep.subr.bf16.mxu0 %v6202
      %7500 = vmatpush1.bf16.msra.mxu0 %v6201
      %7501 = vmatprep.subr.bf16.mxu0 %v6170
      %7502 = vmatpush1.bf16.msra.mxu0 %v6169
      %7503 = vmatprep.subr.bf16.mxu0 %v6650
      %7504 = vmatpush2.bf16.msra.mxu0 %v6649
      %7505 = vmatprep.subr.bf16.mxu0 %v6618
      %7506 = vmatpush2.bf16.msra.mxu0 %v6617
      %7507 = vmatprep.subr.bf16.mxu0 %v6586
      %7508 = vmatpush2.bf16.msra.mxu0 %v6585
      %7509 = vmatprep.subr.bf16.mxu0 %v6554
      %7510 = vmatpush2.bf16.msra.mxu0 %v6553
      %7511 = vmatprep.subr.bf16.mxu0 %v6522
      %7512 = vmatpush2.bf16.msra.mxu0 %v6521
      %7513 = vmatprep.subr.bf16.mxu0 %v6490
      %7514 = vmatpush2.bf16.msra.mxu0 %v6489
      %7515 = vmatprep.subr.bf16.mxu0 %v6458
      %7516 = vmatpush2.bf16.msra.mxu0 %v6457
      %7517 = vmatprep.subr.bf16.mxu0 %v6426
      %7518 = vmatpush2.bf16.msra.mxu0 %v6425
      %7519 = vmatprep.mubr.bf16.mxu0 %v4101
      %7520 = vmatmul.mubr.bf16.gmra.mxu0 %v4085
      %v7521 = vpop.f32.mrf.mxu0
      %v7522 = vadd.f32 0.0, %v7521
      %v7523 = vpop.f32.mrf.mxu0
      %v7524 = vadd.f32 0.0, %v7523
      %v7525 = vpop.f32.mrf.mxu0
      %v7526 = vadd.f32 0.0, %v7525
      %v7527 = vpop.f32.mrf.mxu0
      %v7528 = vadd.f32 0.0, %v7527
      %7529 = vmatprep.mubr.bf16.mxu0 %v4102
      %7530 = vmatmul.mubr.bf16.gmra.mxu0 %v4086
      %v7531 = vpop.f32.mrf.mxu0
      %v7532 = vadd.f32 0.0, %v7531
      %v7533 = vpop.f32.mrf.mxu0
      %v7534 = vadd.f32 0.0, %v7533
      %v7535 = vpop.f32.mrf.mxu0
      %v7536 = vpop.f32.mrf.mxu0
      %7537 = vdwg.mxu0
      %7538 = vmatprep.subr.bf16.mxu0 %v6396
      %7539 = vmatpush1.bf16.msra.mxu0 %v6395
      %7540 = vmatprep.subr.bf16.mxu0 %v6364
      %7541 = vmatpush1.bf16.msra.mxu0 %v6363
      %7542 = vmatprep.subr.bf16.mxu0 %v6332
      %7543 = vmatpush1.bf16.msra.mxu0 %v6331
      %7544 = vmatprep.subr.bf16.mxu0 %v6300
      %7545 = vmatpush1.bf16.msra.mxu0 %v6299
      %7546 = vmatprep.subr.bf16.mxu0 %v6268
      %7547 = vmatpush1.bf16.msra.mxu0 %v6267
      %7548 = vmatprep.subr.bf16.mxu0 %v6236
      %7549 = vmatpush1.bf16.msra.mxu0 %v6235
      %7550 = vmatprep.subr.bf16.mxu0 %v6204
      %7551 = vmatpush1.bf16.msra.mxu0 %v6203
      %7552 = vmatprep.subr.bf16.mxu0 %v6172
      %7553 = vmatpush1.bf16.msra.mxu0 %v6171
      %7554 = vmatprep.subr.bf16.mxu0 %v6652
      %7555 = vmatpush2.bf16.msra.mxu0 %v6651
      %7556 = vmatprep.subr.bf16.mxu0 %v6620
      %7557 = vmatpush2.bf16.msra.mxu0 %v6619
      %7558 = vmatprep.subr.bf16.mxu0 %v6588
      %7559 = vmatpush2.bf16.msra.mxu0 %v6587
      %7560 = vmatprep.subr.bf16.mxu0 %v6556
      %7561 = vmatpush2.bf16.msra.mxu0 %v6555
      %7562 = vmatprep.subr.bf16.mxu0 %v6524
      %7563 = vmatpush2.bf16.msra.mxu0 %v6523
      %7564 = vmatprep.subr.bf16.mxu0 %v6492
      %7565 = vmatpush2.bf16.msra.mxu0 %v6491
      %7566 = vmatprep.subr.bf16.mxu0 %v6460
      %7567 = vmatpush2.bf16.msra.mxu0 %v6459
      %7568 = vmatprep.subr.bf16.mxu0 %v6428
      %7569 = vmatpush2.bf16.msra.mxu0 %v6427
      %7570 = vmatprep.mubr.bf16.mxu0 %v4101
      %7571 = vmatmul.mubr.bf16.gmra.mxu0 %v4085
      %v7572 = vpop.f32.mrf.mxu0
      %v7573 = vadd.f32 0.0, %v7572
      %v7574 = vpop.f32.mrf.mxu0
      %v7575 = vadd.f32 0.0, %v7574
      %v7576 = vpop.f32.mrf.mxu0
      %v7577 = vadd.f32 0.0, %v7576
      %v7578 = vpop.f32.mrf.mxu0
      %v7579 = vadd.f32 0.0, %v7578
      %7580 = vmatprep.mubr.bf16.mxu0 %v4102
      %7581 = vmatmul.mubr.bf16.gmra.mxu0 %v4086
      %v7582 = vpop.f32.mrf.mxu0
      %v7583 = vadd.f32 0.0, %v7582
      %v7584 = vpop.f32.mrf.mxu0
      %v7585 = vadd.f32 0.0, %v7584
      %v7586 = vpop.f32.mrf.mxu0
      %v7587 = vpop.f32.mrf.mxu0
      %7588 = vdwg.mxu0
      %7589 = vmatprep.subr.bf16.mxu0 %v6398
      %7590 = vmatpush1.bf16.msra.mxu0 %v6397
      %7591 = vmatprep.subr.bf16.mxu0 %v6366
      %7592 = vmatpush1.bf16.msra.mxu0 %v6365
      %7593 = vmatprep.subr.bf16.mxu0 %v6334
      %7594 = vmatpush1.bf16.msra.mxu0 %v6333
      %7595 = vmatprep.subr.bf16.mxu0 %v6302
      %7596 = vmatpush1.bf16.msra.mxu0 %v6301
      %7597 = vmatprep.subr.bf16.mxu0 %v6270
      %7598 = vmatpush1.bf16.msra.mxu0 %v6269
      %7599 = vmatprep.subr.bf16.mxu0 %v6238
      %7600 = vmatpush1.bf16.msra.mxu0 %v6237
      %7601 = vmatprep.subr.bf16.mxu0 %v6206
      %7602 = vmatpush1.bf16.msra.mxu0 %v6205
      %7603 = vmatprep.subr.bf16.mxu0 %v6174
      %7604 = vmatpush1.bf16.msra.mxu0 %v6173
      %7605 = vmatprep.subr.bf16.mxu0 %v6654
      %7606 = vmatpush2.bf16.msra.mxu0 %v6653
      %7607 = vmatprep.subr.bf16.mxu0 %v6622
      %7608 = vmatpush2.bf16.msra.mxu0 %v6621
      %7609 = vmatprep.subr.bf16.mxu0 %v6590
      %7610 = vmatpush2.bf16.msra.mxu0 %v6589
      %7611 = vmatprep.subr.bf16.mxu0 %v6558
      %7612 = vmatpush2.bf16.msra.mxu0 %v6557
      %7613 = vmatprep.subr.bf16.mxu0 %v6526
      %7614 = vmatpush2.bf16.msra.mxu0 %v6525
      %7615 = vmatprep.subr.bf16.mxu0 %v6494
      %7616 = vmatpush2.bf16.msra.mxu0 %v6493
      %7617 = vmatprep.subr.bf16.mxu0 %v6462
      %7618 = vmatpush2.bf16.msra.mxu0 %v6461
      %7619 = vmatprep.subr.bf16.mxu0 %v6430
      %7620 = vmatpush2.bf16.msra.mxu0 %v6429
      %7621 = vmatprep.mubr.bf16.mxu0 %v4101
      %7622 = vmatmul.mubr.bf16.gmra.mxu0 %v4085
      %v7623 = vpop.f32.mrf.mxu0
      %v7624 = vadd.f32 0.0, %v7623
      %v7625 = vpop.f32.mrf.mxu0
      %v7626 = vadd.f32 0.0, %v7625
      %v7627 = vpop.f32.mrf.mxu0
      %v7628 = vadd.f32 0.0, %v7627
      %v7629 = vpop.f32.mrf.mxu0
      %v7630 = vadd.f32 0.0, %v7629
      %7631 = vmatprep.mubr.bf16.mxu0 %v4102
      %7632 = vmatmul.mubr.bf16.gmra.mxu0 %v4086
      %v7633 = vpop.f32.mrf.mxu0
      %v7634 = vadd.f32 0.0, %v7633
      %v7635 = vpop.f32.mrf.mxu0
      %v7636 = vadd.f32 0.0, %v7635
      %v7637 = vpop.f32.mrf.mxu0
      %v7638 = vpop.f32.mrf.mxu0
      %7639 = vdwg.mxu0
      %7640 = vmatprep.subr.bf16.mxu0 %v6400
      %7641 = vmatpush1.bf16.msra.mxu0 %v6399
      %7642 = vmatprep.subr.bf16.mxu0 %v6368
      %7643 = vmatpush1.bf16.msra.mxu0 %v6367
      %7644 = vmatprep.subr.bf16.mxu0 %v6336
      %7645 = vmatpush1.bf16.msra.mxu0 %v6335
      %7646 = vmatprep.subr.bf16.mxu0 %v6304
      %7647 = vmatpush1.bf16.msra.mxu0 %v6303
      %7648 = vmatprep.subr.bf16.mxu0 %v6272
      %7649 = vmatpush1.bf16.msra.mxu0 %v6271
      %7650 = vmatprep.subr.bf16.mxu0 %v6240
      %7651 = vmatpush1.bf16.msra.mxu0 %v6239
      %7652 = vmatprep.subr.bf16.mxu0 %v6208
      %7653 = vmatpush1.bf16.msra.mxu0 %v6207
      %7654 = vmatprep.subr.bf16.mxu0 %v6176
      %7655 = vmatpush1.bf16.msra.mxu0 %v6175
      %7656 = vmatprep.subr.bf16.mxu0 %v6656
      %7657 = vmatpush2.bf16.msra.mxu0 %v6655
      %7658 = vmatprep.subr.bf16.mxu0 %v6624
      %7659 = vmatpush2.bf16.msra.mxu0 %v6623
      %7660 = vmatprep.subr.bf16.mxu0 %v6592
      %7661 = vmatpush2.bf16.msra.mxu0 %v6591
      %7662 = vmatprep.subr.bf16.mxu0 %v6560
      %7663 = vmatpush2.bf16.msra.mxu0 %v6559
      %7664 = vmatprep.subr.bf16.mxu0 %v6528
      %7665 = vmatpush2.bf16.msra.mxu0 %v6527
      %7666 = vmatprep.subr.bf16.mxu0 %v6496
      %7667 = vmatpush2.bf16.msra.mxu0 %v6495
      %7668 = vmatprep.subr.bf16.mxu0 %v6464
      %7669 = vmatpush2.bf16.msra.mxu0 %v6463
      %7670 = vmatprep.subr.bf16.mxu0 %v6432
      %7671 = vmatpush2.bf16.msra.mxu0 %v6431
      %7672 = vmatprep.mubr.bf16.mxu0 %v4101
      %7673 = vmatmul.mubr.bf16.gmra.mxu0 %v4085
      %v7674 = vpop.f32.mrf.mxu0
      %v7675 = vadd.f32 0.0, %v7674
      %v7676 = vpop.f32.mrf.mxu0
      %v7677 = vadd.f32 0.0, %v7676
      %v7678 = vpop.f32.mrf.mxu0
      %v7679 = vadd.f32 0.0, %v7678
      %v7680 = vpop.f32.mrf.mxu0
      %v7681 = vadd.f32 0.0, %v7680
      %7682 = vmatprep.mubr.bf16.mxu0 %v4102
      %7683 = vmatmul.mubr.bf16.gmra.mxu0 %v4086
      %v7684 = vpop.f32.mrf.mxu0
      %v7685 = vadd.f32 0.0, %v7684
      %v7686 = vpop.f32.mrf.mxu0
      %v7687 = vadd.f32 0.0, %v7686
      %v7688 = vpop.f32.mrf.mxu0
      %v7689 = vpop.f32.mrf.mxu0
      %7690 = vdwg.mxu0
      %7691 = vmatprep.subr.bf16.mxu0 %v6402
      %7692 = vmatpush1.bf16.msra.mxu0 %v6401
      %7693 = vmatprep.subr.bf16.mxu0 %v6370
      %7694 = vmatpush1.bf16.msra.mxu0 %v6369
      %7695 = vmatprep.subr.bf16.mxu0 %v6338
      %7696 = vmatpush1.bf16.msra.mxu0 %v6337
      %7697 = vmatprep.subr.bf16.mxu0 %v6306
      %7698 = vmatpush1.bf16.msra.mxu0 %v6305
      %7699 = vmatprep.subr.bf16.mxu0 %v6274
      %7700 = vmatpush1.bf16.msra.mxu0 %v6273
      %7701 = vmatprep.subr.bf16.mxu0 %v6242
      %7702 = vmatpush1.bf16.msra.mxu0 %v6241
      %7703 = vmatprep.subr.bf16.mxu0 %v6210
      %7704 = vmatpush1.bf16.msra.mxu0 %v6209
      %7705 = vmatprep.subr.bf16.mxu0 %v6178
      %7706 = vmatpush1.bf16.msra.mxu0 %v6177
      %7707 = vmatprep.subr.bf16.mxu0 %v6658
      %7708 = vmatpush2.bf16.msra.mxu0 %v6657
      %7709 = vmatprep.subr.bf16.mxu0 %v6626
      %7710 = vmatpush2.bf16.msra.mxu0 %v6625
      %7711 = vmatprep.subr.bf16.mxu0 %v6594
      %7712 = vmatpush2.bf16.msra.mxu0 %v6593
      %7713 = vmatprep.subr.bf16.mxu0 %v6562
      %7714 = vmatpush2.bf16.msra.mxu0 %v6561
      %7715 = vmatprep.subr.bf16.mxu0 %v6530
      %7716 = vmatpush2.bf16.msra.mxu0 %v6529
      %7717 = vmatprep.subr.bf16.mxu0 %v6498
      %7718 = vmatpush2.bf16.msra.mxu0 %v6497
      %7719 = vmatprep.subr.bf16.mxu0 %v6466
      %7720 = vmatpush2.bf16.msra.mxu0 %v6465
      %7721 = vmatprep.subr.bf16.mxu0 %v6434
      %7722 = vmatpush2.bf16.msra.mxu0 %v6433
      %7723 = vmatprep.mubr.bf16.mxu0 %v4101
      %7724 = vmatmul.mubr.bf16.gmra.mxu0 %v4085
      %v7725 = vpop.f32.mrf.mxu0
      %v7726 = vadd.f32 0.0, %v7725
      %v7727 = vpop.f32.mrf.mxu0
      %v7728 = vadd.f32 0.0, %v7727
      %v7729 = vpop.f32.mrf.mxu0
      %v7730 = vadd.f32 0.0, %v7729
      %v7731 = vpop.f32.mrf.mxu0
      %v7732 = vadd.f32 0.0, %v7731
      %7733 = vmatprep.mubr.bf16.mxu0 %v4102
      %7734 = vmatmul.mubr.bf16.gmra.mxu0 %v4086
      %v7735 = vpop.f32.mrf.mxu0
      %v7736 = vadd.f32 0.0, %v7735
      %v7737 = vpop.f32.mrf.mxu0
      %v7738 = vadd.f32 0.0, %v7737
      %v7739 = vpop.f32.mrf.mxu0
      %v7740 = vpop.f32.mrf.mxu0
      %7741 = vdwg.mxu0
      %7742 = vmatprep.subr.bf16.mxu0 %v6404
      %7743 = vmatpush1.bf16.msra.mxu0 %v6403
      %7744 = vmatprep.subr.bf16.mxu0 %v6372
      %7745 = vmatpush1.bf16.msra.mxu0 %v6371
      %7746 = vmatprep.subr.bf16.mxu0 %v6340
      %7747 = vmatpush1.bf16.msra.mxu0 %v6339
      %7748 = vmatprep.subr.bf16.mxu0 %v6308
      %7749 = vmatpush1.bf16.msra.mxu0 %v6307
      %7750 = vmatprep.subr.bf16.mxu0 %v6276
      %7751 = vmatpush1.bf16.msra.mxu0 %v6275
      %7752 = vmatprep.subr.bf16.mxu0 %v6244
      %7753 = vmatpush1.bf16.msra.mxu0 %v6243
      %7754 = vmatprep.subr.bf16.mxu0 %v6212
      %7755 = vmatpush1.bf16.msra.mxu0 %v6211
      %7756 = vmatprep.subr.bf16.mxu0 %v6180
      %7757 = vmatpush1.bf16.msra.mxu0 %v6179
      %7758 = vmatprep.subr.bf16.mxu0 %v6660
      %7759 = vmatpush2.bf16.msra.mxu0 %v6659
      %7760 = vmatprep.subr.bf16.mxu0 %v6628
      %7761 = vmatpush2.bf16.msra.mxu0 %v6627
      %7762 = vmatprep.subr.bf16.mxu0 %v6596
      %7763 = vmatpush2.bf16.msra.mxu0 %v6595
      %7764 = vmatprep.subr.bf16.mxu0 %v6564
      %7765 = vmatpush2.bf16.msra.mxu0 %v6563
      %7766 = vmatprep.subr.bf16.mxu0 %v6532
      %7767 = vmatpush2.bf16.msra.mxu0 %v6531
      %7768 = vmatprep.subr.bf16.mxu0 %v6500
      %7769 = vmatpush2.bf16.msra.mxu0 %v6499
      %7770 = vmatprep.subr.bf16.mxu0 %v6468
      %7771 = vmatpush2.bf16.msra.mxu0 %v6467
      %7772 = vmatprep.subr.bf16.mxu0 %v6436
      %7773 = vmatpush2.bf16.msra.mxu0 %v6435
      %7774 = vmatprep.mubr.bf16.mxu0 %v4101
      %7775 = vmatmul.mubr.bf16.gmra.mxu0 %v4085
      %v7776 = vpop.f32.mrf.mxu0
      %v7777 = vadd.f32 0.0, %v7776
      %v7778 = vpop.f32.mrf.mxu0
      %v7779 = vadd.f32 0.0, %v7778
      %v7780 = vpop.f32.mrf.mxu0
      %v7781 = vadd.f32 0.0, %v7780
      %v7782 = vpop.f32.mrf.mxu0
      %v7783 = vadd.f32 0.0, %v7782
      %7784 = vmatprep.mubr.bf16.mxu0 %v4102
      %7785 = vmatmul.mubr.bf16.gmra.mxu0 %v4086
      %v7786 = vpop.f32.mrf.mxu0
      %v7787 = vadd.f32 0.0, %v7786
      %v7788 = vpop.f32.mrf.mxu0
      %v7789 = vadd.f32 0.0, %v7788
      %v7790 = vpop.f32.mrf.mxu0
      %v7791 = vpop.f32.mrf.mxu0
      %7792 = vdwg.mxu0
      %7793 = vmatprep.subr.bf16.mxu0 %v6406
      %7794 = vmatpush1.bf16.msra.mxu0 %v6405
      %7795 = vmatprep.subr.bf16.mxu0 %v6374
      %7796 = vmatpush1.bf16.msra.mxu0 %v6373
      %7797 = vmatprep.subr.bf16.mxu0 %v6342
      %7798 = vmatpush1.bf16.msra.mxu0 %v6341
      %7799 = vmatprep.subr.bf16.mxu0 %v6310
      %7800 = vmatpush1.bf16.msra.mxu0 %v6309
      %7801 = vmatprep.subr.bf16.mxu0 %v6278
      %7802 = vmatpush1.bf16.msra.mxu0 %v6277
      %7803 = vmatprep.subr.bf16.mxu0 %v6246
      %7804 = vmatpush1.bf16.msra.mxu0 %v6245
      %7805 = vmatprep.subr.bf16.mxu0 %v6214
      %7806 = vmatpush1.bf16.msra.mxu0 %v6213
      %7807 = vmatprep.subr.bf16.mxu0 %v6182
      %7808 = vmatpush1.bf16.msra.mxu0 %v6181
      %7809 = vmatprep.subr.bf16.mxu0 %v6662
      %7810 = vmatpush2.bf16.msra.mxu0 %v6661
      %7811 = vmatprep.subr.bf16.mxu0 %v6630
      %7812 = vmatpush2.bf16.msra.mxu0 %v6629
      %7813 = vmatprep.subr.bf16.mxu0 %v6598
      %7814 = vmatpush2.bf16.msra.mxu0 %v6597
      %7815 = vmatprep.subr.bf16.mxu0 %v6566
      %7816 = vmatpush2.bf16.msra.mxu0 %v6565
      %7817 = vmatprep.subr.bf16.mxu0 %v6534
      %7818 = vmatpush2.bf16.msra.mxu0 %v6533
      %7819 = vmatprep.subr.bf16.mxu0 %v6502
      %7820 = vmatpush2.bf16.msra.mxu0 %v6501
      %7821 = vmatprep.subr.bf16.mxu0 %v6470
      %7822 = vmatpush2.bf16.msra.mxu0 %v6469
      %7823 = vmatprep.subr.bf16.mxu0 %v6438
      %7824 = vmatpush2.bf16.msra.mxu0 %v6437
      %7825 = vmatprep.mubr.bf16.mxu0 %v4101
      %7826 = vmatmul.mubr.bf16.gmra.mxu0 %v4085
      %v7827 = vpop.f32.mrf.mxu0
      %v7828 = vadd.f32 0.0, %v7827
      %v7829 = vpop.f32.mrf.mxu0
      %v7830 = vadd.f32 0.0, %v7829
      %v7831 = vpop.f32.mrf.mxu0
      %v7832 = vadd.f32 0.0, %v7831
      %v7833 = vpop.f32.mrf.mxu0
      %v7834 = vadd.f32 0.0, %v7833
      %7835 = vmatprep.mubr.bf16.mxu0 %v4102
      %7836 = vmatmul.mubr.bf16.gmra.mxu0 %v4086
      %v7837 = vpop.f32.mrf.mxu0
      %v7838 = vadd.f32 0.0, %v7837
      %v7839 = vpop.f32.mrf.mxu0
      %v7840 = vadd.f32 0.0, %v7839
      %v7841 = vpop.f32.mrf.mxu0
      %v7842 = vpop.f32.mrf.mxu0
      %7843 = vdwg.mxu0
      %7844 = vmatprep.subr.bf16.mxu0 %v6408
      %7845 = vmatpush1.bf16.msra.mxu0 %v6407
      %7846 = vmatprep.subr.bf16.mxu0 %v6376
      %7847 = vmatpush1.bf16.msra.mxu0 %v6375
      %7848 = vmatprep.subr.bf16.mxu0 %v6344
      %7849 = vmatpush1.bf16.msra.mxu0 %v6343
      %7850 = vmatprep.subr.bf16.mxu0 %v6312
      %7851 = vmatpush1.bf16.msra.mxu0 %v6311
      %7852 = vmatprep.subr.bf16.mxu0 %v6280
      %7853 = vmatpush1.bf16.msra.mxu0 %v6279
      %7854 = vmatprep.subr.bf16.mxu0 %v6248
      %7855 = vmatpush1.bf16.msra.mxu0 %v6247
      %7856 = vmatprep.subr.bf16.mxu0 %v6216
      %7857 = vmatpush1.bf16.msra.mxu0 %v6215
      %7858 = vmatprep.subr.bf16.mxu0 %v6184
      %7859 = vmatpush1.bf16.msra.mxu0 %v6183
      %7860 = vmatprep.subr.bf16.mxu0 %v6664
      %7861 = vmatpush2.bf16.msra.mxu0 %v6663
      %7862 = vmatprep.subr.bf16.mxu0 %v6632
      %7863 = vmatpush2.bf16.msra.mxu0 %v6631
      %7864 = vmatprep.subr.bf16.mxu0 %v6600
      %7865 = vmatpush2.bf16.msra.mxu0 %v6599
      %7866 = vmatprep.subr.bf16.mxu0 %v6568
      %7867 = vmatpush2.bf16.msra.mxu0 %v6567
      %7868 = vmatprep.subr.bf16.mxu0 %v6536
      %7869 = vmatpush2.bf16.msra.mxu0 %v6535
      %7870 = vmatprep.subr.bf16.mxu0 %v6504
      %7871 = vmatpush2.bf16.msra.mxu0 %v6503
      %7872 = vmatprep.subr.bf16.mxu0 %v6472
      %7873 = vmatpush2.bf16.msra.mxu0 %v6471
      %7874 = vmatprep.subr.bf16.mxu0 %v6440
      %7875 = vmatpush2.bf16.msra.mxu0 %v6439
      %7876 = vmatprep.mubr.bf16.mxu0 %v4101
      %7877 = vmatmul.mubr.bf16.gmra.mxu0 %v4085
      %v7878 = vpop.f32.mrf.mxu0
      %v7879 = vadd.f32 0.0, %v7878
      %v7880 = vpop.f32.mrf.mxu0
      %v7881 = vadd.f32 0.0, %v7880
      %v7882 = vpop.f32.mrf.mxu0
      %v7883 = vadd.f32 0.0, %v7882
      %v7884 = vpop.f32.mrf.mxu0
      %v7885 = vadd.f32 0.0, %v7884
      %7886 = vmatprep.mubr.bf16.mxu0 %v4102
      %7887 = vmatmul.mubr.bf16.gmra.mxu0 %v4086
      %v7888 = vpop.f32.mrf.mxu0
      %v7889 = vadd.f32 0.0, %v7888
      %v7890 = vpop.f32.mrf.mxu0
      %v7891 = vadd.f32 0.0, %v7890
      %v7892 = vpop.f32.mrf.mxu0
      %v7893 = vpop.f32.mrf.mxu0
      %7894 = vdwg.mxu0
      %7895 = vmatprep.subr.bf16.mxu0 %v6410
      %7896 = vmatpush1.bf16.msra.mxu0 %v6409
      %7897 = vmatprep.subr.bf16.mxu0 %v6378
      %7898 = vmatpush1.bf16.msra.mxu0 %v6377
      %7899 = vmatprep.subr.bf16.mxu0 %v6346
      %7900 = vmatpush1.bf16.msra.mxu0 %v6345
      %7901 = vmatprep.subr.bf16.mxu0 %v6314
      %7902 = vmatpush1.bf16.msra.mxu0 %v6313
      %7903 = vmatprep.subr.bf16.mxu0 %v6282
      %7904 = vmatpush1.bf16.msra.mxu0 %v6281
      %7905 = vmatprep.subr.bf16.mxu0 %v6250
      %7906 = vmatpush1.bf16.msra.mxu0 %v6249
      %7907 = vmatprep.subr.bf16.mxu0 %v6218
      %7908 = vmatpush1.bf16.msra.mxu0 %v6217
      %7909 = vmatprep.subr.bf16.mxu0 %v6186
      %7910 = vmatpush1.bf16.msra.mxu0 %v6185
      %7911 = vmatprep.subr.bf16.mxu0 %v6666
      %7912 = vmatpush2.bf16.msra.mxu0 %v6665
      %7913 = vmatprep.subr.bf16.mxu0 %v6634
      %7914 = vmatpush2.bf16.msra.mxu0 %v6633
      %7915 = vmatprep.subr.bf16.mxu0 %v6602
      %7916 = vmatpush2.bf16.msra.mxu0 %v6601
      %7917 = vmatprep.subr.bf16.mxu0 %v6570
      %7918 = vmatpush2.bf16.msra.mxu0 %v6569
      %7919 = vmatprep.subr.bf16.mxu0 %v6538
      %7920 = vmatpush2.bf16.msra.mxu0 %v6537
      %7921 = vmatprep.subr.bf16.mxu0 %v6506
      %7922 = vmatpush2.bf16.msra.mxu0 %v6505
      %7923 = vmatprep.subr.bf16.mxu0 %v6474
      %7924 = vmatpush2.bf16.msra.mxu0 %v6473
      %7925 = vmatprep.subr.bf16.mxu0 %v6442
      %7926 = vmatpush2.bf16.msra.mxu0 %v6441
      %7927 = vmatprep.mubr.bf16.mxu0 %v4101
      %7928 = vmatmul.mubr.bf16.gmra.mxu0 %v4085
      %v7929 = vpop.f32.mrf.mxu0
      %v7930 = vadd.f32 0.0, %v7929
      %v7931 = vpop.f32.mrf.mxu0
      %v7932 = vadd.f32 0.0, %v7931
      %v7933 = vpop.f32.mrf.mxu0
      %v7934 = vadd.f32 0.0, %v7933
      %v7935 = vpop.f32.mrf.mxu0
      %v7936 = vadd.f32 0.0, %v7935
      %7937 = vmatprep.mubr.bf16.mxu0 %v4102
      %7938 = vmatmul.mubr.bf16.gmra.mxu0 %v4086
      %v7939 = vpop.f32.mrf.mxu0
      %v7940 = vadd.f32 0.0, %v7939
      %v7941 = vpop.f32.mrf.mxu0
      %v7942 = vadd.f32 0.0, %v7941
      %v7943 = vpop.f32.mrf.mxu0
      %v7944 = vpop.f32.mrf.mxu0
      %7945 = vdwg.mxu0
      %7946 = vmatprep.subr.bf16.mxu0 %v6412
      %7947 = vmatpush1.bf16.msra.mxu0 %v6411
      %7948 = vmatprep.subr.bf16.mxu0 %v6380
      %7949 = vmatpush1.bf16.msra.mxu0 %v6379
      %7950 = vmatprep.subr.bf16.mxu0 %v6348
      %7951 = vmatpush1.bf16.msra.mxu0 %v6347
      %7952 = vmatprep.subr.bf16.mxu0 %v6316
      %7953 = vmatpush1.bf16.msra.mxu0 %v6315
      %7954 = vmatprep.subr.bf16.mxu0 %v6284
      %7955 = vmatpush1.bf16.msra.mxu0 %v6283
      %7956 = vmatprep.subr.bf16.mxu0 %v6252
      %7957 = vmatpush1.bf16.msra.mxu0 %v6251
      %7958 = vmatprep.subr.bf16.mxu0 %v6220
      %7959 = vmatpush1.bf16.msra.mxu0 %v6219
      %7960 = vmatprep.subr.bf16.mxu0 %v6188
      %7961 = vmatpush1.bf16.msra.mxu0 %v6187
      %7962 = vmatprep.subr.bf16.mxu0 %v6668
      %7963 = vmatpush2.bf16.msra.mxu0 %v6667
      %7964 = vmatprep.subr.bf16.mxu0 %v6636
      %7965 = vmatpush2.bf16.msra.mxu0 %v6635
      %7966 = vmatprep.subr.bf16.mxu0 %v6604
      %7967 = vmatpush2.bf16.msra.mxu0 %v6603
      %7968 = vmatprep.subr.bf16.mxu0 %v6572
      %7969 = vmatpush2.bf16.msra.mxu0 %v6571
      %7970 = vmatprep.subr.bf16.mxu0 %v6540
      %7971 = vmatpush2.bf16.msra.mxu0 %v6539
      %7972 = vmatprep.subr.bf16.mxu0 %v6508
      %7973 = vmatpush2.bf16.msra.mxu0 %v6507
      %7974 = vmatprep.subr.bf16.mxu0 %v6476
      %7975 = vmatpush2.bf16.msra.mxu0 %v6475
      %7976 = vmatprep.subr.bf16.mxu0 %v6444
      %7977 = vmatpush2.bf16.msra.mxu0 %v6443
      %7978 = vmatprep.mubr.bf16.mxu0 %v4101
      %7979 = vmatmul.mubr.bf16.gmra.mxu0 %v4085
      %v7980 = vpop.f32.mrf.mxu0
      %v7981 = vadd.f32 0.0, %v7980
      %v7982 = vpop.f32.mrf.mxu0
      %v7983 = vadd.f32 0.0, %v7982
      %v7984 = vpop.f32.mrf.mxu0
      %v7985 = vadd.f32 0.0, %v7984
      %v7986 = vpop.f32.mrf.mxu0
      %v7987 = vadd.f32 0.0, %v7986
      %7988 = vmatprep.mubr.bf16.mxu0 %v4102
      %7989 = vmatmul.mubr.bf16.gmra.mxu0 %v4086
      %v7990 = vpop.f32.mrf.mxu0
      %v7991 = vadd.f32 0.0, %v7990
      %v7992 = vpop.f32.mrf.mxu0
      %v7993 = vadd.f32 0.0, %v7992
      %v7994 = vpop.f32.mrf.mxu0
      %v7995 = vpop.f32.mrf.mxu0
      %7996 = vdwg.mxu0
      %7997 = vst [vmem:[%s197] sm:$0xff] %v7216
      %7998 = vst [vmem:[%s197 + $0x8] sm:$0xff] %v7218
      %7999 = vst [vmem:[%s197 + $0x10] sm:$0xff] %v7267
      %8000 = vst [vmem:[%s197 + $0x18] sm:$0xff] %v7269
      %8001 = vst [vmem:[%s197 + $0x20] sm:$0xff] %v7318
      %8002 = vst [vmem:[%s197 + $0x28] sm:$0xff] %v7320
      %8003 = vst [vmem:[%s197 + $0x30] sm:$0xff] %v7369
      %8004 = vst [vmem:[%s197 + $0x38] sm:$0xff] %v7371
      %8005 = vst [vmem:[%s197 + $0x40] sm:$0xff] %v7420
      %8006 = vst [vmem:[%s197 + $0x48] sm:$0xff] %v7422
      %8007 = vst [vmem:[%s197 + $0x50] sm:$0xff] %v7471
      %8008 = vst [vmem:[%s197 + $0x58] sm:$0xff] %v7473
      %8009 = vst [vmem:[%s197 + $0x60] sm:$0xff] %v7522
      %8010 = vst [vmem:[%s197 + $0x68] sm:$0xff] %v7524
      %8011 = vst [vmem:[%s197 + $0x70] sm:$0xff] %v7573
      %8012 = vst [vmem:[%s197 + $0x78] sm:$0xff] %v7575
      %8013 = vst [vmem:[%s197 + $0x80] sm:$0xff] %v7624
      %8014 = vst [vmem:[%s197 + $0x88] sm:$0xff] %v7626
      %8015 = vst [vmem:[%s197 + $0x90] sm:$0xff] %v7675
      %8016 = vst [vmem:[%s197 + $0x98] sm:$0xff] %v7677
      %8017 = vst [vmem:[%s197 + $0xa0] sm:$0xff] %v7726
      %8018 = vst [vmem:[%s197 + $0xa8] sm:$0xff] %v7728
      %8019 = vst [vmem:[%s197 + $0xb0] sm:$0xff] %v7777
      %8020 = vst [vmem:[%s197 + $0xb8] sm:$0xff] %v7779
      %8021 = vst [vmem:[%s197 + $0xc0] sm:$0xff] %v7828
      %8022 = vst [vmem:[%s197 + $0xc8] sm:$0xff] %v7830
      %8023 = vst [vmem:[%s197 + $0xd0] sm:$0xff] %v7879
      %8024 = vst [vmem:[%s197 + $0xd8] sm:$0xff] %v7881
      %8025 = vst [vmem:[%s197 + $0xe0] sm:$0xff] %v7930
      %8026 = vst [vmem:[%s197 + $0xe8] sm:$0xff] %v7932
      %8027 = vst [vmem:[%s197 + $0xf0] sm:$0xff] %v7981
      %8028 = vst [vmem:[%s197 + $0xf8] sm:$0xff] %v7983
      %8029 = vst [vmem:[%s197 + $0x100] sm:$0xff] %v7220
      %8030 = vst [vmem:[%s197 + $0x108] sm:$0xff] %v7222
      %8031 = vst [vmem:[%s197 + $0x110] sm:$0xff] %v7271
      %8032 = vst [vmem:[%s197 + $0x118] sm:$0xff] %v7273
      %8033 = vst [vmem:[%s197 + $0x120] sm:$0xff] %v7322
      %8034 = vst [vmem:[%s197 + $0x128] sm:$0xff] %v7324
      %8035 = vst [vmem:[%s197 + $0x130] sm:$0xff] %v7373
      %8036 = vst [vmem:[%s197 + $0x138] sm:$0xff] %v7375
      %8037 = vst [vmem:[%s197 + $0x140] sm:$0xff] %v7424
      %8038 = vst [vmem:[%s197 + $0x148] sm:$0xff] %v7426
      %8039 = vst [vmem:[%s197 + $0x150] sm:$0xff] %v7475
      %8040 = vst [vmem:[%s197 + $0x158] sm:$0xff] %v7477
      %8041 = vst [vmem:[%s197 + $0x160] sm:$0xff] %v7526
      %8042 = vst [vmem:[%s197 + $0x168] sm:$0xff] %v7528
      %8043 = vst [vmem:[%s197 + $0x170] sm:$0xff] %v7577
      %8044 = vst [vmem:[%s197 + $0x178] sm:$0xff] %v7579
      %8045 = vst [vmem:[%s197 + $0x180] sm:$0xff] %v7628
      %8046 = vst [vmem:[%s197 + $0x188] sm:$0xff] %v7630
      %8047 = vst [vmem:[%s197 + $0x190] sm:$0xff] %v7679
      %8048 = vst [vmem:[%s197 + $0x198] sm:$0xff] %v7681
      %8049 = vst [vmem:[%s197 + $0x1a0] sm:$0xff] %v7730
      %8050 = vst [vmem:[%s197 + $0x1a8] sm:$0xff] %v7732
      %8051 = vst [vmem:[%s197 + $0x1b0] sm:$0xff] %v7781
      %8052 = vst [vmem:[%s197 + $0x1b8] sm:$0xff] %v7783
      %8053 = vst [vmem:[%s197 + $0x1c0] sm:$0xff] %v7832
      %8054 = vst [vmem:[%s197 + $0x1c8] sm:$0xff] %v7834
      %8055 = vst [vmem:[%s197 + $0x1d0] sm:$0xff] %v7883
      %8056 = vst [vmem:[%s197 + $0x1d8] sm:$0xff] %v7885
      %8057 = vst [vmem:[%s197 + $0x1e0] sm:$0xff] %v7934
      %8058 = vst [vmem:[%s197 + $0x1e8] sm:$0xff] %v7936
      %8059 = vst [vmem:[%s197 + $0x1f0] sm:$0xff] %v7985
      %8060 = vst [vmem:[%s197 + $0x1f8] sm:$0xff] %v7987
      %8061 = vst [vmem:[%s197 + $0x200] sm:$0xf] %v7226
      %8062 = vst [vmem:[%s197 + $0x208] sm:$0xf] %v7228
      %8063 = vst [vmem:[%s197 + $0x210] sm:$0xf] %v7277
      %8064 = vst [vmem:[%s197 + $0x218] sm:$0xf] %v7279
      %8065 = vst [vmem:[%s197 + $0x220] sm:$0xf] %v7328
      %8066 = vst [vmem:[%s197 + $0x228] sm:$0xf] %v7330
      %8067 = vst [vmem:[%s197 + $0x230] sm:$0xf] %v7379
      %8068 = vst [vmem:[%s197 + $0x238] sm:$0xf] %v7381
      %8069 = vst [vmem:[%s197 + $0x240] sm:$0xf] %v7430
      %8070 = vst [vmem:[%s197 + $0x248] sm:$0xf] %v7432
      %8071 = vst [vmem:[%s197 + $0x250] sm:$0xf] %v7481
      %8072 = vst [vmem:[%s197 + $0x258] sm:$0xf] %v7483
      %8073 = vst [vmem:[%s197 + $0x260] sm:$0xf] %v7532
      %8074 = vst [vmem:[%s197 + $0x268] sm:$0xf] %v7534
      %8075 = vst [vmem:[%s197 + $0x270] sm:$0xf] %v7583
      %8076 = vst [vmem:[%s197 + $0x278] sm:$0xf] %v7585
      %8077 = vst [vmem:[%s197 + $0x280] sm:$0xf] %v7634
      %8078 = vst [vmem:[%s197 + $0x288] sm:$0xf] %v7636
      %8079 = vst [vmem:[%s197 + $0x290] sm:$0xf] %v7685
      %8080 = vst [vmem:[%s197 + $0x298] sm:$0xf] %v7687
      %8081 = vst [vmem:[%s197 + $0x2a0] sm:$0xf] %v7736
      %8082 = vst [vmem:[%s197 + $0x2a8] sm:$0xf] %v7738
      %8083 = vst [vmem:[%s197 + $0x2b0] sm:$0xf] %v7787
      %8084 = vst [vmem:[%s197 + $0x2b8] sm:$0xf] %v7789
      %8085 = vst [vmem:[%s197 + $0x2c0] sm:$0xf] %v7838
      %8086 = vst [vmem:[%s197 + $0x2c8] sm:$0xf] %v7840
      %8087 = vst [vmem:[%s197 + $0x2d0] sm:$0xf] %v7889
      %8088 = vst [vmem:[%s197 + $0x2d8] sm:$0xf] %v7891
      %8089 = vst [vmem:[%s197 + $0x2e0] sm:$0xf] %v7940
      %8090 = vst [vmem:[%s197 + $0x2e8] sm:$0xf] %v7942
      %8091 = vst [vmem:[%s197 + $0x2f0] sm:$0xf] %v7991
      %8092 = vst [vmem:[%s197 + $0x2f8] sm:$0xf] %v7993
      %p8093 = scmp.lt.s32.totalorder %s15, 1
      %s8094 = scalar_select %p8093, %s15, 1
      %s8095 = smul.addr %s8094, 96
      %s8096 = smul.addr %s8095, 8
      %s8097 = scalar_lea.vmem %s4, %s8096
      // Predicated region
      $region37: #{task_output_layer.1} parent=35 // pred_check
        %p8098 = pneg %p122
      $region38: #{task_output_layer.1} parent=35 // pred_check_branch
        %8100 = sbr.rel (%p8098) target = $region40
      $region39: #{task_output_layer.1} parent=35 // pred_region
        _
      $region40: #{task_output_layer.1} parent=35 // pred_fallthru
        _
    $region36: #{task_output_layer.1} parent=5 // pred_fallthru
      _
    %p8101 = scmp.le.s32.totalorder 2, %s10
    // Predicated region
    $region41: #{task_output_layer.1} parent=5 // pred_check
      %p8102 = pneg %p8101
    $region42: #{task_output_layer.1} parent=5 // pred_check_branch
      %8104 = sbr.rel (%p8102) target = $region44
    $region43: #{task_output_layer.1} parent=5 // pred_region
      %s8105 = ssub.s32 %s10, 2
      // Predicated region
      $region45: #{task_output_layer.1} parent=43 // pred_check
        %p8106 = pneg %p128
      $region46: #{task_output_layer.1} parent=43 // pred_check_branch
        %8108 = sbr.rel (%p8106) target = $region48
      $region47: #{task_output_layer.1} parent=43 // pred_region
        %p8109 = scmp.lt.s32.totalorder %s16, 1
        %s8110 = scalar_select %p8109, %s16, 1
        %s8111 = smul.addr %s8110, 96
        %s8112 = smul.addr %s8111, 8
        %s8113 = scalar_lea.vmem %s4, %s8112
      $region48: #{task_output_layer.1} parent=43 // pred_fallthru
        _
    $region44: #{task_output_layer.1} parent=5 // pred_fallthru
      _
  $region6: #{task_output_layer.1} parent=0 // loop_footer
    %s14 = sadd.s32 1, %s10
  $region7: #{task_output_layer.1} parent=0 // loop_footer_branch
    %9 = sbr.rel target = $region3
  $region8: #{task_output_layer.1} parent=0 // loop_exit
    _

</llo_original>
